<compile_context>
chip_gen: v6e
topology: v6e:2x2x1
jax: 0.10.0
libtpu: 0.0.40
codegen_flags: <defaults>
</compile_context>

<pallas_src>
import functools
import math

import jax
import jax.numpy as jnp
from jax import lax
from jax.experimental import pallas as pl
from jax.experimental.pallas import tpu as pltpu


def _round_up(x, m):
    return (x + m - 1) // m * m


def _denoise_kernel(x_ref, w1_ref, b1_ref, w2_ref, b2_ref, w3_ref, b3_ref,
                    mask_ref, o_ref, h_ref, *, M, W_pad, margin):
    """Fused conv3x3+ReLU -> conv3x3+ReLU -> conv3x3 for one image.

    Layout: activations are flat matrices (rows = padded pixel positions in
    row-major (H+2)x(W+2) order (+ tail pad to M), cols = channels).  A 3x3
    conv is one matmul against the 9-tap slab whose tap t=(kh,kw) is the
    activation matrix shifted by d_t = (kh-1)*(W+2) + (kw-1) rows.  `margin`
    extra rows above/below the M-row window make every tap a plain static
    slice; rows that would be polluted by the (uninitialized) margins are
    exactly the non-interior rows, which get zeroed by `mask` (layers 1/2)
    or stripped by the wrapper (layer 3).

    x_ref : (1, R, CINP) bf16  flat, zero-padded input (R = M + 2*margin)
    w*_ref: (9*Cin, Cout) bf16 tap-major packed weights
    b*_ref: (1, Cout)      f32
    mask  : (M, 1)         f32  1.0 on interior pixel rows, else 0.0
    o_ref : (1, M, COUT)
    h_ref : (R, C) bf16 VMEM scratch, reused for h1 and h2 (never zeroed)
    """
    offsets = [(kh - 1) * W_pad + (kw - 1)
               for kh in range(3) for kw in range(3)]

    def conv(read_tap, w_ref, b_ref):
        # One K-dense MXU matmul per layer: 9 row-shifted taps concatenated
        # along channels, single jnp.dot, f32 accumulation.
        slab = jnp.concatenate([read_tap(d) for d in offsets], axis=-1)
        return jnp.dot(slab, w_ref[...],
                       preferred_element_type=jnp.float32) + b_ref[...]

    keep = mask_ref[...] != 0.0                    # (M, 1) interior-row mask

    # Layer 1 (+ReLU): taps read straight from the pre-padded bf16 input.
    a1 = conv(lambda d: x_ref[0, margin + d:margin + d + M, :],
              w1_ref, b1_ref)
    h_ref[margin:margin + M, :] = jnp.where(
        keep, jnp.maximum(a1, 0.0), 0.0).astype(h_ref.dtype)

    # Layer 2 (+ReLU): VMEM-resident bf16 intermediate; same scratch reused
    # (the store depends on the tap reads, so ordering is safe).
    a2 = conv(lambda d: h_ref[margin + d:margin + d + M, :],
              w2_ref, b2_ref)
    h_ref[margin:margin + M, :] = jnp.where(
        keep, jnp.maximum(a2, 0.0), 0.0).astype(h_ref.dtype)

    # Layer 3 (no ReLU): non-interior rows are garbage; wrapper strips them.
    a3 = conv(lambda d: h_ref[margin + d:margin + d + M, :],
              w3_ref, b3_ref)
    o_ref[...] = a3.reshape(1, M, -1).astype(o_ref.dtype)


@jax.jit
def denoise_forward(x_nchw, params):
    """Denoise forward. Input/output NCHW like the PyTorch module."""
    (w1, b1), (w2, b2), (w3, b3) = params
    N, Cin, H, W = x_nchw.shape
    C = w1.shape[-1]
    Cout = w3.shape[-1]

    Hp, Wp = H + 2, W + 2
    P = Hp * Wp                          # flat padded pixel positions
    M = _round_up(P, 8)                  # rows computed per image (aligned)
    margin = _round_up(Wp + 1, 8)        # >= max |tap shift|, 8-aligned
    R = margin + M + margin              # rows in the flat input / scratch
    cin_p = _round_up(Cin, 128)          # lane-dense layer-1 channels

    # ---- input: NCHW -> flat (N, R, cin_p) bf16 with zero halo/margins ----
    # (NCHW interface is kept to match the module; if the surrounding model
    #  can stay channels-last these layout passes disappear.)
    x = jnp.transpose(x_nchw, (0, 2, 3, 1))                      # NHWC
    x = jnp.pad(x, ((0, 0), (1, 1), (1, 1), (0, 0)))             # spatial halo
    x = x.reshape(N, P, Cin)
    x = jnp.pad(x, ((0, 0), (margin, R - P - margin), (0, cin_p - Cin)))
    x = x.astype(jnp.bfloat16)

    # ---- weights: (3,3,Cin,Cout) -> (9*Cin, Cout) bf16, tap-major rows ----
    w1p = jnp.pad(w1, ((0, 0), (0, 0), (0, cin_p - Cin), (0, 0)))
    w1p = w1p.reshape(9 * cin_p, C).astype(jnp.bfloat16)
    w2p = w2.reshape(9 * C, C).astype(jnp.bfloat16)
    w3p = w3.reshape(9 * C, Cout).astype(jnp.bfloat16)
    b1p = b1.reshape(1, C).astype(jnp.float32)
    b2p = b2.reshape(1, C).astype(jnp.float32)
    b3p = b3.reshape(1, Cout).astype(jnp.float32)

    # ---- interior mask over the M computed rows (1 = real interior pixel) --
    r = jnp.arange(M, dtype=jnp.int32)
    i, j = r // Wp, r % Wp
    interior = (r < P) & (i >= 1) & (i <= H) & (j >= 1) & (j <= W)
    mask = interior.astype(jnp.float32).reshape(M, 1)

    kernel = functools.partial(_denoise_kernel, M=M, W_pad=Wp, margin=margin)
    out_flat = pl.pallas_call(
        kernel,
        out_shape=jax.ShapeDtypeStruct((N, M, Cout), x_nchw.dtype),
        grid=(N,),
        in_specs=[
            pl.BlockSpec((1, R, cin_p), lambda n: (n, 0, 0)),   # x (flat)
            pl.BlockSpec((9 * cin_p, C), lambda n: (0, 0)),     # w1
            pl.BlockSpec((1, C), lambda n: (0, 0)),             # b1
            pl.BlockSpec((9 * C, C), lambda n: (0, 0)),         # w2
            pl.BlockSpec((1, C), lambda n: (0, 0)),             # b2
            pl.BlockSpec((9 * C, Cout), lambda n: (0, 0)),      # w3
            pl.BlockSpec((1, Cout), lambda n: (0, 0)),          # b3
            pl.BlockSpec((M, 1), lambda n: (0, 0)),             # interior mask
        ],
        out_specs=pl.BlockSpec((1, M, Cout), lambda n: (n, 0, 0)),
        scratch_shapes=[pltpu.VMEM((R, C), jnp.bfloat16)],      # h1/h2 (reused)
        compiler_params=pltpu.CompilerParams(
            dimension_semantics=("parallel",)),
    )(x, w1p, b1p, w2p, b2p, w3p, b3p, mask)

    # Strip tail pad + halo, back to NCHW.
    out = out_flat[:, :P, :].reshape(N, Hp, Wp, Cout)[:, 1:H + 1, 1:W + 1, :]
    return jnp.transpose(out, (0, 3, 1, 2))


def init_conv_params(key, cin, cout, k=3):
    """PyTorch-default-style uniform init. Returns ((3,3,Cin,Cout), (Cout,))."""
    w_key, b_key = jax.random.split(key)
    bound = 1.0 / math.sqrt(cin * k * k)
    w = jax.random.uniform(w_key, (k, k, cin, cout), jnp.float32, -bound, bound)
    b = jax.random.uniform(b_key, (cout,), jnp.float32, -bound, bound)
    return w, b


def _reference_conv3x3(x_nhwc, w, b, relu):
    y = lax.conv_general_dilated(
        x_nhwc, w, window_strides=(1, 1), padding="SAME",
        dimension_numbers=("NHWC", "HWIO", "NHWC"))
    y = y + b[None, None, None, :]
    return jnp.maximum(y, 0.0) if relu else y


def _reference_forward(x_nchw, params):
    (w1, b1), (w2, b2), (w3, b3) = params
    x = jnp.transpose(x_nchw, (0, 2, 3, 1))
    h1 = _reference_conv3x3(x, w1, b1, True)
    h2 = _reference_conv3x3(h1, w2, b2, True)
    out = _reference_conv3x3(h2, w3, b3, False)
    return jnp.transpose(out, (0, 3, 1, 2))


if __name__ == "__main__":
    # Module-implied channel sizes: n=4 -> cin=21*4=84, c=cout=16*4=64.
    N, CIN, H, W = 2, 84, 16, 16
    C, COUT = 64, 64

    key = jax.random.PRNGKey(0)
    kx, k1, k2, k3 = jax.random.split(key, 4)

    x = jax.random.normal(kx, (N, CIN, H, W), jnp.float32)
    params = (
        init_conv_params(k1, CIN, C),
        init_conv_params(k2, C, C),
        init_conv_params(k3, C, COUT),
    )

    out = jax.block_until_ready(denoise_forward(x, params))
    assert out.shape == (N, COUT, H, W), out.shape

    ref = jax.block_until_ready(_reference_forward(x, params))
    err = float(jnp.max(jnp.abs(out - ref)))
    # bf16 MXU operands with f32 accumulation: tolerance relaxed vs the pure
    # f32 version (a real indexing/packing bug would be O(0.1..1), not O(1e-2)).
    assert jnp.allclose(out, ref, atol=5e-2, rtol=5e-2), \
        f"mismatch, max|d|={err}"

    print("KERNEL_OK")
</pallas_src>

<mosaic_0001>
module attributes {stable_mosaic.version = 11 : i64} {
  func.func @_denoise_kernel(%arg0: i32, %arg1: memref<1x376x128xbf16, #tpu.memory_space<vmem>>, %arg2: memref<1152x64xbf16, #tpu.memory_space<vmem>>, %arg3: memref<1x64xf32, #tpu.memory_space<vmem>>, %arg4: memref<576x64xbf16, #tpu.memory_space<vmem>>, %arg5: memref<1x64xf32, #tpu.memory_space<vmem>>, %arg6: memref<576x64xbf16, #tpu.memory_space<vmem>>, %arg7: memref<1x64xf32, #tpu.memory_space<vmem>>, %arg8: memref<328x1xf32, #tpu.memory_space<vmem>>, %arg9: memref<1x328x64xf32, #tpu.memory_space<vmem>>, %arg10: memref<376x64xbf16, #tpu.memory_space<vmem>>) attributes {dimension_semantics = [#tpu.dimension_semantics<parallel>], iteration_bounds = array<i64: 2>, scalar_prefetch = 0 : i64, scratch_operands = 1 : i64, tpu.core_type = #tpu.core_type<tc>, window_params = [{transform_indices = @transform_0, window_bounds = array<i64: 1, 376, 128>}, {pipeline_mode = #tpu.pipeline_mode<synchronous>, transform_indices = @transform_1, window_bounds = array<i64: 1152, 64>}, {pipeline_mode = #tpu.pipeline_mode<synchronous>, transform_indices = @transform_2, window_bounds = array<i64: 1, 64>}, {pipeline_mode = #tpu.pipeline_mode<synchronous>, transform_indices = @transform_3, window_bounds = array<i64: 576, 64>}, {pipeline_mode = #tpu.pipeline_mode<synchronous>, transform_indices = @transform_4, window_bounds = array<i64: 1, 64>}, {pipeline_mode = #tpu.pipeline_mode<synchronous>, transform_indices = @transform_5, window_bounds = array<i64: 576, 64>}, {pipeline_mode = #tpu.pipeline_mode<synchronous>, transform_indices = @transform_6, window_bounds = array<i64: 1, 64>}, {pipeline_mode = #tpu.pipeline_mode<synchronous>, transform_indices = @transform_7, window_bounds = array<i64: 328, 1>}, {transform_indices = @transform_8, window_bounds = array<i64: 1, 328, 64>}]} {
    %c0 = arith.constant 0 : index
    %c0_0 = arith.constant 0 : index
    %0 = vector.load %arg8[%c0, %c0_0] : memref<328x1xf32, #tpu.memory_space<vmem>>, vector<328x1xf32>
    %cst = arith.constant 0.000000e+00 : f32
    %1 = vector.broadcast %cst : f32 to vector<328x1xf32>
    %2 = arith.cmpf one, %0, %1 : vector<328x1xf32>
    %c0_1 = arith.constant 0 : index
    %c5 = arith.constant 5 : index
    %c0_2 = arith.constant 0 : index
    %3 = vector.load %arg1[%c0_1, %c5, %c0_2] : memref<1x376x128xbf16, #tpu.memory_space<vmem>>, vector<1x328x128xbf16>
    %4 = vector.shape_cast %3 : vector<1x328x128xbf16> to vector<328x128xbf16>
    %c0_3 = arith.constant 0 : index
    %c6 = arith.constant 6 : index
    %c0_4 = arith.constant 0 : index
    %5 = vector.load %arg1[%c0_3, %c6, %c0_4] : memref<1x376x128xbf16, #tpu.memory_space<vmem>>, vector<1x328x128xbf16>
    %6 = vector.shape_cast %5 : vector<1x328x128xbf16> to vector<328x128xbf16>
    %c0_5 = arith.constant 0 : index
    %c7 = arith.constant 7 : index
    %c0_6 = arith.constant 0 : index
    %7 = vector.load %arg1[%c0_5, %c7, %c0_6] : memref<1x376x128xbf16, #tpu.memory_space<vmem>>, vector<1x328x128xbf16>
    %8 = vector.shape_cast %7 : vector<1x328x128xbf16> to vector<328x128xbf16>
    %c0_7 = arith.constant 0 : index
    %c23 = arith.constant 23 : index
    %c0_8 = arith.constant 0 : index
    %9 = vector.load %arg1[%c0_7, %c23, %c0_8] : memref<1x376x128xbf16, #tpu.memory_space<vmem>>, vector<1x328x128xbf16>
    %10 = vector.shape_cast %9 : vector<1x328x128xbf16> to vector<328x128xbf16>
    %c0_9 = arith.constant 0 : index
    %c24 = arith.constant 24 : index
    %c0_10 = arith.constant 0 : index
    %11 = vector.load %arg1[%c0_9, %c24, %c0_10] : memref<1x376x128xbf16, #tpu.memory_space<vmem>>, vector<1x328x128xbf16>
    %12 = vector.shape_cast %11 : vector<1x328x128xbf16> to vector<328x128xbf16>
    %c0_11 = arith.constant 0 : index
    %c25 = arith.constant 25 : index
    %c0_12 = arith.constant 0 : index
    %13 = vector.load %arg1[%c0_11, %c25, %c0_12] : memref<1x376x128xbf16, #tpu.memory_space<vmem>>, vector<1x328x128xbf16>
    %14 = vector.shape_cast %13 : vector<1x328x128xbf16> to vector<328x128xbf16>
    %c0_13 = arith.constant 0 : index
    %c41 = arith.constant 41 : index
    %c0_14 = arith.constant 0 : index
    %15 = vector.load %arg1[%c0_13, %c41, %c0_14] : memref<1x376x128xbf16, #tpu.memory_space<vmem>>, vector<1x328x128xbf16>
    %16 = vector.shape_cast %15 : vector<1x328x128xbf16> to vector<328x128xbf16>
    %c0_15 = arith.constant 0 : index
    %c42 = arith.constant 42 : index
    %c0_16 = arith.constant 0 : index
    %17 = vector.load %arg1[%c0_15, %c42, %c0_16] : memref<1x376x128xbf16, #tpu.memory_space<vmem>>, vector<1x328x128xbf16>
    %18 = vector.shape_cast %17 : vector<1x328x128xbf16> to vector<328x128xbf16>
    %c0_17 = arith.constant 0 : index
    %c43 = arith.constant 43 : index
    %c0_18 = arith.constant 0 : index
    %19 = vector.load %arg1[%c0_17, %c43, %c0_18] : memref<1x376x128xbf16, #tpu.memory_space<vmem>>, vector<1x328x128xbf16>
    %20 = vector.shape_cast %19 : vector<1x328x128xbf16> to vector<328x128xbf16>
    %21 = tpu.concatenate %4, %6, %8, %10, %12, %14, %16, %18, %20 in 1 : vector<328x128xbf16>, vector<328x128xbf16>, vector<328x128xbf16>, vector<328x128xbf16>, vector<328x128xbf16>, vector<328x128xbf16>, vector<328x128xbf16>, vector<328x128xbf16>, vector<328x128xbf16> -> vector<328x1152xbf16>
    %c0_19 = arith.constant 0 : index
    %c0_20 = arith.constant 0 : index
    %22 = vector.load %arg2[%c0_19, %c0_20] : memref<1152x64xbf16, #tpu.memory_space<vmem>>, vector<1152x64xbf16>
    %cst_21 = arith.constant dense<0.000000e+00> : vector<328x64xf32>
    %23 = tpu.matmul %21, %22, %cst_21 {dimension_numbers = #tpu.dot_dimension_numbers<[1], [0], [0], [1], [0, 0, 1, 1], [], []>} : vector<328x1152xbf16>, vector<1152x64xbf16>, vector<328x64xf32> -> vector<328x64xf32>
    %c0_22 = arith.constant 0 : index
    %c0_23 = arith.constant 0 : index
    %24 = vector.load %arg3[%c0_22, %c0_23] : memref<1x64xf32, #tpu.memory_space<vmem>>, vector<1x64xf32>
    %25 = vector.broadcast %24 : vector<1x64xf32> to vector<328x64xf32>
    %26 = arith.addf %23, %25 : vector<328x64xf32>
    %cst_24 = arith.constant 0.000000e+00 : f32
    %27 = vector.broadcast %cst_24 : f32 to vector<328x64xf32>
    %28 = arith.maximumf %26, %27 : vector<328x64xf32>
    %cst_25 = arith.constant 0.000000e+00 : f32
    %29 = vector.shape_cast %2 : vector<328x1xi1> to vector<328x1xi1>
    %30 = vector.broadcast %29 : vector<328x1xi1> to vector<328x64xi1>
    %31 = vector.broadcast %cst_25 : f32 to vector<328x64xf32>
    %32 = arith.select %30, %28, %31 : vector<328x64xi1>, vector<328x64xf32>
    %33 = arith.truncf %32 : vector<328x64xf32> to vector<328x64xbf16>
    %c24_26 = arith.constant 24 : index
    %c0_27 = arith.constant 0 : index
    %34 = vector.load %arg10[%c24_26, %c0_27] : memref<376x64xbf16, #tpu.memory_space<vmem>>, vector<328x64xbf16>
    tpu.vector_store %arg10[%c24_26, %c0_27], %33 {strides = array<i32>} : memref<376x64xbf16, #tpu.memory_space<vmem>>, vector<328x64xbf16>,
    %c5_28 = arith.constant 5 : index
    %c0_29 = arith.constant 0 : index
    %35 = vector.load %arg10[%c5_28, %c0_29] : memref<376x64xbf16, #tpu.memory_space<vmem>>, vector<328x64xbf16>
    %c6_30 = arith.constant 6 : index
    %c0_31 = arith.constant 0 : index
    %36 = vector.load %arg10[%c6_30, %c0_31] : memref<376x64xbf16, #tpu.memory_space<vmem>>, vector<328x64xbf16>
    %c7_32 = arith.constant 7 : index
    %c0_33 = arith.constant 0 : index
    %37 = vector.load %arg10[%c7_32, %c0_33] : memref<376x64xbf16, #tpu.memory_space<vmem>>, vector<328x64xbf16>
    %c23_34 = arith.constant 23 : index
    %c0_35 = arith.constant 0 : index
    %38 = vector.load %arg10[%c23_34, %c0_35] : memref<376x64xbf16, #tpu.memory_space<vmem>>, vector<328x64xbf16>
    %c24_36 = arith.constant 24 : index
    %c0_37 = arith.constant 0 : index
    %39 = vector.load %arg10[%c24_36, %c0_37] : memref<376x64xbf16, #tpu.memory_space<vmem>>, vector<328x64xbf16>
    %c25_38 = arith.constant 25 : index
    %c0_39 = arith.constant 0 : index
    %40 = vector.load %arg10[%c25_38, %c0_39] : memref<376x64xbf16, #tpu.memory_space<vmem>>, vector<328x64xbf16>
    %c41_40 = arith.constant 41 : index
    %c0_41 = arith.constant 0 : index
    %41 = vector.load %arg10[%c41_40, %c0_41] : memref<376x64xbf16, #tpu.memory_space<vmem>>, vector<328x64xbf16>
    %c42_42 = arith.constant 42 : index
    %c0_43 = arith.constant 0 : index
    %42 = vector.load %arg10[%c42_42, %c0_43] : memref<376x64xbf16, #tpu.memory_space<vmem>>, vector<328x64xbf16>
    %c43_44 = arith.constant 43 : index
    %c0_45 = arith.constant 0 : index
    %43 = vector.load %arg10[%c43_44, %c0_45] : memref<376x64xbf16, #tpu.memory_space<vmem>>, vector<328x64xbf16>
    %44 = tpu.concatenate %35, %36, %37, %38, %39, %40, %41, %42, %43 in 1 : vector<328x64xbf16>, vector<328x64xbf16>, vector<328x64xbf16>, vector<328x64xbf16>, vector<328x64xbf16>, vector<328x64xbf16>, vector<328x64xbf16>, vector<328x64xbf16>, vector<328x64xbf16> -> vector<328x576xbf16>
    %c0_46 = arith.constant 0 : index
    %c0_47 = arith.constant 0 : index
    %45 = vector.load %arg4[%c0_46, %c0_47] : memref<576x64xbf16, #tpu.memory_space<vmem>>, vector<576x64xbf16>
    %cst_48 = arith.constant dense<0.000000e+00> : vector<328x64xf32>
    %46 = tpu.matmul %44, %45, %cst_48 {dimension_numbers = #tpu.dot_dimension_numbers<[1], [0], [0], [1], [0, 0, 1, 1], [], []>} : vector<328x576xbf16>, vector<576x64xbf16>, vector<328x64xf32> -> vector<328x64xf32>
    %c0_49 = arith.constant 0 : index
    %c0_50 = arith.constant 0 : index
    %47 = vector.load %arg5[%c0_49, %c0_50] : memref<1x64xf32, #tpu.memory_space<vmem>>, vector<1x64xf32>
    %48 = vector.broadcast %47 : vector<1x64xf32> to vector<328x64xf32>
    %49 = arith.addf %46, %48 : vector<328x64xf32>
    %cst_51 = arith.constant 0.000000e+00 : f32
    %50 = vector.broadcast %cst_51 : f32 to vector<328x64xf32>
    %51 = arith.maximumf %49, %50 : vector<328x64xf32>
    %cst_52 = arith.constant 0.000000e+00 : f32
    %52 = vector.shape_cast %2 : vector<328x1xi1> to vector<328x1xi1>
    %53 = vector.broadcast %52 : vector<328x1xi1> to vector<328x64xi1>
    %54 = vector.broadcast %cst_52 : f32 to vector<328x64xf32>
    %55 = arith.select %53, %51, %54 : vector<328x64xi1>, vector<328x64xf32>
    %56 = arith.truncf %55 : vector<328x64xf32> to vector<328x64xbf16>
    %c24_53 = arith.constant 24 : index
    %c0_54 = arith.constant 0 : index
    %57 = vector.load %arg10[%c24_53, %c0_54] : memref<376x64xbf16, #tpu.memory_space<vmem>>, vector<328x64xbf16>
    tpu.vector_store %arg10[%c24_53, %c0_54], %56 {strides = array<i32>} : memref<376x64xbf16, #tpu.memory_space<vmem>>, vector<328x64xbf16>,
    %c5_55 = arith.constant 5 : index
    %c0_56 = arith.constant 0 : index
    %58 = vector.load %arg10[%c5_55, %c0_56] : memref<376x64xbf16, #tpu.memory_space<vmem>>, vector<328x64xbf16>
    %c6_57 = arith.constant 6 : index
    %c0_58 = arith.constant 0 : index
    %59 = vector.load %arg10[%c6_57, %c0_58] : memref<376x64xbf16, #tpu.memory_space<vmem>>, vector<328x64xbf16>
    %c7_59 = arith.constant 7 : index
    %c0_60 = arith.constant 0 : index
    %60 = vector.load %arg10[%c7_59, %c0_60] : memref<376x64xbf16, #tpu.memory_space<vmem>>, vector<328x64xbf16>
    %c23_61 = arith.constant 23 : index
    %c0_62 = arith.constant 0 : index
    %61 = vector.load %arg10[%c23_61, %c0_62] : memref<376x64xbf16, #tpu.memory_space<vmem>>, vector<328x64xbf16>
    %c24_63 = arith.constant 24 : index
    %c0_64 = arith.constant 0 : index
    %62 = vector.load %arg10[%c24_63, %c0_64] : memref<376x64xbf16, #tpu.memory_space<vmem>>, vector<328x64xbf16>
    %c25_65 = arith.constant 25 : index
    %c0_66 = arith.constant 0 : index
    %63 = vector.load %arg10[%c25_65, %c0_66] : memref<376x64xbf16, #tpu.memory_space<vmem>>, vector<328x64xbf16>
    %c41_67 = arith.constant 41 : index
    %c0_68 = arith.constant 0 : index
    %64 = vector.load %arg10[%c41_67, %c0_68] : memref<376x64xbf16, #tpu.memory_space<vmem>>, vector<328x64xbf16>
    %c42_69 = arith.constant 42 : index
    %c0_70 = arith.constant 0 : index
    %65 = vector.load %arg10[%c42_69, %c0_70] : memref<376x64xbf16, #tpu.memory_space<vmem>>, vector<328x64xbf16>
    %c43_71 = arith.constant 43 : index
    %c0_72 = arith.constant 0 : index
    %66 = vector.load %arg10[%c43_71, %c0_72] : memref<376x64xbf16, #tpu.memory_space<vmem>>, vector<328x64xbf16>
    %67 = tpu.concatenate %58, %59, %60, %61, %62, %63, %64, %65, %66 in 1 : vector<328x64xbf16>, vector<328x64xbf16>, vector<328x64xbf16>, vector<328x64xbf16>, vector<328x64xbf16>, vector<328x64xbf16>, vector<328x64xbf16>, vector<328x64xbf16>, vector<328x64xbf16> -> vector<328x576xbf16>
    %c0_73 = arith.constant 0 : index
    %c0_74 = arith.constant 0 : index
    %68 = vector.load %arg6[%c0_73, %c0_74] : memref<576x64xbf16, #tpu.memory_space<vmem>>, vector<576x64xbf16>
    %cst_75 = arith.constant dense<0.000000e+00> : vector<328x64xf32>
    %69 = tpu.matmul %67, %68, %cst_75 {dimension_numbers = #tpu.dot_dimension_numbers<[1], [0], [0], [1], [0, 0, 1, 1], [], []>} : vector<328x576xbf16>, vector<576x64xbf16>, vector<328x64xf32> -> vector<328x64xf32>
    %c0_76 = arith.constant 0 : index
    %c0_77 = arith.constant 0 : index
    %70 = vector.load %arg7[%c0_76, %c0_77] : memref<1x64xf32, #tpu.memory_space<vmem>>, vector<1x64xf32>
    %71 = vector.broadcast %70 : vector<1x64xf32> to vector<328x64xf32>
    %72 = arith.addf %69, %71 : vector<328x64xf32>
    %73 = vector.shape_cast %72 : vector<328x64xf32> to vector<1x328x64xf32>
    %c0_78 = arith.constant 0 : index
    %c0_79 = arith.constant 0 : index
    %c0_80 = arith.constant 0 : index
    %74 = vector.load %arg9[%c0_78, %c0_79, %c0_80] : memref<1x328x64xf32, #tpu.memory_space<vmem>>, vector<1x328x64xf32>
    tpu.vector_store %arg9[%c0_78, %c0_79, %c0_80], %73 {strides = array<i32>} : memref<1x328x64xf32, #tpu.memory_space<vmem>>, vector<1x328x64xf32>,
    return
  }
  func.func @transform_0(%arg0: i32) -> (i32, i32, i32) {
    %c0_i32 = arith.constant 0 : i32
    %c0_i32_0 = arith.constant 0 : i32
    %c0_i32_1 = arith.constant 0 : i32
    return %arg0, %c0_i32, %c0_i32_0 : i32, i32, i32
  }
  func.func @transform_1(%arg0: i32) -> (i32, i32) {
    %c0_i32 = arith.constant 0 : i32
    %c0_i32_0 = arith.constant 0 : i32
    %c0_i32_1 = arith.constant 0 : i32
    return %c0_i32, %c0_i32_0 : i32, i32
  }
  func.func @transform_2(%arg0: i32) -> (i32, i32) {
    %c0_i32 = arith.constant 0 : i32
    %c0_i32_0 = arith.constant 0 : i32
    %c0_i32_1 = arith.constant 0 : i32
    return %c0_i32, %c0_i32_0 : i32, i32
  }
  func.func @transform_3(%arg0: i32) -> (i32, i32) {
    %c0_i32 = arith.constant 0 : i32
    %c0_i32_0 = arith.constant 0 : i32
    %c0_i32_1 = arith.constant 0 : i32
    return %c0_i32, %c0_i32_0 : i32, i32
  }
  func.func @transform_4(%arg0: i32) -> (i32, i32) {
    %c0_i32 = arith.constant 0 : i32
    %c0_i32_0 = arith.constant 0 : i32
    %c0_i32_1 = arith.constant 0 : i32
    return %c0_i32, %c0_i32_0 : i32, i32
  }
  func.func @transform_5(%arg0: i32) -> (i32, i32) {
    %c0_i32 = arith.constant 0 : i32
    %c0_i32_0 = arith.constant 0 : i32
    %c0_i32_1 = arith.constant 0 : i32
    return %c0_i32, %c0_i32_0 : i32, i32
  }
  func.func @transform_6(%arg0: i32) -> (i32, i32) {
    %c0_i32 = arith.constant 0 : i32
    %c0_i32_0 = arith.constant 0 : i32
    %c0_i32_1 = arith.constant 0 : i32
    return %c0_i32, %c0_i32_0 : i32, i32
  }
  func.func @transform_7(%arg0: i32) -> (i32, i32) {
    %c0_i32 = arith.constant 0 : i32
    %c0_i32_0 = arith.constant 0 : i32
    %c0_i32_1 = arith.constant 0 : i32
    return %c0_i32, %c0_i32_0 : i32, i32
  }
  func.func @transform_8(%arg0: i32) -> (i32, i32, i32) {
    %c0_i32 = arith.constant 0 : i32
    %c0_i32_0 = arith.constant 0 : i32
    %c0_i32_1 = arith.constant 0 : i32
    return %arg0, %c0_i32, %c0_i32_0 : i32, i32, i32
  }
}

</mosaic_0001>

<llo_original>
// kernel: denoise_forward.1
$region0: #{denoise_forward.1}
  #allocation0 [shape = 'u32[]', space=smem, size = 0x4, offset = 0x4, fixed_abs, tag = 'smem constant byte address 0x4 - core index']
  #allocation1 [shape = 'u32[144,128]{1,0:T(1,128)}', space=vmem, size = 0x12000, scoped, tag = 'internal scratch']
  #allocation2 [shape = 'bf16[376,64]{1,0:T(8,128)(2,1)}', space=vmem, size = 0x17800, scoped, tag = 'scratch operand']
  %s0 = inlined_call_operand.vmem [shape: bf16[2,376,128], index: 0, kind: input, shape index: {}]
  %s1 = inlined_call_operand.vmem [shape: bf16[1152,64], index: 1, kind: input, shape index: {}]
  %s2 = inlined_call_operand.vmem [shape: f32[1,64], index: 2, kind: input, shape index: {}]
  %s3 = inlined_call_operand.vmem [shape: bf16[576,64], index: 3, kind: input, shape index: {}]
  %s4 = inlined_call_operand.vmem [shape: f32[1,64], index: 4, kind: input, shape index: {}]
  %s5 = inlined_call_operand.vmem [shape: bf16[576,64], index: 5, kind: input, shape index: {}]
  %s6 = inlined_call_operand.vmem [shape: f32[1,64], index: 6, kind: input, shape index: {}]
  %s7 = inlined_call_operand.vmem [shape: f32[328,1], index: 7, kind: input, shape index: {}]
  %s8 = inlined_call_operand.vmem [shape: f32[2,328,64], index: 8, kind: output, shape index: {}]
  %s9 = sld [smem:[#allocation0]]
  $region65: #{denoise_forward.1} parent=0
    _
  %s11 = ssub.s32 1, %s9
  %s12 = scalar_select 0, %s11, %s9
  loop: start=0, step=1, limit=4
  $region2: #{denoise_forward.1} parent=0 // loop_pre_header
    _
  $region3: #{denoise_forward.1} parent=0 // loop_header
    %s14 = sphi 0, %s18
    %p15 = scmp.ge.s32.totalorder %s14, 4
    %s24 = sphi 0, %s26
    %s27 = sphi 0, %s24
    %s28 = sphi 0, %s27
    %s44 = sphi 0, %s28
    %s48 = sphi 0, %s48
    %s50 = sphi 0, %s48
    %s51 = sphi 0, %s50
    %s65 = sphi 0, %s51
    %s69 = sphi 0, %s69
    %s71 = sphi 0, %s69
    %s72 = sphi 0, %s71
    %s86 = sphi 0, %s72
    %s90 = sphi 0, %s90
    %s92 = sphi 0, %s90
    %s93 = sphi 0, %s92
    %s107 = sphi 0, %s93
    %s111 = sphi 0, %s111
    %s113 = sphi 0, %s111
    %s114 = sphi 0, %s113
    %s128 = sphi 0, %s114
    %s132 = sphi 0, %s132
    %s134 = sphi 0, %s132
    %s135 = sphi 0, %s134
    %s149 = sphi 0, %s135
    %s153 = sphi 0, %s153
    %s155 = sphi 0, %s153
    %s156 = sphi 0, %s155
    %s170 = sphi 0, %s156
    %s174 = sphi 0, %s174
    %s176 = sphi 0, %s174
    %s177 = sphi 0, %s176
    %s191 = sphi 0, %s177
    %s197 = sphi 0, %s199
    %s200 = sphi 0, %s197
    %s201 = sphi 0, %s200
    %s217 = sphi 0, %s201
  $region4: #{denoise_forward.1} parent=0 // loop_header_branch
    %17 = sbr.rel (%p15) target = $region8
  $region5: #{denoise_forward.1} parent=0 // loop_body
    %s19 = ssub.s32 %s14, 1
    %s20 = ssub.s32 %s14, 2
    %s21 = sadd.s32 %s14, 1
    %s22 = ssub.s32 %s14, %s21
    %p23 = scmp.eq.s32.totalorder %s22, 0
    %s25 = sadd.s32 %s24, 1
    %s26 = scalar_select %p23, %s24, %s25
    %p29 = pneg %p23
    %p30 = scmp.eq.s32.totalorder %s14, 1
    %p31 = por %p29, %p30
    %p32 = scmp.ne.s32.totalorder %s24, %s27
    %p33 = scmp.eq.s32.totalorder %s14, 0
    %p34 = por %p32, %p33
    %p35 = scmp.ne.s32.totalorder %s24, %s27
    %p36 = scmp.eq.s32.totalorder %s19, 1
    %p37 = por %p35, %p36
    %p38 = scmp.ne.s32.totalorder %s27, %s28
    %p39 = scmp.eq.s32.totalorder %s19, 0
    %p40 = por %p38, %p39
    %p41 = scmp.ne.s32.totalorder %s27, %s28
    %p42 = scmp.eq.s32.totalorder %s20, 1
    %p43 = por %p41, %p42
    %p45 = scmp.ne.s32.totalorder %s28, %s44
    %p46 = scmp.eq.s32.totalorder %s20, 0
    %p47 = por %p45, %p46
    %s49 = sadd.s32 %s48, 1
    %p52 = scmp.eq.s32.totalorder %s14, 1
    %p53 = scmp.ne.s32.totalorder %s48, %s50
    %p54 = scmp.eq.s32.totalorder %s14, 0
    %p55 = por %p53, %p54
    %p56 = scmp.ne.s32.totalorder %s48, %s50
    %p57 = scmp.eq.s32.totalorder %s19, 1
    %p58 = por %p56, %p57
    %p59 = scmp.ne.s32.totalorder %s50, %s51
    %p60 = scmp.eq.s32.totalorder %s19, 0
    %p61 = por %p59, %p60
    %p62 = scmp.ne.s32.totalorder %s50, %s51
    %p63 = scmp.eq.s32.totalorder %s20, 1
    %p64 = por %p62, %p63
    %p66 = scmp.ne.s32.totalorder %s51, %s65
    %p67 = scmp.eq.s32.totalorder %s20, 0
    %p68 = por %p66, %p67
    %s70 = sadd.s32 %s69, 1
    %p73 = scmp.eq.s32.totalorder %s14, 1
    %p74 = scmp.ne.s32.totalorder %s69, %s71
    %p75 = scmp.eq.s32.totalorder %s14, 0
    %p76 = por %p74, %p75
    %p77 = scmp.ne.s32.totalorder %s69, %s71
    %p78 = scmp.eq.s32.totalorder %s19, 1
    %p79 = por %p77, %p78
    %p80 = scmp.ne.s32.totalorder %s71, %s72
    %p81 = scmp.eq.s32.totalorder %s19, 0
    %p82 = por %p80, %p81
    %p83 = scmp.ne.s32.totalorder %s71, %s72
    %p84 = scmp.eq.s32.totalorder %s20, 1
    %p85 = por %p83, %p84
    %p87 = scmp.ne.s32.totalorder %s72, %s86
    %p88 = scmp.eq.s32.totalorder %s20, 0
    %p89 = por %p87, %p88
    %s91 = sadd.s32 %s90, 1
    %p94 = scmp.eq.s32.totalorder %s14, 1
    %p95 = scmp.ne.s32.totalorder %s90, %s92
    %p96 = scmp.eq.s32.totalorder %s14, 0
    %p97 = por %p95, %p96
    %p98 = scmp.ne.s32.totalorder %s90, %s92
    %p99 = scmp.eq.s32.totalorder %s19, 1
    %p100 = por %p98, %p99
    %p101 = scmp.ne.s32.totalorder %s92, %s93
    %p102 = scmp.eq.s32.totalorder %s19, 0
    %p103 = por %p101, %p102
    %p104 = scmp.ne.s32.totalorder %s92, %s93
    %p105 = scmp.eq.s32.totalorder %s20, 1
    %p106 = por %p104, %p105
    %p108 = scmp.ne.s32.totalorder %s93, %s107
    %p109 = scmp.eq.s32.totalorder %s20, 0
    %p110 = por %p108, %p109
    %s112 = sadd.s32 %s111, 1
    %p115 = scmp.eq.s32.totalorder %s14, 1
    %p116 = scmp.ne.s32.totalorder %s111, %s113
    %p117 = scmp.eq.s32.totalorder %s14, 0
    %p118 = por %p116, %p117
    %p119 = scmp.ne.s32.totalorder %s111, %s113
    %p120 = scmp.eq.s32.totalorder %s19, 1
    %p121 = por %p119, %p120
    %p122 = scmp.ne.s32.totalorder %s113, %s114
    %p123 = scmp.eq.s32.totalorder %s19, 0
    %p124 = por %p122, %p123
    %p125 = scmp.ne.s32.totalorder %s113, %s114
    %p126 = scmp.eq.s32.totalorder %s20, 1
    %p127 = por %p125, %p126
    %p129 = scmp.ne.s32.totalorder %s114, %s128
    %p130 = scmp.eq.s32.totalorder %s20, 0
    %p131 = por %p129, %p130
    %s133 = sadd.s32 %s132, 1
    %p136 = scmp.eq.s32.totalorder %s14, 1
    %p137 = scmp.ne.s32.totalorder %s132, %s134
    %p138 = scmp.eq.s32.totalorder %s14, 0
    %p139 = por %p137, %p138
    %p140 = scmp.ne.s32.totalorder %s132, %s134
    %p141 = scmp.eq.s32.totalorder %s19, 1
    %p142 = por %p140, %p141
    %p143 = scmp.ne.s32.totalorder %s134, %s135
    %p144 = scmp.eq.s32.totalorder %s19, 0
    %p145 = por %p143, %p144
    %p146 = scmp.ne.s32.totalorder %s134, %s135
    %p147 = scmp.eq.s32.totalorder %s20, 1
    %p148 = por %p146, %p147
    %p150 = scmp.ne.s32.totalorder %s135, %s149
    %p151 = scmp.eq.s32.totalorder %s20, 0
    %p152 = por %p150, %p151
    %s154 = sadd.s32 %s153, 1
    %p157 = scmp.eq.s32.totalorder %s14, 1
    %p158 = scmp.ne.s32.totalorder %s153, %s155
    %p159 = scmp.eq.s32.totalorder %s14, 0
    %p160 = por %p158, %p159
    %p161 = scmp.ne.s32.totalorder %s153, %s155
    %p162 = scmp.eq.s32.totalorder %s19, 1
    %p163 = por %p161, %p162
    %p164 = scmp.ne.s32.totalorder %s155, %s156
    %p165 = scmp.eq.s32.totalorder %s19, 0
    %p166 = por %p164, %p165
    %p167 = scmp.ne.s32.totalorder %s155, %s156
    %p168 = scmp.eq.s32.totalorder %s20, 1
    %p169 = por %p167, %p168
    %p171 = scmp.ne.s32.totalorder %s156, %s170
    %p172 = scmp.eq.s32.totalorder %s20, 0
    %p173 = por %p171, %p172
    %s175 = sadd.s32 %s174, 1
    %p178 = scmp.eq.s32.totalorder %s14, 1
    %p179 = scmp.ne.s32.totalorder %s174, %s176
    %p180 = scmp.eq.s32.totalorder %s14, 0
    %p181 = por %p179, %p180
    %p182 = scmp.ne.s32.totalorder %s174, %s176
    %p183 = scmp.eq.s32.totalorder %s19, 1
    %p184 = por %p182, %p183
    %p185 = scmp.ne.s32.totalorder %s176, %s177
    %p186 = scmp.eq.s32.totalorder %s19, 0
    %p187 = por %p185, %p186
    %p188 = scmp.ne.s32.totalorder %s176, %s177
    %p189 = scmp.eq.s32.totalorder %s20, 1
    %p190 = por %p188, %p189
    %p192 = scmp.ne.s32.totalorder %s177, %s191
    %p193 = scmp.eq.s32.totalorder %s20, 0
    %p194 = por %p192, %p193
    %s195 = ssub.s32 %s14, %s21
    %p196 = scmp.eq.s32.totalorder %s195, 0
    %s198 = sadd.s32 %s197, 1
    %s199 = scalar_select %p196, %s197, %s198
    %p202 = pneg %p196
    %p203 = scmp.eq.s32.totalorder %s14, 1
    %p204 = por %p202, %p203
    %p205 = scmp.ne.s32.totalorder %s197, %s200
    %p206 = scmp.eq.s32.totalorder %s14, 0
    %p207 = por %p205, %p206
    %p208 = scmp.ne.s32.totalorder %s197, %s200
    %p209 = scmp.eq.s32.totalorder %s19, 1
    %p210 = por %p208, %p209
    %p211 = scmp.ne.s32.totalorder %s200, %s201
    %p212 = scmp.eq.s32.totalorder %s19, 0
    %p213 = por %p211, %p212
    %p214 = scmp.ne.s32.totalorder %s200, %s201
    %p215 = scmp.eq.s32.totalorder %s20, 1
    %p216 = por %p214, %p215
    %p218 = scmp.ne.s32.totalorder %s201, %s217
    %p219 = scmp.eq.s32.totalorder %s20, 0
    %p220 = por %p218, %p219
    %p221 = scmp.le.s32.totalorder 1, %s14
    %p222 = scmp.lt.s32.totalorder %s14, 3
    %p223 = pnand %p221, %p222
    %p224 = pneg %p223
    // Predicated region
    $region9: #{denoise_forward.1} parent=5 // pred_check
      _
    $region10: #{denoise_forward.1} parent=5 // pred_check_branch
      %226 = sbr.rel (%p223) target = $region12
    $region11: #{denoise_forward.1} parent=5 // pred_region
      %s227 = ssub.s32 %s14, 1
      // Predicated region
      $region13: #{denoise_forward.1} parent=11 // pred_check
        %p228 = pneg %p61
      $region14: #{denoise_forward.1} parent=11 // pred_check_branch
        %230 = sbr.rel (%p228) target = $region16
      $region15: #{denoise_forward.1} parent=11 // pred_region
        _
      $region16: #{denoise_forward.1} parent=11 // pred_fallthru
        _
      // Predicated region
      $region17: #{denoise_forward.1} parent=11 // pred_check
        %p231 = pneg %p82
      $region18: #{denoise_forward.1} parent=11 // pred_check_branch
        %233 = sbr.rel (%p231) target = $region20
      $region19: #{denoise_forward.1} parent=11 // pred_region
        _
      $region20: #{denoise_forward.1} parent=11 // pred_fallthru
        _
      // Predicated region
      $region21: #{denoise_forward.1} parent=11 // pred_check
        %p234 = pneg %p103
      $region22: #{denoise_forward.1} parent=11 // pred_check_branch
        %236 = sbr.rel (%p234) target = $region24
      $region23: #{denoise_forward.1} parent=11 // pred_region
        _
      $region24: #{denoise_forward.1} parent=11 // pred_fallthru
        _
      // Predicated region
      $region25: #{denoise_forward.1} parent=11 // pred_check
        %p237 = pneg %p124
      $region26: #{denoise_forward.1} parent=11 // pred_check_branch
        %239 = sbr.rel (%p237) target = $region28
      $region27: #{denoise_forward.1} parent=11 // pred_region
        _
      $region28: #{denoise_forward.1} parent=11 // pred_fallthru
        _
      // Predicated region
      $region29: #{denoise_forward.1} parent=11 // pred_check
        %p240 = pneg %p145
      $region30: #{denoise_forward.1} parent=11 // pred_check_branch
        %242 = sbr.rel (%p240) target = $region32
      $region31: #{denoise_forward.1} parent=11 // pred_region
        _
      $region32: #{denoise_forward.1} parent=11 // pred_fallthru
        _
      // Predicated region
      $region33: #{denoise_forward.1} parent=11 // pred_check
        %p243 = pneg %p166
      $region34: #{denoise_forward.1} parent=11 // pred_check_branch
        %245 = sbr.rel (%p243) target = $region36
      $region35: #{denoise_forward.1} parent=11 // pred_region
        _
      $region36: #{denoise_forward.1} parent=11 // pred_fallthru
        _
      // Predicated region
      $region37: #{denoise_forward.1} parent=11 // pred_check
        %p246 = pneg %p187
      $region38: #{denoise_forward.1} parent=11 // pred_check_branch
        %248 = sbr.rel (%p246) target = $region40
      $region39: #{denoise_forward.1} parent=11 // pred_region
        _
      $region40: #{denoise_forward.1} parent=11 // pred_fallthru
        _
    $region12: #{denoise_forward.1} parent=5 // pred_fallthru
      _
    %p249 = scmp.lt.s32.totalorder %s14, 2
    // Predicated region
    $region41: #{denoise_forward.1} parent=5 // pred_check
      %p250 = pneg %p249
    $region42: #{denoise_forward.1} parent=5 // pred_check_branch
      %252 = sbr.rel (%p250) target = $region44
    $region43: #{denoise_forward.1} parent=5 // pred_region
      // Predicated region
      $region45: #{denoise_forward.1} parent=43 // pred_check
        %p253 = pneg %p34
      $region46: #{denoise_forward.1} parent=43 // pred_check_branch
        %255 = sbr.rel (%p253) target = $region48
      $region47: #{denoise_forward.1} parent=43 // pred_region
        %p256 = scmp.lt.s32.totalorder %s14, 1
        %s257 = scalar_select %p256, %s14, 1
        %s258 = smul.addr %s257, 47
        %s259 = smul.addr %s258, 4
        %s260 = scalar_lea.vmem %s0, %s259
      $region48: #{denoise_forward.1} parent=43 // pred_fallthru
        _
    $region44: #{denoise_forward.1} parent=5 // pred_fallthru
      _
    %p261 = scmp.le.s32.totalorder 1, %s14
    %p262 = scmp.lt.s32.totalorder %s14, 3
    %p263 = pnand %p261, %p262
    %p264 = pneg %p263
    // Predicated region
    $region49: #{denoise_forward.1} parent=5 // pred_check
      _
    $region50: #{denoise_forward.1} parent=5 // pred_check_branch
      %266 = sbr.rel (%p263) target = $region52
    $region51: #{denoise_forward.1} parent=5 // pred_region
      %s267 = ssub.s32 %s14, 1
      %p268 = scmp.lt.s32.totalorder %s19, 1
      %s269 = scalar_select %p268, %s19, 1
      %s270 = smul.addr %s269, 47
      %s271 = smul.addr %s270, 4
      %s272 = scalar_lea.vmem %s0, %s271
      %p273 = pneg %p40
      %p274 = pneg %p37
      %p275 = pneg %p61
      %p276 = pneg %p58
      %p277 = pneg %p82
      %p278 = pneg %p79
      %p279 = pneg %p103
      %p280 = pneg %p100
      %p281 = pneg %p124
      %p282 = pneg %p121
      %p283 = pneg %p145
      %p284 = pneg %p142
      %p285 = pneg %p166
      %p286 = pneg %p163
      %p287 = pneg %p187
      %p288 = pneg %p184
      %p289 = pneg %p213
      %p290 = pneg %p210
      %p291 = scmp.lt.s32.totalorder %s19, 1
      %s292 = scalar_select %p291, %s19, 1
      %s293 = smul.addr %s292, 41
      %s294 = smul.addr %s293, 8
      %s295 = scalar_lea.vmem %s8, %s294
      %p296 = scmp.lt.s32.totalorder %s19, 1
      %s297 = scalar_select %p296, %s19, 1
      %s298 = smul.addr %s297, 47
      %s299 = smul.addr %s298, 4
      %s300 = scalar_lea.vmem %s0, %s299
      %p301 = scmp.lt.s32.totalorder %s19, 1
      %s302 = scalar_select %p301, %s19, 1
      %s303 = smul.addr %s302, 41
      %s304 = smul.addr %s303, 8
      %s305 = scalar_lea.vmem %s8, %s304
      %v307 = vld [vmem:[%s7] sm:$0xff]
      %v308 = vld [vmem:[%s7 + $0x8] sm:$0xff]
      %v309 = vld [vmem:[%s7 + $0x10] sm:$0xff]
      %v310 = vld [vmem:[%s7 + $0x18] sm:$0xff]
      %v311 = vld [vmem:[%s7 + $0x20] sm:$0xff]
      %v312 = vld [vmem:[%s7 + $0x28] sm:$0xff]
      %v313 = vld [vmem:[%s7 + $0x30] sm:$0xff]
      %v314 = vld [vmem:[%s7 + $0x38] sm:$0xff]
      %v315 = vld [vmem:[%s7 + $0x40] sm:$0xff]
      %v316 = vld [vmem:[%s7 + $0x48] sm:$0xff]
      %v317 = vld [vmem:[%s7 + $0x50] sm:$0xff]
      %v318 = vld [vmem:[%s7 + $0x58] sm:$0xff]
      %v319 = vld [vmem:[%s7 + $0x60] sm:$0xff]
      %v320 = vld [vmem:[%s7 + $0x68] sm:$0xff]
      %v321 = vld [vmem:[%s7 + $0x70] sm:$0xff]
      %v322 = vld [vmem:[%s7 + $0x78] sm:$0xff]
      %v323 = vld [vmem:[%s7 + $0x80] sm:$0xff]
      %v324 = vld [vmem:[%s7 + $0x88] sm:$0xff]
      %v325 = vld [vmem:[%s7 + $0x90] sm:$0xff]
      %v326 = vld [vmem:[%s7 + $0x98] sm:$0xff]
      %v327 = vld [vmem:[%s7 + $0xa0] sm:$0xff]
      %v328 = vld [vmem:[%s7 + $0xa8] sm:$0xff]
      %v329 = vld [vmem:[%s7 + $0xb0] sm:$0xff]
      %v330 = vld [vmem:[%s7 + $0xb8] sm:$0xff]
      %v331 = vld [vmem:[%s7 + $0xc0] sm:$0xff]
      %v332 = vld [vmem:[%s7 + $0xc8] sm:$0xff]
      %v333 = vld [vmem:[%s7 + $0xd0] sm:$0xff]
      %v334 = vld [vmem:[%s7 + $0xd8] sm:$0xff]
      %v335 = vld [vmem:[%s7 + $0xe0] sm:$0xff]
      %v336 = vld [vmem:[%s7 + $0xe8] sm:$0xff]
      %v337 = vld [vmem:[%s7 + $0xf0] sm:$0xff]
      %v338 = vld [vmem:[%s7 + $0xf8] sm:$0xff]
      %v339 = vld [vmem:[%s7 + $0x100] sm:$0xff]
      %v340 = vld [vmem:[%s7 + $0x108] sm:$0xff]
      %v341 = vld [vmem:[%s7 + $0x110] sm:$0xff]
      %v342 = vld [vmem:[%s7 + $0x118] sm:$0xff]
      %v343 = vld [vmem:[%s7 + $0x120] sm:$0xff]
      %v344 = vld [vmem:[%s7 + $0x128] sm:$0xff]
      %v345 = vld [vmem:[%s7 + $0x130] sm:$0xff]
      %v346 = vld [vmem:[%s7 + $0x138] sm:$0xff]
      %v347 = vld [vmem:[%s7 + $0x140] sm:$0xff]
      %vm348 = vcmp.ne.f32.partialorder %v307, 0.0
      %vm349 = vcmp.ne.f32.partialorder %v308, 0.0
      %vm350 = vcmp.ne.f32.partialorder %v309, 0.0
      %vm351 = vcmp.ne.f32.partialorder %v310, 0.0
      %vm352 = vcmp.ne.f32.partialorder %v311, 0.0
      %vm353 = vcmp.ne.f32.partialorder %v312, 0.0
      %vm354 = vcmp.ne.f32.partialorder %v313, 0.0
      %vm355 = vcmp.ne.f32.partialorder %v314, 0.0
      %vm356 = vcmp.ne.f32.partialorder %v315, 0.0
      %vm357 = vcmp.ne.f32.partialorder %v316, 0.0
      %vm358 = vcmp.ne.f32.partialorder %v317, 0.0
      %vm359 = vcmp.ne.f32.partialorder %v318, 0.0
      %vm360 = vcmp.ne.f32.partialorder %v319, 0.0
      %vm361 = vcmp.ne.f32.partialorder %v320, 0.0
      %vm362 = vcmp.ne.f32.partialorder %v321, 0.0
      %vm363 = vcmp.ne.f32.partialorder %v322, 0.0
      %vm364 = vcmp.ne.f32.partialorder %v323, 0.0
      %vm365 = vcmp.ne.f32.partialorder %v324, 0.0
      %vm366 = vcmp.ne.f32.partialorder %v325, 0.0
      %vm367 = vcmp.ne.f32.partialorder %v326, 0.0
      %vm368 = vcmp.ne.f32.partialorder %v327, 0.0
      %vm369 = vcmp.ne.f32.partialorder %v328, 0.0
      %vm370 = vcmp.ne.f32.partialorder %v329, 0.0
      %vm371 = vcmp.ne.f32.partialorder %v330, 0.0
      %vm372 = vcmp.ne.f32.partialorder %v331, 0.0
      %vm373 = vcmp.ne.f32.partialorder %v332, 0.0
      %vm374 = vcmp.ne.f32.partialorder %v333, 0.0
      %vm375 = vcmp.ne.f32.partialorder %v334, 0.0
      %vm376 = vcmp.ne.f32.partialorder %v335, 0.0
      %vm377 = vcmp.ne.f32.partialorder %v336, 0.0
      %vm378 = vcmp.ne.f32.partialorder %v337, 0.0
      %vm379 = vcmp.ne.f32.partialorder %v338, 0.0
      %vm380 = vcmp.ne.f32.partialorder %v339, 0.0
      %vm381 = vcmp.ne.f32.partialorder %v340, 0.0
      %vm382 = vcmp.ne.f32.partialorder %v341, 0.0
      %vm383 = vcmp.ne.f32.partialorder %v342, 0.0
      %vm384 = vcmp.ne.f32.partialorder %v343, 0.0
      %vm385 = vcmp.ne.f32.partialorder %v344, 0.0
      %vm386 = vcmp.ne.f32.partialorder %v345, 0.0
      %vm387 = vcmp.ne.f32.partialorder %v346, 0.0
      %vm388 = vcmp.ne.f32.partialorder %v347, 0.0
      %v389 = vld [vmem:[%s300] sm:$0xc]
      %v390 = vld [vmem:[%s300 + $0x4] sm:$0xf]
      %v391 = vld [vmem:[%s300 + $0x8] sm:$0xf]
      %v392 = vld [vmem:[%s300 + $0xc] sm:$0xf]
      %v393 = vld [vmem:[%s300 + $0x10] sm:$0xf]
      %v394 = vld [vmem:[%s300 + $0x14] sm:$0xf]
      %v395 = vld [vmem:[%s300 + $0x18] sm:$0xf]
      %v396 = vld [vmem:[%s300 + $0x1c] sm:$0xf]
      %v397 = vld [vmem:[%s300 + $0x20] sm:$0xf]
      %v398 = vld [vmem:[%s300 + $0x24] sm:$0xf]
      %v399 = vld [vmem:[%s300 + $0x28] sm:$0xf]
      %v400 = vld [vmem:[%s300 + $0x2c] sm:$0xf]
      %v401 = vld [vmem:[%s300 + $0x30] sm:$0xf]
      %v402 = vld [vmem:[%s300 + $0x34] sm:$0xf]
      %v403 = vld [vmem:[%s300 + $0x38] sm:$0xf]
      %v404 = vld [vmem:[%s300 + $0x3c] sm:$0xf]
      %v405 = vld [vmem:[%s300 + $0x40] sm:$0xf]
      %v406 = vld [vmem:[%s300 + $0x44] sm:$0xf]
      %v407 = vld [vmem:[%s300 + $0x48] sm:$0xf]
      %v408 = vld [vmem:[%s300 + $0x4c] sm:$0xf]
      %v409 = vld [vmem:[%s300 + $0x50] sm:$0xf]
      %v410 = vld [vmem:[%s300 + $0x54] sm:$0xf]
      %v411 = vld [vmem:[%s300 + $0x58] sm:$0xf]
      %v412 = vld [vmem:[%s300 + $0x5c] sm:$0xf]
      %v413 = vld [vmem:[%s300 + $0x60] sm:$0xf]
      %v414 = vld [vmem:[%s300 + $0x64] sm:$0xf]
      %v415 = vld [vmem:[%s300 + $0x68] sm:$0xf]
      %v416 = vld [vmem:[%s300 + $0x6c] sm:$0xf]
      %v417 = vld [vmem:[%s300 + $0x70] sm:$0xf]
      %v418 = vld [vmem:[%s300 + $0x74] sm:$0xf]
      %v419 = vld [vmem:[%s300 + $0x78] sm:$0xf]
      %v420 = vld [vmem:[%s300 + $0x7c] sm:$0xf]
      %v421 = vld [vmem:[%s300 + $0x80] sm:$0xf]
      %v422 = vld [vmem:[%s300 + $0x84] sm:$0xf]
      %v423 = vld [vmem:[%s300 + $0x88] sm:$0xf]
      %v424 = vld [vmem:[%s300 + $0x8c] sm:$0xf]
      %v425 = vld [vmem:[%s300 + $0x90] sm:$0xf]
      %v426 = vld [vmem:[%s300 + $0x94] sm:$0xf]
      %v427 = vld [vmem:[%s300 + $0x98] sm:$0xf]
      %v428 = vld [vmem:[%s300 + $0x9c] sm:$0xf]
      %v429 = vld [vmem:[%s300 + $0xa0] sm:$0xf]
      %v430 = vld [vmem:[%s300 + $0xa4] sm:$0x7]
      %v431 = vld [vmem:[%s300] sm:$0x8]
      %v432 = vld [vmem:[%s300 + $0xa4] sm:$0xf]
      %v433 = vld [vmem:[%s300 + $0x8] sm:$0x8]
      %v434 = vld [vmem:[%s300 + $0xa8] sm:$0xf]
      %v435 = vld [vmem:[%s300 + $0xac] sm:$0xf]
      %v436 = vld [vmem:[%s300 + $0xb0] sm:$0x1]
      %v437 = vld [vmem:[%s300 + $0x14] sm:$0xf]
      %v438 = vld [vmem:[%s300 + $0x18] sm:$0xf]
      %v439 = vld [vmem:[%s300 + $0x1c] sm:$0xf]
      %v440 = vld [vmem:[%s300 + $0x20] sm:$0xf]
      %v441 = vld [vmem:[%s300 + $0x24] sm:$0xf]
      %v442 = vld [vmem:[%s300 + $0x28] sm:$0xf]
      %v443 = vld [vmem:[%s300 + $0x2c] sm:$0xf]
      %v444 = vld [vmem:[%s300 + $0x30] sm:$0xf]
      %v445 = vld [vmem:[%s300 + $0x34] sm:$0xf]
      %v446 = vld [vmem:[%s300 + $0x38] sm:$0xf]
      %v447 = vld [vmem:[%s300 + $0x3c] sm:$0xf]
      %v448 = vld [vmem:[%s300 + $0x40] sm:$0xf]
      %v449 = vld [vmem:[%s300 + $0x44] sm:$0xf]
      %v450 = vld [vmem:[%s300 + $0x48] sm:$0xf]
      %v451 = vld [vmem:[%s300 + $0x4c] sm:$0xf]
      %v452 = vld [vmem:[%s300 + $0x50] sm:$0xf]
      %v453 = vld [vmem:[%s300 + $0x54] sm:$0xf]
      %v454 = vld [vmem:[%s300 + $0x58] sm:$0xf]
      %v455 = vld [vmem:[%s300 + $0x5c] sm:$0xf]
      %v456 = vld [vmem:[%s300 + $0x60] sm:$0xf]
      %v457 = vld [vmem:[%s300 + $0x64] sm:$0xf]
      %v458 = vld [vmem:[%s300 + $0x68] sm:$0xf]
      %v459 = vld [vmem:[%s300 + $0x6c] sm:$0xf]
      %v460 = vld [vmem:[%s300 + $0x70] sm:$0xf]
      %v461 = vld [vmem:[%s300 + $0x74] sm:$0xf]
      %v462 = vld [vmem:[%s300 + $0x78] sm:$0xf]
      %v463 = vld [vmem:[%s300 + $0x7c] sm:$0xf]
      %v464 = vld [vmem:[%s300 + $0x80] sm:$0xf]
      %v465 = vld [vmem:[%s300 + $0x84] sm:$0xf]
      %v466 = vld [vmem:[%s300 + $0x88] sm:$0xf]
      %v467 = vld [vmem:[%s300 + $0x8c] sm:$0xf]
      %v468 = vld [vmem:[%s300 + $0x90] sm:$0xf]
      %v469 = vld [vmem:[%s300 + $0x94] sm:$0xf]
      %v470 = vld [vmem:[%s300 + $0x98] sm:$0xf]
      %v471 = vld [vmem:[%s300 + $0x9c] sm:$0xf]
      %v472 = vld [vmem:[%s300 + $0xa0] sm:$0xf]
      %v473 = vld [vmem:[%s300 + $0xa4] sm:$0xf]
      %v474 = vld [vmem:[%s300 + $0xa8] sm:$0xf]
      %v475 = vld [vmem:[%s300 + $0xac] sm:$0xf]
      %v476 = vld [vmem:[%s300 + $0xb0] sm:$0xf]
      %v477 = vld [vmem:[%s300 + $0xb4] sm:$0xf]
      %v478 = vld [vmem:[%s300 + $0xb8] sm:$0x1]
      %v479 = vld [vmem:[%s300 + $0x14] sm:$0xe]
      %v480 = vld [vmem:[%s300 + $0xb8] sm:$0x3]
      %v523 = vunpack.c.l.b16 %v389
      %v524 = vunpack.c.l.b16 %v390
      %v525 = vunpack.c.l.b16 %v391
      %v526 = vunpack.c.l.b16 %v392
      %v527 = vunpack.c.l.b16 %v393
      %v528 = vunpack.c.l.b16 %v394
      %v529 = vunpack.c.l.b16 %v395
      %v530 = vunpack.c.l.b16 %v396
      %v531 = vunpack.c.l.b16 %v397
      %v532 = vunpack.c.l.b16 %v398
      %v533 = vunpack.c.l.b16 %v399
      %v534 = vunpack.c.l.b16 %v400
      %v535 = vunpack.c.l.b16 %v401
      %v536 = vunpack.c.l.b16 %v402
      %v537 = vunpack.c.l.b16 %v403
      %v538 = vunpack.c.l.b16 %v404
      %v539 = vunpack.c.l.b16 %v405
      %v540 = vunpack.c.l.b16 %v406
      %v541 = vunpack.c.l.b16 %v407
      %v542 = vunpack.c.l.b16 %v408
      %v543 = vunpack.c.l.b16 %v409
      %v544 = vunpack.c.l.b16 %v410
      %v545 = vunpack.c.l.b16 %v411
      %v546 = vunpack.c.l.b16 %v412
      %v547 = vunpack.c.l.b16 %v413
      %v548 = vunpack.c.l.b16 %v414
      %v549 = vunpack.c.l.b16 %v415
      %v550 = vunpack.c.l.b16 %v416
      %v551 = vunpack.c.l.b16 %v417
      %v552 = vunpack.c.l.b16 %v418
      %v553 = vunpack.c.l.b16 %v419
      %v554 = vunpack.c.l.b16 %v420
      %v555 = vunpack.c.l.b16 %v421
      %v556 = vunpack.c.l.b16 %v422
      %v557 = vunpack.c.l.b16 %v423
      %v558 = vunpack.c.l.b16 %v424
      %v559 = vunpack.c.l.b16 %v425
      %v560 = vunpack.c.l.b16 %v426
      %v561 = vunpack.c.l.b16 %v427
      %v562 = vunpack.c.l.b16 %v428
      %v563 = vunpack.c.l.b16 %v429
      %v564 = vunpack.c.l.b16 %v430
      %v565 = vpack.c.b16 %v524, %v523
      %v566 = vpack.c.b16 %v526, %v525
      %v567 = vpack.c.b16 %v528, %v527
      %v568 = vpack.c.b16 %v530, %v529
      %v569 = vpack.c.b16 %v532, %v531
      %v570 = vpack.c.b16 %v534, %v533
      %v571 = vpack.c.b16 %v536, %v535
      %v572 = vpack.c.b16 %v538, %v537
      %v573 = vpack.c.b16 %v540, %v539
      %v574 = vpack.c.b16 %v542, %v541
      %v575 = vpack.c.b16 %v544, %v543
      %v576 = vpack.c.b16 %v546, %v545
      %v577 = vpack.c.b16 %v548, %v547
      %v578 = vpack.c.b16 %v550, %v549
      %v579 = vpack.c.b16 %v552, %v551
      %v580 = vpack.c.b16 %v554, %v553
      %v581 = vpack.c.b16 %v556, %v555
      %v582 = vpack.c.b16 %v558, %v557
      %v583 = vpack.c.b16 %v560, %v559
      %v584 = vpack.c.b16 %v562, %v561
      %v585 = vpack.c.b16 %v564, %v563
      %v587 = vunpack.c.l.b16 %v431
      %v588 = vpack.c.b16 %v524, %v587
      %vm589 = vsmask.f32 7424
      %v591 = vshrl.u32 %v588, 16
      %v593 = vshll.u32 %v588, 16
      %v595 = vrot.slane %v593, 1
      %v596 = vor.u32 %v591, %v595
      %v598 = vshll.u32 %v566, 16
      %v600 = vrot.slane %v598, 1
      %v601 = vsel %vm589, %v596, %v600
      %v602 = vshrl.u32 %v566, 16
      %v604 = vor.u32 %v602, %v600
      %v606 = vshll.u32 %v567, 16
      %v608 = vrot.slane %v606, 1
      %v609 = vsel %vm589, %v604, %v608
      %v610 = vshrl.u32 %v567, 16
      %v612 = vor.u32 %v610, %v608
      %v614 = vshll.u32 %v568, 16
      %v616 = vrot.slane %v614, 1
      %v617 = vsel %vm589, %v612, %v616
      %v618 = vshrl.u32 %v568, 16
      %v620 = vor.u32 %v618, %v616
      %v622 = vshll.u32 %v569, 16
      %v624 = vrot.slane %v622, 1
      %v625 = vsel %vm589, %v620, %v624
      %v626 = vshrl.u32 %v569, 16
      %v628 = vor.u32 %v626, %v624
      %v630 = vshll.u32 %v570, 16
      %v632 = vrot.slane %v630, 1
      %v633 = vsel %vm589, %v628, %v632
      %v634 = vshrl.u32 %v570, 16
      %v636 = vor.u32 %v634, %v632
      %v638 = vshll.u32 %v571, 16
      %v640 = vrot.slane %v638, 1
      %v641 = vsel %vm589, %v636, %v640
      %v642 = vshrl.u32 %v571, 16
      %v644 = vor.u32 %v642, %v640
      %v646 = vshll.u32 %v572, 16
      %v648 = vrot.slane %v646, 1
      %v649 = vsel %vm589, %v644, %v648
      %v650 = vshrl.u32 %v572, 16
      %v652 = vor.u32 %v650, %v648
      %v654 = vshll.u32 %v573, 16
      %v656 = vrot.slane %v654, 1
      %v657 = vsel %vm589, %v652, %v656
      %v658 = vshrl.u32 %v573, 16
      %v660 = vor.u32 %v658, %v656
      %v662 = vshll.u32 %v574, 16
      %v664 = vrot.slane %v662, 1
      %v665 = vsel %vm589, %v660, %v664
      %v666 = vshrl.u32 %v574, 16
      %v668 = vor.u32 %v666, %v664
      %v670 = vshll.u32 %v575, 16
      %v672 = vrot.slane %v670, 1
      %v673 = vsel %vm589, %v668, %v672
      %v674 = vshrl.u32 %v575, 16
      %v676 = vor.u32 %v674, %v672
      %v678 = vshll.u32 %v576, 16
      %v680 = vrot.slane %v678, 1
      %v681 = vsel %vm589, %v676, %v680
      %v682 = vshrl.u32 %v576, 16
      %v684 = vor.u32 %v682, %v680
      %v686 = vshll.u32 %v577, 16
      %v688 = vrot.slane %v686, 1
      %v689 = vsel %vm589, %v684, %v688
      %v690 = vshrl.u32 %v577, 16
      %v692 = vor.u32 %v690, %v688
      %v694 = vshll.u32 %v578, 16
      %v696 = vrot.slane %v694, 1
      %v697 = vsel %vm589, %v692, %v696
      %v698 = vshrl.u32 %v578, 16
      %v700 = vor.u32 %v698, %v696
      %v702 = vshll.u32 %v579, 16
      %v704 = vrot.slane %v702, 1
      %v705 = vsel %vm589, %v700, %v704
      %v706 = vshrl.u32 %v579, 16
      %v708 = vor.u32 %v706, %v704
      %v710 = vshll.u32 %v580, 16
      %v712 = vrot.slane %v710, 1
      %v713 = vsel %vm589, %v708, %v712
      %v714 = vshrl.u32 %v580, 16
      %v716 = vor.u32 %v714, %v712
      %v718 = vshll.u32 %v581, 16
      %v720 = vrot.slane %v718, 1
      %v721 = vsel %vm589, %v716, %v720
      %v722 = vshrl.u32 %v581, 16
      %v724 = vor.u32 %v722, %v720
      %v726 = vshll.u32 %v582, 16
      %v728 = vrot.slane %v726, 1
      %v729 = vsel %vm589, %v724, %v728
      %v730 = vshrl.u32 %v582, 16
      %v732 = vor.u32 %v730, %v728
      %v734 = vshll.u32 %v583, 16
      %v736 = vrot.slane %v734, 1
      %v737 = vsel %vm589, %v732, %v736
      %v738 = vshrl.u32 %v583, 16
      %v740 = vor.u32 %v738, %v736
      %v742 = vshll.u32 %v584, 16
      %v744 = vrot.slane %v742, 1
      %v745 = vsel %vm589, %v740, %v744
      %v746 = vshrl.u32 %v584, 16
      %v748 = vor.u32 %v746, %v744
      %v750 = vshll.u32 %v585, 16
      %v752 = vrot.slane %v750, 1
      %v753 = vsel %vm589, %v748, %v752
      %v754 = vshrl.u32 %v585, 16
      %v756 = vor.u32 %v754, %v752
      %v758 = vunpack.c.l.b16 %v432
      %v759 = vpack.c.b16 %v758, %v563
      %vm760 = vcmask 1046528
      %v761 = vrot.slane %v588, 1
      %v762 = vrot.slane %v566, 1
      %v763 = vsel %vm760, %v761, %v762
      %v764 = vrot.slane %v567, 1
      %v765 = vsel %vm760, %v762, %v764
      %v766 = vrot.slane %v568, 1
      %v767 = vsel %vm760, %v764, %v766
      %v768 = vrot.slane %v569, 1
      %v769 = vsel %vm760, %v766, %v768
      %v770 = vrot.slane %v570, 1
      %v771 = vsel %vm760, %v768, %v770
      %v772 = vrot.slane %v571, 1
      %v773 = vsel %vm760, %v770, %v772
      %v774 = vrot.slane %v572, 1
      %v775 = vsel %vm760, %v772, %v774
      %v776 = vrot.slane %v573, 1
      %v777 = vsel %vm760, %v774, %v776
      %v778 = vrot.slane %v574, 1
      %v779 = vsel %vm760, %v776, %v778
      %v780 = vrot.slane %v575, 1
      %v781 = vsel %vm760, %v778, %v780
      %v782 = vrot.slane %v576, 1
      %v783 = vsel %vm760, %v780, %v782
      %v784 = vrot.slane %v577, 1
      %v785 = vsel %vm760, %v782, %v784
      %v786 = vrot.slane %v578, 1
      %v787 = vsel %vm760, %v784, %v786
      %v788 = vrot.slane %v579, 1
      %v789 = vsel %vm760, %v786, %v788
      %v790 = vrot.slane %v580, 1
      %v791 = vsel %vm760, %v788, %v790
      %v792 = vrot.slane %v581, 1
      %v793 = vsel %vm760, %v790, %v792
      %v794 = vrot.slane %v582, 1
      %v795 = vsel %vm760, %v792, %v794
      %v796 = vrot.slane %v583, 1
      %v797 = vsel %vm760, %v794, %v796
      %v798 = vrot.slane %v584, 1
      %v799 = vsel %vm760, %v796, %v798
      %v800 = vrot.slane %v759, 1
      %v801 = vsel %vm760, %v798, %v800
      %v805 = vunpack.c.l.b16 %v433
      %v806 = vunpack.c.l.b16 %v434
      %v807 = vunpack.c.l.b16 %v435
      %v808 = vpack.c.b16 %v526, %v805
      %v809 = vpack.c.b16 %v807, %v806
      %v810 = vrot.slane %v808, 1
      %v811 = vsel %vm760, %v810, %v764
      %v812 = vrot.slane %v809, 1
      %v813 = vsel %vm760, %v800, %v812
      %v814 = vpack.c.b16 %v527, %v526
      %v815 = vpack.c.b16 %v529, %v528
      %v816 = vpack.c.b16 %v531, %v530
      %v817 = vpack.c.b16 %v533, %v532
      %v818 = vpack.c.b16 %v535, %v534
      %v819 = vpack.c.b16 %v537, %v536
      %v820 = vpack.c.b16 %v539, %v538
      %v821 = vpack.c.b16 %v541, %v540
      %v822 = vpack.c.b16 %v543, %v542
      %v823 = vpack.c.b16 %v545, %v544
      %v824 = vpack.c.b16 %v547, %v546
      %v825 = vpack.c.b16 %v549, %v548
      %v826 = vpack.c.b16 %v551, %v550
      %v827 = vpack.c.b16 %v553, %v552
      %v828 = vpack.c.b16 %v555, %v554
      %v829 = vpack.c.b16 %v557, %v556
      %v830 = vpack.c.b16 %v559, %v558
      %v831 = vpack.c.b16 %v561, %v560
      %v832 = vpack.c.b16 %v563, %v562
      %v833 = vpack.c.b16 %v806, %v758
      %v834 = vpack.c.b16 %v807, %v807
      %vm835 = vsmask.f32 2304
      %v837 = vshrl.u32 %v814, 16
      %v839 = vrot.slane %v837, 5
      %v840 = vshll.u32 %v814, 16
      %v842 = vrot.slane %v840, 6
      %v843 = vor.u32 %v839, %v842
      %v845 = vshrl.u32 %v815, 16
      %v847 = vrot.slane %v845, 5
      %v848 = vshll.u32 %v815, 16
      %v850 = vrot.slane %v848, 6
      %v851 = vor.u32 %v847, %v850
      %v852 = vsel %vm835, %v843, %v851
      %v854 = vshrl.u32 %v816, 16
      %v856 = vrot.slane %v854, 5
      %v857 = vshll.u32 %v816, 16
      %v859 = vrot.slane %v857, 6
      %v860 = vor.u32 %v856, %v859
      %v861 = vsel %vm835, %v851, %v860
      %v863 = vshrl.u32 %v817, 16
      %v865 = vrot.slane %v863, 5
      %v866 = vshll.u32 %v817, 16
      %v868 = vrot.slane %v866, 6
      %v869 = vor.u32 %v865, %v868
      %v870 = vsel %vm835, %v860, %v869
      %v872 = vshrl.u32 %v818, 16
      %v874 = vrot.slane %v872, 5
      %v875 = vshll.u32 %v818, 16
      %v877 = vrot.slane %v875, 6
      %v878 = vor.u32 %v874, %v877
      %v879 = vsel %vm835, %v869, %v878
      %v881 = vshrl.u32 %v819, 16
      %v883 = vrot.slane %v881, 5
      %v884 = vshll.u32 %v819, 16
      %v886 = vrot.slane %v884, 6
      %v887 = vor.u32 %v883, %v886
      %v888 = vsel %vm835, %v878, %v887
      %v890 = vshrl.u32 %v820, 16
      %v892 = vrot.slane %v890, 5
      %v893 = vshll.u32 %v820, 16
      %v895 = vrot.slane %v893, 6
      %v896 = vor.u32 %v892, %v895
      %v897 = vsel %vm835, %v887, %v896
      %v899 = vshrl.u32 %v821, 16
      %v901 = vrot.slane %v899, 5
      %v902 = vshll.u32 %v821, 16
      %v904 = vrot.slane %v902, 6
      %v905 = vor.u32 %v901, %v904
      %v906 = vsel %vm835, %v896, %v905
      %v908 = vshrl.u32 %v822, 16
      %v910 = vrot.slane %v908, 5
      %v911 = vshll.u32 %v822, 16
      %v913 = vrot.slane %v911, 6
      %v914 = vor.u32 %v910, %v913
      %v915 = vsel %vm835, %v905, %v914
      %v917 = vshrl.u32 %v823, 16
      %v919 = vrot.slane %v917, 5
      %v920 = vshll.u32 %v823, 16
      %v922 = vrot.slane %v920, 6
      %v923 = vor.u32 %v919, %v922
      %v924 = vsel %vm835, %v914, %v923
      %v926 = vshrl.u32 %v824, 16
      %v928 = vrot.slane %v926, 5
      %v929 = vshll.u32 %v824, 16
      %v931 = vrot.slane %v929, 6
      %v932 = vor.u32 %v928, %v931
      %v933 = vsel %vm835, %v923, %v932
      %v935 = vshrl.u32 %v825, 16
      %v937 = vrot.slane %v935, 5
      %v938 = vshll.u32 %v825, 16
      %v940 = vrot.slane %v938, 6
      %v941 = vor.u32 %v937, %v940
      %v942 = vsel %vm835, %v932, %v941
      %v944 = vshrl.u32 %v826, 16
      %v946 = vrot.slane %v944, 5
      %v947 = vshll.u32 %v826, 16
      %v949 = vrot.slane %v947, 6
      %v950 = vor.u32 %v946, %v949
      %v951 = vsel %vm835, %v941, %v950
      %v953 = vshrl.u32 %v827, 16
      %v955 = vrot.slane %v953, 5
      %v956 = vshll.u32 %v827, 16
      %v958 = vrot.slane %v956, 6
      %v959 = vor.u32 %v955, %v958
      %v960 = vsel %vm835, %v950, %v959
      %v962 = vshrl.u32 %v828, 16
      %v964 = vrot.slane %v962, 5
      %v965 = vshll.u32 %v828, 16
      %v967 = vrot.slane %v965, 6
      %v968 = vor.u32 %v964, %v967
      %v969 = vsel %vm835, %v959, %v968
      %v971 = vshrl.u32 %v829, 16
      %v973 = vrot.slane %v971, 5
      %v974 = vshll.u32 %v829, 16
      %v976 = vrot.slane %v974, 6
      %v977 = vor.u32 %v973, %v976
      %v978 = vsel %vm835, %v968, %v977
      %v980 = vshrl.u32 %v830, 16
      %v982 = vrot.slane %v980, 5
      %v983 = vshll.u32 %v830, 16
      %v985 = vrot.slane %v983, 6
      %v986 = vor.u32 %v982, %v985
      %v987 = vsel %vm835, %v977, %v986
      %v989 = vshrl.u32 %v831, 16
      %v991 = vrot.slane %v989, 5
      %v992 = vshll.u32 %v831, 16
      %v994 = vrot.slane %v992, 6
      %v995 = vor.u32 %v991, %v994
      %v996 = vsel %vm835, %v986, %v995
      %v998 = vshrl.u32 %v832, 16
      %v1000 = vrot.slane %v998, 5
      %v1001 = vshll.u32 %v832, 16
      %v1003 = vrot.slane %v1001, 6
      %v1004 = vor.u32 %v1000, %v1003
      %v1005 = vsel %vm835, %v995, %v1004
      %v1007 = vshrl.u32 %v833, 16
      %v1009 = vrot.slane %v1007, 5
      %v1010 = vshll.u32 %v833, 16
      %v1012 = vrot.slane %v1010, 6
      %v1013 = vor.u32 %v1009, %v1012
      %v1014 = vsel %vm835, %v1004, %v1013
      %v1016 = vshrl.u32 %v834, 16
      %v1018 = vrot.slane %v1016, 5
      %v1019 = vshll.u32 %v834, 16
      %v1021 = vrot.slane %v1019, 6
      %v1022 = vor.u32 %v1018, %v1021
      %v1023 = vsel %vm835, %v1013, %v1022
      %v1025 = vunpack.c.l.b16 %v436
      %v1026 = vpack.c.b16 %v1025, %v807
      %vm1027 = vcmask 1041408
      %v1028 = vrot.slane %v814, 6
      %v1029 = vrot.slane %v815, 6
      %v1030 = vsel %vm1027, %v1028, %v1029
      %v1031 = vrot.slane %v816, 6
      %v1032 = vsel %vm1027, %v1029, %v1031
      %v1033 = vrot.slane %v817, 6
      %v1034 = vsel %vm1027, %v1031, %v1033
      %v1035 = vrot.slane %v818, 6
      %v1036 = vsel %vm1027, %v1033, %v1035
      %v1037 = vrot.slane %v819, 6
      %v1038 = vsel %vm1027, %v1035, %v1037
      %v1039 = vrot.slane %v820, 6
      %v1040 = vsel %vm1027, %v1037, %v1039
      %v1041 = vrot.slane %v821, 6
      %v1042 = vsel %vm1027, %v1039, %v1041
      %v1043 = vrot.slane %v822, 6
      %v1044 = vsel %vm1027, %v1041, %v1043
      %v1045 = vrot.slane %v823, 6
      %v1046 = vsel %vm1027, %v1043, %v1045
      %v1047 = vrot.slane %v824, 6
      %v1048 = vsel %vm1027, %v1045, %v1047
      %v1049 = vrot.slane %v825, 6
      %v1050 = vsel %vm1027, %v1047, %v1049
      %v1051 = vrot.slane %v826, 6
      %v1052 = vsel %vm1027, %v1049, %v1051
      %v1053 = vrot.slane %v827, 6
      %v1054 = vsel %vm1027, %v1051, %v1053
      %v1055 = vrot.slane %v828, 6
      %v1056 = vsel %vm1027, %v1053, %v1055
      %v1057 = vrot.slane %v829, 6
      %v1058 = vsel %vm1027, %v1055, %v1057
      %v1059 = vrot.slane %v830, 6
      %v1060 = vsel %vm1027, %v1057, %v1059
      %v1061 = vrot.slane %v831, 6
      %v1062 = vsel %vm1027, %v1059, %v1061
      %v1063 = vrot.slane %v832, 6
      %v1064 = vsel %vm1027, %v1061, %v1063
      %v1065 = vrot.slane %v833, 6
      %v1066 = vsel %vm1027, %v1063, %v1065
      %v1067 = vrot.slane %v1026, 6
      %v1068 = vsel %vm1027, %v1065, %v1067
      %v1111 = vunpack.c.l.b16 %v437
      %v1112 = vunpack.c.l.b16 %v438
      %v1113 = vunpack.c.l.b16 %v439
      %v1114 = vunpack.c.l.b16 %v440
      %v1115 = vunpack.c.l.b16 %v441
      %v1116 = vunpack.c.l.b16 %v442
      %v1117 = vunpack.c.l.b16 %v443
      %v1118 = vunpack.c.l.b16 %v444
      %v1119 = vunpack.c.l.b16 %v445
      %v1120 = vunpack.c.l.b16 %v446
      %v1121 = vunpack.c.l.b16 %v447
      %v1122 = vunpack.c.l.b16 %v448
      %v1123 = vunpack.c.l.b16 %v449
      %v1124 = vunpack.c.l.b16 %v450
      %v1125 = vunpack.c.l.b16 %v451
      %v1126 = vunpack.c.l.b16 %v452
      %v1127 = vunpack.c.l.b16 %v453
      %v1128 = vunpack.c.l.b16 %v454
      %v1129 = vunpack.c.l.b16 %v455
      %v1130 = vunpack.c.l.b16 %v456
      %v1131 = vunpack.c.l.b16 %v457
      %v1132 = vunpack.c.l.b16 %v458
      %v1133 = vunpack.c.l.b16 %v459
      %v1134 = vunpack.c.l.b16 %v460
      %v1135 = vunpack.c.l.b16 %v461
      %v1136 = vunpack.c.l.b16 %v462
      %v1137 = vunpack.c.l.b16 %v463
      %v1138 = vunpack.c.l.b16 %v464
      %v1139 = vunpack.c.l.b16 %v465
      %v1140 = vunpack.c.l.b16 %v466
      %v1141 = vunpack.c.l.b16 %v467
      %v1142 = vunpack.c.l.b16 %v468
      %v1143 = vunpack.c.l.b16 %v469
      %v1144 = vunpack.c.l.b16 %v470
      %v1145 = vunpack.c.l.b16 %v471
      %v1146 = vunpack.c.l.b16 %v472
      %v1147 = vunpack.c.l.b16 %v473
      %v1148 = vunpack.c.l.b16 %v474
      %v1149 = vunpack.c.l.b16 %v475
      %v1150 = vunpack.c.l.b16 %v476
      %v1151 = vunpack.c.l.b16 %v477
      %v1152 = vunpack.c.l.b16 %v478
      %v1153 = vpack.c.b16 %v1112, %v1111
      %v1154 = vpack.c.b16 %v1114, %v1113
      %v1155 = vpack.c.b16 %v1116, %v1115
      %v1156 = vpack.c.b16 %v1118, %v1117
      %v1157 = vpack.c.b16 %v1120, %v1119
      %v1158 = vpack.c.b16 %v1122, %v1121
      %v1159 = vpack.c.b16 %v1124, %v1123
      %v1160 = vpack.c.b16 %v1126, %v1125
      %v1161 = vpack.c.b16 %v1128, %v1127
      %v1162 = vpack.c.b16 %v1130, %v1129
      %v1163 = vpack.c.b16 %v1132, %v1131
      %v1164 = vpack.c.b16 %v1134, %v1133
      %v1165 = vpack.c.b16 %v1136, %v1135
      %v1166 = vpack.c.b16 %v1138, %v1137
      %v1167 = vpack.c.b16 %v1140, %v1139
      %v1168 = vpack.c.b16 %v1142, %v1141
      %v1169 = vpack.c.b16 %v1144, %v1143
      %v1170 = vpack.c.b16 %v1146, %v1145
      %v1171 = vpack.c.b16 %v1148, %v1147
      %v1172 = vpack.c.b16 %v1150, %v1149
      %v1173 = vpack.c.b16 %v1152, %v1151
      %v1174 = vrot.slane %v1153, 6
      %v1175 = vrot.slane %v1154, 6
      %v1176 = vsel %vm1027, %v1174, %v1175
      %v1177 = vrot.slane %v1155, 6
      %v1178 = vsel %vm1027, %v1175, %v1177
      %v1179 = vrot.slane %v1156, 6
      %v1180 = vsel %vm1027, %v1177, %v1179
      %v1181 = vrot.slane %v1157, 6
      %v1182 = vsel %vm1027, %v1179, %v1181
      %v1183 = vrot.slane %v1158, 6
      %v1184 = vsel %vm1027, %v1181, %v1183
      %v1185 = vrot.slane %v1159, 6
      %v1186 = vsel %vm1027, %v1183, %v1185
      %v1187 = vrot.slane %v1160, 6
      %v1188 = vsel %vm1027, %v1185, %v1187
      %v1189 = vrot.slane %v1161, 6
      %v1190 = vsel %vm1027, %v1187, %v1189
      %v1191 = vrot.slane %v1162, 6
      %v1192 = vsel %vm1027, %v1189, %v1191
      %v1193 = vrot.slane %v1163, 6
      %v1194 = vsel %vm1027, %v1191, %v1193
      %v1195 = vrot.slane %v1164, 6
      %v1196 = vsel %vm1027, %v1193, %v1195
      %v1197 = vrot.slane %v1165, 6
      %v1198 = vsel %vm1027, %v1195, %v1197
      %v1199 = vrot.slane %v1166, 6
      %v1200 = vsel %vm1027, %v1197, %v1199
      %v1201 = vrot.slane %v1167, 6
      %v1202 = vsel %vm1027, %v1199, %v1201
      %v1203 = vrot.slane %v1168, 6
      %v1204 = vsel %vm1027, %v1201, %v1203
      %v1205 = vrot.slane %v1169, 6
      %v1206 = vsel %vm1027, %v1203, %v1205
      %v1207 = vrot.slane %v1170, 6
      %v1208 = vsel %vm1027, %v1205, %v1207
      %v1209 = vrot.slane %v1171, 6
      %v1210 = vsel %vm1027, %v1207, %v1209
      %v1211 = vrot.slane %v1172, 6
      %v1212 = vsel %vm1027, %v1209, %v1211
      %v1213 = vrot.slane %v1173, 6
      %v1214 = vsel %vm1027, %v1211, %v1213
      %v1216 = vunpack.c.l.b16 %v479
      %v1217 = vpack.c.b16 %v1112, %v1216
      %vm1218 = vsmask.f32 1280
      %v1220 = vshrl.u32 %v1217, 16
      %v1222 = vrot.slane %v1220, 6
      %v1223 = vshll.u32 %v1217, 16
      %v1225 = vrot.slane %v1223, 7
      %v1226 = vor.u32 %v1222, %v1225
      %v1228 = vshrl.u32 %v1154, 16
      %v1230 = vrot.slane %v1228, 6
      %v1231 = vshll.u32 %v1154, 16
      %v1233 = vrot.slane %v1231, 7
      %v1234 = vor.u32 %v1230, %v1233
      %v1235 = vsel %vm1218, %v1226, %v1234
      %v1237 = vshrl.u32 %v1155, 16
      %v1239 = vrot.slane %v1237, 6
      %v1240 = vshll.u32 %v1155, 16
      %v1242 = vrot.slane %v1240, 7
      %v1243 = vor.u32 %v1239, %v1242
      %v1244 = vsel %vm1218, %v1234, %v1243
      %v1246 = vshrl.u32 %v1156, 16
      %v1248 = vrot.slane %v1246, 6
      %v1249 = vshll.u32 %v1156, 16
      %v1251 = vrot.slane %v1249, 7
      %v1252 = vor.u32 %v1248, %v1251
      %v1253 = vsel %vm1218, %v1243, %v1252
      %v1255 = vshrl.u32 %v1157, 16
      %v1257 = vrot.slane %v1255, 6
      %v1258 = vshll.u32 %v1157, 16
      %v1260 = vrot.slane %v1258, 7
      %v1261 = vor.u32 %v1257, %v1260
      %v1262 = vsel %vm1218, %v1252, %v1261
      %v1264 = vshrl.u32 %v1158, 16
      %v1266 = vrot.slane %v1264, 6
      %v1267 = vshll.u32 %v1158, 16
      %v1269 = vrot.slane %v1267, 7
      %v1270 = vor.u32 %v1266, %v1269
      %v1271 = vsel %vm1218, %v1261, %v1270
      %v1273 = vshrl.u32 %v1159, 16
      %v1275 = vrot.slane %v1273, 6
      %v1276 = vshll.u32 %v1159, 16
      %v1278 = vrot.slane %v1276, 7
      %v1279 = vor.u32 %v1275, %v1278
      %v1280 = vsel %vm1218, %v1270, %v1279
      %v1282 = vshrl.u32 %v1160, 16
      %v1284 = vrot.slane %v1282, 6
      %v1285 = vshll.u32 %v1160, 16
      %v1287 = vrot.slane %v1285, 7
      %v1288 = vor.u32 %v1284, %v1287
      %v1289 = vsel %vm1218, %v1279, %v1288
      %v1291 = vshrl.u32 %v1161, 16
      %v1293 = vrot.slane %v1291, 6
      %v1294 = vshll.u32 %v1161, 16
      %v1296 = vrot.slane %v1294, 7
      %v1297 = vor.u32 %v1293, %v1296
      %v1298 = vsel %vm1218, %v1288, %v1297
      %v1300 = vshrl.u32 %v1162, 16
      %v1302 = vrot.slane %v1300, 6
      %v1303 = vshll.u32 %v1162, 16
      %v1305 = vrot.slane %v1303, 7
      %v1306 = vor.u32 %v1302, %v1305
      %v1307 = vsel %vm1218, %v1297, %v1306
      %v1309 = vshrl.u32 %v1163, 16
      %v1311 = vrot.slane %v1309, 6
      %v1312 = vshll.u32 %v1163, 16
      %v1314 = vrot.slane %v1312, 7
      %v1315 = vor.u32 %v1311, %v1314
      %v1316 = vsel %vm1218, %v1306, %v1315
      %v1318 = vshrl.u32 %v1164, 16
      %v1320 = vrot.slane %v1318, 6
      %v1321 = vshll.u32 %v1164, 16
      %v1323 = vrot.slane %v1321, 7
      %v1324 = vor.u32 %v1320, %v1323
      %v1325 = vsel %vm1218, %v1315, %v1324
      %v1327 = vshrl.u32 %v1165, 16
      %v1329 = vrot.slane %v1327, 6
      %v1330 = vshll.u32 %v1165, 16
      %v1332 = vrot.slane %v1330, 7
      %v1333 = vor.u32 %v1329, %v1332
      %v1334 = vsel %vm1218, %v1324, %v1333
      %v1336 = vshrl.u32 %v1166, 16
      %v1338 = vrot.slane %v1336, 6
      %v1339 = vshll.u32 %v1166, 16
      %v1341 = vrot.slane %v1339, 7
      %v1342 = vor.u32 %v1338, %v1341
      %v1343 = vsel %vm1218, %v1333, %v1342
      %v1345 = vshrl.u32 %v1167, 16
      %v1347 = vrot.slane %v1345, 6
      %v1348 = vshll.u32 %v1167, 16
      %v1350 = vrot.slane %v1348, 7
      %v1351 = vor.u32 %v1347, %v1350
      %v1352 = vsel %vm1218, %v1342, %v1351
      %v1354 = vshrl.u32 %v1168, 16
      %v1356 = vrot.slane %v1354, 6
      %v1357 = vshll.u32 %v1168, 16
      %v1359 = vrot.slane %v1357, 7
      %v1360 = vor.u32 %v1356, %v1359
      %v1361 = vsel %vm1218, %v1351, %v1360
      %v1363 = vshrl.u32 %v1169, 16
      %v1365 = vrot.slane %v1363, 6
      %v1366 = vshll.u32 %v1169, 16
      %v1368 = vrot.slane %v1366, 7
      %v1369 = vor.u32 %v1365, %v1368
      %v1370 = vsel %vm1218, %v1360, %v1369
      %v1372 = vshrl.u32 %v1170, 16
      %v1374 = vrot.slane %v1372, 6
      %v1375 = vshll.u32 %v1170, 16
      %v1377 = vrot.slane %v1375, 7
      %v1378 = vor.u32 %v1374, %v1377
      %v1379 = vsel %vm1218, %v1369, %v1378
      %v1381 = vshrl.u32 %v1171, 16
      %v1383 = vrot.slane %v1381, 6
      %v1384 = vshll.u32 %v1171, 16
      %v1386 = vrot.slane %v1384, 7
      %v1387 = vor.u32 %v1383, %v1386
      %v1388 = vsel %vm1218, %v1378, %v1387
      %v1390 = vshrl.u32 %v1172, 16
      %v1392 = vrot.slane %v1390, 6
      %v1393 = vshll.u32 %v1172, 16
      %v1395 = vrot.slane %v1393, 7
      %v1396 = vor.u32 %v1392, %v1395
      %v1397 = vsel %vm1218, %v1387, %v1396
      %v1399 = vshrl.u32 %v1173, 16
      %v1401 = vrot.slane %v1399, 6
      %v1402 = vshll.u32 %v1173, 16
      %v1404 = vrot.slane %v1402, 7
      %v1405 = vor.u32 %v1401, %v1404
      %v1406 = vsel %vm1218, %v1396, %v1405
      %v1408 = vunpack.c.l.b16 %v480
      %v1409 = vpack.c.b16 %v1408, %v1151
      %vm1410 = vcmask 1040384
      %v1411 = vrot.slane %v1217, 7
      %v1412 = vrot.slane %v1154, 7
      %v1413 = vsel %vm1410, %v1411, %v1412
      %v1414 = vrot.slane %v1155, 7
      %v1415 = vsel %vm1410, %v1412, %v1414
      %v1416 = vrot.slane %v1156, 7
      %v1417 = vsel %vm1410, %v1414, %v1416
      %v1418 = vrot.slane %v1157, 7
      %v1419 = vsel %vm1410, %v1416, %v1418
      %v1420 = vrot.slane %v1158, 7
      %v1421 = vsel %vm1410, %v1418, %v1420
      %v1422 = vrot.slane %v1159, 7
      %v1423 = vsel %vm1410, %v1420, %v1422
      %v1424 = vrot.slane %v1160, 7
      %v1425 = vsel %vm1410, %v1422, %v1424
      %v1426 = vrot.slane %v1161, 7
      %v1427 = vsel %vm1410, %v1424, %v1426
      %v1428 = vrot.slane %v1162, 7
      %v1429 = vsel %vm1410, %v1426, %v1428
      %v1430 = vrot.slane %v1163, 7
      %v1431 = vsel %vm1410, %v1428, %v1430
      %v1432 = vrot.slane %v1164, 7
      %v1433 = vsel %vm1410, %v1430, %v1432
      %v1434 = vrot.slane %v1165, 7
      %v1435 = vsel %vm1410, %v1432, %v1434
      %v1436 = vrot.slane %v1166, 7
      %v1437 = vsel %vm1410, %v1434, %v1436
      %v1438 = vrot.slane %v1167, 7
      %v1439 = vsel %vm1410, %v1436, %v1438
      %v1440 = vrot.slane %v1168, 7
      %v1441 = vsel %vm1410, %v1438, %v1440
      %v1442 = vrot.slane %v1169, 7
      %v1443 = vsel %vm1410, %v1440, %v1442
      %v1444 = vrot.slane %v1170, 7
      %v1445 = vsel %vm1410, %v1442, %v1444
      %v1446 = vrot.slane %v1171, 7
      %v1447 = vsel %vm1410, %v1444, %v1446
      %v1448 = vrot.slane %v1172, 7
      %v1449 = vsel %vm1410, %v1446, %v1448
      %v1450 = vrot.slane %v1409, 7
      %v1451 = vsel %vm1410, %v1448, %v1450
      %v1452 = vld [vmem:[%s1] sm:$0xf]
      %v1453 = vld [vmem:[%s1 + $0x4] sm:$0xf]
      %v1454 = vld [vmem:[%s1 + $0x8] sm:$0xf]
      %v1455 = vld [vmem:[%s1 + $0xc] sm:$0xf]
      %v1456 = vld [vmem:[%s1 + $0x10] sm:$0xf]
      %v1457 = vld [vmem:[%s1 + $0x14] sm:$0xf]
      %v1458 = vld [vmem:[%s1 + $0x18] sm:$0xf]
      %v1459 = vld [vmem:[%s1 + $0x1c] sm:$0xf]
      %v1460 = vld [vmem:[%s1 + $0x20] sm:$0xf]
      %v1461 = vld [vmem:[%s1 + $0x24] sm:$0xf]
      %v1462 = vld [vmem:[%s1 + $0x28] sm:$0xf]
      %v1463 = vld [vmem:[%s1 + $0x2c] sm:$0xf]
      %v1464 = vld [vmem:[%s1 + $0x30] sm:$0xf]
      %v1465 = vld [vmem:[%s1 + $0x34] sm:$0xf]
      %v1466 = vld [vmem:[%s1 + $0x38] sm:$0xf]
      %v1467 = vld [vmem:[%s1 + $0x3c] sm:$0xf]
      %v1468 = vld [vmem:[%s1 + $0x40] sm:$0xf]
      %v1469 = vld [vmem:[%s1 + $0x44] sm:$0xf]
      %v1470 = vld [vmem:[%s1 + $0x48] sm:$0xf]
      %v1471 = vld [vmem:[%s1 + $0x4c] sm:$0xf]
      %v1472 = vld [vmem:[%s1 + $0x50] sm:$0xf]
      %v1473 = vld [vmem:[%s1 + $0x54] sm:$0xf]
      %v1474 = vld [vmem:[%s1 + $0x58] sm:$0xf]
      %v1475 = vld [vmem:[%s1 + $0x5c] sm:$0xf]
      %v1476 = vld [vmem:[%s1 + $0x60] sm:$0xf]
      %v1477 = vld [vmem:[%s1 + $0x64] sm:$0xf]
      %v1478 = vld [vmem:[%s1 + $0x68] sm:$0xf]
      %v1479 = vld [vmem:[%s1 + $0x6c] sm:$0xf]
      %v1480 = vld [vmem:[%s1 + $0x70] sm:$0xf]
      %v1481 = vld [vmem:[%s1 + $0x74] sm:$0xf]
      %v1482 = vld [vmem:[%s1 + $0x78] sm:$0xf]
      %v1483 = vld [vmem:[%s1 + $0x7c] sm:$0xf]
      %v1484 = vld [vmem:[%s1 + $0x80] sm:$0xf]
      %v1485 = vld [vmem:[%s1 + $0x84] sm:$0xf]
      %v1486 = vld [vmem:[%s1 + $0x88] sm:$0xf]
      %v1487 = vld [vmem:[%s1 + $0x8c] sm:$0xf]
      %v1488 = vld [vmem:[%s1 + $0x90] sm:$0xf]
      %v1489 = vld [vmem:[%s1 + $0x94] sm:$0xf]
      %v1490 = vld [vmem:[%s1 + $0x98] sm:$0xf]
      %v1491 = vld [vmem:[%s1 + $0x9c] sm:$0xf]
      %v1492 = vld [vmem:[%s1 + $0xa0] sm:$0xf]
      %v1493 = vld [vmem:[%s1 + $0xa4] sm:$0xf]
      %v1494 = vld [vmem:[%s1 + $0xa8] sm:$0xf]
      %v1495 = vld [vmem:[%s1 + $0xac] sm:$0xf]
      %v1496 = vld [vmem:[%s1 + $0xb0] sm:$0xf]
      %v1497 = vld [vmem:[%s1 + $0xb4] sm:$0xf]
      %v1498 = vld [vmem:[%s1 + $0xb8] sm:$0xf]
      %v1499 = vld [vmem:[%s1 + $0xbc] sm:$0xf]
      %v1500 = vld [vmem:[%s1 + $0xc0] sm:$0xf]
      %v1501 = vld [vmem:[%s1 + $0xc4] sm:$0xf]
      %v1502 = vld [vmem:[%s1 + $0xc8] sm:$0xf]
      %v1503 = vld [vmem:[%s1 + $0xcc] sm:$0xf]
      %v1504 = vld [vmem:[%s1 + $0xd0] sm:$0xf]
      %v1505 = vld [vmem:[%s1 + $0xd4] sm:$0xf]
      %v1506 = vld [vmem:[%s1 + $0xd8] sm:$0xf]
      %v1507 = vld [vmem:[%s1 + $0xdc] sm:$0xf]
      %v1508 = vld [vmem:[%s1 + $0xe0] sm:$0xf]
      %v1509 = vld [vmem:[%s1 + $0xe4] sm:$0xf]
      %v1510 = vld [vmem:[%s1 + $0xe8] sm:$0xf]
      %v1511 = vld [vmem:[%s1 + $0xec] sm:$0xf]
      %v1512 = vld [vmem:[%s1 + $0xf0] sm:$0xf]
      %v1513 = vld [vmem:[%s1 + $0xf4] sm:$0xf]
      %v1514 = vld [vmem:[%s1 + $0xf8] sm:$0xf]
      %v1515 = vld [vmem:[%s1 + $0xfc] sm:$0xf]
      %v1516 = vld [vmem:[%s1 + $0x100] sm:$0xf]
      %v1517 = vld [vmem:[%s1 + $0x104] sm:$0xf]
      %v1518 = vld [vmem:[%s1 + $0x108] sm:$0xf]
      %v1519 = vld [vmem:[%s1 + $0x10c] sm:$0xf]
      %v1520 = vld [vmem:[%s1 + $0x110] sm:$0xf]
      %v1521 = vld [vmem:[%s1 + $0x114] sm:$0xf]
      %v1522 = vld [vmem:[%s1 + $0x118] sm:$0xf]
      %v1523 = vld [vmem:[%s1 + $0x11c] sm:$0xf]
      %v1524 = vld [vmem:[%s1 + $0x120] sm:$0xf]
      %v1525 = vld [vmem:[%s1 + $0x124] sm:$0xf]
      %v1526 = vld [vmem:[%s1 + $0x128] sm:$0xf]
      %v1527 = vld [vmem:[%s1 + $0x12c] sm:$0xf]
      %v1528 = vld [vmem:[%s1 + $0x130] sm:$0xf]
      %v1529 = vld [vmem:[%s1 + $0x134] sm:$0xf]
      %v1530 = vld [vmem:[%s1 + $0x138] sm:$0xf]
      %v1531 = vld [vmem:[%s1 + $0x13c] sm:$0xf]
      %v1532 = vld [vmem:[%s1 + $0x140] sm:$0xf]
      %v1533 = vld [vmem:[%s1 + $0x144] sm:$0xf]
      %v1534 = vld [vmem:[%s1 + $0x148] sm:$0xf]
      %v1535 = vld [vmem:[%s1 + $0x14c] sm:$0xf]
      %v1536 = vld [vmem:[%s1 + $0x150] sm:$0xf]
      %v1537 = vld [vmem:[%s1 + $0x154] sm:$0xf]
      %v1538 = vld [vmem:[%s1 + $0x158] sm:$0xf]
      %v1539 = vld [vmem:[%s1 + $0x15c] sm:$0xf]
      %v1540 = vld [vmem:[%s1 + $0x160] sm:$0xf]
      %v1541 = vld [vmem:[%s1 + $0x164] sm:$0xf]
      %v1542 = vld [vmem:[%s1 + $0x168] sm:$0xf]
      %v1543 = vld [vmem:[%s1 + $0x16c] sm:$0xf]
      %v1544 = vld [vmem:[%s1 + $0x170] sm:$0xf]
      %v1545 = vld [vmem:[%s1 + $0x174] sm:$0xf]
      %v1546 = vld [vmem:[%s1 + $0x178] sm:$0xf]
      %v1547 = vld [vmem:[%s1 + $0x17c] sm:$0xf]
      %v1548 = vld [vmem:[%s1 + $0x180] sm:$0xf]
      %v1549 = vld [vmem:[%s1 + $0x184] sm:$0xf]
      %v1550 = vld [vmem:[%s1 + $0x188] sm:$0xf]
      %v1551 = vld [vmem:[%s1 + $0x18c] sm:$0xf]
      %v1552 = vld [vmem:[%s1 + $0x190] sm:$0xf]
      %v1553 = vld [vmem:[%s1 + $0x194] sm:$0xf]
      %v1554 = vld [vmem:[%s1 + $0x198] sm:$0xf]
      %v1555 = vld [vmem:[%s1 + $0x19c] sm:$0xf]
      %v1556 = vld [vmem:[%s1 + $0x1a0] sm:$0xf]
      %v1557 = vld [vmem:[%s1 + $0x1a4] sm:$0xf]
      %v1558 = vld [vmem:[%s1 + $0x1a8] sm:$0xf]
      %v1559 = vld [vmem:[%s1 + $0x1ac] sm:$0xf]
      %v1560 = vld [vmem:[%s1 + $0x1b0] sm:$0xf]
      %v1561 = vld [vmem:[%s1 + $0x1b4] sm:$0xf]
      %v1562 = vld [vmem:[%s1 + $0x1b8] sm:$0xf]
      %v1563 = vld [vmem:[%s1 + $0x1bc] sm:$0xf]
      %v1564 = vld [vmem:[%s1 + $0x1c0] sm:$0xf]
      %v1565 = vld [vmem:[%s1 + $0x1c4] sm:$0xf]
      %v1566 = vld [vmem:[%s1 + $0x1c8] sm:$0xf]
      %v1567 = vld [vmem:[%s1 + $0x1cc] sm:$0xf]
      %v1568 = vld [vmem:[%s1 + $0x1d0] sm:$0xf]
      %v1569 = vld [vmem:[%s1 + $0x1d4] sm:$0xf]
      %v1570 = vld [vmem:[%s1 + $0x1d8] sm:$0xf]
      %v1571 = vld [vmem:[%s1 + $0x1dc] sm:$0xf]
      %v1572 = vld [vmem:[%s1 + $0x1e0] sm:$0xf]
      %v1573 = vld [vmem:[%s1 + $0x1e4] sm:$0xf]
      %v1574 = vld [vmem:[%s1 + $0x1e8] sm:$0xf]
      %v1575 = vld [vmem:[%s1 + $0x1ec] sm:$0xf]
      %v1576 = vld [vmem:[%s1 + $0x1f0] sm:$0xf]
      %v1577 = vld [vmem:[%s1 + $0x1f4] sm:$0xf]
      %v1578 = vld [vmem:[%s1 + $0x1f8] sm:$0xf]
      %v1579 = vld [vmem:[%s1 + $0x1fc] sm:$0xf]
      %v1580 = vld [vmem:[%s1 + $0x200] sm:$0xf]
      %v1581 = vld [vmem:[%s1 + $0x204] sm:$0xf]
      %v1582 = vld [vmem:[%s1 + $0x208] sm:$0xf]
      %v1583 = vld [vmem:[%s1 + $0x20c] sm:$0xf]
      %v1584 = vld [vmem:[%s1 + $0x210] sm:$0xf]
      %v1585 = vld [vmem:[%s1 + $0x214] sm:$0xf]
      %v1586 = vld [vmem:[%s1 + $0x218] sm:$0xf]
      %v1587 = vld [vmem:[%s1 + $0x21c] sm:$0xf]
      %v1588 = vld [vmem:[%s1 + $0x220] sm:$0xf]
      %v1589 = vld [vmem:[%s1 + $0x224] sm:$0xf]
      %v1590 = vld [vmem:[%s1 + $0x228] sm:$0xf]
      %v1591 = vld [vmem:[%s1 + $0x22c] sm:$0xf]
      %v1592 = vld [vmem:[%s1 + $0x230] sm:$0xf]
      %v1593 = vld [vmem:[%s1 + $0x234] sm:$0xf]
      %v1594 = vld [vmem:[%s1 + $0x238] sm:$0xf]
      %v1595 = vld [vmem:[%s1 + $0x23c] sm:$0xf]
      %v1596 = vld [vmem:[%s2] sm:$0x1]
      %v1598 = vlaneseq
      %v1599 = vshrl.u32 %v1598, 7
      %v1600 = vsub.s32 0, %v1599
      %v1601 = vrot.slane %v1596, %v1600
      %vm1603 = vsmask.f32 5376
      %v1605 = vshrl.u32 %v565, 16
      %v1607 = vrot.slane %v1605, 2
      %v1608 = vshll.u32 %v565, 16
      %v1610 = vrot.slane %v1608, 3
      %v1611 = vor.u32 %v1607, %v1610
      %v1612 = vrot.slane %v602, 2
      %v1613 = vrot.slane %v598, 3
      %v1614 = vor.u32 %v1612, %v1613
      %v1615 = vsel %vm1603, %v1611, %v1614
      %v1617 = vshrl.u32 %v601, 16
      %v1619 = vrot.slane %v1617, 2
      %v1620 = vshll.u32 %v601, 16
      %v1622 = vrot.slane %v1620, 3
      %v1623 = vor.u32 %v1619, %v1622
      %v1625 = vshrl.u32 %v609, 16
      %v1627 = vrot.slane %v1625, 2
      %v1628 = vshll.u32 %v609, 16
      %v1630 = vrot.slane %v1628, 3
      %v1631 = vor.u32 %v1627, %v1630
      %v1632 = vsel %vm1603, %v1623, %v1631
      %v1634 = vshrl.u32 %v763, 16
      %v1636 = vrot.slane %v1634, 2
      %v1637 = vshll.u32 %v763, 16
      %v1639 = vrot.slane %v1637, 3
      %v1640 = vor.u32 %v1636, %v1639
      %v1642 = vshrl.u32 %v765, 16
      %v1644 = vrot.slane %v1642, 2
      %v1645 = vshll.u32 %v765, 16
      %v1647 = vrot.slane %v1645, 3
      %v1648 = vor.u32 %v1644, %v1647
      %v1649 = vsel %vm1603, %v1640, %v1648
      %v1651 = vshrl.u32 %v811, 16
      %v1653 = vrot.slane %v1651, 2
      %v1654 = vshll.u32 %v811, 16
      %v1656 = vrot.slane %v1654, 3
      %v1657 = vor.u32 %v1653, %v1656
      %v1659 = vshrl.u32 %v767, 16
      %v1661 = vrot.slane %v1659, 2
      %v1662 = vshll.u32 %v767, 16
      %v1664 = vrot.slane %v1662, 3
      %v1665 = vor.u32 %v1661, %v1664
      %v1666 = vsel %vm1603, %v1657, %v1665
      %v1668 = vshrl.u32 %v843, 16
      %v1670 = vrot.slane %v1668, 2
      %v1671 = vshll.u32 %v843, 16
      %v1673 = vrot.slane %v1671, 3
      %v1674 = vor.u32 %v1670, %v1673
      %v1676 = vshrl.u32 %v852, 16
      %v1678 = vrot.slane %v1676, 2
      %v1679 = vshll.u32 %v852, 16
      %v1681 = vrot.slane %v1679, 3
      %v1682 = vor.u32 %v1678, %v1681
      %v1683 = vsel %vm1603, %v1674, %v1682
      %v1685 = vshrl.u32 %v1028, 16
      %v1687 = vrot.slane %v1685, 2
      %v1688 = vshll.u32 %v1028, 16
      %v1690 = vrot.slane %v1688, 3
      %v1691 = vor.u32 %v1687, %v1690
      %v1693 = vshrl.u32 %v1030, 16
      %v1695 = vrot.slane %v1693, 2
      %v1696 = vshll.u32 %v1030, 16
      %v1698 = vrot.slane %v1696, 3
      %v1699 = vor.u32 %v1695, %v1698
      %v1700 = vsel %vm1603, %v1691, %v1699
      %v1702 = vshrl.u32 %v1174, 16
      %v1704 = vrot.slane %v1702, 2
      %v1705 = vshll.u32 %v1174, 16
      %v1707 = vrot.slane %v1705, 3
      %v1708 = vor.u32 %v1704, %v1707
      %v1710 = vshrl.u32 %v1176, 16
      %v1712 = vrot.slane %v1710, 2
      %v1713 = vshll.u32 %v1176, 16
      %v1715 = vrot.slane %v1713, 3
      %v1716 = vor.u32 %v1712, %v1715
      %v1717 = vsel %vm1603, %v1708, %v1716
      %v1719 = vshrl.u32 %v1226, 16
      %v1721 = vrot.slane %v1719, 2
      %v1722 = vshll.u32 %v1226, 16
      %v1724 = vrot.slane %v1722, 3
      %v1725 = vor.u32 %v1721, %v1724
      %v1727 = vshrl.u32 %v1235, 16
      %v1729 = vrot.slane %v1727, 2
      %v1730 = vshll.u32 %v1235, 16
      %v1732 = vrot.slane %v1730, 3
      %v1733 = vor.u32 %v1729, %v1732
      %v1734 = vsel %vm1603, %v1725, %v1733
      %v1736 = vshrl.u32 %v1411, 16
      %v1738 = vrot.slane %v1736, 2
      %v1739 = vshll.u32 %v1411, 16
      %v1741 = vrot.slane %v1739, 3
      %v1742 = vor.u32 %v1738, %v1741
      %v1744 = vshrl.u32 %v1413, 16
      %v1746 = vrot.slane %v1744, 2
      %v1747 = vshll.u32 %v1413, 16
      %v1749 = vrot.slane %v1747, 3
      %v1750 = vor.u32 %v1746, %v1749
      %v1751 = vsel %vm1603, %v1742, %v1750
      %v1752 = vrot.slane %v610, 2
      %v1753 = vrot.slane %v606, 3
      %v1754 = vor.u32 %v1752, %v1753
      %v1755 = vsel %vm1603, %v1614, %v1754
      %v1757 = vshrl.u32 %v617, 16
      %v1759 = vrot.slane %v1757, 2
      %v1760 = vshll.u32 %v617, 16
      %v1762 = vrot.slane %v1760, 3
      %v1763 = vor.u32 %v1759, %v1762
      %v1764 = vsel %vm1603, %v1631, %v1763
      %v1765 = vsel %vm1603, %v1648, %v1665
      %v1767 = vshrl.u32 %v769, 16
      %v1769 = vrot.slane %v1767, 2
      %v1770 = vshll.u32 %v769, 16
      %v1772 = vrot.slane %v1770, 3
      %v1773 = vor.u32 %v1769, %v1772
      %v1774 = vsel %vm1603, %v1665, %v1773
      %v1776 = vshrl.u32 %v861, 16
      %v1778 = vrot.slane %v1776, 2
      %v1779 = vshll.u32 %v861, 16
      %v1781 = vrot.slane %v1779, 3
      %v1782 = vor.u32 %v1778, %v1781
      %v1783 = vsel %vm1603, %v1682, %v1782
      %v1785 = vshrl.u32 %v1032, 16
      %v1787 = vrot.slane %v1785, 2
      %v1788 = vshll.u32 %v1032, 16
      %v1790 = vrot.slane %v1788, 3
      %v1791 = vor.u32 %v1787, %v1790
      %v1792 = vsel %vm1603, %v1699, %v1791
      %v1794 = vshrl.u32 %v1178, 16
      %v1796 = vrot.slane %v1794, 2
      %v1797 = vshll.u32 %v1178, 16
      %v1799 = vrot.slane %v1797, 3
      %v1800 = vor.u32 %v1796, %v1799
      %v1801 = vsel %vm1603, %v1716, %v1800
      %v1803 = vshrl.u32 %v1244, 16
      %v1805 = vrot.slane %v1803, 2
      %v1806 = vshll.u32 %v1244, 16
      %v1808 = vrot.slane %v1806, 3
      %v1809 = vor.u32 %v1805, %v1808
      %v1810 = vsel %vm1603, %v1733, %v1809
      %v1812 = vshrl.u32 %v1415, 16
      %v1814 = vrot.slane %v1812, 2
      %v1815 = vshll.u32 %v1415, 16
      %v1817 = vrot.slane %v1815, 3
      %v1818 = vor.u32 %v1814, %v1817
      %v1819 = vsel %vm1603, %v1750, %v1818
      %v1820 = vrot.slane %v618, 2
      %v1821 = vrot.slane %v614, 3
      %v1822 = vor.u32 %v1820, %v1821
      %v1823 = vsel %vm1603, %v1754, %v1822
      %v1825 = vshrl.u32 %v625, 16
      %v1827 = vrot.slane %v1825, 2
      %v1828 = vshll.u32 %v625, 16
      %v1830 = vrot.slane %v1828, 3
      %v1831 = vor.u32 %v1827, %v1830
      %v1832 = vsel %vm1603, %v1763, %v1831
      %v1834 = vshrl.u32 %v771, 16
      %v1836 = vrot.slane %v1834, 2
      %v1837 = vshll.u32 %v771, 16
      %v1839 = vrot.slane %v1837, 3
      %v1840 = vor.u32 %v1836, %v1839
      %v1841 = vsel %vm1603, %v1773, %v1840
      %v1843 = vshrl.u32 %v870, 16
      %v1845 = vrot.slane %v1843, 2
      %v1846 = vshll.u32 %v870, 16
      %v1848 = vrot.slane %v1846, 3
      %v1849 = vor.u32 %v1845, %v1848
      %v1850 = vsel %vm1603, %v1782, %v1849
      %v1852 = vshrl.u32 %v1034, 16
      %v1854 = vrot.slane %v1852, 2
      %v1855 = vshll.u32 %v1034, 16
      %v1857 = vrot.slane %v1855, 3
      %v1858 = vor.u32 %v1854, %v1857
      %v1859 = vsel %vm1603, %v1791, %v1858
      %v1861 = vshrl.u32 %v1180, 16
      %v1863 = vrot.slane %v1861, 2
      %v1864 = vshll.u32 %v1180, 16
      %v1866 = vrot.slane %v1864, 3
      %v1867 = vor.u32 %v1863, %v1866
      %v1868 = vsel %vm1603, %v1800, %v1867
      %v1870 = vshrl.u32 %v1253, 16
      %v1872 = vrot.slane %v1870, 2
      %v1873 = vshll.u32 %v1253, 16
      %v1875 = vrot.slane %v1873, 3
      %v1876 = vor.u32 %v1872, %v1875
      %v1877 = vsel %vm1603, %v1809, %v1876
      %v1879 = vshrl.u32 %v1417, 16
      %v1881 = vrot.slane %v1879, 2
      %v1882 = vshll.u32 %v1417, 16
      %v1884 = vrot.slane %v1882, 3
      %v1885 = vor.u32 %v1881, %v1884
      %v1886 = vsel %vm1603, %v1818, %v1885
      %v1887 = vrot.slane %v626, 2
      %v1888 = vrot.slane %v622, 3
      %v1889 = vor.u32 %v1887, %v1888
      %v1890 = vsel %vm1603, %v1822, %v1889
      %v1892 = vshrl.u32 %v633, 16
      %v1894 = vrot.slane %v1892, 2
      %v1895 = vshll.u32 %v633, 16
      %v1897 = vrot.slane %v1895, 3
      %v1898 = vor.u32 %v1894, %v1897
      %v1899 = vsel %vm1603, %v1831, %v1898
      %v1901 = vshrl.u32 %v773, 16
      %v1903 = vrot.slane %v1901, 2
      %v1904 = vshll.u32 %v773, 16
      %v1906 = vrot.slane %v1904, 3
      %v1907 = vor.u32 %v1903, %v1906
      %v1908 = vsel %vm1603, %v1840, %v1907
      %v1910 = vshrl.u32 %v879, 16
      %v1912 = vrot.slane %v1910, 2
      %v1913 = vshll.u32 %v879, 16
      %v1915 = vrot.slane %v1913, 3
      %v1916 = vor.u32 %v1912, %v1915
      %v1917 = vsel %vm1603, %v1849, %v1916
      %v1919 = vshrl.u32 %v1036, 16
      %v1921 = vrot.slane %v1919, 2
      %v1922 = vshll.u32 %v1036, 16
      %v1924 = vrot.slane %v1922, 3
      %v1925 = vor.u32 %v1921, %v1924
      %v1926 = vsel %vm1603, %v1858, %v1925
      %v1928 = vshrl.u32 %v1182, 16
      %v1930 = vrot.slane %v1928, 2
      %v1931 = vshll.u32 %v1182, 16
      %v1933 = vrot.slane %v1931, 3
      %v1934 = vor.u32 %v1930, %v1933
      %v1935 = vsel %vm1603, %v1867, %v1934
      %v1937 = vshrl.u32 %v1262, 16
      %v1939 = vrot.slane %v1937, 2
      %v1940 = vshll.u32 %v1262, 16
      %v1942 = vrot.slane %v1940, 3
      %v1943 = vor.u32 %v1939, %v1942
      %v1944 = vsel %vm1603, %v1876, %v1943
      %v1946 = vshrl.u32 %v1419, 16
      %v1948 = vrot.slane %v1946, 2
      %v1949 = vshll.u32 %v1419, 16
      %v1951 = vrot.slane %v1949, 3
      %v1952 = vor.u32 %v1948, %v1951
      %v1953 = vsel %vm1603, %v1885, %v1952
      %v1954 = vrot.slane %v634, 2
      %v1955 = vrot.slane %v630, 3
      %v1956 = vor.u32 %v1954, %v1955
      %v1957 = vsel %vm1603, %v1889, %v1956
      %v1959 = vshrl.u32 %v641, 16
      %v1961 = vrot.slane %v1959, 2
      %v1962 = vshll.u32 %v641, 16
      %v1964 = vrot.slane %v1962, 3
      %v1965 = vor.u32 %v1961, %v1964
      %v1966 = vsel %vm1603, %v1898, %v1965
      %v1968 = vshrl.u32 %v775, 16
      %v1970 = vrot.slane %v1968, 2
      %v1971 = vshll.u32 %v775, 16
      %v1973 = vrot.slane %v1971, 3
      %v1974 = vor.u32 %v1970, %v1973
      %v1975 = vsel %vm1603, %v1907, %v1974
      %v1977 = vshrl.u32 %v888, 16
      %v1979 = vrot.slane %v1977, 2
      %v1980 = vshll.u32 %v888, 16
      %v1982 = vrot.slane %v1980, 3
      %v1983 = vor.u32 %v1979, %v1982
      %v1984 = vsel %vm1603, %v1916, %v1983
      %v1986 = vshrl.u32 %v1038, 16
      %v1988 = vrot.slane %v1986, 2
      %v1989 = vshll.u32 %v1038, 16
      %v1991 = vrot.slane %v1989, 3
      %v1992 = vor.u32 %v1988, %v1991
      %v1993 = vsel %vm1603, %v1925, %v1992
      %v1995 = vshrl.u32 %v1184, 16
      %v1997 = vrot.slane %v1995, 2
      %v1998 = vshll.u32 %v1184, 16
      %v2000 = vrot.slane %v1998, 3
      %v2001 = vor.u32 %v1997, %v2000
      %v2002 = vsel %vm1603, %v1934, %v2001
      %v2004 = vshrl.u32 %v1271, 16
      %v2006 = vrot.slane %v2004, 2
      %v2007 = vshll.u32 %v1271, 16
      %v2009 = vrot.slane %v2007, 3
      %v2010 = vor.u32 %v2006, %v2009
      %v2011 = vsel %vm1603, %v1943, %v2010
      %v2013 = vshrl.u32 %v1421, 16
      %v2015 = vrot.slane %v2013, 2
      %v2016 = vshll.u32 %v1421, 16
      %v2018 = vrot.slane %v2016, 3
      %v2019 = vor.u32 %v2015, %v2018
      %v2020 = vsel %vm1603, %v1952, %v2019
      %v2021 = vrot.slane %v642, 2
      %v2022 = vrot.slane %v638, 3
      %v2023 = vor.u32 %v2021, %v2022
      %v2024 = vsel %vm1603, %v1956, %v2023
      %v2026 = vshrl.u32 %v649, 16
      %v2028 = vrot.slane %v2026, 2
      %v2029 = vshll.u32 %v649, 16
      %v2031 = vrot.slane %v2029, 3
      %v2032 = vor.u32 %v2028, %v2031
      %v2033 = vsel %vm1603, %v1965, %v2032
      %v2035 = vshrl.u32 %v777, 16
      %v2037 = vrot.slane %v2035, 2
      %v2038 = vshll.u32 %v777, 16
      %v2040 = vrot.slane %v2038, 3
      %v2041 = vor.u32 %v2037, %v2040
      %v2042 = vsel %vm1603, %v1974, %v2041
      %v2044 = vshrl.u32 %v897, 16
      %v2046 = vrot.slane %v2044, 2
      %v2047 = vshll.u32 %v897, 16
      %v2049 = vrot.slane %v2047, 3
      %v2050 = vor.u32 %v2046, %v2049
      %v2051 = vsel %vm1603, %v1983, %v2050
      %v2053 = vshrl.u32 %v1040, 16
      %v2055 = vrot.slane %v2053, 2
      %v2056 = vshll.u32 %v1040, 16
      %v2058 = vrot.slane %v2056, 3
      %v2059 = vor.u32 %v2055, %v2058
      %v2060 = vsel %vm1603, %v1992, %v2059
      %v2062 = vshrl.u32 %v1186, 16
      %v2064 = vrot.slane %v2062, 2
      %v2065 = vshll.u32 %v1186, 16
      %v2067 = vrot.slane %v2065, 3
      %v2068 = vor.u32 %v2064, %v2067
      %v2069 = vsel %vm1603, %v2001, %v2068
      %v2071 = vshrl.u32 %v1280, 16
      %v2073 = vrot.slane %v2071, 2
      %v2074 = vshll.u32 %v1280, 16
      %v2076 = vrot.slane %v2074, 3
      %v2077 = vor.u32 %v2073, %v2076
      %v2078 = vsel %vm1603, %v2010, %v2077
      %v2080 = vshrl.u32 %v1423, 16
      %v2082 = vrot.slane %v2080, 2
      %v2083 = vshll.u32 %v1423, 16
      %v2085 = vrot.slane %v2083, 3
      %v2086 = vor.u32 %v2082, %v2085
      %v2087 = vsel %vm1603, %v2019, %v2086
      %v2088 = vrot.slane %v650, 2
      %v2089 = vrot.slane %v646, 3
      %v2090 = vor.u32 %v2088, %v2089
      %v2091 = vsel %vm1603, %v2023, %v2090
      %v2093 = vshrl.u32 %v657, 16
      %v2095 = vrot.slane %v2093, 2
      %v2096 = vshll.u32 %v657, 16
      %v2098 = vrot.slane %v2096, 3
      %v2099 = vor.u32 %v2095, %v2098
      %v2100 = vsel %vm1603, %v2032, %v2099
      %v2102 = vshrl.u32 %v779, 16
      %v2104 = vrot.slane %v2102, 2
      %v2105 = vshll.u32 %v779, 16
      %v2107 = vrot.slane %v2105, 3
      %v2108 = vor.u32 %v2104, %v2107
      %v2109 = vsel %vm1603, %v2041, %v2108
      %v2111 = vshrl.u32 %v906, 16
      %v2113 = vrot.slane %v2111, 2
      %v2114 = vshll.u32 %v906, 16
      %v2116 = vrot.slane %v2114, 3
      %v2117 = vor.u32 %v2113, %v2116
      %v2118 = vsel %vm1603, %v2050, %v2117
      %v2120 = vshrl.u32 %v1042, 16
      %v2122 = vrot.slane %v2120, 2
      %v2123 = vshll.u32 %v1042, 16
      %v2125 = vrot.slane %v2123, 3
      %v2126 = vor.u32 %v2122, %v2125
      %v2127 = vsel %vm1603, %v2059, %v2126
      %v2129 = vshrl.u32 %v1188, 16
      %v2131 = vrot.slane %v2129, 2
      %v2132 = vshll.u32 %v1188, 16
      %v2134 = vrot.slane %v2132, 3
      %v2135 = vor.u32 %v2131, %v2134
      %v2136 = vsel %vm1603, %v2068, %v2135
      %v2138 = vshrl.u32 %v1289, 16
      %v2140 = vrot.slane %v2138, 2
      %v2141 = vshll.u32 %v1289, 16
      %v2143 = vrot.slane %v2141, 3
      %v2144 = vor.u32 %v2140, %v2143
      %v2145 = vsel %vm1603, %v2077, %v2144
      %v2147 = vshrl.u32 %v1425, 16
      %v2149 = vrot.slane %v2147, 2
      %v2150 = vshll.u32 %v1425, 16
      %v2152 = vrot.slane %v2150, 3
      %v2153 = vor.u32 %v2149, %v2152
      %v2154 = vsel %vm1603, %v2086, %v2153
      %v2155 = vrot.slane %v658, 2
      %v2156 = vrot.slane %v654, 3
      %v2157 = vor.u32 %v2155, %v2156
      %v2158 = vsel %vm1603, %v2090, %v2157
      %v2160 = vshrl.u32 %v665, 16
      %v2162 = vrot.slane %v2160, 2
      %v2163 = vshll.u32 %v665, 16
      %v2165 = vrot.slane %v2163, 3
      %v2166 = vor.u32 %v2162, %v2165
      %v2167 = vsel %vm1603, %v2099, %v2166
      %v2169 = vshrl.u32 %v781, 16
      %v2171 = vrot.slane %v2169, 2
      %v2172 = vshll.u32 %v781, 16
      %v2174 = vrot.slane %v2172, 3
      %v2175 = vor.u32 %v2171, %v2174
      %v2176 = vsel %vm1603, %v2108, %v2175
      %v2178 = vshrl.u32 %v915, 16
      %v2180 = vrot.slane %v2178, 2
      %v2181 = vshll.u32 %v915, 16
      %v2183 = vrot.slane %v2181, 3
      %v2184 = vor.u32 %v2180, %v2183
      %v2185 = vsel %vm1603, %v2117, %v2184
      %v2187 = vshrl.u32 %v1044, 16
      %v2189 = vrot.slane %v2187, 2
      %v2190 = vshll.u32 %v1044, 16
      %v2192 = vrot.slane %v2190, 3
      %v2193 = vor.u32 %v2189, %v2192
      %v2194 = vsel %vm1603, %v2126, %v2193
      %v2196 = vshrl.u32 %v1190, 16
      %v2198 = vrot.slane %v2196, 2
      %v2199 = vshll.u32 %v1190, 16
      %v2201 = vrot.slane %v2199, 3
      %v2202 = vor.u32 %v2198, %v2201
      %v2203 = vsel %vm1603, %v2135, %v2202
      %v2205 = vshrl.u32 %v1298, 16
      %v2207 = vrot.slane %v2205, 2
      %v2208 = vshll.u32 %v1298, 16
      %v2210 = vrot.slane %v2208, 3
      %v2211 = vor.u32 %v2207, %v2210
      %v2212 = vsel %vm1603, %v2144, %v2211
      %v2214 = vshrl.u32 %v1427, 16
      %v2216 = vrot.slane %v2214, 2
      %v2217 = vshll.u32 %v1427, 16
      %v2219 = vrot.slane %v2217, 3
      %v2220 = vor.u32 %v2216, %v2219
      %v2221 = vsel %vm1603, %v2153, %v2220
      %v2222 = vrot.slane %v666, 2
      %v2223 = vrot.slane %v662, 3
      %v2224 = vor.u32 %v2222, %v2223
      %v2225 = vsel %vm1603, %v2157, %v2224
      %v2227 = vshrl.u32 %v673, 16
      %v2229 = vrot.slane %v2227, 2
      %v2230 = vshll.u32 %v673, 16
      %v2232 = vrot.slane %v2230, 3
      %v2233 = vor.u32 %v2229, %v2232
      %v2234 = vsel %vm1603, %v2166, %v2233
      %v2236 = vshrl.u32 %v783, 16
      %v2238 = vrot.slane %v2236, 2
      %v2239 = vshll.u32 %v783, 16
      %v2241 = vrot.slane %v2239, 3
      %v2242 = vor.u32 %v2238, %v2241
      %v2243 = vsel %vm1603, %v2175, %v2242
      %v2245 = vshrl.u32 %v924, 16
      %v2247 = vrot.slane %v2245, 2
      %v2248 = vshll.u32 %v924, 16
      %v2250 = vrot.slane %v2248, 3
      %v2251 = vor.u32 %v2247, %v2250
      %v2252 = vsel %vm1603, %v2184, %v2251
      %v2254 = vshrl.u32 %v1046, 16
      %v2256 = vrot.slane %v2254, 2
      %v2257 = vshll.u32 %v1046, 16
      %v2259 = vrot.slane %v2257, 3
      %v2260 = vor.u32 %v2256, %v2259
      %v2261 = vsel %vm1603, %v2193, %v2260
      %v2263 = vshrl.u32 %v1192, 16
      %v2265 = vrot.slane %v2263, 2
      %v2266 = vshll.u32 %v1192, 16
      %v2268 = vrot.slane %v2266, 3
      %v2269 = vor.u32 %v2265, %v2268
      %v2270 = vsel %vm1603, %v2202, %v2269
      %v2272 = vshrl.u32 %v1307, 16
      %v2274 = vrot.slane %v2272, 2
      %v2275 = vshll.u32 %v1307, 16
      %v2277 = vrot.slane %v2275, 3
      %v2278 = vor.u32 %v2274, %v2277
      %v2279 = vsel %vm1603, %v2211, %v2278
      %v2281 = vshrl.u32 %v1429, 16
      %v2283 = vrot.slane %v2281, 2
      %v2284 = vshll.u32 %v1429, 16
      %v2286 = vrot.slane %v2284, 3
      %v2287 = vor.u32 %v2283, %v2286
      %v2288 = vsel %vm1603, %v2220, %v2287
      %v2289 = vrot.slane %v674, 2
      %v2290 = vrot.slane %v670, 3
      %v2291 = vor.u32 %v2289, %v2290
      %v2292 = vsel %vm1603, %v2224, %v2291
      %v2294 = vshrl.u32 %v681, 16
      %v2296 = vrot.slane %v2294, 2
      %v2297 = vshll.u32 %v681, 16
      %v2299 = vrot.slane %v2297, 3
      %v2300 = vor.u32 %v2296, %v2299
      %v2301 = vsel %vm1603, %v2233, %v2300
      %v2303 = vshrl.u32 %v785, 16
      %v2305 = vrot.slane %v2303, 2
      %v2306 = vshll.u32 %v785, 16
      %v2308 = vrot.slane %v2306, 3
      %v2309 = vor.u32 %v2305, %v2308
      %v2310 = vsel %vm1603, %v2242, %v2309
      %v2312 = vshrl.u32 %v933, 16
      %v2314 = vrot.slane %v2312, 2
      %v2315 = vshll.u32 %v933, 16
      %v2317 = vrot.slane %v2315, 3
      %v2318 = vor.u32 %v2314, %v2317
      %v2319 = vsel %vm1603, %v2251, %v2318
      %v2321 = vshrl.u32 %v1048, 16
      %v2323 = vrot.slane %v2321, 2
      %v2324 = vshll.u32 %v1048, 16
      %v2326 = vrot.slane %v2324, 3
      %v2327 = vor.u32 %v2323, %v2326
      %v2328 = vsel %vm1603, %v2260, %v2327
      %v2330 = vshrl.u32 %v1194, 16
      %v2332 = vrot.slane %v2330, 2
      %v2333 = vshll.u32 %v1194, 16
      %v2335 = vrot.slane %v2333, 3
      %v2336 = vor.u32 %v2332, %v2335
      %v2337 = vsel %vm1603, %v2269, %v2336
      %v2339 = vshrl.u32 %v1316, 16
      %v2341 = vrot.slane %v2339, 2
      %v2342 = vshll.u32 %v1316, 16
      %v2344 = vrot.slane %v2342, 3
      %v2345 = vor.u32 %v2341, %v2344
      %v2346 = vsel %vm1603, %v2278, %v2345
      %v2348 = vshrl.u32 %v1431, 16
      %v2350 = vrot.slane %v2348, 2
      %v2351 = vshll.u32 %v1431, 16
      %v2353 = vrot.slane %v2351, 3
      %v2354 = vor.u32 %v2350, %v2353
      %v2355 = vsel %vm1603, %v2287, %v2354
      %v2356 = vrot.slane %v682, 2
      %v2357 = vrot.slane %v678, 3
      %v2358 = vor.u32 %v2356, %v2357
      %v2359 = vsel %vm1603, %v2291, %v2358
      %v2361 = vshrl.u32 %v689, 16
      %v2363 = vrot.slane %v2361, 2
      %v2364 = vshll.u32 %v689, 16
      %v2366 = vrot.slane %v2364, 3
      %v2367 = vor.u32 %v2363, %v2366
      %v2368 = vsel %vm1603, %v2300, %v2367
      %v2370 = vshrl.u32 %v787, 16
      %v2372 = vrot.slane %v2370, 2
      %v2373 = vshll.u32 %v787, 16
      %v2375 = vrot.slane %v2373, 3
      %v2376 = vor.u32 %v2372, %v2375
      %v2377 = vsel %vm1603, %v2309, %v2376
      %v2379 = vshrl.u32 %v942, 16
      %v2381 = vrot.slane %v2379, 2
      %v2382 = vshll.u32 %v942, 16
      %v2384 = vrot.slane %v2382, 3
      %v2385 = vor.u32 %v2381, %v2384
      %v2386 = vsel %vm1603, %v2318, %v2385
      %v2388 = vshrl.u32 %v1050, 16
      %v2390 = vrot.slane %v2388, 2
      %v2391 = vshll.u32 %v1050, 16
      %v2393 = vrot.slane %v2391, 3
      %v2394 = vor.u32 %v2390, %v2393
      %v2395 = vsel %vm1603, %v2327, %v2394
      %v2397 = vshrl.u32 %v1196, 16
      %v2399 = vrot.slane %v2397, 2
      %v2400 = vshll.u32 %v1196, 16
      %v2402 = vrot.slane %v2400, 3
      %v2403 = vor.u32 %v2399, %v2402
      %v2404 = vsel %vm1603, %v2336, %v2403
      %v2406 = vshrl.u32 %v1325, 16
      %v2408 = vrot.slane %v2406, 2
      %v2409 = vshll.u32 %v1325, 16
      %v2411 = vrot.slane %v2409, 3
      %v2412 = vor.u32 %v2408, %v2411
      %v2413 = vsel %vm1603, %v2345, %v2412
      %v2415 = vshrl.u32 %v1433, 16
      %v2417 = vrot.slane %v2415, 2
      %v2418 = vshll.u32 %v1433, 16
      %v2420 = vrot.slane %v2418, 3
      %v2421 = vor.u32 %v2417, %v2420
      %v2422 = vsel %vm1603, %v2354, %v2421
      %v2423 = vrot.slane %v690, 2
      %v2424 = vrot.slane %v686, 3
      %v2425 = vor.u32 %v2423, %v2424
      %v2426 = vsel %vm1603, %v2358, %v2425
      %v2428 = vshrl.u32 %v697, 16
      %v2430 = vrot.slane %v2428, 2
      %v2431 = vshll.u32 %v697, 16
      %v2433 = vrot.slane %v2431, 3
      %v2434 = vor.u32 %v2430, %v2433
      %v2435 = vsel %vm1603, %v2367, %v2434
      %v2437 = vshrl.u32 %v789, 16
      %v2439 = vrot.slane %v2437, 2
      %v2440 = vshll.u32 %v789, 16
      %v2442 = vrot.slane %v2440, 3
      %v2443 = vor.u32 %v2439, %v2442
      %v2444 = vsel %vm1603, %v2376, %v2443
      %v2446 = vshrl.u32 %v951, 16
      %v2448 = vrot.slane %v2446, 2
      %v2449 = vshll.u32 %v951, 16
      %v2451 = vrot.slane %v2449, 3
      %v2452 = vor.u32 %v2448, %v2451
      %v2453 = vsel %vm1603, %v2385, %v2452
      %v2455 = vshrl.u32 %v1052, 16
      %v2457 = vrot.slane %v2455, 2
      %v2458 = vshll.u32 %v1052, 16
      %v2460 = vrot.slane %v2458, 3
      %v2461 = vor.u32 %v2457, %v2460
      %v2462 = vsel %vm1603, %v2394, %v2461
      %v2464 = vshrl.u32 %v1198, 16
      %v2466 = vrot.slane %v2464, 2
      %v2467 = vshll.u32 %v1198, 16
      %v2469 = vrot.slane %v2467, 3
      %v2470 = vor.u32 %v2466, %v2469
      %v2471 = vsel %vm1603, %v2403, %v2470
      %v2473 = vshrl.u32 %v1334, 16
      %v2475 = vrot.slane %v2473, 2
      %v2476 = vshll.u32 %v1334, 16
      %v2478 = vrot.slane %v2476, 3
      %v2479 = vor.u32 %v2475, %v2478
      %v2480 = vsel %vm1603, %v2412, %v2479
      %v2482 = vshrl.u32 %v1435, 16
      %v2484 = vrot.slane %v2482, 2
      %v2485 = vshll.u32 %v1435, 16
      %v2487 = vrot.slane %v2485, 3
      %v2488 = vor.u32 %v2484, %v2487
      %v2489 = vsel %vm1603, %v2421, %v2488
      %v2490 = vrot.slane %v698, 2
      %v2491 = vrot.slane %v694, 3
      %v2492 = vor.u32 %v2490, %v2491
      %v2493 = vsel %vm1603, %v2425, %v2492
      %v2495 = vshrl.u32 %v705, 16
      %v2497 = vrot.slane %v2495, 2
      %v2498 = vshll.u32 %v705, 16
      %v2500 = vrot.slane %v2498, 3
      %v2501 = vor.u32 %v2497, %v2500
      %v2502 = vsel %vm1603, %v2434, %v2501
      %v2504 = vshrl.u32 %v791, 16
      %v2506 = vrot.slane %v2504, 2
      %v2507 = vshll.u32 %v791, 16
      %v2509 = vrot.slane %v2507, 3
      %v2510 = vor.u32 %v2506, %v2509
      %v2511 = vsel %vm1603, %v2443, %v2510
      %v2513 = vshrl.u32 %v960, 16
      %v2515 = vrot.slane %v2513, 2
      %v2516 = vshll.u32 %v960, 16
      %v2518 = vrot.slane %v2516, 3
      %v2519 = vor.u32 %v2515, %v2518
      %v2520 = vsel %vm1603, %v2452, %v2519
      %v2522 = vshrl.u32 %v1054, 16
      %v2524 = vrot.slane %v2522, 2
      %v2525 = vshll.u32 %v1054, 16
      %v2527 = vrot.slane %v2525, 3
      %v2528 = vor.u32 %v2524, %v2527
      %v2529 = vsel %vm1603, %v2461, %v2528
      %v2531 = vshrl.u32 %v1200, 16
      %v2533 = vrot.slane %v2531, 2
      %v2534 = vshll.u32 %v1200, 16
      %v2536 = vrot.slane %v2534, 3
      %v2537 = vor.u32 %v2533, %v2536
      %v2538 = vsel %vm1603, %v2470, %v2537
      %v2540 = vshrl.u32 %v1343, 16
      %v2542 = vrot.slane %v2540, 2
      %v2543 = vshll.u32 %v1343, 16
      %v2545 = vrot.slane %v2543, 3
      %v2546 = vor.u32 %v2542, %v2545
      %v2547 = vsel %vm1603, %v2479, %v2546
      %v2549 = vshrl.u32 %v1437, 16
      %v2551 = vrot.slane %v2549, 2
      %v2552 = vshll.u32 %v1437, 16
      %v2554 = vrot.slane %v2552, 3
      %v2555 = vor.u32 %v2551, %v2554
      %v2556 = vsel %vm1603, %v2488, %v2555
      %v2557 = vrot.slane %v706, 2
      %v2558 = vrot.slane %v702, 3
      %v2559 = vor.u32 %v2557, %v2558
      %v2560 = vsel %vm1603, %v2492, %v2559
      %v2562 = vshrl.u32 %v713, 16
      %v2564 = vrot.slane %v2562, 2
      %v2565 = vshll.u32 %v713, 16
      %v2567 = vrot.slane %v2565, 3
      %v2568 = vor.u32 %v2564, %v2567
      %v2569 = vsel %vm1603, %v2501, %v2568
      %v2571 = vshrl.u32 %v793, 16
      %v2573 = vrot.slane %v2571, 2
      %v2574 = vshll.u32 %v793, 16
      %v2576 = vrot.slane %v2574, 3
      %v2577 = vor.u32 %v2573, %v2576
      %v2578 = vsel %vm1603, %v2510, %v2577
      %v2580 = vshrl.u32 %v969, 16
      %v2582 = vrot.slane %v2580, 2
      %v2583 = vshll.u32 %v969, 16
      %v2585 = vrot.slane %v2583, 3
      %v2586 = vor.u32 %v2582, %v2585
      %v2587 = vsel %vm1603, %v2519, %v2586
      %v2589 = vshrl.u32 %v1056, 16
      %v2591 = vrot.slane %v2589, 2
      %v2592 = vshll.u32 %v1056, 16
      %v2594 = vrot.slane %v2592, 3
      %v2595 = vor.u32 %v2591, %v2594
      %v2596 = vsel %vm1603, %v2528, %v2595
      %v2598 = vshrl.u32 %v1202, 16
      %v2600 = vrot.slane %v2598, 2
      %v2601 = vshll.u32 %v1202, 16
      %v2603 = vrot.slane %v2601, 3
      %v2604 = vor.u32 %v2600, %v2603
      %v2605 = vsel %vm1603, %v2537, %v2604
      %v2607 = vshrl.u32 %v1352, 16
      %v2609 = vrot.slane %v2607, 2
      %v2610 = vshll.u32 %v1352, 16
      %v2612 = vrot.slane %v2610, 3
      %v2613 = vor.u32 %v2609, %v2612
      %v2614 = vsel %vm1603, %v2546, %v2613
      %v2616 = vshrl.u32 %v1439, 16
      %v2618 = vrot.slane %v2616, 2
      %v2619 = vshll.u32 %v1439, 16
      %v2621 = vrot.slane %v2619, 3
      %v2622 = vor.u32 %v2618, %v2621
      %v2623 = vsel %vm1603, %v2555, %v2622
      %v2624 = vrot.slane %v714, 2
      %v2625 = vrot.slane %v710, 3
      %v2626 = vor.u32 %v2624, %v2625
      %v2627 = vsel %vm1603, %v2559, %v2626
      %v2629 = vshrl.u32 %v721, 16
      %v2631 = vrot.slane %v2629, 2
      %v2632 = vshll.u32 %v721, 16
      %v2634 = vrot.slane %v2632, 3
      %v2635 = vor.u32 %v2631, %v2634
      %v2636 = vsel %vm1603, %v2568, %v2635
      %v2638 = vshrl.u32 %v795, 16
      %v2640 = vrot.slane %v2638, 2
      %v2641 = vshll.u32 %v795, 16
      %v2643 = vrot.slane %v2641, 3
      %v2644 = vor.u32 %v2640, %v2643
      %v2645 = vsel %vm1603, %v2577, %v2644
      %v2647 = vshrl.u32 %v978, 16
      %v2649 = vrot.slane %v2647, 2
      %v2650 = vshll.u32 %v978, 16
      %v2652 = vrot.slane %v2650, 3
      %v2653 = vor.u32 %v2649, %v2652
      %v2654 = vsel %vm1603, %v2586, %v2653
      %v2656 = vshrl.u32 %v1058, 16
      %v2658 = vrot.slane %v2656, 2
      %v2659 = vshll.u32 %v1058, 16
      %v2661 = vrot.slane %v2659, 3
      %v2662 = vor.u32 %v2658, %v2661
      %v2663 = vsel %vm1603, %v2595, %v2662
      %v2665 = vshrl.u32 %v1204, 16
      %v2667 = vrot.slane %v2665, 2
      %v2668 = vshll.u32 %v1204, 16
      %v2670 = vrot.slane %v2668, 3
      %v2671 = vor.u32 %v2667, %v2670
      %v2672 = vsel %vm1603, %v2604, %v2671
      %v2674 = vshrl.u32 %v1361, 16
      %v2676 = vrot.slane %v2674, 2
      %v2677 = vshll.u32 %v1361, 16
      %v2679 = vrot.slane %v2677, 3
      %v2680 = vor.u32 %v2676, %v2679
      %v2681 = vsel %vm1603, %v2613, %v2680
      %v2683 = vshrl.u32 %v1441, 16
      %v2685 = vrot.slane %v2683, 2
      %v2686 = vshll.u32 %v1441, 16
      %v2688 = vrot.slane %v2686, 3
      %v2689 = vor.u32 %v2685, %v2688
      %v2690 = vsel %vm1603, %v2622, %v2689
      %v2691 = vrot.slane %v722, 2
      %v2692 = vrot.slane %v718, 3
      %v2693 = vor.u32 %v2691, %v2692
      %v2694 = vsel %vm1603, %v2626, %v2693
      %v2696 = vshrl.u32 %v729, 16
      %v2698 = vrot.slane %v2696, 2
      %v2699 = vshll.u32 %v729, 16
      %v2701 = vrot.slane %v2699, 3
      %v2702 = vor.u32 %v2698, %v2701
      %v2703 = vsel %vm1603, %v2635, %v2702
      %v2705 = vshrl.u32 %v797, 16
      %v2707 = vrot.slane %v2705, 2
      %v2708 = vshll.u32 %v797, 16
      %v2710 = vrot.slane %v2708, 3
      %v2711 = vor.u32 %v2707, %v2710
      %v2712 = vsel %vm1603, %v2644, %v2711
      %v2714 = vshrl.u32 %v987, 16
      %v2716 = vrot.slane %v2714, 2
      %v2717 = vshll.u32 %v987, 16
      %v2719 = vrot.slane %v2717, 3
      %v2720 = vor.u32 %v2716, %v2719
      %v2721 = vsel %vm1603, %v2653, %v2720
      %v2723 = vshrl.u32 %v1060, 16
      %v2725 = vrot.slane %v2723, 2
      %v2726 = vshll.u32 %v1060, 16
      %v2728 = vrot.slane %v2726, 3
      %v2729 = vor.u32 %v2725, %v2728
      %v2730 = vsel %vm1603, %v2662, %v2729
      %v2732 = vshrl.u32 %v1206, 16
      %v2734 = vrot.slane %v2732, 2
      %v2735 = vshll.u32 %v1206, 16
      %v2737 = vrot.slane %v2735, 3
      %v2738 = vor.u32 %v2734, %v2737
      %v2739 = vsel %vm1603, %v2671, %v2738
      %v2741 = vshrl.u32 %v1370, 16
      %v2743 = vrot.slane %v2741, 2
      %v2744 = vshll.u32 %v1370, 16
      %v2746 = vrot.slane %v2744, 3
      %v2747 = vor.u32 %v2743, %v2746
      %v2748 = vsel %vm1603, %v2680, %v2747
      %v2750 = vshrl.u32 %v1443, 16
      %v2752 = vrot.slane %v2750, 2
      %v2753 = vshll.u32 %v1443, 16
      %v2755 = vrot.slane %v2753, 3
      %v2756 = vor.u32 %v2752, %v2755
      %v2757 = vsel %vm1603, %v2689, %v2756
      %v2758 = vrot.slane %v730, 2
      %v2759 = vrot.slane %v726, 3
      %v2760 = vor.u32 %v2758, %v2759
      %v2761 = vsel %vm1603, %v2693, %v2760
      %v2763 = vshrl.u32 %v737, 16
      %v2765 = vrot.slane %v2763, 2
      %v2766 = vshll.u32 %v737, 16
      %v2768 = vrot.slane %v2766, 3
      %v2769 = vor.u32 %v2765, %v2768
      %v2770 = vsel %vm1603, %v2702, %v2769
      %v2772 = vshrl.u32 %v799, 16
      %v2774 = vrot.slane %v2772, 2
      %v2775 = vshll.u32 %v799, 16
      %v2777 = vrot.slane %v2775, 3
      %v2778 = vor.u32 %v2774, %v2777
      %v2779 = vsel %vm1603, %v2711, %v2778
      %v2781 = vshrl.u32 %v996, 16
      %v2783 = vrot.slane %v2781, 2
      %v2784 = vshll.u32 %v996, 16
      %v2786 = vrot.slane %v2784, 3
      %v2787 = vor.u32 %v2783, %v2786
      %v2788 = vsel %vm1603, %v2720, %v2787
      %v2790 = vshrl.u32 %v1062, 16
      %v2792 = vrot.slane %v2790, 2
      %v2793 = vshll.u32 %v1062, 16
      %v2795 = vrot.slane %v2793, 3
      %v2796 = vor.u32 %v2792, %v2795
      %v2797 = vsel %vm1603, %v2729, %v2796
      %v2799 = vshrl.u32 %v1208, 16
      %v2801 = vrot.slane %v2799, 2
      %v2802 = vshll.u32 %v1208, 16
      %v2804 = vrot.slane %v2802, 3
      %v2805 = vor.u32 %v2801, %v2804
      %v2806 = vsel %vm1603, %v2738, %v2805
      %v2808 = vshrl.u32 %v1379, 16
      %v2810 = vrot.slane %v2808, 2
      %v2811 = vshll.u32 %v1379, 16
      %v2813 = vrot.slane %v2811, 3
      %v2814 = vor.u32 %v2810, %v2813
      %v2815 = vsel %vm1603, %v2747, %v2814
      %v2817 = vshrl.u32 %v1445, 16
      %v2819 = vrot.slane %v2817, 2
      %v2820 = vshll.u32 %v1445, 16
      %v2822 = vrot.slane %v2820, 3
      %v2823 = vor.u32 %v2819, %v2822
      %v2824 = vsel %vm1603, %v2756, %v2823
      %v2825 = vrot.slane %v738, 2
      %v2826 = vrot.slane %v734, 3
      %v2827 = vor.u32 %v2825, %v2826
      %v2828 = vsel %vm1603, %v2760, %v2827
      %v2830 = vshrl.u32 %v745, 16
      %v2832 = vrot.slane %v2830, 2
      %v2833 = vshll.u32 %v745, 16
      %v2835 = vrot.slane %v2833, 3
      %v2836 = vor.u32 %v2832, %v2835
      %v2837 = vsel %vm1603, %v2769, %v2836
      %v2839 = vshrl.u32 %v801, 16
      %v2841 = vrot.slane %v2839, 2
      %v2842 = vshll.u32 %v801, 16
      %v2844 = vrot.slane %v2842, 3
      %v2845 = vor.u32 %v2841, %v2844
      %v2846 = vsel %vm1603, %v2778, %v2845
      %v2848 = vshrl.u32 %v1005, 16
      %v2850 = vrot.slane %v2848, 2
      %v2851 = vshll.u32 %v1005, 16
      %v2853 = vrot.slane %v2851, 3
      %v2854 = vor.u32 %v2850, %v2853
      %v2855 = vsel %vm1603, %v2787, %v2854
      %v2857 = vshrl.u32 %v1064, 16
      %v2859 = vrot.slane %v2857, 2
      %v2860 = vshll.u32 %v1064, 16
      %v2862 = vrot.slane %v2860, 3
      %v2863 = vor.u32 %v2859, %v2862
      %v2864 = vsel %vm1603, %v2796, %v2863
      %v2866 = vshrl.u32 %v1210, 16
      %v2868 = vrot.slane %v2866, 2
      %v2869 = vshll.u32 %v1210, 16
      %v2871 = vrot.slane %v2869, 3
      %v2872 = vor.u32 %v2868, %v2871
      %v2873 = vsel %vm1603, %v2805, %v2872
      %v2875 = vshrl.u32 %v1388, 16
      %v2877 = vrot.slane %v2875, 2
      %v2878 = vshll.u32 %v1388, 16
      %v2880 = vrot.slane %v2878, 3
      %v2881 = vor.u32 %v2877, %v2880
      %v2882 = vsel %vm1603, %v2814, %v2881
      %v2884 = vshrl.u32 %v1447, 16
      %v2886 = vrot.slane %v2884, 2
      %v2887 = vshll.u32 %v1447, 16
      %v2889 = vrot.slane %v2887, 3
      %v2890 = vor.u32 %v2886, %v2889
      %v2891 = vsel %vm1603, %v2823, %v2890
      %v2892 = vrot.slane %v746, 2
      %v2893 = vrot.slane %v742, 3
      %v2894 = vor.u32 %v2892, %v2893
      %v2895 = vsel %vm1603, %v2827, %v2894
      %v2897 = vshrl.u32 %v753, 16
      %v2899 = vrot.slane %v2897, 2
      %v2900 = vshll.u32 %v753, 16
      %v2902 = vrot.slane %v2900, 3
      %v2903 = vor.u32 %v2899, %v2902
      %v2904 = vsel %vm1603, %v2836, %v2903
      %v2906 = vshrl.u32 %v813, 16
      %v2908 = vrot.slane %v2906, 2
      %v2909 = vshll.u32 %v813, 16
      %v2911 = vrot.slane %v2909, 3
      %v2912 = vor.u32 %v2908, %v2911
      %v2913 = vsel %vm1603, %v2845, %v2912
      %v2915 = vshrl.u32 %v1014, 16
      %v2917 = vrot.slane %v2915, 2
      %v2918 = vshll.u32 %v1014, 16
      %v2920 = vrot.slane %v2918, 3
      %v2921 = vor.u32 %v2917, %v2920
      %v2922 = vsel %vm1603, %v2854, %v2921
      %v2924 = vshrl.u32 %v1066, 16
      %v2926 = vrot.slane %v2924, 2
      %v2927 = vshll.u32 %v1066, 16
      %v2929 = vrot.slane %v2927, 3
      %v2930 = vor.u32 %v2926, %v2929
      %v2931 = vsel %vm1603, %v2863, %v2930
      %v2933 = vshrl.u32 %v1212, 16
      %v2935 = vrot.slane %v2933, 2
      %v2936 = vshll.u32 %v1212, 16
      %v2938 = vrot.slane %v2936, 3
      %v2939 = vor.u32 %v2935, %v2938
      %v2940 = vsel %vm1603, %v2872, %v2939
      %v2942 = vshrl.u32 %v1397, 16
      %v2944 = vrot.slane %v2942, 2
      %v2945 = vshll.u32 %v1397, 16
      %v2947 = vrot.slane %v2945, 3
      %v2948 = vor.u32 %v2944, %v2947
      %v2949 = vsel %vm1603, %v2881, %v2948
      %v2951 = vshrl.u32 %v1449, 16
      %v2953 = vrot.slane %v2951, 2
      %v2954 = vshll.u32 %v1449, 16
      %v2956 = vrot.slane %v2954, 3
      %v2957 = vor.u32 %v2953, %v2956
      %v2958 = vsel %vm1603, %v2890, %v2957
      %v2959 = vrot.slane %v754, 2
      %v2960 = vrot.slane %v750, 3
      %v2961 = vor.u32 %v2959, %v2960
      %v2962 = vsel %vm1603, %v2894, %v2961
      %v2964 = vshrl.u32 %v756, 16
      %v2966 = vrot.slane %v2964, 2
      %v2967 = vshll.u32 %v756, 16
      %v2969 = vrot.slane %v2967, 3
      %v2970 = vor.u32 %v2966, %v2969
      %v2971 = vsel %vm1603, %v2903, %v2970
      %v2973 = vshrl.u32 %v800, 16
      %v2975 = vrot.slane %v2973, 2
      %v2976 = vshll.u32 %v800, 16
      %v2978 = vrot.slane %v2976, 3
      %v2979 = vor.u32 %v2975, %v2978
      %v2980 = vsel %vm1603, %v2845, %v2979
      %v2982 = vshrl.u32 %v812, 16
      %v2984 = vrot.slane %v2982, 2
      %v2985 = vshll.u32 %v812, 16
      %v2987 = vrot.slane %v2985, 3
      %v2988 = vor.u32 %v2984, %v2987
      %v2989 = vsel %vm1603, %v2912, %v2988
      %v2991 = vshrl.u32 %v1023, 16
      %v2993 = vrot.slane %v2991, 2
      %v2994 = vshll.u32 %v1023, 16
      %v2996 = vrot.slane %v2994, 3
      %v2997 = vor.u32 %v2993, %v2996
      %v2998 = vsel %vm1603, %v2921, %v2997
      %v3000 = vshrl.u32 %v1068, 16
      %v3002 = vrot.slane %v3000, 2
      %v3003 = vshll.u32 %v1068, 16
      %v3005 = vrot.slane %v3003, 3
      %v3006 = vor.u32 %v3002, %v3005
      %v3007 = vsel %vm1603, %v2930, %v3006
      %v3009 = vshrl.u32 %v1214, 16
      %v3011 = vrot.slane %v3009, 2
      %v3012 = vshll.u32 %v1214, 16
      %v3014 = vrot.slane %v3012, 3
      %v3015 = vor.u32 %v3011, %v3014
      %v3016 = vsel %vm1603, %v2939, %v3015
      %v3018 = vshrl.u32 %v1406, 16
      %v3020 = vrot.slane %v3018, 2
      %v3021 = vshll.u32 %v1406, 16
      %v3023 = vrot.slane %v3021, 3
      %v3024 = vor.u32 %v3020, %v3023
      %v3025 = vsel %vm1603, %v2948, %v3024
      %v3027 = vshrl.u32 %v1451, 16
      %v3029 = vrot.slane %v3027, 2
      %v3030 = vshll.u32 %v1451, 16
      %v3032 = vrot.slane %v3030, 3
      %v3033 = vor.u32 %v3029, %v3032
      %v3034 = vsel %vm1603, %v2957, %v3033
      %v3351 = vunpack.c.l.b16 %v1452
      %v3352 = vunpack.c.l.b16 %v1453
      %v3353 = vunpack.c.l.b16 %v1454
      %v3354 = vunpack.c.l.b16 %v1455
      %v3355 = vunpack.c.l.b16 %v1456
      %v3356 = vunpack.c.l.b16 %v1457
      %v3357 = vunpack.c.l.b16 %v1458
      %v3358 = vunpack.c.l.b16 %v1459
      %v3359 = vunpack.c.l.b16 %v1460
      %v3360 = vunpack.c.l.b16 %v1461
      %v3361 = vunpack.c.l.b16 %v1462
      %v3362 = vunpack.c.l.b16 %v1463
      %v3363 = vunpack.c.l.b16 %v1464
      %v3364 = vunpack.c.l.b16 %v1465
      %v3365 = vunpack.c.l.b16 %v1466
      %v3366 = vunpack.c.l.b16 %v1467
      %v3367 = vunpack.c.l.b16 %v1468
      %v3368 = vunpack.c.l.b16 %v1469
      %v3369 = vunpack.c.l.b16 %v1470
      %v3370 = vunpack.c.l.b16 %v1471
      %v3371 = vunpack.c.l.b16 %v1472
      %v3372 = vunpack.c.l.b16 %v1473
      %v3373 = vunpack.c.l.b16 %v1474
      %v3374 = vunpack.c.l.b16 %v1475
      %v3375 = vunpack.c.l.b16 %v1476
      %v3376 = vunpack.c.l.b16 %v1477
      %v3377 = vunpack.c.l.b16 %v1478
      %v3378 = vunpack.c.l.b16 %v1479
      %v3379 = vunpack.c.l.b16 %v1480
      %v3380 = vunpack.c.l.b16 %v1481
      %v3381 = vunpack.c.l.b16 %v1482
      %v3382 = vunpack.c.l.b16 %v1483
      %v3383 = vunpack.c.l.b16 %v1484
      %v3384 = vunpack.c.l.b16 %v1485
      %v3385 = vunpack.c.l.b16 %v1486
      %v3386 = vunpack.c.l.b16 %v1487
      %v3387 = vunpack.c.l.b16 %v1488
      %v3388 = vunpack.c.l.b16 %v1489
      %v3389 = vunpack.c.l.b16 %v1490
      %v3390 = vunpack.c.l.b16 %v1491
      %v3391 = vunpack.c.l.b16 %v1492
      %v3392 = vunpack.c.l.b16 %v1493
      %v3393 = vunpack.c.l.b16 %v1494
      %v3394 = vunpack.c.l.b16 %v1495
      %v3395 = vunpack.c.l.b16 %v1496
      %v3396 = vunpack.c.l.b16 %v1497
      %v3397 = vunpack.c.l.b16 %v1498
      %v3398 = vunpack.c.l.b16 %v1499
      %v3399 = vunpack.c.l.b16 %v1500
      %v3400 = vunpack.c.l.b16 %v1501
      %v3401 = vunpack.c.l.b16 %v1502
      %v3402 = vunpack.c.l.b16 %v1503
      %v3403 = vunpack.c.l.b16 %v1504
      %v3404 = vunpack.c.l.b16 %v1505
      %v3405 = vunpack.c.l.b16 %v1506
      %v3406 = vunpack.c.l.b16 %v1507
      %v3407 = vunpack.c.l.b16 %v1508
      %v3408 = vunpack.c.l.b16 %v1509
      %v3409 = vunpack.c.l.b16 %v1510
      %v3410 = vunpack.c.l.b16 %v1511
      %v3411 = vunpack.c.l.b16 %v1512
      %v3412 = vunpack.c.l.b16 %v1513
      %v3413 = vunpack.c.l.b16 %v1514
      %v3414 = vunpack.c.l.b16 %v1515
      %v3415 = vunpack.c.l.b16 %v1516
      %v3416 = vunpack.c.l.b16 %v1517
      %v3417 = vunpack.c.l.b16 %v1518
      %v3418 = vunpack.c.l.b16 %v1519
      %v3419 = vunpack.c.l.b16 %v1520
      %v3420 = vunpack.c.l.b16 %v1521
      %v3421 = vunpack.c.l.b16 %v1522
      %v3422 = vunpack.c.l.b16 %v1523
      %v3423 = vunpack.c.l.b16 %v1524
      %v3424 = vunpack.c.l.b16 %v1525
      %v3425 = vunpack.c.l.b16 %v1526
      %v3426 = vunpack.c.l.b16 %v1527
      %v3427 = vunpack.c.l.b16 %v1528
      %v3428 = vunpack.c.l.b16 %v1529
      %v3429 = vunpack.c.l.b16 %v1530
      %v3430 = vunpack.c.l.b16 %v1531
      %v3431 = vunpack.c.l.b16 %v1532
      %v3432 = vunpack.c.l.b16 %v1533
      %v3433 = vunpack.c.l.b16 %v1534
      %v3434 = vunpack.c.l.b16 %v1535
      %v3435 = vunpack.c.l.b16 %v1536
      %v3436 = vunpack.c.l.b16 %v1537
      %v3437 = vunpack.c.l.b16 %v1538
      %v3438 = vunpack.c.l.b16 %v1539
      %v3439 = vunpack.c.l.b16 %v1540
      %v3440 = vunpack.c.l.b16 %v1541
      %v3441 = vunpack.c.l.b16 %v1542
      %v3442 = vunpack.c.l.b16 %v1543
      %v3443 = vunpack.c.l.b16 %v1544
      %v3444 = vunpack.c.l.b16 %v1545
      %v3445 = vunpack.c.l.b16 %v1546
      %v3446 = vunpack.c.l.b16 %v1547
      %v3447 = vunpack.c.l.b16 %v1548
      %v3448 = vunpack.c.l.b16 %v1549
      %v3449 = vunpack.c.l.b16 %v1550
      %v3450 = vunpack.c.l.b16 %v1551
      %v3451 = vunpack.c.l.b16 %v1552
      %v3452 = vunpack.c.l.b16 %v1553
      %v3453 = vunpack.c.l.b16 %v1554
      %v3454 = vunpack.c.l.b16 %v1555
      %v3455 = vunpack.c.l.b16 %v1556
      %v3456 = vunpack.c.l.b16 %v1557
      %v3457 = vunpack.c.l.b16 %v1558
      %v3458 = vunpack.c.l.b16 %v1559
      %v3459 = vunpack.c.l.b16 %v1560
      %v3460 = vunpack.c.l.b16 %v1561
      %v3461 = vunpack.c.l.b16 %v1562
      %v3462 = vunpack.c.l.b16 %v1563
      %v3463 = vunpack.c.l.b16 %v1564
      %v3464 = vunpack.c.l.b16 %v1565
      %v3465 = vunpack.c.l.b16 %v1566
      %v3466 = vunpack.c.l.b16 %v1567
      %v3467 = vunpack.c.l.b16 %v1568
      %v3468 = vunpack.c.l.b16 %v1569
      %v3469 = vunpack.c.l.b16 %v1570
      %v3470 = vunpack.c.l.b16 %v1571
      %v3471 = vunpack.c.l.b16 %v1572
      %v3472 = vunpack.c.l.b16 %v1573
      %v3473 = vunpack.c.l.b16 %v1574
      %v3474 = vunpack.c.l.b16 %v1575
      %v3475 = vunpack.c.l.b16 %v1576
      %v3476 = vunpack.c.l.b16 %v1577
      %v3477 = vunpack.c.l.b16 %v1578
      %v3478 = vunpack.c.l.b16 %v1579
      %v3479 = vunpack.c.l.b16 %v1580
      %v3480 = vunpack.c.l.b16 %v1581
      %v3481 = vunpack.c.l.b16 %v1582
      %v3482 = vunpack.c.l.b16 %v1583
      %v3483 = vunpack.c.l.b16 %v1584
      %v3484 = vunpack.c.l.b16 %v1585
      %v3485 = vunpack.c.l.b16 %v1586
      %v3486 = vunpack.c.l.b16 %v1587
      %v3487 = vunpack.c.l.b16 %v1588
      %v3488 = vunpack.c.l.b16 %v1589
      %v3489 = vunpack.c.l.b16 %v1590
      %v3490 = vunpack.c.l.b16 %v1591
      %v3491 = vunpack.c.l.b16 %v1592
      %v3492 = vunpack.c.l.b16 %v1593
      %v3493 = vunpack.c.l.b16 %v1594
      %v3494 = vunpack.c.l.b16 %v1595
      %v3495 = vpack.c.b16 %v3352, %v3351
      %v3496 = vpack.c.b16 %v3354, %v3353
      %v3497 = vpack.c.b16 %v3356, %v3355
      %v3498 = vpack.c.b16 %v3358, %v3357
      %v3499 = vpack.c.b16 %v3360, %v3359
      %v3500 = vpack.c.b16 %v3362, %v3361
      %v3501 = vpack.c.b16 %v3364, %v3363
      %v3502 = vpack.c.b16 %v3366, %v3365
      %v3503 = vpack.c.b16 %v3368, %v3367
      %v3504 = vpack.c.b16 %v3370, %v3369
      %v3505 = vpack.c.b16 %v3372, %v3371
      %v3506 = vpack.c.b16 %v3374, %v3373
      %v3507 = vpack.c.b16 %v3376, %v3375
      %v3508 = vpack.c.b16 %v3378, %v3377
      %v3509 = vpack.c.b16 %v3380, %v3379
      %v3510 = vpack.c.b16 %v3382, %v3381
      %v3511 = vpack.c.b16 %v3384, %v3383
      %v3512 = vpack.c.b16 %v3386, %v3385
      %v3513 = vpack.c.b16 %v3388, %v3387
      %v3514 = vpack.c.b16 %v3390, %v3389
      %v3515 = vpack.c.b16 %v3392, %v3391
      %v3516 = vpack.c.b16 %v3394, %v3393
      %v3517 = vpack.c.b16 %v3396, %v3395
      %v3518 = vpack.c.b16 %v3398, %v3397
      %v3519 = vpack.c.b16 %v3400, %v3399
      %v3520 = vpack.c.b16 %v3402, %v3401
      %v3521 = vpack.c.b16 %v3404, %v3403
      %v3522 = vpack.c.b16 %v3406, %v3405
      %v3523 = vpack.c.b16 %v3408, %v3407
      %v3524 = vpack.c.b16 %v3410, %v3409
      %v3525 = vpack.c.b16 %v3412, %v3411
      %v3526 = vpack.c.b16 %v3414, %v3413
      %v3527 = vpack.c.b16 %v3416, %v3415
      %v3528 = vpack.c.b16 %v3418, %v3417
      %v3529 = vpack.c.b16 %v3420, %v3419
      %v3530 = vpack.c.b16 %v3422, %v3421
      %v3531 = vpack.c.b16 %v3424, %v3423
      %v3532 = vpack.c.b16 %v3426, %v3425
      %v3533 = vpack.c.b16 %v3428, %v3427
      %v3534 = vpack.c.b16 %v3430, %v3429
      %v3535 = vpack.c.b16 %v3432, %v3431
      %v3536 = vpack.c.b16 %v3434, %v3433
      %v3537 = vpack.c.b16 %v3436, %v3435
      %v3538 = vpack.c.b16 %v3438, %v3437
      %v3539 = vpack.c.b16 %v3440, %v3439
      %v3540 = vpack.c.b16 %v3442, %v3441
      %v3541 = vpack.c.b16 %v3444, %v3443
      %v3542 = vpack.c.b16 %v3446, %v3445
      %v3543 = vpack.c.b16 %v3448, %v3447
      %v3544 = vpack.c.b16 %v3450, %v3449
      %v3545 = vpack.c.b16 %v3452, %v3451
      %v3546 = vpack.c.b16 %v3454, %v3453
      %v3547 = vpack.c.b16 %v3456, %v3455
      %v3548 = vpack.c.b16 %v3458, %v3457
      %v3549 = vpack.c.b16 %v3460, %v3459
      %v3550 = vpack.c.b16 %v3462, %v3461
      %v3551 = vpack.c.b16 %v3464, %v3463
      %v3552 = vpack.c.b16 %v3466, %v3465
      %v3553 = vpack.c.b16 %v3468, %v3467
      %v3554 = vpack.c.b16 %v3470, %v3469
      %v3555 = vpack.c.b16 %v3472, %v3471
      %v3556 = vpack.c.b16 %v3474, %v3473
      %v3557 = vpack.c.b16 %v3476, %v3475
      %v3558 = vpack.c.b16 %v3478, %v3477
      %v3559 = vpack.c.b16 %v3480, %v3479
      %v3560 = vpack.c.b16 %v3482, %v3481
      %v3561 = vpack.c.b16 %v3484, %v3483
      %v3562 = vpack.c.b16 %v3486, %v3485
      %v3563 = vpack.c.b16 %v3488, %v3487
      %v3564 = vpack.c.b16 %v3490, %v3489
      %v3565 = vpack.c.b16 %v3492, %v3491
      %v3566 = vpack.c.b16 %v3494, %v3493
      %3639 = vmatprep.subr.bf16.mxu0 0
      %3640 = vmatpush1.bf16.msra.mxu0 %v3502
      %3641 = vmatprep.subr.bf16.mxu0 0
      %3642 = vmatpush1.bf16.msra.mxu0 %v3501
      %3643 = vmatprep.subr.bf16.mxu0 0
      %3644 = vmatpush1.bf16.msra.mxu0 %v3500
      %3645 = vmatprep.subr.bf16.mxu0 0
      %3646 = vmatpush1.bf16.msra.mxu0 %v3499
      %3647 = vmatprep.subr.bf16.mxu0 0
      %3648 = vmatpush1.bf16.msra.mxu0 %v3498
      %3649 = vmatprep.subr.bf16.mxu0 0
      %3650 = vmatpush1.bf16.msra.mxu0 %v3497
      %3651 = vmatprep.subr.bf16.mxu0 0
      %3652 = vmatpush1.bf16.msra.mxu0 %v3496
      %3653 = vmatprep.subr.bf16.mxu0 0
      %3654 = vmatpush1.bf16.msra.mxu0 %v3495
      %3655 = vmatprep.subr.bf16.mxu0 0
      %3656 = vmatpush2.bf16.msra.mxu0 %v3510
      %3657 = vmatprep.subr.bf16.mxu0 0
      %3658 = vmatpush2.bf16.msra.mxu0 %v3509
      %3659 = vmatprep.subr.bf16.mxu0 0
      %3660 = vmatpush2.bf16.msra.mxu0 %v3508
      %3661 = vmatprep.subr.bf16.mxu0 0
      %3662 = vmatpush2.bf16.msra.mxu0 %v3507
      %3663 = vmatprep.subr.bf16.mxu0 0
      %3664 = vmatpush2.bf16.msra.mxu0 %v3506
      %3665 = vmatprep.subr.bf16.mxu0 0
      %3666 = vmatpush2.bf16.msra.mxu0 %v3505
      %3667 = vmatprep.subr.bf16.mxu0 0
      %3668 = vmatpush2.bf16.msra.mxu0 %v3504
      %3669 = vmatprep.subr.bf16.mxu0 0
      %3670 = vmatpush2.bf16.msra.mxu0 %v3503
      %3671 = vmatprep.mubr.bf16.mxu0 %v1632
      %3672 = vmatmul.mubr.bf16.gmra.mxu0 %v1615
      %v3673 = vpop.f32.mrf.mxu0
      %v3674 = vadd.f32 %v1601, %v3673
      %v3675 = vpop.f32.mrf.mxu0
      %v3676 = vpop.f32.mrf.mxu0
      %v3677 = vadd.f32 %v1601, %v3676
      %v3678 = vpop.f32.mrf.mxu0
      %3679 = vmatprep.mubr.bf16.mxu0 %v1764
      %3680 = vmatmul.mubr.bf16.gmra.mxu0 %v1755
      %v3681 = vpop.f32.mrf.mxu0
      %v3682 = vadd.f32 %v1601, %v3681
      %v3683 = vpop.f32.mrf.mxu0
      %v3684 = vpop.f32.mrf.mxu0
      %v3685 = vadd.f32 %v1601, %v3684
      %v3686 = vpop.f32.mrf.mxu0
      %3687 = vmatprep.mubr.bf16.mxu0 %v1832
      %3688 = vmatmul.mubr.bf16.gmra.mxu0 %v1823
      %v3689 = vpop.f32.mrf.mxu0
      %v3690 = vadd.f32 %v1601, %v3689
      %v3691 = vpop.f32.mrf.mxu0
      %v3692 = vpop.f32.mrf.mxu0
      %v3693 = vadd.f32 %v1601, %v3692
      %v3694 = vpop.f32.mrf.mxu0
      %3695 = vmatprep.mubr.bf16.mxu0 %v1899
      %3696 = vmatmul.mubr.bf16.gmra.mxu0 %v1890
      %v3697 = vpop.f32.mrf.mxu0
      %v3698 = vadd.f32 %v1601, %v3697
      %v3699 = vpop.f32.mrf.mxu0
      %v3700 = vpop.f32.mrf.mxu0
      %v3701 = vadd.f32 %v1601, %v3700
      %v3702 = vpop.f32.mrf.mxu0
      %3703 = vmatprep.mubr.bf16.mxu0 %v1966
      %3704 = vmatmul.mubr.bf16.gmra.mxu0 %v1957
      %v3705 = vpop.f32.mrf.mxu0
      %v3706 = vadd.f32 %v1601, %v3705
      %v3707 = vpop.f32.mrf.mxu0
      %v3708 = vpop.f32.mrf.mxu0
      %v3709 = vadd.f32 %v1601, %v3708
      %v3710 = vpop.f32.mrf.mxu0
      %3711 = vmatprep.mubr.bf16.mxu0 %v2033
      %3712 = vmatmul.mubr.bf16.gmra.mxu0 %v2024
      %v3713 = vpop.f32.mrf.mxu0
      %v3714 = vadd.f32 %v1601, %v3713
      %v3715 = vpop.f32.mrf.mxu0
      %v3716 = vpop.f32.mrf.mxu0
      %v3717 = vadd.f32 %v1601, %v3716
      %v3718 = vpop.f32.mrf.mxu0
      %3719 = vmatprep.mubr.bf16.mxu0 %v2100
      %3720 = vmatmul.mubr.bf16.gmra.mxu0 %v2091
      %v3721 = vpop.f32.mrf.mxu0
      %v3722 = vadd.f32 %v1601, %v3721
      %v3723 = vpop.f32.mrf.mxu0
      %v3724 = vpop.f32.mrf.mxu0
      %v3725 = vadd.f32 %v1601, %v3724
      %v3726 = vpop.f32.mrf.mxu0
      %3727 = vmatprep.mubr.bf16.mxu0 %v2167
      %3728 = vmatmul.mubr.bf16.gmra.mxu0 %v2158
      %v3729 = vpop.f32.mrf.mxu0
      %v3730 = vadd.f32 %v1601, %v3729
      %v3731 = vpop.f32.mrf.mxu0
      %v3732 = vpop.f32.mrf.mxu0
      %v3733 = vadd.f32 %v1601, %v3732
      %v3734 = vpop.f32.mrf.mxu0
      %3735 = vmatprep.mubr.bf16.mxu0 %v2234
      %3736 = vmatmul.mubr.bf16.gmra.mxu0 %v2225
      %v3737 = vpop.f32.mrf.mxu0
      %v3738 = vadd.f32 %v1601, %v3737
      %v3739 = vpop.f32.mrf.mxu0
      %v3740 = vpop.f32.mrf.mxu0
      %v3741 = vadd.f32 %v1601, %v3740
      %v3742 = vpop.f32.mrf.mxu0
      %3743 = vmatprep.mubr.bf16.mxu0 %v2301
      %3744 = vmatmul.mubr.bf16.gmra.mxu0 %v2292
      %v3745 = vpop.f32.mrf.mxu0
      %v3746 = vadd.f32 %v1601, %v3745
      %v3747 = vpop.f32.mrf.mxu0
      %v3748 = vpop.f32.mrf.mxu0
      %v3749 = vadd.f32 %v1601, %v3748
      %v3750 = vpop.f32.mrf.mxu0
      %3751 = vmatprep.mubr.bf16.mxu0 %v2368
      %3752 = vmatmul.mubr.bf16.gmra.mxu0 %v2359
      %v3753 = vpop.f32.mrf.mxu0
      %v3754 = vadd.f32 %v1601, %v3753
      %v3755 = vpop.f32.mrf.mxu0
      %v3756 = vpop.f32.mrf.mxu0
      %v3757 = vadd.f32 %v1601, %v3756
      %v3758 = vpop.f32.mrf.mxu0
      %3759 = vmatprep.mubr.bf16.mxu0 %v2435
      %3760 = vmatmul.mubr.bf16.gmra.mxu0 %v2426
      %v3761 = vpop.f32.mrf.mxu0
      %v3762 = vadd.f32 %v1601, %v3761
      %v3763 = vpop.f32.mrf.mxu0
      %v3764 = vpop.f32.mrf.mxu0
      %v3765 = vadd.f32 %v1601, %v3764
      %v3766 = vpop.f32.mrf.mxu0
      %3767 = vmatprep.mubr.bf16.mxu0 %v2502
      %3768 = vmatmul.mubr.bf16.gmra.mxu0 %v2493
      %v3769 = vpop.f32.mrf.mxu0
      %v3770 = vadd.f32 %v1601, %v3769
      %v3771 = vpop.f32.mrf.mxu0
      %v3772 = vpop.f32.mrf.mxu0
      %v3773 = vadd.f32 %v1601, %v3772
      %v3774 = vpop.f32.mrf.mxu0
      %3775 = vmatprep.mubr.bf16.mxu0 %v2569
      %3776 = vmatmul.mubr.bf16.gmra.mxu0 %v2560
      %v3777 = vpop.f32.mrf.mxu0
      %v3778 = vadd.f32 %v1601, %v3777
      %v3779 = vpop.f32.mrf.mxu0
      %v3780 = vpop.f32.mrf.mxu0
      %v3781 = vadd.f32 %v1601, %v3780
      %v3782 = vpop.f32.mrf.mxu0
      %3783 = vmatprep.mubr.bf16.mxu0 %v2636
      %3784 = vmatmul.mubr.bf16.gmra.mxu0 %v2627
      %v3785 = vpop.f32.mrf.mxu0
      %v3786 = vadd.f32 %v1601, %v3785
      %v3787 = vpop.f32.mrf.mxu0
      %v3788 = vpop.f32.mrf.mxu0
      %v3789 = vadd.f32 %v1601, %v3788
      %v3790 = vpop.f32.mrf.mxu0
      %3791 = vmatprep.mubr.bf16.mxu0 %v2703
      %3792 = vmatmul.mubr.bf16.gmra.mxu0 %v2694
      %v3793 = vpop.f32.mrf.mxu0
      %v3794 = vadd.f32 %v1601, %v3793
      %v3795 = vpop.f32.mrf.mxu0
      %v3796 = vpop.f32.mrf.mxu0
      %v3797 = vadd.f32 %v1601, %v3796
      %v3798 = vpop.f32.mrf.mxu0
      %3799 = vmatprep.mubr.bf16.mxu0 %v2770
      %3800 = vmatmul.mubr.bf16.gmra.mxu0 %v2761
      %v3801 = vpop.f32.mrf.mxu0
      %v3802 = vadd.f32 %v1601, %v3801
      %v3803 = vpop.f32.mrf.mxu0
      %v3804 = vpop.f32.mrf.mxu0
      %v3805 = vadd.f32 %v1601, %v3804
      %v3806 = vpop.f32.mrf.mxu0
      %3807 = vmatprep.mubr.bf16.mxu0 %v2837
      %3808 = vmatmul.mubr.bf16.gmra.mxu0 %v2828
      %v3809 = vpop.f32.mrf.mxu0
      %v3810 = vadd.f32 %v1601, %v3809
      %v3811 = vpop.f32.mrf.mxu0
      %v3812 = vpop.f32.mrf.mxu0
      %v3813 = vadd.f32 %v1601, %v3812
      %v3814 = vpop.f32.mrf.mxu0
      %3815 = vmatprep.mubr.bf16.mxu0 %v2904
      %3816 = vmatmul.mubr.bf16.gmra.mxu0 %v2895
      %v3817 = vpop.f32.mrf.mxu0
      %v3818 = vadd.f32 %v1601, %v3817
      %v3819 = vpop.f32.mrf.mxu0
      %v3820 = vpop.f32.mrf.mxu0
      %v3821 = vadd.f32 %v1601, %v3820
      %v3822 = vpop.f32.mrf.mxu0
      %3823 = vmatprep.mubr.bf16.mxu0 %v2971
      %3824 = vmatmul.mubr.bf16.gmra.mxu0 %v2962
      %v3825 = vpop.f32.mrf.mxu0
      %v3826 = vadd.f32 %v1601, %v3825
      %v3827 = vpop.f32.mrf.mxu0
      %v3828 = vpop.f32.mrf.mxu0
      %v3829 = vadd.f32 %v1601, %v3828
      %v3830 = vpop.f32.mrf.mxu0
      %3831 = vmatprep.mubr.bf16.mxu0 %v2970
      %3832 = vmatmul.mubr.bf16.gmra.mxu0 %v2961
      %v3833 = vpop.f32.mrf.mxu0
      %v3834 = vadd.f32 %v1601, %v3833
      %v3835 = vpop.f32.mrf.mxu0
      %v3836 = vpop.f32.mrf.mxu0
      %v3837 = vpop.f32.mrf.mxu0
      %3838 = vdwg.mxu0
      %3839 = vmatprep.subr.bf16.mxu0 0
      %3840 = vmatpush1.bf16.msra.mxu0 %v3518
      %3841 = vmatprep.subr.bf16.mxu0 0
      %3842 = vmatpush1.bf16.msra.mxu0 %v3517
      %3843 = vmatprep.subr.bf16.mxu0 0
      %3844 = vmatpush1.bf16.msra.mxu0 %v3516
      %3845 = vmatprep.subr.bf16.mxu0 0
      %3846 = vmatpush1.bf16.msra.mxu0 %v3515
      %3847 = vmatprep.subr.bf16.mxu0 0
      %3848 = vmatpush1.bf16.msra.mxu0 %v3514
      %3849 = vmatprep.subr.bf16.mxu0 0
      %3850 = vmatpush1.bf16.msra.mxu0 %v3513
      %3851 = vmatprep.subr.bf16.mxu0 0
      %3852 = vmatpush1.bf16.msra.mxu0 %v3512
      %3853 = vmatprep.subr.bf16.mxu0 0
      %3854 = vmatpush1.bf16.msra.mxu0 %v3511
      %3855 = vmatprep.subr.bf16.mxu0 0
      %3856 = vmatpush2.bf16.msra.mxu0 %v3526
      %3857 = vmatprep.subr.bf16.mxu0 0
      %3858 = vmatpush2.bf16.msra.mxu0 %v3525
      %3859 = vmatprep.subr.bf16.mxu0 0
      %3860 = vmatpush2.bf16.msra.mxu0 %v3524
      %3861 = vmatprep.subr.bf16.mxu0 0
      %3862 = vmatpush2.bf16.msra.mxu0 %v3523
      %3863 = vmatprep.subr.bf16.mxu0 0
      %3864 = vmatpush2.bf16.msra.mxu0 %v3522
      %3865 = vmatprep.subr.bf16.mxu0 0
      %3866 = vmatpush2.bf16.msra.mxu0 %v3521
      %3867 = vmatprep.subr.bf16.mxu0 0
      %3868 = vmatpush2.bf16.msra.mxu0 %v3520
      %3869 = vmatprep.subr.bf16.mxu0 0
      %3870 = vmatpush2.bf16.msra.mxu0 %v3519
      %3871 = vmatprep.mubr.bf16.mxu0 %v1666
      %3872 = vmatmul.mubr.bf16.gmra.mxu0 %v1649
      %v3873 = vpop.f32.mrf.mxu0
      %v3874 = vadd.f32 %v3674, %v3873
      %v3875 = vpop.f32.mrf.mxu0
      %v3876 = vpop.f32.mrf.mxu0
      %v3877 = vadd.f32 %v3677, %v3876
      %v3878 = vpop.f32.mrf.mxu0
      %3879 = vmatprep.mubr.bf16.mxu0 %v1774
      %3880 = vmatmul.mubr.bf16.gmra.mxu0 %v1765
      %v3881 = vpop.f32.mrf.mxu0
      %v3882 = vadd.f32 %v3682, %v3881
      %v3883 = vpop.f32.mrf.mxu0
      %v3884 = vpop.f32.mrf.mxu0
      %v3885 = vadd.f32 %v3685, %v3884
      %v3886 = vpop.f32.mrf.mxu0
      %3887 = vmatprep.mubr.bf16.mxu0 %v1841
      %3888 = vmatmul.mubr.bf16.gmra.mxu0 %v1774
      %v3889 = vpop.f32.mrf.mxu0
      %v3890 = vadd.f32 %v3690, %v3889
      %v3891 = vpop.f32.mrf.mxu0
      %v3892 = vpop.f32.mrf.mxu0
      %v3893 = vadd.f32 %v3693, %v3892
      %v3894 = vpop.f32.mrf.mxu0
      %3895 = vmatprep.mubr.bf16.mxu0 %v1908
      %3896 = vmatmul.mubr.bf16.gmra.mxu0 %v1841
      %v3897 = vpop.f32.mrf.mxu0
      %v3898 = vadd.f32 %v3698, %v3897
      %v3899 = vpop.f32.mrf.mxu0
      %v3900 = vpop.f32.mrf.mxu0
      %v3901 = vadd.f32 %v3701, %v3900
      %v3902 = vpop.f32.mrf.mxu0
      %3903 = vmatprep.mubr.bf16.mxu0 %v1975
      %3904 = vmatmul.mubr.bf16.gmra.mxu0 %v1908
      %v3905 = vpop.f32.mrf.mxu0
      %v3906 = vadd.f32 %v3706, %v3905
      %v3907 = vpop.f32.mrf.mxu0
      %v3908 = vpop.f32.mrf.mxu0
      %v3909 = vadd.f32 %v3709, %v3908
      %v3910 = vpop.f32.mrf.mxu0
      %3911 = vmatprep.mubr.bf16.mxu0 %v2042
      %3912 = vmatmul.mubr.bf16.gmra.mxu0 %v1975
      %v3913 = vpop.f32.mrf.mxu0
      %v3914 = vadd.f32 %v3714, %v3913
      %v3915 = vpop.f32.mrf.mxu0
      %v3916 = vpop.f32.mrf.mxu0
      %v3917 = vadd.f32 %v3717, %v3916
      %v3918 = vpop.f32.mrf.mxu0
      %3919 = vmatprep.mubr.bf16.mxu0 %v2109
      %3920 = vmatmul.mubr.bf16.gmra.mxu0 %v2042
      %v3921 = vpop.f32.mrf.mxu0
      %v3922 = vadd.f32 %v3722, %v3921
      %v3923 = vpop.f32.mrf.mxu0
      %v3924 = vpop.f32.mrf.mxu0
      %v3925 = vadd.f32 %v3725, %v3924
      %v3926 = vpop.f32.mrf.mxu0
      %3927 = vmatprep.mubr.bf16.mxu0 %v2176
      %3928 = vmatmul.mubr.bf16.gmra.mxu0 %v2109
      %v3929 = vpop.f32.mrf.mxu0
      %v3930 = vadd.f32 %v3730, %v3929
      %v3931 = vpop.f32.mrf.mxu0
      %v3932 = vpop.f32.mrf.mxu0
      %v3933 = vadd.f32 %v3733, %v3932
      %v3934 = vpop.f32.mrf.mxu0
      %3935 = vmatprep.mubr.bf16.mxu0 %v2243
      %3936 = vmatmul.mubr.bf16.gmra.mxu0 %v2176
      %v3937 = vpop.f32.mrf.mxu0
      %v3938 = vadd.f32 %v3738, %v3937
      %v3939 = vpop.f32.mrf.mxu0
      %v3940 = vpop.f32.mrf.mxu0
      %v3941 = vadd.f32 %v3741, %v3940
      %v3942 = vpop.f32.mrf.mxu0
      %3943 = vmatprep.mubr.bf16.mxu0 %v2310
      %3944 = vmatmul.mubr.bf16.gmra.mxu0 %v2243
      %v3945 = vpop.f32.mrf.mxu0
      %v3946 = vadd.f32 %v3746, %v3945
      %v3947 = vpop.f32.mrf.mxu0
      %v3948 = vpop.f32.mrf.mxu0
      %v3949 = vadd.f32 %v3749, %v3948
      %v3950 = vpop.f32.mrf.mxu0
      %3951 = vmatprep.mubr.bf16.mxu0 %v2377
      %3952 = vmatmul.mubr.bf16.gmra.mxu0 %v2310
      %v3953 = vpop.f32.mrf.mxu0
      %v3954 = vadd.f32 %v3754, %v3953
      %v3955 = vpop.f32.mrf.mxu0
      %v3956 = vpop.f32.mrf.mxu0
      %v3957 = vadd.f32 %v3757, %v3956
      %v3958 = vpop.f32.mrf.mxu0
      %3959 = vmatprep.mubr.bf16.mxu0 %v2444
      %3960 = vmatmul.mubr.bf16.gmra.mxu0 %v2377
      %v3961 = vpop.f32.mrf.mxu0
      %v3962 = vadd.f32 %v3762, %v3961
      %v3963 = vpop.f32.mrf.mxu0
      %v3964 = vpop.f32.mrf.mxu0
      %v3965 = vadd.f32 %v3765, %v3964
      %v3966 = vpop.f32.mrf.mxu0
      %3967 = vmatprep.mubr.bf16.mxu0 %v2511
      %3968 = vmatmul.mubr.bf16.gmra.mxu0 %v2444
      %v3969 = vpop.f32.mrf.mxu0
      %v3970 = vadd.f32 %v3770, %v3969
      %v3971 = vpop.f32.mrf.mxu0
      %v3972 = vpop.f32.mrf.mxu0
      %v3973 = vadd.f32 %v3773, %v3972
      %v3974 = vpop.f32.mrf.mxu0
      %3975 = vmatprep.mubr.bf16.mxu0 %v2578
      %3976 = vmatmul.mubr.bf16.gmra.mxu0 %v2511
      %v3977 = vpop.f32.mrf.mxu0
      %v3978 = vadd.f32 %v3778, %v3977
      %v3979 = vpop.f32.mrf.mxu0
      %v3980 = vpop.f32.mrf.mxu0
      %v3981 = vadd.f32 %v3781, %v3980
      %v3982 = vpop.f32.mrf.mxu0
      %3983 = vmatprep.mubr.bf16.mxu0 %v2645
      %3984 = vmatmul.mubr.bf16.gmra.mxu0 %v2578
      %v3985 = vpop.f32.mrf.mxu0
      %v3986 = vadd.f32 %v3786, %v3985
      %v3987 = vpop.f32.mrf.mxu0
      %v3988 = vpop.f32.mrf.mxu0
      %v3989 = vadd.f32 %v3789, %v3988
      %v3990 = vpop.f32.mrf.mxu0
      %3991 = vmatprep.mubr.bf16.mxu0 %v2712
      %3992 = vmatmul.mubr.bf16.gmra.mxu0 %v2645
      %v3993 = vpop.f32.mrf.mxu0
      %v3994 = vadd.f32 %v3794, %v3993
      %v3995 = vpop.f32.mrf.mxu0
      %v3996 = vpop.f32.mrf.mxu0
      %v3997 = vadd.f32 %v3797, %v3996
      %v3998 = vpop.f32.mrf.mxu0
      %3999 = vmatprep.mubr.bf16.mxu0 %v2779
      %4000 = vmatmul.mubr.bf16.gmra.mxu0 %v2712
      %v4001 = vpop.f32.mrf.mxu0
      %v4002 = vadd.f32 %v3802, %v4001
      %v4003 = vpop.f32.mrf.mxu0
      %v4004 = vpop.f32.mrf.mxu0
      %v4005 = vadd.f32 %v3805, %v4004
      %v4006 = vpop.f32.mrf.mxu0
      %4007 = vmatprep.mubr.bf16.mxu0 %v2846
      %4008 = vmatmul.mubr.bf16.gmra.mxu0 %v2779
      %v4009 = vpop.f32.mrf.mxu0
      %v4010 = vadd.f32 %v3810, %v4009
      %v4011 = vpop.f32.mrf.mxu0
      %v4012 = vpop.f32.mrf.mxu0
      %v4013 = vadd.f32 %v3813, %v4012
      %v4014 = vpop.f32.mrf.mxu0
      %4015 = vmatprep.mubr.bf16.mxu0 %v2913
      %4016 = vmatmul.mubr.bf16.gmra.mxu0 %v2846
      %v4017 = vpop.f32.mrf.mxu0
      %v4018 = vadd.f32 %v3818, %v4017
      %v4019 = vpop.f32.mrf.mxu0
      %v4020 = vpop.f32.mrf.mxu0
      %v4021 = vadd.f32 %v3821, %v4020
      %v4022 = vpop.f32.mrf.mxu0
      %4023 = vmatprep.mubr.bf16.mxu0 %v2989
      %4024 = vmatmul.mubr.bf16.gmra.mxu0 %v2980
      %v4025 = vpop.f32.mrf.mxu0
      %v4026 = vadd.f32 %v3826, %v4025
      %v4027 = vpop.f32.mrf.mxu0
      %v4028 = vpop.f32.mrf.mxu0
      %v4029 = vadd.f32 %v3829, %v4028
      %v4030 = vpop.f32.mrf.mxu0
      %4031 = vmatprep.mubr.bf16.mxu0 %v2988
      %4032 = vmatmul.mubr.bf16.gmra.mxu0 %v2979
      %v4033 = vpop.f32.mrf.mxu0
      %v4034 = vadd.f32 %v3834, %v4033
      %v4035 = vpop.f32.mrf.mxu0
      %v4036 = vpop.f32.mrf.mxu0
      %v4037 = vpop.f32.mrf.mxu0
      %4038 = vdwg.mxu0
      %4039 = vmatprep.subr.bf16.mxu0 0
      %4040 = vmatpush1.bf16.msra.mxu0 %v3534
      %4041 = vmatprep.subr.bf16.mxu0 0
      %4042 = vmatpush1.bf16.msra.mxu0 %v3533
      %4043 = vmatprep.subr.bf16.mxu0 0
      %4044 = vmatpush1.bf16.msra.mxu0 %v3532
      %4045 = vmatprep.subr.bf16.mxu0 0
      %4046 = vmatpush1.bf16.msra.mxu0 %v3531
      %4047 = vmatprep.subr.bf16.mxu0 0
      %4048 = vmatpush1.bf16.msra.mxu0 %v3530
      %4049 = vmatprep.subr.bf16.mxu0 0
      %4050 = vmatpush1.bf16.msra.mxu0 %v3529
      %4051 = vmatprep.subr.bf16.mxu0 0
      %4052 = vmatpush1.bf16.msra.mxu0 %v3528
      %4053 = vmatprep.subr.bf16.mxu0 0
      %4054 = vmatpush1.bf16.msra.mxu0 %v3527
      %4055 = vmatprep.subr.bf16.mxu0 0
      %4056 = vmatpush2.bf16.msra.mxu0 %v3542
      %4057 = vmatprep.subr.bf16.mxu0 0
      %4058 = vmatpush2.bf16.msra.mxu0 %v3541
      %4059 = vmatprep.subr.bf16.mxu0 0
      %4060 = vmatpush2.bf16.msra.mxu0 %v3540
      %4061 = vmatprep.subr.bf16.mxu0 0
      %4062 = vmatpush2.bf16.msra.mxu0 %v3539
      %4063 = vmatprep.subr.bf16.mxu0 0
      %4064 = vmatpush2.bf16.msra.mxu0 %v3538
      %4065 = vmatprep.subr.bf16.mxu0 0
      %4066 = vmatpush2.bf16.msra.mxu0 %v3537
      %4067 = vmatprep.subr.bf16.mxu0 0
      %4068 = vmatpush2.bf16.msra.mxu0 %v3536
      %4069 = vmatprep.subr.bf16.mxu0 0
      %4070 = vmatpush2.bf16.msra.mxu0 %v3535
      %4071 = vmatprep.mubr.bf16.mxu0 %v1700
      %4072 = vmatmul.mubr.bf16.gmra.mxu0 %v1683
      %v4073 = vpop.f32.mrf.mxu0
      %v4074 = vadd.f32 %v3874, %v4073
      %v4075 = vpop.f32.mrf.mxu0
      %v4076 = vpop.f32.mrf.mxu0
      %v4077 = vadd.f32 %v3877, %v4076
      %v4078 = vpop.f32.mrf.mxu0
      %4079 = vmatprep.mubr.bf16.mxu0 %v1792
      %4080 = vmatmul.mubr.bf16.gmra.mxu0 %v1783
      %v4081 = vpop.f32.mrf.mxu0
      %v4082 = vadd.f32 %v3882, %v4081
      %v4083 = vpop.f32.mrf.mxu0
      %v4084 = vpop.f32.mrf.mxu0
      %v4085 = vadd.f32 %v3885, %v4084
      %v4086 = vpop.f32.mrf.mxu0
      %4087 = vmatprep.mubr.bf16.mxu0 %v1859
      %4088 = vmatmul.mubr.bf16.gmra.mxu0 %v1850
      %v4089 = vpop.f32.mrf.mxu0
      %v4090 = vadd.f32 %v3890, %v4089
      %v4091 = vpop.f32.mrf.mxu0
      %v4092 = vpop.f32.mrf.mxu0
      %v4093 = vadd.f32 %v3893, %v4092
      %v4094 = vpop.f32.mrf.mxu0
      %4095 = vmatprep.mubr.bf16.mxu0 %v1926
      %4096 = vmatmul.mubr.bf16.gmra.mxu0 %v1917
      %v4097 = vpop.f32.mrf.mxu0
      %v4098 = vadd.f32 %v3898, %v4097
      %v4099 = vpop.f32.mrf.mxu0
      %v4100 = vpop.f32.mrf.mxu0
      %v4101 = vadd.f32 %v3901, %v4100
      %v4102 = vpop.f32.mrf.mxu0
      %4103 = vmatprep.mubr.bf16.mxu0 %v1993
      %4104 = vmatmul.mubr.bf16.gmra.mxu0 %v1984
      %v4105 = vpop.f32.mrf.mxu0
      %v4106 = vadd.f32 %v3906, %v4105
      %v4107 = vpop.f32.mrf.mxu0
      %v4108 = vpop.f32.mrf.mxu0
      %v4109 = vadd.f32 %v3909, %v4108
      %v4110 = vpop.f32.mrf.mxu0
      %4111 = vmatprep.mubr.bf16.mxu0 %v2060
      %4112 = vmatmul.mubr.bf16.gmra.mxu0 %v2051
      %v4113 = vpop.f32.mrf.mxu0
      %v4114 = vadd.f32 %v3914, %v4113
      %v4115 = vpop.f32.mrf.mxu0
      %v4116 = vpop.f32.mrf.mxu0
      %v4117 = vadd.f32 %v3917, %v4116
      %v4118 = vpop.f32.mrf.mxu0
      %4119 = vmatprep.mubr.bf16.mxu0 %v2127
      %4120 = vmatmul.mubr.bf16.gmra.mxu0 %v2118
      %v4121 = vpop.f32.mrf.mxu0
      %v4122 = vadd.f32 %v3922, %v4121
      %v4123 = vpop.f32.mrf.mxu0
      %v4124 = vpop.f32.mrf.mxu0
      %v4125 = vadd.f32 %v3925, %v4124
      %v4126 = vpop.f32.mrf.mxu0
      %4127 = vmatprep.mubr.bf16.mxu0 %v2194
      %4128 = vmatmul.mubr.bf16.gmra.mxu0 %v2185
      %v4129 = vpop.f32.mrf.mxu0
      %v4130 = vadd.f32 %v3930, %v4129
      %v4131 = vpop.f32.mrf.mxu0
      %v4132 = vpop.f32.mrf.mxu0
      %v4133 = vadd.f32 %v3933, %v4132
      %v4134 = vpop.f32.mrf.mxu0
      %4135 = vmatprep.mubr.bf16.mxu0 %v2261
      %4136 = vmatmul.mubr.bf16.gmra.mxu0 %v2252
      %v4137 = vpop.f32.mrf.mxu0
      %v4138 = vadd.f32 %v3938, %v4137
      %v4139 = vpop.f32.mrf.mxu0
      %v4140 = vpop.f32.mrf.mxu0
      %v4141 = vadd.f32 %v3941, %v4140
      %v4142 = vpop.f32.mrf.mxu0
      %4143 = vmatprep.mubr.bf16.mxu0 %v2328
      %4144 = vmatmul.mubr.bf16.gmra.mxu0 %v2319
      %v4145 = vpop.f32.mrf.mxu0
      %v4146 = vadd.f32 %v3946, %v4145
      %v4147 = vpop.f32.mrf.mxu0
      %v4148 = vpop.f32.mrf.mxu0
      %v4149 = vadd.f32 %v3949, %v4148
      %v4150 = vpop.f32.mrf.mxu0
      %4151 = vmatprep.mubr.bf16.mxu0 %v2395
      %4152 = vmatmul.mubr.bf16.gmra.mxu0 %v2386
      %v4153 = vpop.f32.mrf.mxu0
      %v4154 = vadd.f32 %v3954, %v4153
      %v4155 = vpop.f32.mrf.mxu0
      %v4156 = vpop.f32.mrf.mxu0
      %v4157 = vadd.f32 %v3957, %v4156
      %v4158 = vpop.f32.mrf.mxu0
      %4159 = vmatprep.mubr.bf16.mxu0 %v2462
      %4160 = vmatmul.mubr.bf16.gmra.mxu0 %v2453
      %v4161 = vpop.f32.mrf.mxu0
      %v4162 = vadd.f32 %v3962, %v4161
      %v4163 = vpop.f32.mrf.mxu0
      %v4164 = vpop.f32.mrf.mxu0
      %v4165 = vadd.f32 %v3965, %v4164
      %v4166 = vpop.f32.mrf.mxu0
      %4167 = vmatprep.mubr.bf16.mxu0 %v2529
      %4168 = vmatmul.mubr.bf16.gmra.mxu0 %v2520
      %v4169 = vpop.f32.mrf.mxu0
      %v4170 = vadd.f32 %v3970, %v4169
      %v4171 = vpop.f32.mrf.mxu0
      %v4172 = vpop.f32.mrf.mxu0
      %v4173 = vadd.f32 %v3973, %v4172
      %v4174 = vpop.f32.mrf.mxu0
      %4175 = vmatprep.mubr.bf16.mxu0 %v2596
      %4176 = vmatmul.mubr.bf16.gmra.mxu0 %v2587
      %v4177 = vpop.f32.mrf.mxu0
      %v4178 = vadd.f32 %v3978, %v4177
      %v4179 = vpop.f32.mrf.mxu0
      %v4180 = vpop.f32.mrf.mxu0
      %v4181 = vadd.f32 %v3981, %v4180
      %v4182 = vpop.f32.mrf.mxu0
      %4183 = vmatprep.mubr.bf16.mxu0 %v2663
      %4184 = vmatmul.mubr.bf16.gmra.mxu0 %v2654
      %v4185 = vpop.f32.mrf.mxu0
      %v4186 = vadd.f32 %v3986, %v4185
      %v4187 = vpop.f32.mrf.mxu0
      %v4188 = vpop.f32.mrf.mxu0
      %v4189 = vadd.f32 %v3989, %v4188
      %v4190 = vpop.f32.mrf.mxu0
      %4191 = vmatprep.mubr.bf16.mxu0 %v2730
      %4192 = vmatmul.mubr.bf16.gmra.mxu0 %v2721
      %v4193 = vpop.f32.mrf.mxu0
      %v4194 = vadd.f32 %v3994, %v4193
      %v4195 = vpop.f32.mrf.mxu0
      %v4196 = vpop.f32.mrf.mxu0
      %v4197 = vadd.f32 %v3997, %v4196
      %v4198 = vpop.f32.mrf.mxu0
      %4199 = vmatprep.mubr.bf16.mxu0 %v2797
      %4200 = vmatmul.mubr.bf16.gmra.mxu0 %v2788
      %v4201 = vpop.f32.mrf.mxu0
      %v4202 = vadd.f32 %v4002, %v4201
      %v4203 = vpop.f32.mrf.mxu0
      %v4204 = vpop.f32.mrf.mxu0
      %v4205 = vadd.f32 %v4005, %v4204
      %v4206 = vpop.f32.mrf.mxu0
      %4207 = vmatprep.mubr.bf16.mxu0 %v2864
      %4208 = vmatmul.mubr.bf16.gmra.mxu0 %v2855
      %v4209 = vpop.f32.mrf.mxu0
      %v4210 = vadd.f32 %v4010, %v4209
      %v4211 = vpop.f32.mrf.mxu0
      %v4212 = vpop.f32.mrf.mxu0
      %v4213 = vadd.f32 %v4013, %v4212
      %v4214 = vpop.f32.mrf.mxu0
      %4215 = vmatprep.mubr.bf16.mxu0 %v2931
      %4216 = vmatmul.mubr.bf16.gmra.mxu0 %v2922
      %v4217 = vpop.f32.mrf.mxu0
      %v4218 = vadd.f32 %v4018, %v4217
      %v4219 = vpop.f32.mrf.mxu0
      %v4220 = vpop.f32.mrf.mxu0
      %v4221 = vadd.f32 %v4021, %v4220
      %v4222 = vpop.f32.mrf.mxu0
      %4223 = vmatprep.mubr.bf16.mxu0 %v3007
      %4224 = vmatmul.mubr.bf16.gmra.mxu0 %v2998
      %v4225 = vpop.f32.mrf.mxu0
      %v4226 = vadd.f32 %v4026, %v4225
      %v4227 = vpop.f32.mrf.mxu0
      %v4228 = vpop.f32.mrf.mxu0
      %v4229 = vadd.f32 %v4029, %v4228
      %v4230 = vpop.f32.mrf.mxu0
      %4231 = vmatprep.mubr.bf16.mxu0 %v3006
      %4232 = vmatmul.mubr.bf16.gmra.mxu0 %v2997
      %v4233 = vpop.f32.mrf.mxu0
      %v4234 = vadd.f32 %v4034, %v4233
      %v4235 = vpop.f32.mrf.mxu0
      %v4236 = vpop.f32.mrf.mxu0
      %v4237 = vpop.f32.mrf.mxu0
      %4238 = vdwg.mxu0
      %4239 = vmatprep.subr.bf16.mxu0 0
      %4240 = vmatpush1.bf16.msra.mxu0 %v3550
      %4241 = vmatprep.subr.bf16.mxu0 0
      %4242 = vmatpush1.bf16.msra.mxu0 %v3549
      %4243 = vmatprep.subr.bf16.mxu0 0
      %4244 = vmatpush1.bf16.msra.mxu0 %v3548
      %4245 = vmatprep.subr.bf16.mxu0 0
      %4246 = vmatpush1.bf16.msra.mxu0 %v3547
      %4247 = vmatprep.subr.bf16.mxu0 0
      %4248 = vmatpush1.bf16.msra.mxu0 %v3546
      %4249 = vmatprep.subr.bf16.mxu0 0
      %4250 = vmatpush1.bf16.msra.mxu0 %v3545
      %4251 = vmatprep.subr.bf16.mxu0 0
      %4252 = vmatpush1.bf16.msra.mxu0 %v3544
      %4253 = vmatprep.subr.bf16.mxu0 0
      %4254 = vmatpush1.bf16.msra.mxu0 %v3543
      %4255 = vmatprep.subr.bf16.mxu0 0
      %4256 = vmatpush2.bf16.msra.mxu0 %v3558
      %4257 = vmatprep.subr.bf16.mxu0 0
      %4258 = vmatpush2.bf16.msra.mxu0 %v3557
      %4259 = vmatprep.subr.bf16.mxu0 0
      %4260 = vmatpush2.bf16.msra.mxu0 %v3556
      %4261 = vmatprep.subr.bf16.mxu0 0
      %4262 = vmatpush2.bf16.msra.mxu0 %v3555
      %4263 = vmatprep.subr.bf16.mxu0 0
      %4264 = vmatpush2.bf16.msra.mxu0 %v3554
      %4265 = vmatprep.subr.bf16.mxu0 0
      %4266 = vmatpush2.bf16.msra.mxu0 %v3553
      %4267 = vmatprep.subr.bf16.mxu0 0
      %4268 = vmatpush2.bf16.msra.mxu0 %v3552
      %4269 = vmatprep.subr.bf16.mxu0 0
      %4270 = vmatpush2.bf16.msra.mxu0 %v3551
      %4271 = vmatprep.mubr.bf16.mxu0 %v1734
      %4272 = vmatmul.mubr.bf16.gmra.mxu0 %v1717
      %v4273 = vpop.f32.mrf.mxu0
      %v4274 = vadd.f32 %v4074, %v4273
      %v4275 = vpop.f32.mrf.mxu0
      %v4276 = vpop.f32.mrf.mxu0
      %v4277 = vadd.f32 %v4077, %v4276
      %v4278 = vpop.f32.mrf.mxu0
      %4279 = vmatprep.mubr.bf16.mxu0 %v1810
      %4280 = vmatmul.mubr.bf16.gmra.mxu0 %v1801
      %v4281 = vpop.f32.mrf.mxu0
      %v4282 = vadd.f32 %v4082, %v4281
      %v4283 = vpop.f32.mrf.mxu0
      %v4284 = vpop.f32.mrf.mxu0
      %v4285 = vadd.f32 %v4085, %v4284
      %v4286 = vpop.f32.mrf.mxu0
      %4287 = vmatprep.mubr.bf16.mxu0 %v1877
      %4288 = vmatmul.mubr.bf16.gmra.mxu0 %v1868
      %v4289 = vpop.f32.mrf.mxu0
      %v4290 = vadd.f32 %v4090, %v4289
      %v4291 = vpop.f32.mrf.mxu0
      %v4292 = vpop.f32.mrf.mxu0
      %v4293 = vadd.f32 %v4093, %v4292
      %v4294 = vpop.f32.mrf.mxu0
      %4295 = vmatprep.mubr.bf16.mxu0 %v1944
      %4296 = vmatmul.mubr.bf16.gmra.mxu0 %v1935
      %v4297 = vpop.f32.mrf.mxu0
      %v4298 = vadd.f32 %v4098, %v4297
      %v4299 = vpop.f32.mrf.mxu0
      %v4300 = vpop.f32.mrf.mxu0
      %v4301 = vadd.f32 %v4101, %v4300
      %v4302 = vpop.f32.mrf.mxu0
      %4303 = vmatprep.mubr.bf16.mxu0 %v2011
      %4304 = vmatmul.mubr.bf16.gmra.mxu0 %v2002
      %v4305 = vpop.f32.mrf.mxu0
      %v4306 = vadd.f32 %v4106, %v4305
      %v4307 = vpop.f32.mrf.mxu0
      %v4308 = vpop.f32.mrf.mxu0
      %v4309 = vadd.f32 %v4109, %v4308
      %v4310 = vpop.f32.mrf.mxu0
      %4311 = vmatprep.mubr.bf16.mxu0 %v2078
      %4312 = vmatmul.mubr.bf16.gmra.mxu0 %v2069
      %v4313 = vpop.f32.mrf.mxu0
      %v4314 = vadd.f32 %v4114, %v4313
      %v4315 = vpop.f32.mrf.mxu0
      %v4316 = vpop.f32.mrf.mxu0
      %v4317 = vadd.f32 %v4117, %v4316
      %v4318 = vpop.f32.mrf.mxu0
      %4319 = vmatprep.mubr.bf16.mxu0 %v2145
      %4320 = vmatmul.mubr.bf16.gmra.mxu0 %v2136
      %v4321 = vpop.f32.mrf.mxu0
      %v4322 = vadd.f32 %v4122, %v4321
      %v4323 = vpop.f32.mrf.mxu0
      %v4324 = vpop.f32.mrf.mxu0
      %v4325 = vadd.f32 %v4125, %v4324
      %v4326 = vpop.f32.mrf.mxu0
      %4327 = vmatprep.mubr.bf16.mxu0 %v2212
      %4328 = vmatmul.mubr.bf16.gmra.mxu0 %v2203
      %v4329 = vpop.f32.mrf.mxu0
      %v4330 = vadd.f32 %v4130, %v4329
      %v4331 = vpop.f32.mrf.mxu0
      %v4332 = vpop.f32.mrf.mxu0
      %v4333 = vadd.f32 %v4133, %v4332
      %v4334 = vpop.f32.mrf.mxu0
      %4335 = vmatprep.mubr.bf16.mxu0 %v2279
      %4336 = vmatmul.mubr.bf16.gmra.mxu0 %v2270
      %v4337 = vpop.f32.mrf.mxu0
      %v4338 = vadd.f32 %v4138, %v4337
      %v4339 = vpop.f32.mrf.mxu0
      %v4340 = vpop.f32.mrf.mxu0
      %v4341 = vadd.f32 %v4141, %v4340
      %v4342 = vpop.f32.mrf.mxu0
      %4343 = vmatprep.mubr.bf16.mxu0 %v2346
      %4344 = vmatmul.mubr.bf16.gmra.mxu0 %v2337
      %v4345 = vpop.f32.mrf.mxu0
      %v4346 = vadd.f32 %v4146, %v4345
      %v4347 = vpop.f32.mrf.mxu0
      %v4348 = vpop.f32.mrf.mxu0
      %v4349 = vadd.f32 %v4149, %v4348
      %v4350 = vpop.f32.mrf.mxu0
      %4351 = vmatprep.mubr.bf16.mxu0 %v2413
      %4352 = vmatmul.mubr.bf16.gmra.mxu0 %v2404
      %v4353 = vpop.f32.mrf.mxu0
      %v4354 = vadd.f32 %v4154, %v4353
      %v4355 = vpop.f32.mrf.mxu0
      %v4356 = vpop.f32.mrf.mxu0
      %v4357 = vadd.f32 %v4157, %v4356
      %v4358 = vpop.f32.mrf.mxu0
      %4359 = vmatprep.mubr.bf16.mxu0 %v2480
      %4360 = vmatmul.mubr.bf16.gmra.mxu0 %v2471
      %v4361 = vpop.f32.mrf.mxu0
      %v4362 = vadd.f32 %v4162, %v4361
      %v4363 = vpop.f32.mrf.mxu0
      %v4364 = vpop.f32.mrf.mxu0
      %v4365 = vadd.f32 %v4165, %v4364
      %v4366 = vpop.f32.mrf.mxu0
      %4367 = vmatprep.mubr.bf16.mxu0 %v2547
      %4368 = vmatmul.mubr.bf16.gmra.mxu0 %v2538
      %v4369 = vpop.f32.mrf.mxu0
      %v4370 = vadd.f32 %v4170, %v4369
      %v4371 = vpop.f32.mrf.mxu0
      %v4372 = vpop.f32.mrf.mxu0
      %v4373 = vadd.f32 %v4173, %v4372
      %v4374 = vpop.f32.mrf.mxu0
      %4375 = vmatprep.mubr.bf16.mxu0 %v2614
      %4376 = vmatmul.mubr.bf16.gmra.mxu0 %v2605
      %v4377 = vpop.f32.mrf.mxu0
      %v4378 = vadd.f32 %v4178, %v4377
      %v4379 = vpop.f32.mrf.mxu0
      %v4380 = vpop.f32.mrf.mxu0
      %v4381 = vadd.f32 %v4181, %v4380
      %v4382 = vpop.f32.mrf.mxu0
      %4383 = vmatprep.mubr.bf16.mxu0 %v2681
      %4384 = vmatmul.mubr.bf16.gmra.mxu0 %v2672
      %v4385 = vpop.f32.mrf.mxu0
      %v4386 = vadd.f32 %v4186, %v4385
      %v4387 = vpop.f32.mrf.mxu0
      %v4388 = vpop.f32.mrf.mxu0
      %v4389 = vadd.f32 %v4189, %v4388
      %v4390 = vpop.f32.mrf.mxu0
      %4391 = vmatprep.mubr.bf16.mxu0 %v2748
      %4392 = vmatmul.mubr.bf16.gmra.mxu0 %v2739
      %v4393 = vpop.f32.mrf.mxu0
      %v4394 = vadd.f32 %v4194, %v4393
      %v4395 = vpop.f32.mrf.mxu0
      %v4396 = vpop.f32.mrf.mxu0
      %v4397 = vadd.f32 %v4197, %v4396
      %v4398 = vpop.f32.mrf.mxu0
      %4399 = vmatprep.mubr.bf16.mxu0 %v2815
      %4400 = vmatmul.mubr.bf16.gmra.mxu0 %v2806
      %v4401 = vpop.f32.mrf.mxu0
      %v4402 = vadd.f32 %v4202, %v4401
      %v4403 = vpop.f32.mrf.mxu0
      %v4404 = vpop.f32.mrf.mxu0
      %v4405 = vadd.f32 %v4205, %v4404
      %v4406 = vpop.f32.mrf.mxu0
      %4407 = vmatprep.mubr.bf16.mxu0 %v2882
      %4408 = vmatmul.mubr.bf16.gmra.mxu0 %v2873
      %v4409 = vpop.f32.mrf.mxu0
      %v4410 = vadd.f32 %v4210, %v4409
      %v4411 = vpop.f32.mrf.mxu0
      %v4412 = vpop.f32.mrf.mxu0
      %v4413 = vadd.f32 %v4213, %v4412
      %v4414 = vpop.f32.mrf.mxu0
      %4415 = vmatprep.mubr.bf16.mxu0 %v2949
      %4416 = vmatmul.mubr.bf16.gmra.mxu0 %v2940
      %v4417 = vpop.f32.mrf.mxu0
      %v4418 = vadd.f32 %v4218, %v4417
      %v4419 = vpop.f32.mrf.mxu0
      %v4420 = vpop.f32.mrf.mxu0
      %v4421 = vadd.f32 %v4221, %v4420
      %v4422 = vpop.f32.mrf.mxu0
      %4423 = vmatprep.mubr.bf16.mxu0 %v3025
      %4424 = vmatmul.mubr.bf16.gmra.mxu0 %v3016
      %v4425 = vpop.f32.mrf.mxu0
      %v4426 = vadd.f32 %v4226, %v4425
      %v4427 = vpop.f32.mrf.mxu0
      %v4428 = vpop.f32.mrf.mxu0
      %v4429 = vadd.f32 %v4229, %v4428
      %v4430 = vpop.f32.mrf.mxu0
      %4431 = vmatprep.mubr.bf16.mxu0 %v3024
      %4432 = vmatmul.mubr.bf16.gmra.mxu0 %v3015
      %v4433 = vpop.f32.mrf.mxu0
      %v4434 = vadd.f32 %v4234, %v4433
      %v4435 = vpop.f32.mrf.mxu0
      %v4436 = vpop.f32.mrf.mxu0
      %v4437 = vpop.f32.mrf.mxu0
      %4438 = vdwg.mxu0
      %4439 = vmatprep.subr.bf16.mxu0 0
      %4440 = vmatpush1.bf16.msra.mxu0 %v3566
      %4441 = vmatprep.subr.bf16.mxu0 0
      %4442 = vmatpush1.bf16.msra.mxu0 %v3565
      %4443 = vmatprep.subr.bf16.mxu0 0
      %4444 = vmatpush1.bf16.msra.mxu0 %v3564
      %4445 = vmatprep.subr.bf16.mxu0 0
      %4446 = vmatpush1.bf16.msra.mxu0 %v3563
      %4447 = vmatprep.subr.bf16.mxu0 0
      %4448 = vmatpush1.bf16.msra.mxu0 %v3562
      %4449 = vmatprep.subr.bf16.mxu0 0
      %4450 = vmatpush1.bf16.msra.mxu0 %v3561
      %4451 = vmatprep.subr.bf16.mxu0 0
      %4452 = vmatpush1.bf16.msra.mxu0 %v3560
      %4453 = vmatprep.subr.bf16.mxu0 0
      %4454 = vmatpush1.bf16.msra.mxu0 %v3559
      %4455 = vmatprep.subr.bf16.mxu0 0
      %4456 = vmatpush2.bf16.msra.mxu0 0
      %4457 = vmatprep.subr.bf16.mxu0 0
      %4458 = vmatpush2.bf16.msra.mxu0 0
      %4459 = vmatprep.subr.bf16.mxu0 0
      %4460 = vmatpush2.bf16.msra.mxu0 0
      %4461 = vmatprep.subr.bf16.mxu0 0
      %4462 = vmatpush2.bf16.msra.mxu0 0
      %4463 = vmatprep.subr.bf16.mxu0 0
      %4464 = vmatpush2.bf16.msra.mxu0 0
      %4465 = vmatprep.subr.bf16.mxu0 0
      %4466 = vmatpush2.bf16.msra.mxu0 0
      %4467 = vmatprep.subr.bf16.mxu0 0
      %4468 = vmatpush2.bf16.msra.mxu0 0
      %4469 = vmatprep.subr.bf16.mxu0 0
      %4470 = vmatpush2.bf16.msra.mxu0 0
      %4471 = vmatprep.mubr.bf16.mxu0 0
      %4472 = vmatmul.mubr.bf16.gmra.mxu0 %v1751
      %v4473 = vpop.f32.mrf.mxu0
      %v4474 = vadd.f32 %v4274, %v4473
      %v4475 = vpop.f32.mrf.mxu0
      %v4476 = vpop.f32.mrf.mxu0
      %v4477 = vadd.f32 %v4277, %v4476
      %v4478 = vpop.f32.mrf.mxu0
      %4479 = vmatprep.mubr.bf16.mxu0 0
      %4480 = vmatmul.mubr.bf16.gmra.mxu0 %v1819
      %v4481 = vpop.f32.mrf.mxu0
      %v4482 = vadd.f32 %v4282, %v4481
      %v4483 = vpop.f32.mrf.mxu0
      %v4484 = vpop.f32.mrf.mxu0
      %v4485 = vadd.f32 %v4285, %v4484
      %v4486 = vpop.f32.mrf.mxu0
      %4487 = vmatprep.mubr.bf16.mxu0 0
      %4488 = vmatmul.mubr.bf16.gmra.mxu0 %v1886
      %v4489 = vpop.f32.mrf.mxu0
      %v4490 = vadd.f32 %v4290, %v4489
      %v4491 = vpop.f32.mrf.mxu0
      %v4492 = vpop.f32.mrf.mxu0
      %v4493 = vadd.f32 %v4293, %v4492
      %v4494 = vpop.f32.mrf.mxu0
      %4495 = vmatprep.mubr.bf16.mxu0 0
      %4496 = vmatmul.mubr.bf16.gmra.mxu0 %v1953
      %v4497 = vpop.f32.mrf.mxu0
      %v4498 = vadd.f32 %v4298, %v4497
      %v4499 = vpop.f32.mrf.mxu0
      %v4500 = vpop.f32.mrf.mxu0
      %v4501 = vadd.f32 %v4301, %v4500
      %v4502 = vpop.f32.mrf.mxu0
      %4503 = vmatprep.mubr.bf16.mxu0 0
      %4504 = vmatmul.mubr.bf16.gmra.mxu0 %v2020
      %v4505 = vpop.f32.mrf.mxu0
      %v4506 = vadd.f32 %v4306, %v4505
      %v4507 = vpop.f32.mrf.mxu0
      %v4508 = vpop.f32.mrf.mxu0
      %v4509 = vadd.f32 %v4309, %v4508
      %v4510 = vpop.f32.mrf.mxu0
      %4511 = vmatprep.mubr.bf16.mxu0 0
      %4512 = vmatmul.mubr.bf16.gmra.mxu0 %v2087
      %v4513 = vpop.f32.mrf.mxu0
      %v4514 = vadd.f32 %v4314, %v4513
      %v4515 = vpop.f32.mrf.mxu0
      %v4516 = vpop.f32.mrf.mxu0
      %v4517 = vadd.f32 %v4317, %v4516
      %v4518 = vpop.f32.mrf.mxu0
      %4519 = vmatprep.mubr.bf16.mxu0 0
      %4520 = vmatmul.mubr.bf16.gmra.mxu0 %v2154
      %v4521 = vpop.f32.mrf.mxu0
      %v4522 = vadd.f32 %v4322, %v4521
      %v4523 = vpop.f32.mrf.mxu0
      %v4524 = vpop.f32.mrf.mxu0
      %v4525 = vadd.f32 %v4325, %v4524
      %v4526 = vpop.f32.mrf.mxu0
      %4527 = vmatprep.mubr.bf16.mxu0 0
      %4528 = vmatmul.mubr.bf16.gmra.mxu0 %v2221
      %v4529 = vpop.f32.mrf.mxu0
      %v4530 = vadd.f32 %v4330, %v4529
      %v4531 = vpop.f32.mrf.mxu0
      %v4532 = vpop.f32.mrf.mxu0
      %v4533 = vadd.f32 %v4333, %v4532
      %v4534 = vpop.f32.mrf.mxu0
      %4535 = vmatprep.mubr.bf16.mxu0 0
      %4536 = vmatmul.mubr.bf16.gmra.mxu0 %v2288
      %v4537 = vpop.f32.mrf.mxu0
      %v4538 = vadd.f32 %v4338, %v4537
      %v4539 = vpop.f32.mrf.mxu0
      %v4540 = vpop.f32.mrf.mxu0
      %v4541 = vadd.f32 %v4341, %v4540
      %v4542 = vpop.f32.mrf.mxu0
      %4543 = vmatprep.mubr.bf16.mxu0 0
      %4544 = vmatmul.mubr.bf16.gmra.mxu0 %v2355
      %v4545 = vpop.f32.mrf.mxu0
      %v4546 = vadd.f32 %v4346, %v4545
      %v4547 = vpop.f32.mrf.mxu0
      %v4548 = vpop.f32.mrf.mxu0
      %v4549 = vadd.f32 %v4349, %v4548
      %v4550 = vpop.f32.mrf.mxu0
      %4551 = vmatprep.mubr.bf16.mxu0 0
      %4552 = vmatmul.mubr.bf16.gmra.mxu0 %v2422
      %v4553 = vpop.f32.mrf.mxu0
      %v4554 = vadd.f32 %v4354, %v4553
      %v4555 = vpop.f32.mrf.mxu0
      %v4556 = vpop.f32.mrf.mxu0
      %v4557 = vadd.f32 %v4357, %v4556
      %v4558 = vpop.f32.mrf.mxu0
      %4559 = vmatprep.mubr.bf16.mxu0 0
      %4560 = vmatmul.mubr.bf16.gmra.mxu0 %v2489
      %v4561 = vpop.f32.mrf.mxu0
      %v4562 = vadd.f32 %v4362, %v4561
      %v4563 = vpop.f32.mrf.mxu0
      %v4564 = vpop.f32.mrf.mxu0
      %v4565 = vadd.f32 %v4365, %v4564
      %v4566 = vpop.f32.mrf.mxu0
      %4567 = vmatprep.mubr.bf16.mxu0 0
      %4568 = vmatmul.mubr.bf16.gmra.mxu0 %v2556
      %v4569 = vpop.f32.mrf.mxu0
      %v4570 = vadd.f32 %v4370, %v4569
      %v4571 = vpop.f32.mrf.mxu0
      %v4572 = vpop.f32.mrf.mxu0
      %v4573 = vadd.f32 %v4373, %v4572
      %v4574 = vpop.f32.mrf.mxu0
      %4575 = vmatprep.mubr.bf16.mxu0 0
      %4576 = vmatmul.mubr.bf16.gmra.mxu0 %v2623
      %v4577 = vpop.f32.mrf.mxu0
      %v4578 = vadd.f32 %v4378, %v4577
      %v4579 = vpop.f32.mrf.mxu0
      %v4580 = vpop.f32.mrf.mxu0
      %v4581 = vadd.f32 %v4381, %v4580
      %v4582 = vpop.f32.mrf.mxu0
      %4583 = vmatprep.mubr.bf16.mxu0 0
      %4584 = vmatmul.mubr.bf16.gmra.mxu0 %v2690
      %v4585 = vpop.f32.mrf.mxu0
      %v4586 = vadd.f32 %v4386, %v4585
      %v4587 = vpop.f32.mrf.mxu0
      %v4588 = vpop.f32.mrf.mxu0
      %v4589 = vadd.f32 %v4389, %v4588
      %v4590 = vpop.f32.mrf.mxu0
      %4591 = vmatprep.mubr.bf16.mxu0 0
      %4592 = vmatmul.mubr.bf16.gmra.mxu0 %v2757
      %v4593 = vpop.f32.mrf.mxu0
      %v4594 = vadd.f32 %v4394, %v4593
      %v4595 = vpop.f32.mrf.mxu0
      %v4596 = vpop.f32.mrf.mxu0
      %v4597 = vadd.f32 %v4397, %v4596
      %v4598 = vpop.f32.mrf.mxu0
      %4599 = vmatprep.mubr.bf16.mxu0 0
      %4600 = vmatmul.mubr.bf16.gmra.mxu0 %v2824
      %v4601 = vpop.f32.mrf.mxu0
      %v4602 = vadd.f32 %v4402, %v4601
      %v4603 = vpop.f32.mrf.mxu0
      %v4604 = vpop.f32.mrf.mxu0
      %v4605 = vadd.f32 %v4405, %v4604
      %v4606 = vpop.f32.mrf.mxu0
      %4607 = vmatprep.mubr.bf16.mxu0 0
      %4608 = vmatmul.mubr.bf16.gmra.mxu0 %v2891
      %v4609 = vpop.f32.mrf.mxu0
      %v4610 = vadd.f32 %v4410, %v4609
      %v4611 = vpop.f32.mrf.mxu0
      %v4612 = vpop.f32.mrf.mxu0
      %v4613 = vadd.f32 %v4413, %v4612
      %v4614 = vpop.f32.mrf.mxu0
      %4615 = vmatprep.mubr.bf16.mxu0 0
      %4616 = vmatmul.mubr.bf16.gmra.mxu0 %v2958
      %v4617 = vpop.f32.mrf.mxu0
      %v4618 = vadd.f32 %v4418, %v4617
      %v4619 = vpop.f32.mrf.mxu0
      %v4620 = vpop.f32.mrf.mxu0
      %v4621 = vadd.f32 %v4421, %v4620
      %v4622 = vpop.f32.mrf.mxu0
      %4623 = vmatprep.mubr.bf16.mxu0 0
      %4624 = vmatmul.mubr.bf16.gmra.mxu0 %v3034
      %v4625 = vpop.f32.mrf.mxu0
      %v4626 = vadd.f32 %v4426, %v4625
      %v4627 = vpop.f32.mrf.mxu0
      %v4628 = vpop.f32.mrf.mxu0
      %v4629 = vadd.f32 %v4429, %v4628
      %v4630 = vpop.f32.mrf.mxu0
      %4631 = vmatprep.mubr.bf16.mxu0 0
      %4632 = vmatmul.mubr.bf16.gmra.mxu0 %v3033
      %v4633 = vpop.f32.mrf.mxu0
      %v4634 = vadd.f32 %v4434, %v4633
      %v4635 = vpop.f32.mrf.mxu0
      %v4636 = vpop.f32.mrf.mxu0
      %v4637 = vpop.f32.mrf.mxu0
      %4638 = vdwg.mxu0
      %v4639 = vmax.f32 %v4474, 0.0
      %v4640 = vmax.f32 %v4477, 0.0
      %v4641 = vmax.f32 %v4482, 0.0
      %v4642 = vmax.f32 %v4485, 0.0
      %v4643 = vmax.f32 %v4490, 0.0
      %v4644 = vmax.f32 %v4493, 0.0
      %v4645 = vmax.f32 %v4498, 0.0
      %v4646 = vmax.f32 %v4501, 0.0
      %v4647 = vmax.f32 %v4506, 0.0
      %v4648 = vmax.f32 %v4509, 0.0
      %v4649 = vmax.f32 %v4514, 0.0
      %v4650 = vmax.f32 %v4517, 0.0
      %v4651 = vmax.f32 %v4522, 0.0
      %v4652 = vmax.f32 %v4525, 0.0
      %v4653 = vmax.f32 %v4530, 0.0
      %v4654 = vmax.f32 %v4533, 0.0
      %v4655 = vmax.f32 %v4538, 0.0
      %v4656 = vmax.f32 %v4541, 0.0
      %v4657 = vmax.f32 %v4546, 0.0
      %v4658 = vmax.f32 %v4549, 0.0
      %v4659 = vmax.f32 %v4554, 0.0
      %v4660 = vmax.f32 %v4557, 0.0
      %v4661 = vmax.f32 %v4562, 0.0
      %v4662 = vmax.f32 %v4565, 0.0
      %v4663 = vmax.f32 %v4570, 0.0
      %v4664 = vmax.f32 %v4573, 0.0
      %v4665 = vmax.f32 %v4578, 0.0
      %v4666 = vmax.f32 %v4581, 0.0
      %v4667 = vmax.f32 %v4586, 0.0
      %v4668 = vmax.f32 %v4589, 0.0
      %v4669 = vmax.f32 %v4594, 0.0
      %v4670 = vmax.f32 %v4597, 0.0
      %v4671 = vmax.f32 %v4602, 0.0
      %v4672 = vmax.f32 %v4605, 0.0
      %v4673 = vmax.f32 %v4610, 0.0
      %v4674 = vmax.f32 %v4613, 0.0
      %v4675 = vmax.f32 %v4618, 0.0
      %v4676 = vmax.f32 %v4621, 0.0
      %v4677 = vmax.f32 %v4626, 0.0
      %v4678 = vmax.f32 %v4629, 0.0
      %v4679 = vmax.f32 %v4634, 0.0
      %v4680 = vsel %vm348, 1, 0
      %v4681 = vsel %vm349, 1, 0
      %v4682 = vsel %vm350, 1, 0
      %v4683 = vsel %vm351, 1, 0
      %v4684 = vsel %vm352, 1, 0
      %v4685 = vsel %vm353, 1, 0
      %v4686 = vsel %vm354, 1, 0
      %v4687 = vsel %vm355, 1, 0
      %v4688 = vsel %vm356, 1, 0
      %v4689 = vsel %vm357, 1, 0
      %v4690 = vsel %vm358, 1, 0
      %v4691 = vsel %vm359, 1, 0
      %v4692 = vsel %vm360, 1, 0
      %v4693 = vsel %vm361, 1, 0
      %v4694 = vsel %vm362, 1, 0
      %v4695 = vsel %vm363, 1, 0
      %v4696 = vsel %vm364, 1, 0
      %v4697 = vsel %vm365, 1, 0
      %v4698 = vsel %vm366, 1, 0
      %v4699 = vsel %vm367, 1, 0
      %v4700 = vsel %vm368, 1, 0
      %v4701 = vsel %vm369, 1, 0
      %v4702 = vsel %vm370, 1, 0
      %v4703 = vsel %vm371, 1, 0
      %v4704 = vsel %vm372, 1, 0
      %v4705 = vsel %vm373, 1, 0
      %v4706 = vsel %vm374, 1, 0
      %v4707 = vsel %vm375, 1, 0
      %v4708 = vsel %vm376, 1, 0
      %v4709 = vsel %vm377, 1, 0
      %v4710 = vsel %vm378, 1, 0
      %v4711 = vsel %vm379, 1, 0
      %v4712 = vsel %vm380, 1, 0
      %v4713 = vsel %vm381, 1, 0
      %v4714 = vsel %vm382, 1, 0
      %v4715 = vsel %vm383, 1, 0
      %v4716 = vsel %vm384, 1, 0
      %v4717 = vsel %vm385, 1, 0
      %v4718 = vsel %vm386, 1, 0
      %v4719 = vsel %vm387, 1, 0
      %v4720 = vsel %vm388, 1, 0
      %4721 = vset.pattern.permute.xlu0 0
      %4722 = vperm.xlu0 %4721, %v4680
      %v4723 = vpop.permute.xlu0 %4722
      %4724 = vset.pattern.permute.xlu0 0
      %4725 = vperm.xlu0 %4724, %v4681
      %v4726 = vpop.permute.xlu0 %4725
      %4727 = vset.pattern.permute.xlu0 0
      %4728 = vperm.xlu0 %4727, %v4682
      %v4729 = vpop.permute.xlu0 %4728
      %4730 = vset.pattern.permute.xlu0 0
      %4731 = vperm.xlu0 %4730, %v4683
      %v4732 = vpop.permute.xlu0 %4731
      %4733 = vset.pattern.permute.xlu0 0
      %4734 = vperm.xlu0 %4733, %v4684
      %v4735 = vpop.permute.xlu0 %4734
      %4736 = vset.pattern.permute.xlu0 0
      %4737 = vperm.xlu0 %4736, %v4685
      %v4738 = vpop.permute.xlu0 %4737
      %4739 = vset.pattern.permute.xlu0 0
      %4740 = vperm.xlu0 %4739, %v4686
      %v4741 = vpop.permute.xlu0 %4740
      %4742 = vset.pattern.permute.xlu0 0
      %4743 = vperm.xlu0 %4742, %v4687
      %v4744 = vpop.permute.xlu0 %4743
      %4745 = vset.pattern.permute.xlu0 0
      %4746 = vperm.xlu0 %4745, %v4688
      %v4747 = vpop.permute.xlu0 %4746
      %4748 = vset.pattern.permute.xlu0 0
      %4749 = vperm.xlu0 %4748, %v4689
      %v4750 = vpop.permute.xlu0 %4749
      %4751 = vset.pattern.permute.xlu0 0
      %4752 = vperm.xlu0 %4751, %v4690
      %v4753 = vpop.permute.xlu0 %4752
      %4754 = vset.pattern.permute.xlu0 0
      %4755 = vperm.xlu0 %4754, %v4691
      %v4756 = vpop.permute.xlu0 %4755
      %4757 = vset.pattern.permute.xlu0 0
      %4758 = vperm.xlu0 %4757, %v4692
      %v4759 = vpop.permute.xlu0 %4758
      %4760 = vset.pattern.permute.xlu0 0
      %4761 = vperm.xlu0 %4760, %v4693
      %v4762 = vpop.permute.xlu0 %4761
      %4763 = vset.pattern.permute.xlu0 0
      %4764 = vperm.xlu0 %4763, %v4694
      %v4765 = vpop.permute.xlu0 %4764
      %4766 = vset.pattern.permute.xlu0 0
      %4767 = vperm.xlu0 %4766, %v4695
      %v4768 = vpop.permute.xlu0 %4767
      %4769 = vset.pattern.permute.xlu0 0
      %4770 = vperm.xlu0 %4769, %v4696
      %v4771 = vpop.permute.xlu0 %4770
      %4772 = vset.pattern.permute.xlu0 0
      %4773 = vperm.xlu0 %4772, %v4697
      %v4774 = vpop.permute.xlu0 %4773
      %4775 = vset.pattern.permute.xlu0 0
      %4776 = vperm.xlu0 %4775, %v4698
      %v4777 = vpop.permute.xlu0 %4776
      %4778 = vset.pattern.permute.xlu0 0
      %4779 = vperm.xlu0 %4778, %v4699
      %v4780 = vpop.permute.xlu0 %4779
      %4781 = vset.pattern.permute.xlu0 0
      %4782 = vperm.xlu0 %4781, %v4700
      %v4783 = vpop.permute.xlu0 %4782
      %4784 = vset.pattern.permute.xlu0 0
      %4785 = vperm.xlu0 %4784, %v4701
      %v4786 = vpop.permute.xlu0 %4785
      %4787 = vset.pattern.permute.xlu0 0
      %4788 = vperm.xlu0 %4787, %v4702
      %v4789 = vpop.permute.xlu0 %4788
      %4790 = vset.pattern.permute.xlu0 0
      %4791 = vperm.xlu0 %4790, %v4703
      %v4792 = vpop.permute.xlu0 %4791
      %4793 = vset.pattern.permute.xlu0 0
      %4794 = vperm.xlu0 %4793, %v4704
      %v4795 = vpop.permute.xlu0 %4794
      %4796 = vset.pattern.permute.xlu0 0
      %4797 = vperm.xlu0 %4796, %v4705
      %v4798 = vpop.permute.xlu0 %4797
      %4799 = vset.pattern.permute.xlu0 0
      %4800 = vperm.xlu0 %4799, %v4706
      %v4801 = vpop.permute.xlu0 %4800
      %4802 = vset.pattern.permute.xlu0 0
      %4803 = vperm.xlu0 %4802, %v4707
      %v4804 = vpop.permute.xlu0 %4803
      %4805 = vset.pattern.permute.xlu0 0
      %4806 = vperm.xlu0 %4805, %v4708
      %v4807 = vpop.permute.xlu0 %4806
      %4808 = vset.pattern.permute.xlu0 0
      %4809 = vperm.xlu0 %4808, %v4709
      %v4810 = vpop.permute.xlu0 %4809
      %4811 = vset.pattern.permute.xlu0 0
      %4812 = vperm.xlu0 %4811, %v4710
      %v4813 = vpop.permute.xlu0 %4812
      %4814 = vset.pattern.permute.xlu0 0
      %4815 = vperm.xlu0 %4814, %v4711
      %v4816 = vpop.permute.xlu0 %4815
      %4817 = vset.pattern.permute.xlu0 0
      %4818 = vperm.xlu0 %4817, %v4712
      %v4819 = vpop.permute.xlu0 %4818
      %4820 = vset.pattern.permute.xlu0 0
      %4821 = vperm.xlu0 %4820, %v4713
      %v4822 = vpop.permute.xlu0 %4821
      %4823 = vset.pattern.permute.xlu0 0
      %4824 = vperm.xlu0 %4823, %v4714
      %v4825 = vpop.permute.xlu0 %4824
      %4826 = vset.pattern.permute.xlu0 0
      %4827 = vperm.xlu0 %4826, %v4715
      %v4828 = vpop.permute.xlu0 %4827
      %4829 = vset.pattern.permute.xlu0 0
      %4830 = vperm.xlu0 %4829, %v4716
      %v4831 = vpop.permute.xlu0 %4830
      %4832 = vset.pattern.permute.xlu0 0
      %4833 = vperm.xlu0 %4832, %v4717
      %v4834 = vpop.permute.xlu0 %4833
      %4835 = vset.pattern.permute.xlu0 0
      %4836 = vperm.xlu0 %4835, %v4718
      %v4837 = vpop.permute.xlu0 %4836
      %4838 = vset.pattern.permute.xlu0 0
      %4839 = vperm.xlu0 %4838, %v4719
      %v4840 = vpop.permute.xlu0 %4839
      %4841 = vset.pattern.permute.xlu0 0
      %4842 = vperm.xlu0 %4841, %v4720
      %v4843 = vpop.permute.xlu0 %4842
      %vm4844 = vcmp.eq.s32.totalorder %v4723, 1
      %vm4845 = vcmp.eq.s32.totalorder %v4726, 1
      %vm4846 = vcmp.eq.s32.totalorder %v4729, 1
      %vm4847 = vcmp.eq.s32.totalorder %v4732, 1
      %vm4848 = vcmp.eq.s32.totalorder %v4735, 1
      %vm4849 = vcmp.eq.s32.totalorder %v4738, 1
      %vm4850 = vcmp.eq.s32.totalorder %v4741, 1
      %vm4851 = vcmp.eq.s32.totalorder %v4744, 1
      %vm4852 = vcmp.eq.s32.totalorder %v4747, 1
      %vm4853 = vcmp.eq.s32.totalorder %v4750, 1
      %vm4854 = vcmp.eq.s32.totalorder %v4753, 1
      %vm4855 = vcmp.eq.s32.totalorder %v4756, 1
      %vm4856 = vcmp.eq.s32.totalorder %v4759, 1
      %vm4857 = vcmp.eq.s32.totalorder %v4762, 1
      %vm4858 = vcmp.eq.s32.totalorder %v4765, 1
      %vm4859 = vcmp.eq.s32.totalorder %v4768, 1
      %vm4860 = vcmp.eq.s32.totalorder %v4771, 1
      %vm4861 = vcmp.eq.s32.totalorder %v4774, 1
      %vm4862 = vcmp.eq.s32.totalorder %v4777, 1
      %vm4863 = vcmp.eq.s32.totalorder %v4780, 1
      %vm4864 = vcmp.eq.s32.totalorder %v4783, 1
      %vm4865 = vcmp.eq.s32.totalorder %v4786, 1
      %vm4866 = vcmp.eq.s32.totalorder %v4789, 1
      %vm4867 = vcmp.eq.s32.totalorder %v4792, 1
      %vm4868 = vcmp.eq.s32.totalorder %v4795, 1
      %vm4869 = vcmp.eq.s32.totalorder %v4798, 1
      %vm4870 = vcmp.eq.s32.totalorder %v4801, 1
      %vm4871 = vcmp.eq.s32.totalorder %v4804, 1
      %vm4872 = vcmp.eq.s32.totalorder %v4807, 1
      %vm4873 = vcmp.eq.s32.totalorder %v4810, 1
      %vm4874 = vcmp.eq.s32.totalorder %v4813, 1
      %vm4875 = vcmp.eq.s32.totalorder %v4816, 1
      %vm4876 = vcmp.eq.s32.totalorder %v4819, 1
      %vm4877 = vcmp.eq.s32.totalorder %v4822, 1
      %vm4878 = vcmp.eq.s32.totalorder %v4825, 1
      %vm4879 = vcmp.eq.s32.totalorder %v4828, 1
      %vm4880 = vcmp.eq.s32.totalorder %v4831, 1
      %vm4881 = vcmp.eq.s32.totalorder %v4834, 1
      %vm4882 = vcmp.eq.s32.totalorder %v4837, 1
      %vm4883 = vcmp.eq.s32.totalorder %v4840, 1
      %vm4884 = vcmp.eq.s32.totalorder %v4843, 1
      %v4885 = vsel %vm4844, %v4639, 0.0
      %v4886 = vsel %vm4845, %v4640, 0.0
      %v4887 = vsel %vm4846, %v4641, 0.0
      %v4888 = vsel %vm4847, %v4642, 0.0
      %v4889 = vsel %vm4848, %v4643, 0.0
      %v4890 = vsel %vm4849, %v4644, 0.0
      %v4891 = vsel %vm4850, %v4645, 0.0
      %v4892 = vsel %vm4851, %v4646, 0.0
      %v4893 = vsel %vm4852, %v4647, 0.0
      %v4894 = vsel %vm4853, %v4648, 0.0
      %v4895 = vsel %vm4854, %v4649, 0.0
      %v4896 = vsel %vm4855, %v4650, 0.0
      %v4897 = vsel %vm4856, %v4651, 0.0
      %v4898 = vsel %vm4857, %v4652, 0.0
      %v4899 = vsel %vm4858, %v4653, 0.0
      %v4900 = vsel %vm4859, %v4654, 0.0
      %v4901 = vsel %vm4860, %v4655, 0.0
      %v4902 = vsel %vm4861, %v4656, 0.0
      %v4903 = vsel %vm4862, %v4657, 0.0
      %v4904 = vsel %vm4863, %v4658, 0.0
      %v4905 = vsel %vm4864, %v4659, 0.0
      %v4906 = vsel %vm4865, %v4660, 0.0
      %v4907 = vsel %vm4866, %v4661, 0.0
      %v4908 = vsel %vm4867, %v4662, 0.0
      %v4909 = vsel %vm4868, %v4663, 0.0
      %v4910 = vsel %vm4869, %v4664, 0.0
      %v4911 = vsel %vm4870, %v4665, 0.0
      %v4912 = vsel %vm4871, %v4666, 0.0
      %v4913 = vsel %vm4872, %v4667, 0.0
      %v4914 = vsel %vm4873, %v4668, 0.0
      %v4915 = vsel %vm4874, %v4669, 0.0
      %v4916 = vsel %vm4875, %v4670, 0.0
      %v4917 = vsel %vm4876, %v4671, 0.0
      %v4918 = vsel %vm4877, %v4672, 0.0
      %v4919 = vsel %vm4878, %v4673, 0.0
      %v4920 = vsel %vm4879, %v4674, 0.0
      %v4921 = vsel %vm4880, %v4675, 0.0
      %v4922 = vsel %vm4881, %v4676, 0.0
      %v4923 = vsel %vm4882, %v4677, 0.0
      %v4924 = vsel %vm4883, %v4678, 0.0
      %v4925 = vsel %vm4884, %v4679, 0.0
      %v4926 = vpack.c.bf16 %v4886, %v4885
      %v4927 = vpack.c.bf16 %v4888, %v4887
      %v4928 = vpack.c.bf16 %v4890, %v4889
      %v4929 = vpack.c.bf16 %v4892, %v4891
      %v4930 = vpack.c.bf16 %v4894, %v4893
      %v4931 = vpack.c.bf16 %v4896, %v4895
      %v4932 = vpack.c.bf16 %v4898, %v4897
      %v4933 = vpack.c.bf16 %v4900, %v4899
      %v4934 = vpack.c.bf16 %v4902, %v4901
      %v4935 = vpack.c.bf16 %v4904, %v4903
      %v4936 = vpack.c.bf16 %v4906, %v4905
      %v4937 = vpack.c.bf16 %v4908, %v4907
      %v4938 = vpack.c.bf16 %v4910, %v4909
      %v4939 = vpack.c.bf16 %v4912, %v4911
      %v4940 = vpack.c.bf16 %v4914, %v4913
      %v4941 = vpack.c.bf16 %v4916, %v4915
      %v4942 = vpack.c.bf16 %v4918, %v4917
      %v4943 = vpack.c.bf16 %v4920, %v4919
      %v4944 = vpack.c.bf16 %v4922, %v4921
      %v4945 = vpack.c.bf16 %v4924, %v4923
      %v4946 = vpack.c.bf16 %v4925, %v4925
      %v4968 = vunpack.c.l.b16 %v4926
      %v4969 = vunpack.c.h.b16 %v4926
      %v4970 = vunpack.c.l.b16 %v4927
      %v4971 = vunpack.c.h.b16 %v4927
      %v4972 = vunpack.c.l.b16 %v4928
      %v4973 = vunpack.c.h.b16 %v4928
      %v4974 = vunpack.c.l.b16 %v4929
      %v4975 = vunpack.c.h.b16 %v4929
      %v4976 = vunpack.c.l.b16 %v4930
      %v4977 = vunpack.c.h.b16 %v4930
      %v4978 = vunpack.c.l.b16 %v4931
      %v4979 = vunpack.c.h.b16 %v4931
      %v4980 = vunpack.c.l.b16 %v4932
      %v4981 = vunpack.c.h.b16 %v4932
      %v4982 = vunpack.c.l.b16 %v4933
      %v4983 = vunpack.c.h.b16 %v4933
      %v4984 = vunpack.c.l.b16 %v4934
      %v4985 = vunpack.c.h.b16 %v4934
      %v4986 = vunpack.c.l.b16 %v4935
      %v4987 = vunpack.c.h.b16 %v4935
      %v4988 = vunpack.c.l.b16 %v4936
      %v4989 = vunpack.c.h.b16 %v4936
      %v4990 = vunpack.c.l.b16 %v4937
      %v4991 = vunpack.c.h.b16 %v4937
      %v4992 = vunpack.c.l.b16 %v4938
      %v4993 = vunpack.c.h.b16 %v4938
      %v4994 = vunpack.c.l.b16 %v4939
      %v4995 = vunpack.c.h.b16 %v4939
      %v4996 = vunpack.c.l.b16 %v4940
      %v4997 = vunpack.c.h.b16 %v4940
      %v4998 = vunpack.c.l.b16 %v4941
      %v4999 = vunpack.c.h.b16 %v4941
      %v5000 = vunpack.c.l.b16 %v4942
      %v5001 = vunpack.c.h.b16 %v4942
      %v5002 = vunpack.c.l.b16 %v4943
      %v5003 = vunpack.c.h.b16 %v4943
      %v5004 = vunpack.c.l.b16 %v4944
      %v5005 = vunpack.c.h.b16 %v4944
      %v5006 = vunpack.c.l.b16 %v4945
      %v5007 = vunpack.c.h.b16 %v4945
      %v5008 = vunpack.c.l.b16 %v4946
      %v5009 = vpack.c.b16 %v4968, %v4968
      %v5010 = vpack.c.b16 %v4969, %v4969
      %v5011 = vpack.c.b16 %v4970, %v4970
      %v5012 = vpack.c.b16 %v4971, %v4971
      %v5013 = vpack.c.b16 %v4972, %v4972
      %v5014 = vpack.c.b16 %v4973, %v4973
      %v5015 = vpack.c.b16 %v4974, %v4974
      %v5016 = vpack.c.b16 %v4975, %v4975
      %v5017 = vpack.c.b16 %v4976, %v4976
      %v5018 = vpack.c.b16 %v4977, %v4977
      %v5019 = vpack.c.b16 %v4978, %v4978
      %v5020 = vpack.c.b16 %v4979, %v4979
      %v5021 = vpack.c.b16 %v4980, %v4980
      %v5022 = vpack.c.b16 %v4981, %v4981
      %v5023 = vpack.c.b16 %v4982, %v4982
      %v5024 = vpack.c.b16 %v4983, %v4983
      %v5025 = vpack.c.b16 %v4984, %v4984
      %v5026 = vpack.c.b16 %v4985, %v4985
      %v5027 = vpack.c.b16 %v4986, %v4986
      %v5028 = vpack.c.b16 %v4987, %v4987
      %v5029 = vpack.c.b16 %v4988, %v4988
      %v5030 = vpack.c.b16 %v4989, %v4989
      %v5031 = vpack.c.b16 %v4990, %v4990
      %v5032 = vpack.c.b16 %v4991, %v4991
      %v5033 = vpack.c.b16 %v4992, %v4992
      %v5034 = vpack.c.b16 %v4993, %v4993
      %v5035 = vpack.c.b16 %v4994, %v4994
      %v5036 = vpack.c.b16 %v4995, %v4995
      %v5037 = vpack.c.b16 %v4996, %v4996
      %v5038 = vpack.c.b16 %v4997, %v4997
      %v5039 = vpack.c.b16 %v4998, %v4998
      %v5040 = vpack.c.b16 %v4999, %v4999
      %v5041 = vpack.c.b16 %v5000, %v5000
      %v5042 = vpack.c.b16 %v5001, %v5001
      %v5043 = vpack.c.b16 %v5002, %v5002
      %v5044 = vpack.c.b16 %v5003, %v5003
      %v5045 = vpack.c.b16 %v5004, %v5004
      %v5046 = vpack.c.b16 %v5005, %v5005
      %v5047 = vpack.c.b16 %v5006, %v5006
      %v5048 = vpack.c.b16 %v5007, %v5007
      %v5049 = vpack.c.b16 %v5008, %v5008
      %vm5091 = vcmask 519168
      %5092 = vst.msk [vmem:[#allocation2 + $0xc] sm:$0xf] %vm5091, %v5009
      %5093 = vst.msk [vmem:[#allocation2 + $0x10] sm:$0xf] %vm5091, %v5010
      %5094 = vst.msk [vmem:[#allocation2 + $0x14] sm:$0xf] %vm5091, %v5011
      %5095 = vst.msk [vmem:[#allocation2 + $0x18] sm:$0xf] %vm5091, %v5012
      %5096 = vst.msk [vmem:[#allocation2 + $0x1c] sm:$0xf] %vm5091, %v5013
      %5097 = vst.msk [vmem:[#allocation2 + $0x20] sm:$0xf] %vm5091, %v5014
      %5098 = vst.msk [vmem:[#allocation2 + $0x24] sm:$0xf] %vm5091, %v5015
      %5099 = vst.msk [vmem:[#allocation2 + $0x28] sm:$0xf] %vm5091, %v5016
      %5100 = vst.msk [vmem:[#allocation2 + $0x2c] sm:$0xf] %vm5091, %v5017
      %5101 = vst.msk [vmem:[#allocation2 + $0x30] sm:$0xf] %vm5091, %v5018
      %5102 = vst.msk [vmem:[#allocation2 + $0x34] sm:$0xf] %vm5091, %v5019
      %5103 = vst.msk [vmem:[#allocation2 + $0x38] sm:$0xf] %vm5091, %v5020
      %5104 = vst.msk [vmem:[#allocation2 + $0x3c] sm:$0xf] %vm5091, %v5021
      %5105 = vst.msk [vmem:[#allocation2 + $0x40] sm:$0xf] %vm5091, %v5022
      %5106 = vst.msk [vmem:[#allocation2 + $0x44] sm:$0xf] %vm5091, %v5023
      %5107 = vst.msk [vmem:[#allocation2 + $0x48] sm:$0xf] %vm5091, %v5024
      %5108 = vst.msk [vmem:[#allocation2 + $0x4c] sm:$0xf] %vm5091, %v5025
      %5109 = vst.msk [vmem:[#allocation2 + $0x50] sm:$0xf] %vm5091, %v5026
      %5110 = vst.msk [vmem:[#allocation2 + $0x54] sm:$0xf] %vm5091, %v5027
      %5111 = vst.msk [vmem:[#allocation2 + $0x58] sm:$0xf] %vm5091, %v5028
      %5112 = vst.msk [vmem:[#allocation2 + $0x5c] sm:$0xf] %vm5091, %v5029
      %5113 = vst.msk [vmem:[#allocation2 + $0x60] sm:$0xf] %vm5091, %v5030
      %5114 = vst.msk [vmem:[#allocation2 + $0x64] sm:$0xf] %vm5091, %v5031
      %5115 = vst.msk [vmem:[#allocation2 + $0x68] sm:$0xf] %vm5091, %v5032
      %5116 = vst.msk [vmem:[#allocation2 + $0x6c] sm:$0xf] %vm5091, %v5033
      %5117 = vst.msk [vmem:[#allocation2 + $0x70] sm:$0xf] %vm5091, %v5034
      %5118 = vst.msk [vmem:[#allocation2 + $0x74] sm:$0xf] %vm5091, %v5035
      %5119 = vst.msk [vmem:[#allocation2 + $0x78] sm:$0xf] %vm5091, %v5036
      %5120 = vst.msk [vmem:[#allocation2 + $0x7c] sm:$0xf] %vm5091, %v5037
      %5121 = vst.msk [vmem:[#allocation2 + $0x80] sm:$0xf] %vm5091, %v5038
      %5122 = vst.msk [vmem:[#allocation2 + $0x84] sm:$0xf] %vm5091, %v5039
      %5123 = vst.msk [vmem:[#allocation2 + $0x88] sm:$0xf] %vm5091, %v5040
      %5124 = vst.msk [vmem:[#allocation2 + $0x8c] sm:$0xf] %vm5091, %v5041
      %5125 = vst.msk [vmem:[#allocation2 + $0x90] sm:$0xf] %vm5091, %v5042
      %5126 = vst.msk [vmem:[#allocation2 + $0x94] sm:$0xf] %vm5091, %v5043
      %5127 = vst.msk [vmem:[#allocation2 + $0x98] sm:$0xf] %vm5091, %v5044
      %5128 = vst.msk [vmem:[#allocation2 + $0x9c] sm:$0xf] %vm5091, %v5045
      %5129 = vst.msk [vmem:[#allocation2 + $0xa0] sm:$0xf] %vm5091, %v5046
      %5130 = vst.msk [vmem:[#allocation2 + $0xa4] sm:$0xf] %vm5091, %v5047
      %5131 = vst.msk [vmem:[#allocation2 + $0xa8] sm:$0xf] %vm5091, %v5048
      %5132 = vst.msk [vmem:[#allocation2 + $0xac] sm:$0xf] %vm5091, %v5049
      %v5133 = vld [vmem:[#allocation2] sm:$0xc]
      %v5134 = vld [vmem:[#allocation2 + $0x4] sm:$0xf]
      %v5135 = vld [vmem:[#allocation2 + $0x8] sm:$0xf]
      %v5136 = vld [vmem:[#allocation2 + $0xc] sm:$0xf]
      %v5137 = vld [vmem:[#allocation2 + $0x10] sm:$0xf]
      %v5138 = vld [vmem:[#allocation2 + $0x14] sm:$0xf]
      %v5139 = vld [vmem:[#allocation2 + $0x18] sm:$0xf]
      %v5140 = vld [vmem:[#allocation2 + $0x1c] sm:$0xf]
      %v5141 = vld [vmem:[#allocation2 + $0x20] sm:$0xf]
      %v5142 = vld [vmem:[#allocation2 + $0x24] sm:$0xf]
      %v5143 = vld [vmem:[#allocation2 + $0x28] sm:$0xf]
      %v5144 = vld [vmem:[#allocation2 + $0x2c] sm:$0xf]
      %v5145 = vld [vmem:[#allocation2 + $0x30] sm:$0xf]
      %v5146 = vld [vmem:[#allocation2 + $0x34] sm:$0xf]
      %v5147 = vld [vmem:[#allocation2 + $0x38] sm:$0xf]
      %v5148 = vld [vmem:[#allocation2 + $0x3c] sm:$0xf]
      %v5149 = vld [vmem:[#allocation2 + $0x40] sm:$0xf]
      %v5150 = vld [vmem:[#allocation2 + $0x44] sm:$0xf]
      %v5151 = vld [vmem:[#allocation2 + $0x48] sm:$0xf]
      %v5152 = vld [vmem:[#allocation2 + $0x4c] sm:$0xf]
      %v5153 = vld [vmem:[#allocation2 + $0x50] sm:$0xf]
      %v5154 = vld [vmem:[#allocation2 + $0x54] sm:$0xf]
      %v5155 = vld [vmem:[#allocation2 + $0x58] sm:$0xf]
      %v5156 = vld [vmem:[#allocation2 + $0x5c] sm:$0xf]
      %v5157 = vld [vmem:[#allocation2 + $0x60] sm:$0xf]
      %v5158 = vld [vmem:[#allocation2 + $0x64] sm:$0xf]
      %v5159 = vld [vmem:[#allocation2 + $0x68] sm:$0xf]
      %v5160 = vld [vmem:[#allocation2 + $0x6c] sm:$0xf]
      %v5161 = vld [vmem:[#allocation2 + $0x70] sm:$0xf]
      %v5162 = vld [vmem:[#allocation2 + $0x74] sm:$0xf]
      %v5163 = vld [vmem:[#allocation2 + $0x78] sm:$0xf]
      %v5164 = vld [vmem:[#allocation2 + $0x7c] sm:$0xf]
      %v5165 = vld [vmem:[#allocation2 + $0x80] sm:$0xf]
      %v5166 = vld [vmem:[#allocation2 + $0x84] sm:$0xf]
      %v5167 = vld [vmem:[#allocation2 + $0x88] sm:$0xf]
      %v5168 = vld [vmem:[#allocation2 + $0x8c] sm:$0xf]
      %v5169 = vld [vmem:[#allocation2 + $0x90] sm:$0xf]
      %v5170 = vld [vmem:[#allocation2 + $0x94] sm:$0xf]
      %v5171 = vld [vmem:[#allocation2 + $0x98] sm:$0xf]
      %v5172 = vld [vmem:[#allocation2 + $0x9c] sm:$0xf]
      %v5173 = vld [vmem:[#allocation2 + $0xa0] sm:$0xf]
      %v5174 = vld [vmem:[#allocation2 + $0xa4] sm:$0x7]
      %v5175 = vld [vmem:[#allocation2] sm:$0x8]
      %v5176 = vld [vmem:[#allocation2 + $0xa4] sm:$0xf]
      %v5177 = vld [vmem:[#allocation2 + $0x8] sm:$0x8]
      %v5178 = vld [vmem:[#allocation2 + $0xa8] sm:$0xf]
      %v5179 = vld [vmem:[#allocation2 + $0xac] sm:$0xf]
      %v5180 = vld [vmem:[#allocation2 + $0xb0] sm:$0x1]
      %v5181 = vld [vmem:[#allocation2 + $0xb0] sm:$0xf]
      %v5182 = vld [vmem:[#allocation2 + $0xb4] sm:$0xf]
      %v5183 = vld [vmem:[#allocation2 + $0xb8] sm:$0x1]
      %v5184 = vld [vmem:[#allocation2 + $0x14] sm:$0xe]
      %v5185 = vld [vmem:[#allocation2 + $0xb8] sm:$0x3]
      %v5228 = vunpack.c.l.b16 %v5133
      %v5229 = vunpack.c.l.b16 %v5134
      %v5230 = vunpack.c.l.b16 %v5135
      %v5231 = vunpack.c.l.b16 %v5136
      %v5232 = vunpack.c.l.b16 %v5137
      %v5233 = vunpack.c.l.b16 %v5138
      %v5234 = vunpack.c.l.b16 %v5139
      %v5235 = vunpack.c.l.b16 %v5140
      %v5236 = vunpack.c.l.b16 %v5141
      %v5237 = vunpack.c.l.b16 %v5142
      %v5238 = vunpack.c.l.b16 %v5143
      %v5239 = vunpack.c.l.b16 %v5144
      %v5240 = vunpack.c.l.b16 %v5145
      %v5241 = vunpack.c.l.b16 %v5146
      %v5242 = vunpack.c.l.b16 %v5147
      %v5243 = vunpack.c.l.b16 %v5148
      %v5244 = vunpack.c.l.b16 %v5149
      %v5245 = vunpack.c.l.b16 %v5150
      %v5246 = vunpack.c.l.b16 %v5151
      %v5247 = vunpack.c.l.b16 %v5152
      %v5248 = vunpack.c.l.b16 %v5153
      %v5249 = vunpack.c.l.b16 %v5154
      %v5250 = vunpack.c.l.b16 %v5155
      %v5251 = vunpack.c.l.b16 %v5156
      %v5252 = vunpack.c.l.b16 %v5157
      %v5253 = vunpack.c.l.b16 %v5158
      %v5254 = vunpack.c.l.b16 %v5159
      %v5255 = vunpack.c.l.b16 %v5160
      %v5256 = vunpack.c.l.b16 %v5161
      %v5257 = vunpack.c.l.b16 %v5162
      %v5258 = vunpack.c.l.b16 %v5163
      %v5259 = vunpack.c.l.b16 %v5164
      %v5260 = vunpack.c.l.b16 %v5165
      %v5261 = vunpack.c.l.b16 %v5166
      %v5262 = vunpack.c.l.b16 %v5167
      %v5263 = vunpack.c.l.b16 %v5168
      %v5264 = vunpack.c.l.b16 %v5169
      %v5265 = vunpack.c.l.b16 %v5170
      %v5266 = vunpack.c.l.b16 %v5171
      %v5267 = vunpack.c.l.b16 %v5172
      %v5268 = vunpack.c.l.b16 %v5173
      %v5269 = vunpack.c.l.b16 %v5174
      %v5270 = vpack.c.b16 %v5229, %v5228
      %v5271 = vpack.c.b16 %v5231, %v5230
      %v5272 = vpack.c.b16 %v5233, %v5232
      %v5273 = vpack.c.b16 %v5235, %v5234
      %v5274 = vpack.c.b16 %v5237, %v5236
      %v5275 = vpack.c.b16 %v5239, %v5238
      %v5276 = vpack.c.b16 %v5241, %v5240
      %v5277 = vpack.c.b16 %v5243, %v5242
      %v5278 = vpack.c.b16 %v5245, %v5244
      %v5279 = vpack.c.b16 %v5247, %v5246
      %v5280 = vpack.c.b16 %v5249, %v5248
      %v5281 = vpack.c.b16 %v5251, %v5250
      %v5282 = vpack.c.b16 %v5253, %v5252
      %v5283 = vpack.c.b16 %v5255, %v5254
      %v5284 = vpack.c.b16 %v5257, %v5256
      %v5285 = vpack.c.b16 %v5259, %v5258
      %v5286 = vpack.c.b16 %v5261, %v5260
      %v5287 = vpack.c.b16 %v5263, %v5262
      %v5288 = vpack.c.b16 %v5265, %v5264
      %v5289 = vpack.c.b16 %v5267, %v5266
      %v5290 = vpack.c.b16 %v5269, %v5268
      %v5292 = vunpack.c.l.b16 %v5175
      %v5293 = vpack.c.b16 %v5229, %v5292
      %v5295 = vshrl.u32 %v5293, 16
      %v5297 = vshll.u32 %v5293, 16
      %v5299 = vrot.slane %v5297, 1
      %v5300 = vor.u32 %v5295, %v5299
      %v5302 = vshll.u32 %v5271, 16
      %v5304 = vrot.slane %v5302, 1
      %v5305 = vsel %vm589, %v5300, %v5304
      %v5306 = vshrl.u32 %v5271, 16
      %v5308 = vor.u32 %v5306, %v5304
      %v5310 = vshll.u32 %v5272, 16
      %v5312 = vrot.slane %v5310, 1
      %v5313 = vsel %vm589, %v5308, %v5312
      %v5314 = vshrl.u32 %v5272, 16
      %v5316 = vor.u32 %v5314, %v5312
      %v5318 = vshll.u32 %v5273, 16
      %v5320 = vrot.slane %v5318, 1
      %v5321 = vsel %vm589, %v5316, %v5320
      %v5322 = vshrl.u32 %v5273, 16
      %v5324 = vor.u32 %v5322, %v5320
      %v5326 = vshll.u32 %v5274, 16
      %v5328 = vrot.slane %v5326, 1
      %v5329 = vsel %vm589, %v5324, %v5328
      %v5330 = vshrl.u32 %v5274, 16
      %v5332 = vor.u32 %v5330, %v5328
      %v5334 = vshll.u32 %v5275, 16
      %v5336 = vrot.slane %v5334, 1
      %v5337 = vsel %vm589, %v5332, %v5336
      %v5338 = vshrl.u32 %v5275, 16
      %v5340 = vor.u32 %v5338, %v5336
      %v5342 = vshll.u32 %v5276, 16
      %v5344 = vrot.slane %v5342, 1
      %v5345 = vsel %vm589, %v5340, %v5344
      %v5346 = vshrl.u32 %v5276, 16
      %v5348 = vor.u32 %v5346, %v5344
      %v5350 = vshll.u32 %v5277, 16
      %v5352 = vrot.slane %v5350, 1
      %v5353 = vsel %vm589, %v5348, %v5352
      %v5354 = vshrl.u32 %v5277, 16
      %v5356 = vor.u32 %v5354, %v5352
      %v5358 = vshll.u32 %v5278, 16
      %v5360 = vrot.slane %v5358, 1
      %v5361 = vsel %vm589, %v5356, %v5360
      %v5362 = vshrl.u32 %v5278, 16
      %v5364 = vor.u32 %v5362, %v5360
      %v5366 = vshll.u32 %v5279, 16
      %v5368 = vrot.slane %v5366, 1
      %v5369 = vsel %vm589, %v5364, %v5368
      %v5370 = vshrl.u32 %v5279, 16
      %v5372 = vor.u32 %v5370, %v5368
      %v5374 = vshll.u32 %v5280, 16
      %v5376 = vrot.slane %v5374, 1
      %v5377 = vsel %vm589, %v5372, %v5376
      %v5378 = vshrl.u32 %v5280, 16
      %v5380 = vor.u32 %v5378, %v5376
      %v5382 = vshll.u32 %v5281, 16
      %v5384 = vrot.slane %v5382, 1
      %v5385 = vsel %vm589, %v5380, %v5384
      %v5386 = vshrl.u32 %v5281, 16
      %v5388 = vor.u32 %v5386, %v5384
      %v5390 = vshll.u32 %v5282, 16
      %v5392 = vrot.slane %v5390, 1
      %v5393 = vsel %vm589, %v5388, %v5392
      %v5394 = vshrl.u32 %v5282, 16
      %v5396 = vor.u32 %v5394, %v5392
      %v5398 = vshll.u32 %v5283, 16
      %v5400 = vrot.slane %v5398, 1
      %v5401 = vsel %vm589, %v5396, %v5400
      %v5402 = vshrl.u32 %v5283, 16
      %v5404 = vor.u32 %v5402, %v5400
      %v5406 = vshll.u32 %v5284, 16
      %v5408 = vrot.slane %v5406, 1
      %v5409 = vsel %vm589, %v5404, %v5408
      %v5410 = vshrl.u32 %v5284, 16
      %v5412 = vor.u32 %v5410, %v5408
      %v5414 = vshll.u32 %v5285, 16
      %v5416 = vrot.slane %v5414, 1
      %v5417 = vsel %vm589, %v5412, %v5416
      %v5418 = vshrl.u32 %v5285, 16
      %v5420 = vor.u32 %v5418, %v5416
      %v5422 = vshll.u32 %v5286, 16
      %v5424 = vrot.slane %v5422, 1
      %v5425 = vsel %vm589, %v5420, %v5424
      %v5426 = vshrl.u32 %v5286, 16
      %v5428 = vor.u32 %v5426, %v5424
      %v5430 = vshll.u32 %v5287, 16
      %v5432 = vrot.slane %v5430, 1
      %v5433 = vsel %vm589, %v5428, %v5432
      %v5434 = vshrl.u32 %v5287, 16
      %v5436 = vor.u32 %v5434, %v5432
      %v5438 = vshll.u32 %v5288, 16
      %v5440 = vrot.slane %v5438, 1
      %v5441 = vsel %vm589, %v5436, %v5440
      %v5442 = vshrl.u32 %v5288, 16
      %v5444 = vor.u32 %v5442, %v5440
      %v5446 = vshll.u32 %v5289, 16
      %v5448 = vrot.slane %v5446, 1
      %v5449 = vsel %vm589, %v5444, %v5448
      %v5450 = vshrl.u32 %v5289, 16
      %v5452 = vor.u32 %v5450, %v5448
      %v5454 = vshll.u32 %v5290, 16
      %v5456 = vrot.slane %v5454, 1
      %v5457 = vsel %vm589, %v5452, %v5456
      %v5458 = vshrl.u32 %v5290, 16
      %v5460 = vor.u32 %v5458, %v5456
      %5461 = vrot.lane.b32.xlu0 %v5305, 64
      %v5462 = vpop.permute.xlu0 %5461
      %5463 = vrot.lane.b32.xlu0 %v5313, 64
      %v5464 = vpop.permute.xlu0 %5463
      %5465 = vrot.lane.b32.xlu0 %v5321, 64
      %v5466 = vpop.permute.xlu0 %5465
      %5467 = vrot.lane.b32.xlu0 %v5329, 64
      %v5468 = vpop.permute.xlu0 %5467
      %5469 = vrot.lane.b32.xlu0 %v5337, 64
      %v5470 = vpop.permute.xlu0 %5469
      %5471 = vrot.lane.b32.xlu0 %v5345, 64
      %v5472 = vpop.permute.xlu0 %5471
      %5473 = vrot.lane.b32.xlu0 %v5353, 64
      %v5474 = vpop.permute.xlu0 %5473
      %5475 = vrot.lane.b32.xlu0 %v5361, 64
      %v5476 = vpop.permute.xlu0 %5475
      %5477 = vrot.lane.b32.xlu0 %v5369, 64
      %v5478 = vpop.permute.xlu0 %5477
      %5479 = vrot.lane.b32.xlu0 %v5377, 64
      %v5480 = vpop.permute.xlu0 %5479
      %5481 = vrot.lane.b32.xlu0 %v5385, 64
      %v5482 = vpop.permute.xlu0 %5481
      %5483 = vrot.lane.b32.xlu0 %v5393, 64
      %v5484 = vpop.permute.xlu0 %5483
      %5485 = vrot.lane.b32.xlu0 %v5401, 64
      %v5486 = vpop.permute.xlu0 %5485
      %5487 = vrot.lane.b32.xlu0 %v5409, 64
      %v5488 = vpop.permute.xlu0 %5487
      %5489 = vrot.lane.b32.xlu0 %v5417, 64
      %v5490 = vpop.permute.xlu0 %5489
      %5491 = vrot.lane.b32.xlu0 %v5425, 64
      %v5492 = vpop.permute.xlu0 %5491
      %5493 = vrot.lane.b32.xlu0 %v5433, 64
      %v5494 = vpop.permute.xlu0 %5493
      %5495 = vrot.lane.b32.xlu0 %v5441, 64
      %v5496 = vpop.permute.xlu0 %5495
      %5497 = vrot.lane.b32.xlu0 %v5449, 64
      %v5498 = vpop.permute.xlu0 %5497
      %5499 = vrot.lane.b32.xlu0 %v5457, 64
      %v5500 = vpop.permute.xlu0 %5499
      %5501 = vrot.lane.b32.xlu0 %v5460, 64
      %v5502 = vpop.permute.xlu0 %5501
      %v5504 = vunpack.c.l.b16 %v5176
      %v5505 = vpack.c.b16 %v5504, %v5268
      %v5506 = vrot.slane %v5293, 1
      %v5507 = vrot.slane %v5271, 1
      %v5508 = vsel %vm760, %v5506, %v5507
      %v5509 = vrot.slane %v5272, 1
      %v5510 = vsel %vm760, %v5507, %v5509
      %v5511 = vrot.slane %v5273, 1
      %v5512 = vsel %vm760, %v5509, %v5511
      %v5513 = vrot.slane %v5274, 1
      %v5514 = vsel %vm760, %v5511, %v5513
      %v5515 = vrot.slane %v5275, 1
      %v5516 = vsel %vm760, %v5513, %v5515
      %v5517 = vrot.slane %v5276, 1
      %v5518 = vsel %vm760, %v5515, %v5517
      %v5519 = vrot.slane %v5277, 1
      %v5520 = vsel %vm760, %v5517, %v5519
      %v5521 = vrot.slane %v5278, 1
      %v5522 = vsel %vm760, %v5519, %v5521
      %v5523 = vrot.slane %v5279, 1
      %v5524 = vsel %vm760, %v5521, %v5523
      %v5525 = vrot.slane %v5280, 1
      %v5526 = vsel %vm760, %v5523, %v5525
      %v5527 = vrot.slane %v5281, 1
      %v5528 = vsel %vm760, %v5525, %v5527
      %v5529 = vrot.slane %v5282, 1
      %v5530 = vsel %vm760, %v5527, %v5529
      %v5531 = vrot.slane %v5283, 1
      %v5532 = vsel %vm760, %v5529, %v5531
      %v5533 = vrot.slane %v5284, 1
      %v5534 = vsel %vm760, %v5531, %v5533
      %v5535 = vrot.slane %v5285, 1
      %v5536 = vsel %vm760, %v5533, %v5535
      %v5537 = vrot.slane %v5286, 1
      %v5538 = vsel %vm760, %v5535, %v5537
      %v5539 = vrot.slane %v5287, 1
      %v5540 = vsel %vm760, %v5537, %v5539
      %v5541 = vrot.slane %v5288, 1
      %v5542 = vsel %vm760, %v5539, %v5541
      %v5543 = vrot.slane %v5289, 1
      %v5544 = vsel %vm760, %v5541, %v5543
      %v5545 = vrot.slane %v5505, 1
      %v5546 = vsel %vm760, %v5543, %v5545
      %v5550 = vunpack.c.l.b16 %v5177
      %v5551 = vunpack.c.l.b16 %v5178
      %v5552 = vunpack.c.l.b16 %v5179
      %v5553 = vpack.c.b16 %v5231, %v5550
      %v5554 = vpack.c.b16 %v5552, %v5551
      %v5555 = vrot.slane %v5553, 1
      %v5556 = vsel %vm760, %v5555, %v5509
      %v5557 = vrot.slane %v5554, 1
      %v5558 = vsel %vm760, %v5545, %v5557
      %5559 = vrot.lane.b32.xlu0 %v5556, 64
      %v5560 = vpop.permute.xlu0 %5559
      %5561 = vrot.lane.b32.xlu0 %v5512, 64
      %v5562 = vpop.permute.xlu0 %5561
      %5563 = vrot.lane.b32.xlu0 %v5514, 64
      %v5564 = vpop.permute.xlu0 %5563
      %5565 = vrot.lane.b32.xlu0 %v5516, 64
      %v5566 = vpop.permute.xlu0 %5565
      %5567 = vrot.lane.b32.xlu0 %v5518, 64
      %v5568 = vpop.permute.xlu0 %5567
      %5569 = vrot.lane.b32.xlu0 %v5520, 64
      %v5570 = vpop.permute.xlu0 %5569
      %5571 = vrot.lane.b32.xlu0 %v5522, 64
      %v5572 = vpop.permute.xlu0 %5571
      %5573 = vrot.lane.b32.xlu0 %v5524, 64
      %v5574 = vpop.permute.xlu0 %5573
      %5575 = vrot.lane.b32.xlu0 %v5526, 64
      %v5576 = vpop.permute.xlu0 %5575
      %5577 = vrot.lane.b32.xlu0 %v5528, 64
      %v5578 = vpop.permute.xlu0 %5577
      %5579 = vrot.lane.b32.xlu0 %v5530, 64
      %v5580 = vpop.permute.xlu0 %5579
      %5581 = vrot.lane.b32.xlu0 %v5532, 64
      %v5582 = vpop.permute.xlu0 %5581
      %5583 = vrot.lane.b32.xlu0 %v5534, 64
      %v5584 = vpop.permute.xlu0 %5583
      %5585 = vrot.lane.b32.xlu0 %v5536, 64
      %v5586 = vpop.permute.xlu0 %5585
      %5587 = vrot.lane.b32.xlu0 %v5538, 64
      %v5588 = vpop.permute.xlu0 %5587
      %5589 = vrot.lane.b32.xlu0 %v5540, 64
      %v5590 = vpop.permute.xlu0 %5589
      %5591 = vrot.lane.b32.xlu0 %v5542, 64
      %v5592 = vpop.permute.xlu0 %5591
      %5593 = vrot.lane.b32.xlu0 %v5544, 64
      %v5594 = vpop.permute.xlu0 %5593
      %5595 = vrot.lane.b32.xlu0 %v5546, 64
      %v5596 = vpop.permute.xlu0 %5595
      %5597 = vrot.lane.b32.xlu0 %v5558, 64
      %v5598 = vpop.permute.xlu0 %5597
      %5599 = vrot.lane.b32.xlu0 %v5557, 64
      %v5600 = vpop.permute.xlu0 %5599
      %v5601 = vpack.c.b16 %v5232, %v5231
      %v5602 = vpack.c.b16 %v5234, %v5233
      %v5603 = vpack.c.b16 %v5236, %v5235
      %v5604 = vpack.c.b16 %v5238, %v5237
      %v5605 = vpack.c.b16 %v5240, %v5239
      %v5606 = vpack.c.b16 %v5242, %v5241
      %v5607 = vpack.c.b16 %v5244, %v5243
      %v5608 = vpack.c.b16 %v5246, %v5245
      %v5609 = vpack.c.b16 %v5248, %v5247
      %v5610 = vpack.c.b16 %v5250, %v5249
      %v5611 = vpack.c.b16 %v5252, %v5251
      %v5612 = vpack.c.b16 %v5254, %v5253
      %v5613 = vpack.c.b16 %v5256, %v5255
      %v5614 = vpack.c.b16 %v5258, %v5257
      %v5615 = vpack.c.b16 %v5260, %v5259
      %v5616 = vpack.c.b16 %v5262, %v5261
      %v5617 = vpack.c.b16 %v5264, %v5263
      %v5618 = vpack.c.b16 %v5266, %v5265
      %v5619 = vpack.c.b16 %v5268, %v5267
      %v5620 = vpack.c.b16 %v5551, %v5504
      %v5621 = vpack.c.b16 %v5552, %v5552
      %v5623 = vshrl.u32 %v5601, 16
      %v5625 = vrot.slane %v5623, 5
      %v5626 = vshll.u32 %v5601, 16
      %v5628 = vrot.slane %v5626, 6
      %v5629 = vor.u32 %v5625, %v5628
      %v5631 = vshrl.u32 %v5602, 16
      %v5633 = vrot.slane %v5631, 5
      %v5634 = vshll.u32 %v5602, 16
      %v5636 = vrot.slane %v5634, 6
      %v5637 = vor.u32 %v5633, %v5636
      %v5638 = vsel %vm835, %v5629, %v5637
      %v5640 = vshrl.u32 %v5603, 16
      %v5642 = vrot.slane %v5640, 5
      %v5643 = vshll.u32 %v5603, 16
      %v5645 = vrot.slane %v5643, 6
      %v5646 = vor.u32 %v5642, %v5645
      %v5647 = vsel %vm835, %v5637, %v5646
      %v5649 = vshrl.u32 %v5604, 16
      %v5651 = vrot.slane %v5649, 5
      %v5652 = vshll.u32 %v5604, 16
      %v5654 = vrot.slane %v5652, 6
      %v5655 = vor.u32 %v5651, %v5654
      %v5656 = vsel %vm835, %v5646, %v5655
      %v5658 = vshrl.u32 %v5605, 16
      %v5660 = vrot.slane %v5658, 5
      %v5661 = vshll.u32 %v5605, 16
      %v5663 = vrot.slane %v5661, 6
      %v5664 = vor.u32 %v5660, %v5663
      %v5665 = vsel %vm835, %v5655, %v5664
      %v5667 = vshrl.u32 %v5606, 16
      %v5669 = vrot.slane %v5667, 5
      %v5670 = vshll.u32 %v5606, 16
      %v5672 = vrot.slane %v5670, 6
      %v5673 = vor.u32 %v5669, %v5672
      %v5674 = vsel %vm835, %v5664, %v5673
      %v5676 = vshrl.u32 %v5607, 16
      %v5678 = vrot.slane %v5676, 5
      %v5679 = vshll.u32 %v5607, 16
      %v5681 = vrot.slane %v5679, 6
      %v5682 = vor.u32 %v5678, %v5681
      %v5683 = vsel %vm835, %v5673, %v5682
      %v5685 = vshrl.u32 %v5608, 16
      %v5687 = vrot.slane %v5685, 5
      %v5688 = vshll.u32 %v5608, 16
      %v5690 = vrot.slane %v5688, 6
      %v5691 = vor.u32 %v5687, %v5690
      %v5692 = vsel %vm835, %v5682, %v5691
      %v5694 = vshrl.u32 %v5609, 16
      %v5696 = vrot.slane %v5694, 5
      %v5697 = vshll.u32 %v5609, 16
      %v5699 = vrot.slane %v5697, 6
      %v5700 = vor.u32 %v5696, %v5699
      %v5701 = vsel %vm835, %v5691, %v5700
      %v5703 = vshrl.u32 %v5610, 16
      %v5705 = vrot.slane %v5703, 5
      %v5706 = vshll.u32 %v5610, 16
      %v5708 = vrot.slane %v5706, 6
      %v5709 = vor.u32 %v5705, %v5708
      %v5710 = vsel %vm835, %v5700, %v5709
      %v5712 = vshrl.u32 %v5611, 16
      %v5714 = vrot.slane %v5712, 5
      %v5715 = vshll.u32 %v5611, 16
      %v5717 = vrot.slane %v5715, 6
      %v5718 = vor.u32 %v5714, %v5717
      %v5719 = vsel %vm835, %v5709, %v5718
      %v5721 = vshrl.u32 %v5612, 16
      %v5723 = vrot.slane %v5721, 5
      %v5724 = vshll.u32 %v5612, 16
      %v5726 = vrot.slane %v5724, 6
      %v5727 = vor.u32 %v5723, %v5726
      %v5728 = vsel %vm835, %v5718, %v5727
      %v5730 = vshrl.u32 %v5613, 16
      %v5732 = vrot.slane %v5730, 5
      %v5733 = vshll.u32 %v5613, 16
      %v5735 = vrot.slane %v5733, 6
      %v5736 = vor.u32 %v5732, %v5735
      %v5737 = vsel %vm835, %v5727, %v5736
      %v5739 = vshrl.u32 %v5614, 16
      %v5741 = vrot.slane %v5739, 5
      %v5742 = vshll.u32 %v5614, 16
      %v5744 = vrot.slane %v5742, 6
      %v5745 = vor.u32 %v5741, %v5744
      %v5746 = vsel %vm835, %v5736, %v5745
      %v5748 = vshrl.u32 %v5615, 16
      %v5750 = vrot.slane %v5748, 5
      %v5751 = vshll.u32 %v5615, 16
      %v5753 = vrot.slane %v5751, 6
      %v5754 = vor.u32 %v5750, %v5753
      %v5755 = vsel %vm835, %v5745, %v5754
      %v5757 = vshrl.u32 %v5616, 16
      %v5759 = vrot.slane %v5757, 5
      %v5760 = vshll.u32 %v5616, 16
      %v5762 = vrot.slane %v5760, 6
      %v5763 = vor.u32 %v5759, %v5762
      %v5764 = vsel %vm835, %v5754, %v5763
      %v5766 = vshrl.u32 %v5617, 16
      %v5768 = vrot.slane %v5766, 5
      %v5769 = vshll.u32 %v5617, 16
      %v5771 = vrot.slane %v5769, 6
      %v5772 = vor.u32 %v5768, %v5771
      %v5773 = vsel %vm835, %v5763, %v5772
      %v5775 = vshrl.u32 %v5618, 16
      %v5777 = vrot.slane %v5775, 5
      %v5778 = vshll.u32 %v5618, 16
      %v5780 = vrot.slane %v5778, 6
      %v5781 = vor.u32 %v5777, %v5780
      %v5782 = vsel %vm835, %v5772, %v5781
      %v5784 = vshrl.u32 %v5619, 16
      %v5786 = vrot.slane %v5784, 5
      %v5787 = vshll.u32 %v5619, 16
      %v5789 = vrot.slane %v5787, 6
      %v5790 = vor.u32 %v5786, %v5789
      %v5791 = vsel %vm835, %v5781, %v5790
      %v5793 = vshrl.u32 %v5620, 16
      %v5795 = vrot.slane %v5793, 5
      %v5796 = vshll.u32 %v5620, 16
      %v5798 = vrot.slane %v5796, 6
      %v5799 = vor.u32 %v5795, %v5798
      %v5800 = vsel %vm835, %v5790, %v5799
      %v5802 = vshrl.u32 %v5621, 16
      %v5804 = vrot.slane %v5802, 5
      %v5805 = vshll.u32 %v5621, 16
      %v5807 = vrot.slane %v5805, 6
      %v5808 = vor.u32 %v5804, %v5807
      %v5809 = vsel %vm835, %v5799, %v5808
      %v5811 = vunpack.c.l.b16 %v5180
      %v5812 = vpack.c.b16 %v5811, %v5552
      %v5813 = vrot.slane %v5601, 6
      %v5814 = vrot.slane %v5602, 6
      %v5815 = vsel %vm1027, %v5813, %v5814
      %v5816 = vrot.slane %v5603, 6
      %v5817 = vsel %vm1027, %v5814, %v5816
      %v5818 = vrot.slane %v5604, 6
      %v5819 = vsel %vm1027, %v5816, %v5818
      %v5820 = vrot.slane %v5605, 6
      %v5821 = vsel %vm1027, %v5818, %v5820
      %v5822 = vrot.slane %v5606, 6
      %v5823 = vsel %vm1027, %v5820, %v5822
      %v5824 = vrot.slane %v5607, 6
      %v5825 = vsel %vm1027, %v5822, %v5824
      %v5826 = vrot.slane %v5608, 6
      %v5827 = vsel %vm1027, %v5824, %v5826
      %v5828 = vrot.slane %v5609, 6
      %v5829 = vsel %vm1027, %v5826, %v5828
      %v5830 = vrot.slane %v5610, 6
      %v5831 = vsel %vm1027, %v5828, %v5830
      %v5832 = vrot.slane %v5611, 6
      %v5833 = vsel %vm1027, %v5830, %v5832
      %v5834 = vrot.slane %v5612, 6
      %v5835 = vsel %vm1027, %v5832, %v5834
      %v5836 = vrot.slane %v5613, 6
      %v5837 = vsel %vm1027, %v5834, %v5836
      %v5838 = vrot.slane %v5614, 6
      %v5839 = vsel %vm1027, %v5836, %v5838
      %v5840 = vrot.slane %v5615, 6
      %v5841 = vsel %vm1027, %v5838, %v5840
      %v5842 = vrot.slane %v5616, 6
      %v5843 = vsel %vm1027, %v5840, %v5842
      %v5844 = vrot.slane %v5617, 6
      %v5845 = vsel %vm1027, %v5842, %v5844
      %v5846 = vrot.slane %v5618, 6
      %v5847 = vsel %vm1027, %v5844, %v5846
      %v5848 = vrot.slane %v5619, 6
      %v5849 = vsel %vm1027, %v5846, %v5848
      %v5850 = vrot.slane %v5620, 6
      %v5851 = vsel %vm1027, %v5848, %v5850
      %v5852 = vrot.slane %v5812, 6
      %v5853 = vsel %vm1027, %v5850, %v5852
      %5854 = vrot.lane.b32.xlu0 %v5813, 64
      %v5855 = vpop.permute.xlu0 %5854
      %5856 = vrot.lane.b32.xlu0 %v5815, 64
      %v5857 = vpop.permute.xlu0 %5856
      %5858 = vrot.lane.b32.xlu0 %v5817, 64
      %v5859 = vpop.permute.xlu0 %5858
      %5860 = vrot.lane.b32.xlu0 %v5819, 64
      %v5861 = vpop.permute.xlu0 %5860
      %5862 = vrot.lane.b32.xlu0 %v5821, 64
      %v5863 = vpop.permute.xlu0 %5862
      %5864 = vrot.lane.b32.xlu0 %v5823, 64
      %v5865 = vpop.permute.xlu0 %5864
      %5866 = vrot.lane.b32.xlu0 %v5825, 64
      %v5867 = vpop.permute.xlu0 %5866
      %5868 = vrot.lane.b32.xlu0 %v5827, 64
      %v5869 = vpop.permute.xlu0 %5868
      %5870 = vrot.lane.b32.xlu0 %v5829, 64
      %v5871 = vpop.permute.xlu0 %5870
      %5872 = vrot.lane.b32.xlu0 %v5831, 64
      %v5873 = vpop.permute.xlu0 %5872
      %5874 = vrot.lane.b32.xlu0 %v5833, 64
      %v5875 = vpop.permute.xlu0 %5874
      %5876 = vrot.lane.b32.xlu0 %v5835, 64
      %v5877 = vpop.permute.xlu0 %5876
      %5878 = vrot.lane.b32.xlu0 %v5837, 64
      %v5879 = vpop.permute.xlu0 %5878
      %5880 = vrot.lane.b32.xlu0 %v5839, 64
      %v5881 = vpop.permute.xlu0 %5880
      %5882 = vrot.lane.b32.xlu0 %v5841, 64
      %v5883 = vpop.permute.xlu0 %5882
      %5884 = vrot.lane.b32.xlu0 %v5843, 64
      %v5885 = vpop.permute.xlu0 %5884
      %5886 = vrot.lane.b32.xlu0 %v5845, 64
      %v5887 = vpop.permute.xlu0 %5886
      %5888 = vrot.lane.b32.xlu0 %v5847, 64
      %v5889 = vpop.permute.xlu0 %5888
      %5890 = vrot.lane.b32.xlu0 %v5849, 64
      %v5891 = vpop.permute.xlu0 %5890
      %5892 = vrot.lane.b32.xlu0 %v5851, 64
      %v5893 = vpop.permute.xlu0 %5892
      %5894 = vrot.lane.b32.xlu0 %v5853, 64
      %v5895 = vpop.permute.xlu0 %5894
      %v5899 = vunpack.c.l.b16 %v5181
      %v5900 = vunpack.c.l.b16 %v5182
      %v5901 = vunpack.c.l.b16 %v5183
      %v5902 = vpack.c.b16 %v5899, %v5552
      %v5903 = vpack.c.b16 %v5901, %v5900
      %v5904 = vrot.slane %v5902, 6
      %v5905 = vsel %vm1027, %v5850, %v5904
      %v5906 = vrot.slane %v5903, 6
      %v5907 = vsel %vm1027, %v5904, %v5906
      %v5909 = vunpack.c.l.b16 %v5184
      %v5910 = vpack.c.b16 %v5234, %v5909
      %v5912 = vshrl.u32 %v5910, 16
      %v5914 = vrot.slane %v5912, 6
      %v5915 = vshll.u32 %v5910, 16
      %v5917 = vrot.slane %v5915, 7
      %v5918 = vor.u32 %v5914, %v5917
      %v5919 = vrot.slane %v5640, 6
      %v5920 = vrot.slane %v5643, 7
      %v5921 = vor.u32 %v5919, %v5920
      %v5922 = vsel %vm1218, %v5918, %v5921
      %v5923 = vrot.slane %v5649, 6
      %v5924 = vrot.slane %v5652, 7
      %v5925 = vor.u32 %v5923, %v5924
      %v5926 = vsel %vm1218, %v5921, %v5925
      %v5927 = vrot.slane %v5658, 6
      %v5928 = vrot.slane %v5661, 7
      %v5929 = vor.u32 %v5927, %v5928
      %v5930 = vsel %vm1218, %v5925, %v5929
      %v5931 = vrot.slane %v5667, 6
      %v5932 = vrot.slane %v5670, 7
      %v5933 = vor.u32 %v5931, %v5932
      %v5934 = vsel %vm1218, %v5929, %v5933
      %v5935 = vrot.slane %v5676, 6
      %v5936 = vrot.slane %v5679, 7
      %v5937 = vor.u32 %v5935, %v5936
      %v5938 = vsel %vm1218, %v5933, %v5937
      %v5939 = vrot.slane %v5685, 6
      %v5940 = vrot.slane %v5688, 7
      %v5941 = vor.u32 %v5939, %v5940
      %v5942 = vsel %vm1218, %v5937, %v5941
      %v5943 = vrot.slane %v5694, 6
      %v5944 = vrot.slane %v5697, 7
      %v5945 = vor.u32 %v5943, %v5944
      %v5946 = vsel %vm1218, %v5941, %v5945
      %v5947 = vrot.slane %v5703, 6
      %v5948 = vrot.slane %v5706, 7
      %v5949 = vor.u32 %v5947, %v5948
      %v5950 = vsel %vm1218, %v5945, %v5949
      %v5951 = vrot.slane %v5712, 6
      %v5952 = vrot.slane %v5715, 7
      %v5953 = vor.u32 %v5951, %v5952
      %v5954 = vsel %vm1218, %v5949, %v5953
      %v5955 = vrot.slane %v5721, 6
      %v5956 = vrot.slane %v5724, 7
      %v5957 = vor.u32 %v5955, %v5956
      %v5958 = vsel %vm1218, %v5953, %v5957
      %v5959 = vrot.slane %v5730, 6
      %v5960 = vrot.slane %v5733, 7
      %v5961 = vor.u32 %v5959, %v5960
      %v5962 = vsel %vm1218, %v5957, %v5961
      %v5963 = vrot.slane %v5739, 6
      %v5964 = vrot.slane %v5742, 7
      %v5965 = vor.u32 %v5963, %v5964
      %v5966 = vsel %vm1218, %v5961, %v5965
      %v5967 = vrot.slane %v5748, 6
      %v5968 = vrot.slane %v5751, 7
      %v5969 = vor.u32 %v5967, %v5968
      %v5970 = vsel %vm1218, %v5965, %v5969
      %v5971 = vrot.slane %v5757, 6
      %v5972 = vrot.slane %v5760, 7
      %v5973 = vor.u32 %v5971, %v5972
      %v5974 = vsel %vm1218, %v5969, %v5973
      %v5975 = vrot.slane %v5766, 6
      %v5976 = vrot.slane %v5769, 7
      %v5977 = vor.u32 %v5975, %v5976
      %v5978 = vsel %vm1218, %v5973, %v5977
      %v5979 = vrot.slane %v5775, 6
      %v5980 = vrot.slane %v5778, 7
      %v5981 = vor.u32 %v5979, %v5980
      %v5982 = vsel %vm1218, %v5977, %v5981
      %v5983 = vrot.slane %v5784, 6
      %v5984 = vrot.slane %v5787, 7
      %v5985 = vor.u32 %v5983, %v5984
      %v5986 = vsel %vm1218, %v5981, %v5985
      %v5987 = vrot.slane %v5793, 6
      %v5988 = vrot.slane %v5796, 7
      %v5989 = vor.u32 %v5987, %v5988
      %v5990 = vsel %vm1218, %v5985, %v5989
      %v5992 = vshrl.u32 %v5902, 16
      %v5994 = vrot.slane %v5992, 6
      %v5995 = vshll.u32 %v5902, 16
      %v5997 = vrot.slane %v5995, 7
      %v5998 = vor.u32 %v5994, %v5997
      %v5999 = vsel %vm1218, %v5989, %v5998
      %v6001 = vshrl.u32 %v5903, 16
      %v6003 = vrot.slane %v6001, 6
      %v6004 = vshll.u32 %v5903, 16
      %v6006 = vrot.slane %v6004, 7
      %v6007 = vor.u32 %v6003, %v6006
      %v6008 = vsel %vm1218, %v5998, %v6007
      %6009 = vrot.lane.b32.xlu0 %v5918, 64
      %v6010 = vpop.permute.xlu0 %6009
      %6011 = vrot.lane.b32.xlu0 %v5922, 64
      %v6012 = vpop.permute.xlu0 %6011
      %6013 = vrot.lane.b32.xlu0 %v5926, 64
      %v6014 = vpop.permute.xlu0 %6013
      %6015 = vrot.lane.b32.xlu0 %v5930, 64
      %v6016 = vpop.permute.xlu0 %6015
      %6017 = vrot.lane.b32.xlu0 %v5934, 64
      %v6018 = vpop.permute.xlu0 %6017
      %6019 = vrot.lane.b32.xlu0 %v5938, 64
      %v6020 = vpop.permute.xlu0 %6019
      %6021 = vrot.lane.b32.xlu0 %v5942, 64
      %v6022 = vpop.permute.xlu0 %6021
      %6023 = vrot.lane.b32.xlu0 %v5946, 64
      %v6024 = vpop.permute.xlu0 %6023
      %6025 = vrot.lane.b32.xlu0 %v5950, 64
      %v6026 = vpop.permute.xlu0 %6025
      %6027 = vrot.lane.b32.xlu0 %v5954, 64
      %v6028 = vpop.permute.xlu0 %6027
      %6029 = vrot.lane.b32.xlu0 %v5958, 64
      %v6030 = vpop.permute.xlu0 %6029
      %6031 = vrot.lane.b32.xlu0 %v5962, 64
      %v6032 = vpop.permute.xlu0 %6031
      %6033 = vrot.lane.b32.xlu0 %v5966, 64
      %v6034 = vpop.permute.xlu0 %6033
      %6035 = vrot.lane.b32.xlu0 %v5970, 64
      %v6036 = vpop.permute.xlu0 %6035
      %6037 = vrot.lane.b32.xlu0 %v5974, 64
      %v6038 = vpop.permute.xlu0 %6037
      %6039 = vrot.lane.b32.xlu0 %v5978, 64
      %v6040 = vpop.permute.xlu0 %6039
      %6041 = vrot.lane.b32.xlu0 %v5982, 64
      %v6042 = vpop.permute.xlu0 %6041
      %6043 = vrot.lane.b32.xlu0 %v5986, 64
      %v6044 = vpop.permute.xlu0 %6043
      %6045 = vrot.lane.b32.xlu0 %v5990, 64
      %v6046 = vpop.permute.xlu0 %6045
      %6047 = vrot.lane.b32.xlu0 %v5999, 64
      %v6048 = vpop.permute.xlu0 %6047
      %6049 = vrot.lane.b32.xlu0 %v6008, 64
      %v6050 = vpop.permute.xlu0 %6049
      %v6052 = vunpack.c.l.b16 %v5185
      %v6053 = vpack.c.b16 %v6052, %v5900
      %v6054 = vrot.slane %v5910, 7
      %v6055 = vrot.slane %v5603, 7
      %v6056 = vsel %vm1410, %v6054, %v6055
      %v6057 = vrot.slane %v5604, 7
      %v6058 = vsel %vm1410, %v6055, %v6057
      %v6059 = vrot.slane %v5605, 7
      %v6060 = vsel %vm1410, %v6057, %v6059
      %v6061 = vrot.slane %v5606, 7
      %v6062 = vsel %vm1410, %v6059, %v6061
      %v6063 = vrot.slane %v5607, 7
      %v6064 = vsel %vm1410, %v6061, %v6063
      %v6065 = vrot.slane %v5608, 7
      %v6066 = vsel %vm1410, %v6063, %v6065
      %v6067 = vrot.slane %v5609, 7
      %v6068 = vsel %vm1410, %v6065, %v6067
      %v6069 = vrot.slane %v5610, 7
      %v6070 = vsel %vm1410, %v6067, %v6069
      %v6071 = vrot.slane %v5611, 7
      %v6072 = vsel %vm1410, %v6069, %v6071
      %v6073 = vrot.slane %v5612, 7
      %v6074 = vsel %vm1410, %v6071, %v6073
      %v6075 = vrot.slane %v5613, 7
      %v6076 = vsel %vm1410, %v6073, %v6075
      %v6077 = vrot.slane %v5614, 7
      %v6078 = vsel %vm1410, %v6075, %v6077
      %v6079 = vrot.slane %v5615, 7
      %v6080 = vsel %vm1410, %v6077, %v6079
      %v6081 = vrot.slane %v5616, 7
      %v6082 = vsel %vm1410, %v6079, %v6081
      %v6083 = vrot.slane %v5617, 7
      %v6084 = vsel %vm1410, %v6081, %v6083
      %v6085 = vrot.slane %v5618, 7
      %v6086 = vsel %vm1410, %v6083, %v6085
      %v6087 = vrot.slane %v5619, 7
      %v6088 = vsel %vm1410, %v6085, %v6087
      %v6089 = vrot.slane %v5620, 7
      %v6090 = vsel %vm1410, %v6087, %v6089
      %v6091 = vrot.slane %v5902, 7
      %v6092 = vsel %vm1410, %v6089, %v6091
      %v6093 = vrot.slane %v6053, 7
      %v6094 = vsel %vm1410, %v6091, %v6093
      %vm6095 = vcmask 523264
      %v6098 = vsel %vm6095, %v5270, %v5462
      %v6100 = vsel %vm6095, %v5271, %v5464
      %v6102 = vsel %vm6095, %v5272, %v5466
      %v6104 = vsel %vm6095, %v5273, %v5468
      %v6106 = vsel %vm6095, %v5274, %v5470
      %v6108 = vsel %vm6095, %v5275, %v5472
      %v6110 = vsel %vm6095, %v5276, %v5474
      %v6112 = vsel %vm6095, %v5277, %v5476
      %v6114 = vsel %vm6095, %v5278, %v5478
      %v6116 = vsel %vm6095, %v5279, %v5480
      %v6118 = vsel %vm6095, %v5280, %v5482
      %v6120 = vsel %vm6095, %v5281, %v5484
      %v6122 = vsel %vm6095, %v5282, %v5486
      %v6124 = vsel %vm6095, %v5283, %v5488
      %v6126 = vsel %vm6095, %v5284, %v5490
      %v6128 = vsel %vm6095, %v5285, %v5492
      %v6130 = vsel %vm6095, %v5286, %v5494
      %v6132 = vsel %vm6095, %v5287, %v5496
      %v6134 = vsel %vm6095, %v5288, %v5498
      %v6136 = vsel %vm6095, %v5289, %v5500
      %v6138 = vsel %vm6095, %v5290, %v5502
      %v6141 = vsel %vm6095, %v5508, %v5560
      %v6144 = vsel %vm6095, %v5510, %v5562
      %v6147 = vsel %vm6095, %v5512, %v5564
      %v6150 = vsel %vm6095, %v5514, %v5566
      %v6153 = vsel %vm6095, %v5516, %v5568
      %v6156 = vsel %vm6095, %v5518, %v5570
      %v6159 = vsel %vm6095, %v5520, %v5572
      %v6162 = vsel %vm6095, %v5522, %v5574
      %v6165 = vsel %vm6095, %v5524, %v5576
      %v6168 = vsel %vm6095, %v5526, %v5578
      %v6171 = vsel %vm6095, %v5528, %v5580
      %v6174 = vsel %vm6095, %v5530, %v5582
      %v6177 = vsel %vm6095, %v5532, %v5584
      %v6180 = vsel %vm6095, %v5534, %v5586
      %v6183 = vsel %vm6095, %v5536, %v5588
      %v6186 = vsel %vm6095, %v5538, %v5590
      %v6189 = vsel %vm6095, %v5540, %v5592
      %v6192 = vsel %vm6095, %v5542, %v5594
      %v6195 = vsel %vm6095, %v5544, %v5596
      %v6198 = vsel %vm6095, %v5546, %v5598
      %v6201 = vsel %vm6095, %v5545, %v5600
      %v6204 = vsel %vm6095, %v5629, %v5855
      %v6207 = vsel %vm6095, %v5638, %v5857
      %v6210 = vsel %vm6095, %v5647, %v5859
      %v6213 = vsel %vm6095, %v5656, %v5861
      %v6216 = vsel %vm6095, %v5665, %v5863
      %v6219 = vsel %vm6095, %v5674, %v5865
      %v6222 = vsel %vm6095, %v5683, %v5867
      %v6225 = vsel %vm6095, %v5692, %v5869
      %v6228 = vsel %vm6095, %v5701, %v5871
      %v6231 = vsel %vm6095, %v5710, %v5873
      %v6234 = vsel %vm6095, %v5719, %v5875
      %v6237 = vsel %vm6095, %v5728, %v5877
      %v6240 = vsel %vm6095, %v5737, %v5879
      %v6243 = vsel %vm6095, %v5746, %v5881
      %v6246 = vsel %vm6095, %v5755, %v5883
      %v6249 = vsel %vm6095, %v5764, %v5885
      %v6252 = vsel %vm6095, %v5773, %v5887
      %v6255 = vsel %vm6095, %v5782, %v5889
      %v6258 = vsel %vm6095, %v5791, %v5891
      %v6261 = vsel %vm6095, %v5800, %v5893
      %v6264 = vsel %vm6095, %v5809, %v5895
      %v6267 = vsel %vm6095, %v5814, %v6010
      %v6270 = vsel %vm6095, %v5817, %v6012
      %v6273 = vsel %vm6095, %v5819, %v6014
      %v6276 = vsel %vm6095, %v5821, %v6016
      %v6279 = vsel %vm6095, %v5823, %v6018
      %v6282 = vsel %vm6095, %v5825, %v6020
      %v6285 = vsel %vm6095, %v5827, %v6022
      %v6288 = vsel %vm6095, %v5829, %v6024
      %v6291 = vsel %vm6095, %v5831, %v6026
      %v6294 = vsel %vm6095, %v5833, %v6028
      %v6297 = vsel %vm6095, %v5835, %v6030
      %v6300 = vsel %vm6095, %v5837, %v6032
      %v6303 = vsel %vm6095, %v5839, %v6034
      %v6306 = vsel %vm6095, %v5841, %v6036
      %v6309 = vsel %vm6095, %v5843, %v6038
      %v6312 = vsel %vm6095, %v5845, %v6040
      %v6315 = vsel %vm6095, %v5847, %v6042
      %v6318 = vsel %vm6095, %v5849, %v6044
      %v6321 = vsel %vm6095, %v5851, %v6046
      %v6324 = vsel %vm6095, %v5905, %v6048
      %v6327 = vsel %vm6095, %v5907, %v6050
      %v6328 = vld [vmem:[%s3] sm:$0xf]
      %v6329 = vld [vmem:[%s3 + $0x4] sm:$0xf]
      %v6330 = vld [vmem:[%s3 + $0x8] sm:$0xf]
      %v6331 = vld [vmem:[%s3 + $0xc] sm:$0xf]
      %v6332 = vld [vmem:[%s3 + $0x10] sm:$0xf]
      %v6333 = vld [vmem:[%s3 + $0x14] sm:$0xf]
      %v6334 = vld [vmem:[%s3 + $0x18] sm:$0xf]
      %v6335 = vld [vmem:[%s3 + $0x1c] sm:$0xf]
      %v6336 = vld [vmem:[%s3 + $0x20] sm:$0xf]
      %v6337 = vld [vmem:[%s3 + $0x24] sm:$0xf]
      %v6338 = vld [vmem:[%s3 + $0x28] sm:$0xf]
      %v6339 = vld [vmem:[%s3 + $0x2c] sm:$0xf]
      %v6340 = vld [vmem:[%s3 + $0x30] sm:$0xf]
      %v6341 = vld [vmem:[%s3 + $0x34] sm:$0xf]
      %v6342 = vld [vmem:[%s3 + $0x38] sm:$0xf]
      %v6343 = vld [vmem:[%s3 + $0x3c] sm:$0xf]
      %v6344 = vld [vmem:[%s3 + $0x40] sm:$0xf]
      %v6345 = vld [vmem:[%s3 + $0x44] sm:$0xf]
      %v6346 = vld [vmem:[%s3 + $0x48] sm:$0xf]
      %v6347 = vld [vmem:[%s3 + $0x4c] sm:$0xf]
      %v6348 = vld [vmem:[%s3 + $0x50] sm:$0xf]
      %v6349 = vld [vmem:[%s3 + $0x54] sm:$0xf]
      %v6350 = vld [vmem:[%s3 + $0x58] sm:$0xf]
      %v6351 = vld [vmem:[%s3 + $0x5c] sm:$0xf]
      %v6352 = vld [vmem:[%s3 + $0x60] sm:$0xf]
      %v6353 = vld [vmem:[%s3 + $0x64] sm:$0xf]
      %v6354 = vld [vmem:[%s3 + $0x68] sm:$0xf]
      %v6355 = vld [vmem:[%s3 + $0x6c] sm:$0xf]
      %v6356 = vld [vmem:[%s3 + $0x70] sm:$0xf]
      %v6357 = vld [vmem:[%s3 + $0x74] sm:$0xf]
      %v6358 = vld [vmem:[%s3 + $0x78] sm:$0xf]
      %v6359 = vld [vmem:[%s3 + $0x7c] sm:$0xf]
      %v6360 = vld [vmem:[%s3 + $0x80] sm:$0xf]
      %v6361 = vld [vmem:[%s3 + $0x84] sm:$0xf]
      %v6362 = vld [vmem:[%s3 + $0x88] sm:$0xf]
      %v6363 = vld [vmem:[%s3 + $0x8c] sm:$0xf]
      %v6364 = vld [vmem:[%s3 + $0x90] sm:$0xf]
      %v6365 = vld [vmem:[%s3 + $0x94] sm:$0xf]
      %v6366 = vld [vmem:[%s3 + $0x98] sm:$0xf]
      %v6367 = vld [vmem:[%s3 + $0x9c] sm:$0xf]
      %v6368 = vld [vmem:[%s3 + $0xa0] sm:$0xf]
      %v6369 = vld [vmem:[%s3 + $0xa4] sm:$0xf]
      %v6370 = vld [vmem:[%s3 + $0xa8] sm:$0xf]
      %v6371 = vld [vmem:[%s3 + $0xac] sm:$0xf]
      %v6372 = vld [vmem:[%s3 + $0xb0] sm:$0xf]
      %v6373 = vld [vmem:[%s3 + $0xb4] sm:$0xf]
      %v6374 = vld [vmem:[%s3 + $0xb8] sm:$0xf]
      %v6375 = vld [vmem:[%s3 + $0xbc] sm:$0xf]
      %v6376 = vld [vmem:[%s3 + $0xc0] sm:$0xf]
      %v6377 = vld [vmem:[%s3 + $0xc4] sm:$0xf]
      %v6378 = vld [vmem:[%s3 + $0xc8] sm:$0xf]
      %v6379 = vld [vmem:[%s3 + $0xcc] sm:$0xf]
      %v6380 = vld [vmem:[%s3 + $0xd0] sm:$0xf]
      %v6381 = vld [vmem:[%s3 + $0xd4] sm:$0xf]
      %v6382 = vld [vmem:[%s3 + $0xd8] sm:$0xf]
      %v6383 = vld [vmem:[%s3 + $0xdc] sm:$0xf]
      %v6384 = vld [vmem:[%s3 + $0xe0] sm:$0xf]
      %v6385 = vld [vmem:[%s3 + $0xe4] sm:$0xf]
      %v6386 = vld [vmem:[%s3 + $0xe8] sm:$0xf]
      %v6387 = vld [vmem:[%s3 + $0xec] sm:$0xf]
      %v6388 = vld [vmem:[%s3 + $0xf0] sm:$0xf]
      %v6389 = vld [vmem:[%s3 + $0xf4] sm:$0xf]
      %v6390 = vld [vmem:[%s3 + $0xf8] sm:$0xf]
      %v6391 = vld [vmem:[%s3 + $0xfc] sm:$0xf]
      %v6392 = vld [vmem:[%s3 + $0x100] sm:$0xf]
      %v6393 = vld [vmem:[%s3 + $0x104] sm:$0xf]
      %v6394 = vld [vmem:[%s3 + $0x108] sm:$0xf]
      %v6395 = vld [vmem:[%s3 + $0x10c] sm:$0xf]
      %v6396 = vld [vmem:[%s3 + $0x110] sm:$0xf]
      %v6397 = vld [vmem:[%s3 + $0x114] sm:$0xf]
      %v6398 = vld [vmem:[%s3 + $0x118] sm:$0xf]
      %v6399 = vld [vmem:[%s3 + $0x11c] sm:$0xf]
      %v6400 = vld [vmem:[%s4] sm:$0x1]
      %v6402 = vlaneseq
      %v6403 = vshrl.u32 %v6402, 7
      %v6404 = vsub.s32 0, %v6403
      %v6405 = vrot.slane %v6400, %v6404
      %v6407 = vshrl.u32 %v6098, 16
      %v6409 = vrot.slane %v6407, 2
      %v6410 = vshll.u32 %v6098, 16
      %v6412 = vrot.slane %v6410, 3
      %v6413 = vor.u32 %v6409, %v6412
      %v6414 = vshrl.u32 %v6100, 16
      %v6416 = vrot.slane %v6414, 2
      %v6417 = vshll.u32 %v6100, 16
      %v6419 = vrot.slane %v6417, 3
      %v6420 = vor.u32 %v6416, %v6419
      %v6421 = vsel %vm1603, %v6413, %v6420
      %v6422 = vshrl.u32 %v6141, 16
      %v6424 = vrot.slane %v6422, 2
      %v6425 = vshll.u32 %v6141, 16
      %v6427 = vrot.slane %v6425, 3
      %v6428 = vor.u32 %v6424, %v6427
      %v6429 = vshrl.u32 %v6144, 16
      %v6431 = vrot.slane %v6429, 2
      %v6432 = vshll.u32 %v6144, 16
      %v6434 = vrot.slane %v6432, 3
      %v6435 = vor.u32 %v6431, %v6434
      %v6436 = vsel %vm1603, %v6428, %v6435
      %v6437 = vshrl.u32 %v6204, 16
      %v6439 = vrot.slane %v6437, 2
      %v6440 = vshll.u32 %v6204, 16
      %v6442 = vrot.slane %v6440, 3
      %v6443 = vor.u32 %v6439, %v6442
      %v6444 = vshrl.u32 %v6207, 16
      %v6446 = vrot.slane %v6444, 2
      %v6447 = vshll.u32 %v6207, 16
      %v6449 = vrot.slane %v6447, 3
      %v6450 = vor.u32 %v6446, %v6449
      %v6451 = vsel %vm1603, %v6443, %v6450
      %v6452 = vshrl.u32 %v6267, 16
      %v6454 = vrot.slane %v6452, 2
      %v6455 = vshll.u32 %v6267, 16
      %v6457 = vrot.slane %v6455, 3
      %v6458 = vor.u32 %v6454, %v6457
      %v6459 = vshrl.u32 %v6270, 16
      %v6461 = vrot.slane %v6459, 2
      %v6462 = vshll.u32 %v6270, 16
      %v6464 = vrot.slane %v6462, 3
      %v6465 = vor.u32 %v6461, %v6464
      %v6466 = vsel %vm1603, %v6458, %v6465
      %v6468 = vshrl.u32 %v6054, 16
      %v6470 = vrot.slane %v6468, 2
      %v6471 = vshll.u32 %v6054, 16
      %v6473 = vrot.slane %v6471, 3
      %v6474 = vor.u32 %v6470, %v6473
      %v6476 = vshrl.u32 %v6056, 16
      %v6478 = vrot.slane %v6476, 2
      %v6479 = vshll.u32 %v6056, 16
      %v6481 = vrot.slane %v6479, 3
      %v6482 = vor.u32 %v6478, %v6481
      %v6483 = vsel %vm1603, %v6474, %v6482
      %v6484 = vshrl.u32 %v6102, 16
      %v6486 = vrot.slane %v6484, 2
      %v6487 = vshll.u32 %v6102, 16
      %v6489 = vrot.slane %v6487, 3
      %v6490 = vor.u32 %v6486, %v6489
      %v6491 = vsel %vm1603, %v6420, %v6490
      %v6492 = vshrl.u32 %v6147, 16
      %v6494 = vrot.slane %v6492, 2
      %v6495 = vshll.u32 %v6147, 16
      %v6497 = vrot.slane %v6495, 3
      %v6498 = vor.u32 %v6494, %v6497
      %v6499 = vsel %vm1603, %v6435, %v6498
      %v6500 = vshrl.u32 %v6210, 16
      %v6502 = vrot.slane %v6500, 2
      %v6503 = vshll.u32 %v6210, 16
      %v6505 = vrot.slane %v6503, 3
      %v6506 = vor.u32 %v6502, %v6505
      %v6507 = vsel %vm1603, %v6450, %v6506
      %v6508 = vshrl.u32 %v6273, 16
      %v6510 = vrot.slane %v6508, 2
      %v6511 = vshll.u32 %v6273, 16
      %v6513 = vrot.slane %v6511, 3
      %v6514 = vor.u32 %v6510, %v6513
      %v6515 = vsel %vm1603, %v6465, %v6514
      %v6517 = vshrl.u32 %v6058, 16
      %v6519 = vrot.slane %v6517, 2
      %v6520 = vshll.u32 %v6058, 16
      %v6522 = vrot.slane %v6520, 3
      %v6523 = vor.u32 %v6519, %v6522
      %v6524 = vsel %vm1603, %v6482, %v6523
      %v6525 = vshrl.u32 %v6104, 16
      %v6527 = vrot.slane %v6525, 2
      %v6528 = vshll.u32 %v6104, 16
      %v6530 = vrot.slane %v6528, 3
      %v6531 = vor.u32 %v6527, %v6530
      %v6532 = vsel %vm1603, %v6490, %v6531
      %v6533 = vshrl.u32 %v6150, 16
      %v6535 = vrot.slane %v6533, 2
      %v6536 = vshll.u32 %v6150, 16
      %v6538 = vrot.slane %v6536, 3
      %v6539 = vor.u32 %v6535, %v6538
      %v6540 = vsel %vm1603, %v6498, %v6539
      %v6541 = vshrl.u32 %v6213, 16
      %v6543 = vrot.slane %v6541, 2
      %v6544 = vshll.u32 %v6213, 16
      %v6546 = vrot.slane %v6544, 3
      %v6547 = vor.u32 %v6543, %v6546
      %v6548 = vsel %vm1603, %v6506, %v6547
      %v6549 = vshrl.u32 %v6276, 16
      %v6551 = vrot.slane %v6549, 2
      %v6552 = vshll.u32 %v6276, 16
      %v6554 = vrot.slane %v6552, 3
      %v6555 = vor.u32 %v6551, %v6554
      %v6556 = vsel %vm1603, %v6514, %v6555
      %v6558 = vshrl.u32 %v6060, 16
      %v6560 = vrot.slane %v6558, 2
      %v6561 = vshll.u32 %v6060, 16
      %v6563 = vrot.slane %v6561, 3
      %v6564 = vor.u32 %v6560, %v6563
      %v6565 = vsel %vm1603, %v6523, %v6564
      %v6566 = vshrl.u32 %v6106, 16
      %v6568 = vrot.slane %v6566, 2
      %v6569 = vshll.u32 %v6106, 16
      %v6571 = vrot.slane %v6569, 3
      %v6572 = vor.u32 %v6568, %v6571
      %v6573 = vsel %vm1603, %v6531, %v6572
      %v6574 = vshrl.u32 %v6153, 16
      %v6576 = vrot.slane %v6574, 2
      %v6577 = vshll.u32 %v6153, 16
      %v6579 = vrot.slane %v6577, 3
      %v6580 = vor.u32 %v6576, %v6579
      %v6581 = vsel %vm1603, %v6539, %v6580
      %v6582 = vshrl.u32 %v6216, 16
      %v6584 = vrot.slane %v6582, 2
      %v6585 = vshll.u32 %v6216, 16
      %v6587 = vrot.slane %v6585, 3
      %v6588 = vor.u32 %v6584, %v6587
      %v6589 = vsel %vm1603, %v6547, %v6588
      %v6590 = vshrl.u32 %v6279, 16
      %v6592 = vrot.slane %v6590, 2
      %v6593 = vshll.u32 %v6279, 16
      %v6595 = vrot.slane %v6593, 3
      %v6596 = vor.u32 %v6592, %v6595
      %v6597 = vsel %vm1603, %v6555, %v6596
      %v6599 = vshrl.u32 %v6062, 16
      %v6601 = vrot.slane %v6599, 2
      %v6602 = vshll.u32 %v6062, 16
      %v6604 = vrot.slane %v6602, 3
      %v6605 = vor.u32 %v6601, %v6604
      %v6606 = vsel %vm1603, %v6564, %v6605
      %v6607 = vshrl.u32 %v6108, 16
      %v6609 = vrot.slane %v6607, 2
      %v6610 = vshll.u32 %v6108, 16
      %v6612 = vrot.slane %v6610, 3
      %v6613 = vor.u32 %v6609, %v6612
      %v6614 = vsel %vm1603, %v6572, %v6613
      %v6615 = vshrl.u32 %v6156, 16
      %v6617 = vrot.slane %v6615, 2
      %v6618 = vshll.u32 %v6156, 16
      %v6620 = vrot.slane %v6618, 3
      %v6621 = vor.u32 %v6617, %v6620
      %v6622 = vsel %vm1603, %v6580, %v6621
      %v6623 = vshrl.u32 %v6219, 16
      %v6625 = vrot.slane %v6623, 2
      %v6626 = vshll.u32 %v6219, 16
      %v6628 = vrot.slane %v6626, 3
      %v6629 = vor.u32 %v6625, %v6628
      %v6630 = vsel %vm1603, %v6588, %v6629
      %v6631 = vshrl.u32 %v6282, 16
      %v6633 = vrot.slane %v6631, 2
      %v6634 = vshll.u32 %v6282, 16
      %v6636 = vrot.slane %v6634, 3
      %v6637 = vor.u32 %v6633, %v6636
      %v6638 = vsel %vm1603, %v6596, %v6637
      %v6640 = vshrl.u32 %v6064, 16
      %v6642 = vrot.slane %v6640, 2
      %v6643 = vshll.u32 %v6064, 16
      %v6645 = vrot.slane %v6643, 3
      %v6646 = vor.u32 %v6642, %v6645
      %v6647 = vsel %vm1603, %v6605, %v6646
      %v6648 = vshrl.u32 %v6110, 16
      %v6650 = vrot.slane %v6648, 2
      %v6651 = vshll.u32 %v6110, 16
      %v6653 = vrot.slane %v6651, 3
      %v6654 = vor.u32 %v6650, %v6653
      %v6655 = vsel %vm1603, %v6613, %v6654
      %v6656 = vshrl.u32 %v6159, 16
      %v6658 = vrot.slane %v6656, 2
      %v6659 = vshll.u32 %v6159, 16
      %v6661 = vrot.slane %v6659, 3
      %v6662 = vor.u32 %v6658, %v6661
      %v6663 = vsel %vm1603, %v6621, %v6662
      %v6664 = vshrl.u32 %v6222, 16
      %v6666 = vrot.slane %v6664, 2
      %v6667 = vshll.u32 %v6222, 16
      %v6669 = vrot.slane %v6667, 3
      %v6670 = vor.u32 %v6666, %v6669
      %v6671 = vsel %vm1603, %v6629, %v6670
      %v6672 = vshrl.u32 %v6285, 16
      %v6674 = vrot.slane %v6672, 2
      %v6675 = vshll.u32 %v6285, 16
      %v6677 = vrot.slane %v6675, 3
      %v6678 = vor.u32 %v6674, %v6677
      %v6679 = vsel %vm1603, %v6637, %v6678
      %v6681 = vshrl.u32 %v6066, 16
      %v6683 = vrot.slane %v6681, 2
      %v6684 = vshll.u32 %v6066, 16
      %v6686 = vrot.slane %v6684, 3
      %v6687 = vor.u32 %v6683, %v6686
      %v6688 = vsel %vm1603, %v6646, %v6687
      %v6689 = vshrl.u32 %v6112, 16
      %v6691 = vrot.slane %v6689, 2
      %v6692 = vshll.u32 %v6112, 16
      %v6694 = vrot.slane %v6692, 3
      %v6695 = vor.u32 %v6691, %v6694
      %v6696 = vsel %vm1603, %v6654, %v6695
      %v6697 = vshrl.u32 %v6162, 16
      %v6699 = vrot.slane %v6697, 2
      %v6700 = vshll.u32 %v6162, 16
      %v6702 = vrot.slane %v6700, 3
      %v6703 = vor.u32 %v6699, %v6702
      %v6704 = vsel %vm1603, %v6662, %v6703
      %v6705 = vshrl.u32 %v6225, 16
      %v6707 = vrot.slane %v6705, 2
      %v6708 = vshll.u32 %v6225, 16
      %v6710 = vrot.slane %v6708, 3
      %v6711 = vor.u32 %v6707, %v6710
      %v6712 = vsel %vm1603, %v6670, %v6711
      %v6713 = vshrl.u32 %v6288, 16
      %v6715 = vrot.slane %v6713, 2
      %v6716 = vshll.u32 %v6288, 16
      %v6718 = vrot.slane %v6716, 3
      %v6719 = vor.u32 %v6715, %v6718
      %v6720 = vsel %vm1603, %v6678, %v6719
      %v6722 = vshrl.u32 %v6068, 16
      %v6724 = vrot.slane %v6722, 2
      %v6725 = vshll.u32 %v6068, 16
      %v6727 = vrot.slane %v6725, 3
      %v6728 = vor.u32 %v6724, %v6727
      %v6729 = vsel %vm1603, %v6687, %v6728
      %v6730 = vshrl.u32 %v6114, 16
      %v6732 = vrot.slane %v6730, 2
      %v6733 = vshll.u32 %v6114, 16
      %v6735 = vrot.slane %v6733, 3
      %v6736 = vor.u32 %v6732, %v6735
      %v6737 = vsel %vm1603, %v6695, %v6736
      %v6738 = vshrl.u32 %v6165, 16
      %v6740 = vrot.slane %v6738, 2
      %v6741 = vshll.u32 %v6165, 16
      %v6743 = vrot.slane %v6741, 3
      %v6744 = vor.u32 %v6740, %v6743
      %v6745 = vsel %vm1603, %v6703, %v6744
      %v6746 = vshrl.u32 %v6228, 16
      %v6748 = vrot.slane %v6746, 2
      %v6749 = vshll.u32 %v6228, 16
      %v6751 = vrot.slane %v6749, 3
      %v6752 = vor.u32 %v6748, %v6751
      %v6753 = vsel %vm1603, %v6711, %v6752
      %v6754 = vshrl.u32 %v6291, 16
      %v6756 = vrot.slane %v6754, 2
      %v6757 = vshll.u32 %v6291, 16
      %v6759 = vrot.slane %v6757, 3
      %v6760 = vor.u32 %v6756, %v6759
      %v6761 = vsel %vm1603, %v6719, %v6760
      %v6763 = vshrl.u32 %v6070, 16
      %v6765 = vrot.slane %v6763, 2
      %v6766 = vshll.u32 %v6070, 16
      %v6768 = vrot.slane %v6766, 3
      %v6769 = vor.u32 %v6765, %v6768
      %v6770 = vsel %vm1603, %v6728, %v6769
      %v6771 = vshrl.u32 %v6116, 16
      %v6773 = vrot.slane %v6771, 2
      %v6774 = vshll.u32 %v6116, 16
      %v6776 = vrot.slane %v6774, 3
      %v6777 = vor.u32 %v6773, %v6776
      %v6778 = vsel %vm1603, %v6736, %v6777
      %v6779 = vshrl.u32 %v6168, 16
      %v6781 = vrot.slane %v6779, 2
      %v6782 = vshll.u32 %v6168, 16
      %v6784 = vrot.slane %v6782, 3
      %v6785 = vor.u32 %v6781, %v6784
      %v6786 = vsel %vm1603, %v6744, %v6785
      %v6787 = vshrl.u32 %v6231, 16
      %v6789 = vrot.slane %v6787, 2
      %v6790 = vshll.u32 %v6231, 16
      %v6792 = vrot.slane %v6790, 3
      %v6793 = vor.u32 %v6789, %v6792
      %v6794 = vsel %vm1603, %v6752, %v6793
      %v6795 = vshrl.u32 %v6294, 16
      %v6797 = vrot.slane %v6795, 2
      %v6798 = vshll.u32 %v6294, 16
      %v6800 = vrot.slane %v6798, 3
      %v6801 = vor.u32 %v6797, %v6800
      %v6802 = vsel %vm1603, %v6760, %v6801
      %v6804 = vshrl.u32 %v6072, 16
      %v6806 = vrot.slane %v6804, 2
      %v6807 = vshll.u32 %v6072, 16
      %v6809 = vrot.slane %v6807, 3
      %v6810 = vor.u32 %v6806, %v6809
      %v6811 = vsel %vm1603, %v6769, %v6810
      %v6812 = vshrl.u32 %v6118, 16
      %v6814 = vrot.slane %v6812, 2
      %v6815 = vshll.u32 %v6118, 16
      %v6817 = vrot.slane %v6815, 3
      %v6818 = vor.u32 %v6814, %v6817
      %v6819 = vsel %vm1603, %v6777, %v6818
      %v6820 = vshrl.u32 %v6171, 16
      %v6822 = vrot.slane %v6820, 2
      %v6823 = vshll.u32 %v6171, 16
      %v6825 = vrot.slane %v6823, 3
      %v6826 = vor.u32 %v6822, %v6825
      %v6827 = vsel %vm1603, %v6785, %v6826
      %v6828 = vshrl.u32 %v6234, 16
      %v6830 = vrot.slane %v6828, 2
      %v6831 = vshll.u32 %v6234, 16
      %v6833 = vrot.slane %v6831, 3
      %v6834 = vor.u32 %v6830, %v6833
      %v6835 = vsel %vm1603, %v6793, %v6834
      %v6836 = vshrl.u32 %v6297, 16
      %v6838 = vrot.slane %v6836, 2
      %v6839 = vshll.u32 %v6297, 16
      %v6841 = vrot.slane %v6839, 3
      %v6842 = vor.u32 %v6838, %v6841
      %v6843 = vsel %vm1603, %v6801, %v6842
      %v6845 = vshrl.u32 %v6074, 16
      %v6847 = vrot.slane %v6845, 2
      %v6848 = vshll.u32 %v6074, 16
      %v6850 = vrot.slane %v6848, 3
      %v6851 = vor.u32 %v6847, %v6850
      %v6852 = vsel %vm1603, %v6810, %v6851
      %v6853 = vshrl.u32 %v6120, 16
      %v6855 = vrot.slane %v6853, 2
      %v6856 = vshll.u32 %v6120, 16
      %v6858 = vrot.slane %v6856, 3
      %v6859 = vor.u32 %v6855, %v6858
      %v6860 = vsel %vm1603, %v6818, %v6859
      %v6861 = vshrl.u32 %v6174, 16
      %v6863 = vrot.slane %v6861, 2
      %v6864 = vshll.u32 %v6174, 16
      %v6866 = vrot.slane %v6864, 3
      %v6867 = vor.u32 %v6863, %v6866
      %v6868 = vsel %vm1603, %v6826, %v6867
      %v6869 = vshrl.u32 %v6237, 16
      %v6871 = vrot.slane %v6869, 2
      %v6872 = vshll.u32 %v6237, 16
      %v6874 = vrot.slane %v6872, 3
      %v6875 = vor.u32 %v6871, %v6874
      %v6876 = vsel %vm1603, %v6834, %v6875
      %v6877 = vshrl.u32 %v6300, 16
      %v6879 = vrot.slane %v6877, 2
      %v6880 = vshll.u32 %v6300, 16
      %v6882 = vrot.slane %v6880, 3
      %v6883 = vor.u32 %v6879, %v6882
      %v6884 = vsel %vm1603, %v6842, %v6883
      %v6886 = vshrl.u32 %v6076, 16
      %v6888 = vrot.slane %v6886, 2
      %v6889 = vshll.u32 %v6076, 16
      %v6891 = vrot.slane %v6889, 3
      %v6892 = vor.u32 %v6888, %v6891
      %v6893 = vsel %vm1603, %v6851, %v6892
      %v6894 = vshrl.u32 %v6122, 16
      %v6896 = vrot.slane %v6894, 2
      %v6897 = vshll.u32 %v6122, 16
      %v6899 = vrot.slane %v6897, 3
      %v6900 = vor.u32 %v6896, %v6899
      %v6901 = vsel %vm1603, %v6859, %v6900
      %v6902 = vshrl.u32 %v6177, 16
      %v6904 = vrot.slane %v6902, 2
      %v6905 = vshll.u32 %v6177, 16
      %v6907 = vrot.slane %v6905, 3
      %v6908 = vor.u32 %v6904, %v6907
      %v6909 = vsel %vm1603, %v6867, %v6908
      %v6910 = vshrl.u32 %v6240, 16
      %v6912 = vrot.slane %v6910, 2
      %v6913 = vshll.u32 %v6240, 16
      %v6915 = vrot.slane %v6913, 3
      %v6916 = vor.u32 %v6912, %v6915
      %v6917 = vsel %vm1603, %v6875, %v6916
      %v6918 = vshrl.u32 %v6303, 16
      %v6920 = vrot.slane %v6918, 2
      %v6921 = vshll.u32 %v6303, 16
      %v6923 = vrot.slane %v6921, 3
      %v6924 = vor.u32 %v6920, %v6923
      %v6925 = vsel %vm1603, %v6883, %v6924
      %v6927 = vshrl.u32 %v6078, 16
      %v6929 = vrot.slane %v6927, 2
      %v6930 = vshll.u32 %v6078, 16
      %v6932 = vrot.slane %v6930, 3
      %v6933 = vor.u32 %v6929, %v6932
      %v6934 = vsel %vm1603, %v6892, %v6933
      %v6935 = vshrl.u32 %v6124, 16
      %v6937 = vrot.slane %v6935, 2
      %v6938 = vshll.u32 %v6124, 16
      %v6940 = vrot.slane %v6938, 3
      %v6941 = vor.u32 %v6937, %v6940
      %v6942 = vsel %vm1603, %v6900, %v6941
      %v6943 = vshrl.u32 %v6180, 16
      %v6945 = vrot.slane %v6943, 2
      %v6946 = vshll.u32 %v6180, 16
      %v6948 = vrot.slane %v6946, 3
      %v6949 = vor.u32 %v6945, %v6948
      %v6950 = vsel %vm1603, %v6908, %v6949
      %v6951 = vshrl.u32 %v6243, 16
      %v6953 = vrot.slane %v6951, 2
      %v6954 = vshll.u32 %v6243, 16
      %v6956 = vrot.slane %v6954, 3
      %v6957 = vor.u32 %v6953, %v6956
      %v6958 = vsel %vm1603, %v6916, %v6957
      %v6959 = vshrl.u32 %v6306, 16
      %v6961 = vrot.slane %v6959, 2
      %v6962 = vshll.u32 %v6306, 16
      %v6964 = vrot.slane %v6962, 3
      %v6965 = vor.u32 %v6961, %v6964
      %v6966 = vsel %vm1603, %v6924, %v6965
      %v6968 = vshrl.u32 %v6080, 16
      %v6970 = vrot.slane %v6968, 2
      %v6971 = vshll.u32 %v6080, 16
      %v6973 = vrot.slane %v6971, 3
      %v6974 = vor.u32 %v6970, %v6973
      %v6975 = vsel %vm1603, %v6933, %v6974
      %v6976 = vshrl.u32 %v6126, 16
      %v6978 = vrot.slane %v6976, 2
      %v6979 = vshll.u32 %v6126, 16
      %v6981 = vrot.slane %v6979, 3
      %v6982 = vor.u32 %v6978, %v6981
      %v6983 = vsel %vm1603, %v6941, %v6982
      %v6984 = vshrl.u32 %v6183, 16
      %v6986 = vrot.slane %v6984, 2
      %v6987 = vshll.u32 %v6183, 16
      %v6989 = vrot.slane %v6987, 3
      %v6990 = vor.u32 %v6986, %v6989
      %v6991 = vsel %vm1603, %v6949, %v6990
      %v6992 = vshrl.u32 %v6246, 16
      %v6994 = vrot.slane %v6992, 2
      %v6995 = vshll.u32 %v6246, 16
      %v6997 = vrot.slane %v6995, 3
      %v6998 = vor.u32 %v6994, %v6997
      %v6999 = vsel %vm1603, %v6957, %v6998
      %v7000 = vshrl.u32 %v6309, 16
      %v7002 = vrot.slane %v7000, 2
      %v7003 = vshll.u32 %v6309, 16
      %v7005 = vrot.slane %v7003, 3
      %v7006 = vor.u32 %v7002, %v7005
      %v7007 = vsel %vm1603, %v6965, %v7006
      %v7009 = vshrl.u32 %v6082, 16
      %v7011 = vrot.slane %v7009, 2
      %v7012 = vshll.u32 %v6082, 16
      %v7014 = vrot.slane %v7012, 3
      %v7015 = vor.u32 %v7011, %v7014
      %v7016 = vsel %vm1603, %v6974, %v7015
      %v7017 = vshrl.u32 %v6128, 16
      %v7019 = vrot.slane %v7017, 2
      %v7020 = vshll.u32 %v6128, 16
      %v7022 = vrot.slane %v7020, 3
      %v7023 = vor.u32 %v7019, %v7022
      %v7024 = vsel %vm1603, %v6982, %v7023
      %v7025 = vshrl.u32 %v6186, 16
      %v7027 = vrot.slane %v7025, 2
      %v7028 = vshll.u32 %v6186, 16
      %v7030 = vrot.slane %v7028, 3
      %v7031 = vor.u32 %v7027, %v7030
      %v7032 = vsel %vm1603, %v6990, %v7031
      %v7033 = vshrl.u32 %v6249, 16
      %v7035 = vrot.slane %v7033, 2
      %v7036 = vshll.u32 %v6249, 16
      %v7038 = vrot.slane %v7036, 3
      %v7039 = vor.u32 %v7035, %v7038
      %v7040 = vsel %vm1603, %v6998, %v7039
      %v7041 = vshrl.u32 %v6312, 16
      %v7043 = vrot.slane %v7041, 2
      %v7044 = vshll.u32 %v6312, 16
      %v7046 = vrot.slane %v7044, 3
      %v7047 = vor.u32 %v7043, %v7046
      %v7048 = vsel %vm1603, %v7006, %v7047
      %v7050 = vshrl.u32 %v6084, 16
      %v7052 = vrot.slane %v7050, 2
      %v7053 = vshll.u32 %v6084, 16
      %v7055 = vrot.slane %v7053, 3
      %v7056 = vor.u32 %v7052, %v7055
      %v7057 = vsel %vm1603, %v7015, %v7056
      %v7058 = vshrl.u32 %v6130, 16
      %v7060 = vrot.slane %v7058, 2
      %v7061 = vshll.u32 %v6130, 16
      %v7063 = vrot.slane %v7061, 3
      %v7064 = vor.u32 %v7060, %v7063
      %v7065 = vsel %vm1603, %v7023, %v7064
      %v7066 = vshrl.u32 %v6189, 16
      %v7068 = vrot.slane %v7066, 2
      %v7069 = vshll.u32 %v6189, 16
      %v7071 = vrot.slane %v7069, 3
      %v7072 = vor.u32 %v7068, %v7071
      %v7073 = vsel %vm1603, %v7031, %v7072
      %v7074 = vshrl.u32 %v6252, 16
      %v7076 = vrot.slane %v7074, 2
      %v7077 = vshll.u32 %v6252, 16
      %v7079 = vrot.slane %v7077, 3
      %v7080 = vor.u32 %v7076, %v7079
      %v7081 = vsel %vm1603, %v7039, %v7080
      %v7082 = vshrl.u32 %v6315, 16
      %v7084 = vrot.slane %v7082, 2
      %v7085 = vshll.u32 %v6315, 16
      %v7087 = vrot.slane %v7085, 3
      %v7088 = vor.u32 %v7084, %v7087
      %v7089 = vsel %vm1603, %v7047, %v7088
      %v7091 = vshrl.u32 %v6086, 16
      %v7093 = vrot.slane %v7091, 2
      %v7094 = vshll.u32 %v6086, 16
      %v7096 = vrot.slane %v7094, 3
      %v7097 = vor.u32 %v7093, %v7096
      %v7098 = vsel %vm1603, %v7056, %v7097
      %v7099 = vshrl.u32 %v6132, 16
      %v7101 = vrot.slane %v7099, 2
      %v7102 = vshll.u32 %v6132, 16
      %v7104 = vrot.slane %v7102, 3
      %v7105 = vor.u32 %v7101, %v7104
      %v7106 = vsel %vm1603, %v7064, %v7105
      %v7107 = vshrl.u32 %v6192, 16
      %v7109 = vrot.slane %v7107, 2
      %v7110 = vshll.u32 %v6192, 16
      %v7112 = vrot.slane %v7110, 3
      %v7113 = vor.u32 %v7109, %v7112
      %v7114 = vsel %vm1603, %v7072, %v7113
      %v7115 = vshrl.u32 %v6255, 16
      %v7117 = vrot.slane %v7115, 2
      %v7118 = vshll.u32 %v6255, 16
      %v7120 = vrot.slane %v7118, 3
      %v7121 = vor.u32 %v7117, %v7120
      %v7122 = vsel %vm1603, %v7080, %v7121
      %v7123 = vshrl.u32 %v6318, 16
      %v7125 = vrot.slane %v7123, 2
      %v7126 = vshll.u32 %v6318, 16
      %v7128 = vrot.slane %v7126, 3
      %v7129 = vor.u32 %v7125, %v7128
      %v7130 = vsel %vm1603, %v7088, %v7129
      %v7132 = vshrl.u32 %v6088, 16
      %v7134 = vrot.slane %v7132, 2
      %v7135 = vshll.u32 %v6088, 16
      %v7137 = vrot.slane %v7135, 3
      %v7138 = vor.u32 %v7134, %v7137
      %v7139 = vsel %vm1603, %v7097, %v7138
      %v7140 = vshrl.u32 %v6134, 16
      %v7142 = vrot.slane %v7140, 2
      %v7143 = vshll.u32 %v6134, 16
      %v7145 = vrot.slane %v7143, 3
      %v7146 = vor.u32 %v7142, %v7145
      %v7147 = vsel %vm1603, %v7105, %v7146
      %v7148 = vshrl.u32 %v6195, 16
      %v7150 = vrot.slane %v7148, 2
      %v7151 = vshll.u32 %v6195, 16
      %v7153 = vrot.slane %v7151, 3
      %v7154 = vor.u32 %v7150, %v7153
      %v7155 = vsel %vm1603, %v7113, %v7154
      %v7156 = vshrl.u32 %v6258, 16
      %v7158 = vrot.slane %v7156, 2
      %v7159 = vshll.u32 %v6258, 16
      %v7161 = vrot.slane %v7159, 3
      %v7162 = vor.u32 %v7158, %v7161
      %v7163 = vsel %vm1603, %v7121, %v7162
      %v7164 = vshrl.u32 %v6321, 16
      %v7166 = vrot.slane %v7164, 2
      %v7167 = vshll.u32 %v6321, 16
      %v7169 = vrot.slane %v7167, 3
      %v7170 = vor.u32 %v7166, %v7169
      %v7171 = vsel %vm1603, %v7129, %v7170
      %v7173 = vshrl.u32 %v6090, 16
      %v7175 = vrot.slane %v7173, 2
      %v7176 = vshll.u32 %v6090, 16
      %v7178 = vrot.slane %v7176, 3
      %v7179 = vor.u32 %v7175, %v7178
      %v7180 = vsel %vm1603, %v7138, %v7179
      %v7181 = vshrl.u32 %v6136, 16
      %v7183 = vrot.slane %v7181, 2
      %v7184 = vshll.u32 %v6136, 16
      %v7186 = vrot.slane %v7184, 3
      %v7187 = vor.u32 %v7183, %v7186
      %v7188 = vsel %vm1603, %v7146, %v7187
      %v7189 = vshrl.u32 %v6198, 16
      %v7191 = vrot.slane %v7189, 2
      %v7192 = vshll.u32 %v6198, 16
      %v7194 = vrot.slane %v7192, 3
      %v7195 = vor.u32 %v7191, %v7194
      %v7196 = vsel %vm1603, %v7154, %v7195
      %v7197 = vshrl.u32 %v6261, 16
      %v7199 = vrot.slane %v7197, 2
      %v7200 = vshll.u32 %v6261, 16
      %v7202 = vrot.slane %v7200, 3
      %v7203 = vor.u32 %v7199, %v7202
      %v7204 = vsel %vm1603, %v7162, %v7203
      %v7205 = vshrl.u32 %v6324, 16
      %v7207 = vrot.slane %v7205, 2
      %v7208 = vshll.u32 %v6324, 16
      %v7210 = vrot.slane %v7208, 3
      %v7211 = vor.u32 %v7207, %v7210
      %v7212 = vsel %vm1603, %v7170, %v7211
      %v7214 = vshrl.u32 %v6092, 16
      %v7216 = vrot.slane %v7214, 2
      %v7217 = vshll.u32 %v6092, 16
      %v7219 = vrot.slane %v7217, 3
      %v7220 = vor.u32 %v7216, %v7219
      %v7221 = vsel %vm1603, %v7179, %v7220
      %v7222 = vshrl.u32 %v6138, 16
      %v7224 = vrot.slane %v7222, 2
      %v7225 = vshll.u32 %v6138, 16
      %v7227 = vrot.slane %v7225, 3
      %v7228 = vor.u32 %v7224, %v7227
      %v7229 = vsel %vm1603, %v7187, %v7228
      %v7230 = vshrl.u32 %v6201, 16
      %v7232 = vrot.slane %v7230, 2
      %v7233 = vshll.u32 %v6201, 16
      %v7235 = vrot.slane %v7233, 3
      %v7236 = vor.u32 %v7232, %v7235
      %v7237 = vsel %vm1603, %v7195, %v7236
      %v7238 = vshrl.u32 %v6264, 16
      %v7240 = vrot.slane %v7238, 2
      %v7241 = vshll.u32 %v6264, 16
      %v7243 = vrot.slane %v7241, 3
      %v7244 = vor.u32 %v7240, %v7243
      %v7245 = vsel %vm1603, %v7203, %v7244
      %v7246 = vshrl.u32 %v6327, 16
      %v7248 = vrot.slane %v7246, 2
      %v7249 = vshll.u32 %v6327, 16
      %v7251 = vrot.slane %v7249, 3
      %v7252 = vor.u32 %v7248, %v7251
      %v7253 = vsel %vm1603, %v7211, %v7252
      %v7255 = vshrl.u32 %v6094, 16
      %v7257 = vrot.slane %v7255, 2
      %v7258 = vshll.u32 %v6094, 16
      %v7260 = vrot.slane %v7258, 3
      %v7261 = vor.u32 %v7257, %v7260
      %v7262 = vsel %vm1603, %v7220, %v7261
      %v7419 = vunpack.c.l.b16 %v6328
      %v7420 = vunpack.c.l.b16 %v6329
      %v7421 = vunpack.c.l.b16 %v6330
      %v7422 = vunpack.c.l.b16 %v6331
      %v7423 = vunpack.c.l.b16 %v6332
      %v7424 = vunpack.c.l.b16 %v6333
      %v7425 = vunpack.c.l.b16 %v6334
      %v7426 = vunpack.c.l.b16 %v6335
      %v7427 = vunpack.c.l.b16 %v6336
      %v7428 = vunpack.c.l.b16 %v6337
      %v7429 = vunpack.c.l.b16 %v6338
      %v7430 = vunpack.c.l.b16 %v6339
      %v7431 = vunpack.c.l.b16 %v6340
      %v7432 = vunpack.c.l.b16 %v6341
      %v7433 = vunpack.c.l.b16 %v6342
      %v7434 = vunpack.c.l.b16 %v6343
      %v7435 = vunpack.c.l.b16 %v6344
      %v7436 = vunpack.c.l.b16 %v6345
      %v7437 = vunpack.c.l.b16 %v6346
      %v7438 = vunpack.c.l.b16 %v6347
      %v7439 = vunpack.c.l.b16 %v6348
      %v7440 = vunpack.c.l.b16 %v6349
      %v7441 = vunpack.c.l.b16 %v6350
      %v7442 = vunpack.c.l.b16 %v6351
      %v7443 = vunpack.c.l.b16 %v6352
      %v7444 = vunpack.c.l.b16 %v6353
      %v7445 = vunpack.c.l.b16 %v6354
      %v7446 = vunpack.c.l.b16 %v6355
      %v7447 = vunpack.c.l.b16 %v6356
      %v7448 = vunpack.c.l.b16 %v6357
      %v7449 = vunpack.c.l.b16 %v6358
      %v7450 = vunpack.c.l.b16 %v6359
      %v7451 = vunpack.c.l.b16 %v6360
      %v7452 = vunpack.c.l.b16 %v6361
      %v7453 = vunpack.c.l.b16 %v6362
      %v7454 = vunpack.c.l.b16 %v6363
      %v7455 = vunpack.c.l.b16 %v6364
      %v7456 = vunpack.c.l.b16 %v6365
      %v7457 = vunpack.c.l.b16 %v6366
      %v7458 = vunpack.c.l.b16 %v6367
      %v7459 = vunpack.c.l.b16 %v6368
      %v7460 = vunpack.c.l.b16 %v6369
      %v7461 = vunpack.c.l.b16 %v6370
      %v7462 = vunpack.c.l.b16 %v6371
      %v7463 = vunpack.c.l.b16 %v6372
      %v7464 = vunpack.c.l.b16 %v6373
      %v7465 = vunpack.c.l.b16 %v6374
      %v7466 = vunpack.c.l.b16 %v6375
      %v7467 = vunpack.c.l.b16 %v6376
      %v7468 = vunpack.c.l.b16 %v6377
      %v7469 = vunpack.c.l.b16 %v6378
      %v7470 = vunpack.c.l.b16 %v6379
      %v7471 = vunpack.c.l.b16 %v6380
      %v7472 = vunpack.c.l.b16 %v6381
      %v7473 = vunpack.c.l.b16 %v6382
      %v7474 = vunpack.c.l.b16 %v6383
      %v7475 = vunpack.c.l.b16 %v6384
      %v7476 = vunpack.c.l.b16 %v6385
      %v7477 = vunpack.c.l.b16 %v6386
      %v7478 = vunpack.c.l.b16 %v6387
      %v7479 = vunpack.c.l.b16 %v6388
      %v7480 = vunpack.c.l.b16 %v6389
      %v7481 = vunpack.c.l.b16 %v6390
      %v7482 = vunpack.c.l.b16 %v6391
      %v7483 = vunpack.c.l.b16 %v6392
      %v7484 = vunpack.c.l.b16 %v6393
      %v7485 = vunpack.c.l.b16 %v6394
      %v7486 = vunpack.c.l.b16 %v6395
      %v7487 = vunpack.c.l.b16 %v6396
      %v7488 = vunpack.c.l.b16 %v6397
      %v7489 = vunpack.c.l.b16 %v6398
      %v7490 = vunpack.c.l.b16 %v6399
      %v7491 = vpack.c.b16 %v7420, %v7419
      %v7492 = vpack.c.b16 %v7422, %v7421
      %v7493 = vpack.c.b16 %v7424, %v7423
      %v7494 = vpack.c.b16 %v7426, %v7425
      %v7495 = vpack.c.b16 %v7428, %v7427
      %v7496 = vpack.c.b16 %v7430, %v7429
      %v7497 = vpack.c.b16 %v7432, %v7431
      %v7498 = vpack.c.b16 %v7434, %v7433
      %v7499 = vpack.c.b16 %v7436, %v7435
      %v7500 = vpack.c.b16 %v7438, %v7437
      %v7501 = vpack.c.b16 %v7440, %v7439
      %v7502 = vpack.c.b16 %v7442, %v7441
      %v7503 = vpack.c.b16 %v7444, %v7443
      %v7504 = vpack.c.b16 %v7446, %v7445
      %v7505 = vpack.c.b16 %v7448, %v7447
      %v7506 = vpack.c.b16 %v7450, %v7449
      %v7507 = vpack.c.b16 %v7452, %v7451
      %v7508 = vpack.c.b16 %v7454, %v7453
      %v7509 = vpack.c.b16 %v7456, %v7455
      %v7510 = vpack.c.b16 %v7458, %v7457
      %v7511 = vpack.c.b16 %v7460, %v7459
      %v7512 = vpack.c.b16 %v7462, %v7461
      %v7513 = vpack.c.b16 %v7464, %v7463
      %v7514 = vpack.c.b16 %v7466, %v7465
      %v7515 = vpack.c.b16 %v7468, %v7467
      %v7516 = vpack.c.b16 %v7470, %v7469
      %v7517 = vpack.c.b16 %v7472, %v7471
      %v7518 = vpack.c.b16 %v7474, %v7473
      %v7519 = vpack.c.b16 %v7476, %v7475
      %v7520 = vpack.c.b16 %v7478, %v7477
      %v7521 = vpack.c.b16 %v7480, %v7479
      %v7522 = vpack.c.b16 %v7482, %v7481
      %v7523 = vpack.c.b16 %v7484, %v7483
      %v7524 = vpack.c.b16 %v7486, %v7485
      %v7525 = vpack.c.b16 %v7488, %v7487
      %v7526 = vpack.c.b16 %v7490, %v7489
      %v7564 = vsel %vm6095, %v6483, 0
      %v7567 = vsel %vm6095, %v6524, 0
      %v7570 = vsel %vm6095, %v6565, 0
      %v7573 = vsel %vm6095, %v6606, 0
      %v7576 = vsel %vm6095, %v6647, 0
      %v7579 = vsel %vm6095, %v6688, 0
      %v7582 = vsel %vm6095, %v6729, 0
      %v7585 = vsel %vm6095, %v6770, 0
      %v7588 = vsel %vm6095, %v6811, 0
      %v7591 = vsel %vm6095, %v6852, 0
      %v7594 = vsel %vm6095, %v6893, 0
      %v7597 = vsel %vm6095, %v6934, 0
      %v7600 = vsel %vm6095, %v6975, 0
      %v7603 = vsel %vm6095, %v7016, 0
      %v7606 = vsel %vm6095, %v7057, 0
      %v7609 = vsel %vm6095, %v7098, 0
      %v7612 = vsel %vm6095, %v7139, 0
      %v7615 = vsel %vm6095, %v7180, 0
      %v7618 = vsel %vm6095, %v7221, 0
      %v7621 = vsel %vm6095, %v7262, 0
      %v7624 = vsel %vm6095, %v7261, 0
      %7626 = vmatprep.subr.bf16.mxu0 0
      %7627 = vmatpush1.bf16.msra.mxu0 %v7498
      %7628 = vmatprep.subr.bf16.mxu0 0
      %7629 = vmatpush1.bf16.msra.mxu0 %v7497
      %7630 = vmatprep.subr.bf16.mxu0 0
      %7631 = vmatpush1.bf16.msra.mxu0 %v7496
      %7632 = vmatprep.subr.bf16.mxu0 0
      %7633 = vmatpush1.bf16.msra.mxu0 %v7495
      %7634 = vmatprep.subr.bf16.mxu0 0
      %7635 = vmatpush1.bf16.msra.mxu0 %v7494
      %7636 = vmatprep.subr.bf16.mxu0 0
      %7637 = vmatpush1.bf16.msra.mxu0 %v7493
      %7638 = vmatprep.subr.bf16.mxu0 0
      %7639 = vmatpush1.bf16.msra.mxu0 %v7492
      %7640 = vmatprep.subr.bf16.mxu0 0
      %7641 = vmatpush1.bf16.msra.mxu0 %v7491
      %7642 = vmatprep.subr.bf16.mxu0 0
      %7643 = vmatpush2.bf16.msra.mxu0 %v7506
      %7644 = vmatprep.subr.bf16.mxu0 0
      %7645 = vmatpush2.bf16.msra.mxu0 %v7505
      %7646 = vmatprep.subr.bf16.mxu0 0
      %7647 = vmatpush2.bf16.msra.mxu0 %v7504
      %7648 = vmatprep.subr.bf16.mxu0 0
      %7649 = vmatpush2.bf16.msra.mxu0 %v7503
      %7650 = vmatprep.subr.bf16.mxu0 0
      %7651 = vmatpush2.bf16.msra.mxu0 %v7502
      %7652 = vmatprep.subr.bf16.mxu0 0
      %7653 = vmatpush2.bf16.msra.mxu0 %v7501
      %7654 = vmatprep.subr.bf16.mxu0 0
      %7655 = vmatpush2.bf16.msra.mxu0 %v7500
      %7656 = vmatprep.subr.bf16.mxu0 0
      %7657 = vmatpush2.bf16.msra.mxu0 %v7499
      %7658 = vmatprep.mubr.bf16.mxu0 %v6436
      %7659 = vmatmul.mubr.bf16.gmra.mxu0 %v6421
      %v7660 = vpop.f32.mrf.mxu0
      %v7661 = vadd.f32 %v6405, %v7660
      %v7662 = vpop.f32.mrf.mxu0
      %v7663 = vpop.f32.mrf.mxu0
      %v7664 = vadd.f32 %v6405, %v7663
      %v7665 = vpop.f32.mrf.mxu0
      %7666 = vmatprep.mubr.bf16.mxu0 %v6499
      %7667 = vmatmul.mubr.bf16.gmra.mxu0 %v6491
      %v7668 = vpop.f32.mrf.mxu0
      %v7669 = vadd.f32 %v6405, %v7668
      %v7670 = vpop.f32.mrf.mxu0
      %v7671 = vpop.f32.mrf.mxu0
      %v7672 = vadd.f32 %v6405, %v7671
      %v7673 = vpop.f32.mrf.mxu0
      %7674 = vmatprep.mubr.bf16.mxu0 %v6540
      %7675 = vmatmul.mubr.bf16.gmra.mxu0 %v6532
      %v7676 = vpop.f32.mrf.mxu0
      %v7677 = vadd.f32 %v6405, %v7676
      %v7678 = vpop.f32.mrf.mxu0
      %v7679 = vpop.f32.mrf.mxu0
      %v7680 = vadd.f32 %v6405, %v7679
      %v7681 = vpop.f32.mrf.mxu0
      %7682 = vmatprep.mubr.bf16.mxu0 %v6581
      %7683 = vmatmul.mubr.bf16.gmra.mxu0 %v6573
      %v7684 = vpop.f32.mrf.mxu0
      %v7685 = vadd.f32 %v6405, %v7684
      %v7686 = vpop.f32.mrf.mxu0
      %v7687 = vpop.f32.mrf.mxu0
      %v7688 = vadd.f32 %v6405, %v7687
      %v7689 = vpop.f32.mrf.mxu0
      %7690 = vmatprep.mubr.bf16.mxu0 %v6622
      %7691 = vmatmul.mubr.bf16.gmra.mxu0 %v6614
      %v7692 = vpop.f32.mrf.mxu0
      %v7693 = vadd.f32 %v6405, %v7692
      %v7694 = vpop.f32.mrf.mxu0
      %v7695 = vpop.f32.mrf.mxu0
      %v7696 = vadd.f32 %v6405, %v7695
      %v7697 = vpop.f32.mrf.mxu0
      %7698 = vmatprep.mubr.bf16.mxu0 %v6663
      %7699 = vmatmul.mubr.bf16.gmra.mxu0 %v6655
      %v7700 = vpop.f32.mrf.mxu0
      %v7701 = vadd.f32 %v6405, %v7700
      %v7702 = vpop.f32.mrf.mxu0
      %v7703 = vpop.f32.mrf.mxu0
      %v7704 = vadd.f32 %v6405, %v7703
      %v7705 = vpop.f32.mrf.mxu0
      %7706 = vmatprep.mubr.bf16.mxu0 %v6704
      %7707 = vmatmul.mubr.bf16.gmra.mxu0 %v6696
      %v7708 = vpop.f32.mrf.mxu0
      %v7709 = vadd.f32 %v6405, %v7708
      %v7710 = vpop.f32.mrf.mxu0
      %v7711 = vpop.f32.mrf.mxu0
      %v7712 = vadd.f32 %v6405, %v7711
      %v7713 = vpop.f32.mrf.mxu0
      %7714 = vmatprep.mubr.bf16.mxu0 %v6745
      %7715 = vmatmul.mubr.bf16.gmra.mxu0 %v6737
      %v7716 = vpop.f32.mrf.mxu0
      %v7717 = vadd.f32 %v6405, %v7716
      %v7718 = vpop.f32.mrf.mxu0
      %v7719 = vpop.f32.mrf.mxu0
      %v7720 = vadd.f32 %v6405, %v7719
      %v7721 = vpop.f32.mrf.mxu0
      %7722 = vmatprep.mubr.bf16.mxu0 %v6786
      %7723 = vmatmul.mubr.bf16.gmra.mxu0 %v6778
      %v7724 = vpop.f32.mrf.mxu0
      %v7725 = vadd.f32 %v6405, %v7724
      %v7726 = vpop.f32.mrf.mxu0
      %v7727 = vpop.f32.mrf.mxu0
      %v7728 = vadd.f32 %v6405, %v7727
      %v7729 = vpop.f32.mrf.mxu0
      %7730 = vmatprep.mubr.bf16.mxu0 %v6827
      %7731 = vmatmul.mubr.bf16.gmra.mxu0 %v6819
      %v7732 = vpop.f32.mrf.mxu0
      %v7733 = vadd.f32 %v6405, %v7732
      %v7734 = vpop.f32.mrf.mxu0
      %v7735 = vpop.f32.mrf.mxu0
      %v7736 = vadd.f32 %v6405, %v7735
      %v7737 = vpop.f32.mrf.mxu0
      %7738 = vmatprep.mubr.bf16.mxu0 %v6868
      %7739 = vmatmul.mubr.bf16.gmra.mxu0 %v6860
      %v7740 = vpop.f32.mrf.mxu0
      %v7741 = vadd.f32 %v6405, %v7740
      %v7742 = vpop.f32.mrf.mxu0
      %v7743 = vpop.f32.mrf.mxu0
      %v7744 = vadd.f32 %v6405, %v7743
      %v7745 = vpop.f32.mrf.mxu0
      %7746 = vmatprep.mubr.bf16.mxu0 %v6909
      %7747 = vmatmul.mubr.bf16.gmra.mxu0 %v6901
      %v7748 = vpop.f32.mrf.mxu0
      %v7749 = vadd.f32 %v6405, %v7748
      %v7750 = vpop.f32.mrf.mxu0
      %v7751 = vpop.f32.mrf.mxu0
      %v7752 = vadd.f32 %v6405, %v7751
      %v7753 = vpop.f32.mrf.mxu0
      %7754 = vmatprep.mubr.bf16.mxu0 %v6950
      %7755 = vmatmul.mubr.bf16.gmra.mxu0 %v6942
      %v7756 = vpop.f32.mrf.mxu0
      %v7757 = vadd.f32 %v6405, %v7756
      %v7758 = vpop.f32.mrf.mxu0
      %v7759 = vpop.f32.mrf.mxu0
      %v7760 = vadd.f32 %v6405, %v7759
      %v7761 = vpop.f32.mrf.mxu0
      %7762 = vmatprep.mubr.bf16.mxu0 %v6991
      %7763 = vmatmul.mubr.bf16.gmra.mxu0 %v6983
      %v7764 = vpop.f32.mrf.mxu0
      %v7765 = vadd.f32 %v6405, %v7764
      %v7766 = vpop.f32.mrf.mxu0
      %v7767 = vpop.f32.mrf.mxu0
      %v7768 = vadd.f32 %v6405, %v7767
      %v7769 = vpop.f32.mrf.mxu0
      %7770 = vmatprep.mubr.bf16.mxu0 %v7032
      %7771 = vmatmul.mubr.bf16.gmra.mxu0 %v7024
      %v7772 = vpop.f32.mrf.mxu0
      %v7773 = vadd.f32 %v6405, %v7772
      %v7774 = vpop.f32.mrf.mxu0
      %v7775 = vpop.f32.mrf.mxu0
      %v7776 = vadd.f32 %v6405, %v7775
      %v7777 = vpop.f32.mrf.mxu0
      %7778 = vmatprep.mubr.bf16.mxu0 %v7073
      %7779 = vmatmul.mubr.bf16.gmra.mxu0 %v7065
      %v7780 = vpop.f32.mrf.mxu0
      %v7781 = vadd.f32 %v6405, %v7780
      %v7782 = vpop.f32.mrf.mxu0
      %v7783 = vpop.f32.mrf.mxu0
      %v7784 = vadd.f32 %v6405, %v7783
      %v7785 = vpop.f32.mrf.mxu0
      %7786 = vmatprep.mubr.bf16.mxu0 %v7114
      %7787 = vmatmul.mubr.bf16.gmra.mxu0 %v7106
      %v7788 = vpop.f32.mrf.mxu0
      %v7789 = vadd.f32 %v6405, %v7788
      %v7790 = vpop.f32.mrf.mxu0
      %v7791 = vpop.f32.mrf.mxu0
      %v7792 = vadd.f32 %v6405, %v7791
      %v7793 = vpop.f32.mrf.mxu0
      %7794 = vmatprep.mubr.bf16.mxu0 %v7155
      %7795 = vmatmul.mubr.bf16.gmra.mxu0 %v7147
      %v7796 = vpop.f32.mrf.mxu0
      %v7797 = vadd.f32 %v6405, %v7796
      %v7798 = vpop.f32.mrf.mxu0
      %v7799 = vpop.f32.mrf.mxu0
      %v7800 = vadd.f32 %v6405, %v7799
      %v7801 = vpop.f32.mrf.mxu0
      %7802 = vmatprep.mubr.bf16.mxu0 %v7196
      %7803 = vmatmul.mubr.bf16.gmra.mxu0 %v7188
      %v7804 = vpop.f32.mrf.mxu0
      %v7805 = vadd.f32 %v6405, %v7804
      %v7806 = vpop.f32.mrf.mxu0
      %v7807 = vpop.f32.mrf.mxu0
      %v7808 = vadd.f32 %v6405, %v7807
      %v7809 = vpop.f32.mrf.mxu0
      %7810 = vmatprep.mubr.bf16.mxu0 %v7237
      %7811 = vmatmul.mubr.bf16.gmra.mxu0 %v7229
      %v7812 = vpop.f32.mrf.mxu0
      %v7813 = vadd.f32 %v6405, %v7812
      %v7814 = vpop.f32.mrf.mxu0
      %v7815 = vpop.f32.mrf.mxu0
      %v7816 = vadd.f32 %v6405, %v7815
      %v7817 = vpop.f32.mrf.mxu0
      %7818 = vmatprep.mubr.bf16.mxu0 %v7236
      %7819 = vmatmul.mubr.bf16.gmra.mxu0 %v7228
      %v7820 = vpop.f32.mrf.mxu0
      %v7821 = vadd.f32 %v6405, %v7820
      %v7822 = vpop.f32.mrf.mxu0
      %v7823 = vpop.f32.mrf.mxu0
      %v7824 = vpop.f32.mrf.mxu0
      %7825 = vdwg.mxu0
      %7826 = vmatprep.subr.bf16.mxu0 0
      %7827 = vmatpush1.bf16.msra.mxu0 %v7514
      %7828 = vmatprep.subr.bf16.mxu0 0
      %7829 = vmatpush1.bf16.msra.mxu0 %v7513
      %7830 = vmatprep.subr.bf16.mxu0 0
      %7831 = vmatpush1.bf16.msra.mxu0 %v7512
      %7832 = vmatprep.subr.bf16.mxu0 0
      %7833 = vmatpush1.bf16.msra.mxu0 %v7511
      %7834 = vmatprep.subr.bf16.mxu0 0
      %7835 = vmatpush1.bf16.msra.mxu0 %v7510
      %7836 = vmatprep.subr.bf16.mxu0 0
      %7837 = vmatpush1.bf16.msra.mxu0 %v7509
      %7838 = vmatprep.subr.bf16.mxu0 0
      %7839 = vmatpush1.bf16.msra.mxu0 %v7508
      %7840 = vmatprep.subr.bf16.mxu0 0
      %7841 = vmatpush1.bf16.msra.mxu0 %v7507
      %7842 = vmatprep.subr.bf16.mxu0 0
      %7843 = vmatpush2.bf16.msra.mxu0 %v7522
      %7844 = vmatprep.subr.bf16.mxu0 0
      %7845 = vmatpush2.bf16.msra.mxu0 %v7521
      %7846 = vmatprep.subr.bf16.mxu0 0
      %7847 = vmatpush2.bf16.msra.mxu0 %v7520
      %7848 = vmatprep.subr.bf16.mxu0 0
      %7849 = vmatpush2.bf16.msra.mxu0 %v7519
      %7850 = vmatprep.subr.bf16.mxu0 0
      %7851 = vmatpush2.bf16.msra.mxu0 %v7518
      %7852 = vmatprep.subr.bf16.mxu0 0
      %7853 = vmatpush2.bf16.msra.mxu0 %v7517
      %7854 = vmatprep.subr.bf16.mxu0 0
      %7855 = vmatpush2.bf16.msra.mxu0 %v7516
      %7856 = vmatprep.subr.bf16.mxu0 0
      %7857 = vmatpush2.bf16.msra.mxu0 %v7515
      %7858 = vmatprep.mubr.bf16.mxu0 %v6466
      %7859 = vmatmul.mubr.bf16.gmra.mxu0 %v6451
      %v7860 = vpop.f32.mrf.mxu0
      %v7861 = vadd.f32 %v7661, %v7860
      %v7862 = vpop.f32.mrf.mxu0
      %v7863 = vpop.f32.mrf.mxu0
      %v7864 = vadd.f32 %v7664, %v7863
      %v7865 = vpop.f32.mrf.mxu0
      %7866 = vmatprep.mubr.bf16.mxu0 %v6515
      %7867 = vmatmul.mubr.bf16.gmra.mxu0 %v6507
      %v7868 = vpop.f32.mrf.mxu0
      %v7869 = vadd.f32 %v7669, %v7868
      %v7870 = vpop.f32.mrf.mxu0
      %v7871 = vpop.f32.mrf.mxu0
      %v7872 = vadd.f32 %v7672, %v7871
      %v7873 = vpop.f32.mrf.mxu0
      %7874 = vmatprep.mubr.bf16.mxu0 %v6556
      %7875 = vmatmul.mubr.bf16.gmra.mxu0 %v6548
      %v7876 = vpop.f32.mrf.mxu0
      %v7877 = vadd.f32 %v7677, %v7876
      %v7878 = vpop.f32.mrf.mxu0
      %v7879 = vpop.f32.mrf.mxu0
      %v7880 = vadd.f32 %v7680, %v7879
      %v7881 = vpop.f32.mrf.mxu0
      %7882 = vmatprep.mubr.bf16.mxu0 %v6597
      %7883 = vmatmul.mubr.bf16.gmra.mxu0 %v6589
      %v7884 = vpop.f32.mrf.mxu0
      %v7885 = vadd.f32 %v7685, %v7884
      %v7886 = vpop.f32.mrf.mxu0
      %v7887 = vpop.f32.mrf.mxu0
      %v7888 = vadd.f32 %v7688, %v7887
      %v7889 = vpop.f32.mrf.mxu0
      %7890 = vmatprep.mubr.bf16.mxu0 %v6638
      %7891 = vmatmul.mubr.bf16.gmra.mxu0 %v6630
      %v7892 = vpop.f32.mrf.mxu0
      %v7893 = vadd.f32 %v7693, %v7892
      %v7894 = vpop.f32.mrf.mxu0
      %v7895 = vpop.f32.mrf.mxu0
      %v7896 = vadd.f32 %v7696, %v7895
      %v7897 = vpop.f32.mrf.mxu0
      %7898 = vmatprep.mubr.bf16.mxu0 %v6679
      %7899 = vmatmul.mubr.bf16.gmra.mxu0 %v6671
      %v7900 = vpop.f32.mrf.mxu0
      %v7901 = vadd.f32 %v7701, %v7900
      %v7902 = vpop.f32.mrf.mxu0
      %v7903 = vpop.f32.mrf.mxu0
      %v7904 = vadd.f32 %v7704, %v7903
      %v7905 = vpop.f32.mrf.mxu0
      %7906 = vmatprep.mubr.bf16.mxu0 %v6720
      %7907 = vmatmul.mubr.bf16.gmra.mxu0 %v6712
      %v7908 = vpop.f32.mrf.mxu0
      %v7909 = vadd.f32 %v7709, %v7908
      %v7910 = vpop.f32.mrf.mxu0
      %v7911 = vpop.f32.mrf.mxu0
      %v7912 = vadd.f32 %v7712, %v7911
      %v7913 = vpop.f32.mrf.mxu0
      %7914 = vmatprep.mubr.bf16.mxu0 %v6761
      %7915 = vmatmul.mubr.bf16.gmra.mxu0 %v6753
      %v7916 = vpop.f32.mrf.mxu0
      %v7917 = vadd.f32 %v7717, %v7916
      %v7918 = vpop.f32.mrf.mxu0
      %v7919 = vpop.f32.mrf.mxu0
      %v7920 = vadd.f32 %v7720, %v7919
      %v7921 = vpop.f32.mrf.mxu0
      %7922 = vmatprep.mubr.bf16.mxu0 %v6802
      %7923 = vmatmul.mubr.bf16.gmra.mxu0 %v6794
      %v7924 = vpop.f32.mrf.mxu0
      %v7925 = vadd.f32 %v7725, %v7924
      %v7926 = vpop.f32.mrf.mxu0
      %v7927 = vpop.f32.mrf.mxu0
      %v7928 = vadd.f32 %v7728, %v7927
      %v7929 = vpop.f32.mrf.mxu0
      %7930 = vmatprep.mubr.bf16.mxu0 %v6843
      %7931 = vmatmul.mubr.bf16.gmra.mxu0 %v6835
      %v7932 = vpop.f32.mrf.mxu0
      %v7933 = vadd.f32 %v7733, %v7932
      %v7934 = vpop.f32.mrf.mxu0
      %v7935 = vpop.f32.mrf.mxu0
      %v7936 = vadd.f32 %v7736, %v7935
      %v7937 = vpop.f32.mrf.mxu0
      %7938 = vmatprep.mubr.bf16.mxu0 %v6884
      %7939 = vmatmul.mubr.bf16.gmra.mxu0 %v6876
      %v7940 = vpop.f32.mrf.mxu0
      %v7941 = vadd.f32 %v7741, %v7940
      %v7942 = vpop.f32.mrf.mxu0
      %v7943 = vpop.f32.mrf.mxu0
      %v7944 = vadd.f32 %v7744, %v7943
      %v7945 = vpop.f32.mrf.mxu0
      %7946 = vmatprep.mubr.bf16.mxu0 %v6925
      %7947 = vmatmul.mubr.bf16.gmra.mxu0 %v6917
      %v7948 = vpop.f32.mrf.mxu0
      %v7949 = vadd.f32 %v7749, %v7948
      %v7950 = vpop.f32.mrf.mxu0
      %v7951 = vpop.f32.mrf.mxu0
      %v7952 = vadd.f32 %v7752, %v7951
      %v7953 = vpop.f32.mrf.mxu0
      %7954 = vmatprep.mubr.bf16.mxu0 %v6966
      %7955 = vmatmul.mubr.bf16.gmra.mxu0 %v6958
      %v7956 = vpop.f32.mrf.mxu0
      %v7957 = vadd.f32 %v7757, %v7956
      %v7958 = vpop.f32.mrf.mxu0
      %v7959 = vpop.f32.mrf.mxu0
      %v7960 = vadd.f32 %v7760, %v7959
      %v7961 = vpop.f32.mrf.mxu0
      %7962 = vmatprep.mubr.bf16.mxu0 %v7007
      %7963 = vmatmul.mubr.bf16.gmra.mxu0 %v6999
      %v7964 = vpop.f32.mrf.mxu0
      %v7965 = vadd.f32 %v7765, %v7964
      %v7966 = vpop.f32.mrf.mxu0
      %v7967 = vpop.f32.mrf.mxu0
      %v7968 = vadd.f32 %v7768, %v7967
      %v7969 = vpop.f32.mrf.mxu0
      %7970 = vmatprep.mubr.bf16.mxu0 %v7048
      %7971 = vmatmul.mubr.bf16.gmra.mxu0 %v7040
      %v7972 = vpop.f32.mrf.mxu0
      %v7973 = vadd.f32 %v7773, %v7972
      %v7974 = vpop.f32.mrf.mxu0
      %v7975 = vpop.f32.mrf.mxu0
      %v7976 = vadd.f32 %v7776, %v7975
      %v7977 = vpop.f32.mrf.mxu0
      %7978 = vmatprep.mubr.bf16.mxu0 %v7089
      %7979 = vmatmul.mubr.bf16.gmra.mxu0 %v7081
      %v7980 = vpop.f32.mrf.mxu0
      %v7981 = vadd.f32 %v7781, %v7980
      %v7982 = vpop.f32.mrf.mxu0
      %v7983 = vpop.f32.mrf.mxu0
      %v7984 = vadd.f32 %v7784, %v7983
      %v7985 = vpop.f32.mrf.mxu0
      %7986 = vmatprep.mubr.bf16.mxu0 %v7130
      %7987 = vmatmul.mubr.bf16.gmra.mxu0 %v7122
      %v7988 = vpop.f32.mrf.mxu0
      %v7989 = vadd.f32 %v7789, %v7988
      %v7990 = vpop.f32.mrf.mxu0
      %v7991 = vpop.f32.mrf.mxu0
      %v7992 = vadd.f32 %v7792, %v7991
      %v7993 = vpop.f32.mrf.mxu0
      %7994 = vmatprep.mubr.bf16.mxu0 %v7171
      %7995 = vmatmul.mubr.bf16.gmra.mxu0 %v7163
      %v7996 = vpop.f32.mrf.mxu0
      %v7997 = vadd.f32 %v7797, %v7996
      %v7998 = vpop.f32.mrf.mxu0
      %v7999 = vpop.f32.mrf.mxu0
      %v8000 = vadd.f32 %v7800, %v7999
      %v8001 = vpop.f32.mrf.mxu0
      %8002 = vmatprep.mubr.bf16.mxu0 %v7212
      %8003 = vmatmul.mubr.bf16.gmra.mxu0 %v7204
      %v8004 = vpop.f32.mrf.mxu0
      %v8005 = vadd.f32 %v7805, %v8004
      %v8006 = vpop.f32.mrf.mxu0
      %v8007 = vpop.f32.mrf.mxu0
      %v8008 = vadd.f32 %v7808, %v8007
      %v8009 = vpop.f32.mrf.mxu0
      %8010 = vmatprep.mubr.bf16.mxu0 %v7253
      %8011 = vmatmul.mubr.bf16.gmra.mxu0 %v7245
      %v8012 = vpop.f32.mrf.mxu0
      %v8013 = vadd.f32 %v7813, %v8012
      %v8014 = vpop.f32.mrf.mxu0
      %v8015 = vpop.f32.mrf.mxu0
      %v8016 = vadd.f32 %v7816, %v8015
      %v8017 = vpop.f32.mrf.mxu0
      %8018 = vmatprep.mubr.bf16.mxu0 %v7252
      %8019 = vmatmul.mubr.bf16.gmra.mxu0 %v7244
      %v8020 = vpop.f32.mrf.mxu0
      %v8021 = vadd.f32 %v7821, %v8020
      %v8022 = vpop.f32.mrf.mxu0
      %v8023 = vpop.f32.mrf.mxu0
      %v8024 = vpop.f32.mrf.mxu0
      %8025 = vdwg.mxu0
      %8026 = vmatprep.subr.bf16.mxu0 0
      %8027 = vmatpush1.bf16.msra.mxu0 0
      %8028 = vmatprep.subr.bf16.mxu0 0
      %8029 = vmatpush1.bf16.msra.mxu0 0
      %8030 = vmatprep.subr.bf16.mxu0 0
      %8031 = vmatpush1.bf16.msra.mxu0 0
      %8032 = vmatprep.subr.bf16.mxu0 0
      %8033 = vmatpush1.bf16.msra.mxu0 0
      %8034 = vmatprep.subr.bf16.mxu0 0
      %8035 = vmatpush1.bf16.msra.mxu0 %v7526
      %8036 = vmatprep.subr.bf16.mxu0 0
      %8037 = vmatpush1.bf16.msra.mxu0 %v7525
      %8038 = vmatprep.subr.bf16.mxu0 0
      %8039 = vmatpush1.bf16.msra.mxu0 %v7524
      %8040 = vmatprep.subr.bf16.mxu0 0
      %8041 = vmatpush1.bf16.msra.mxu0 %v7523
      %8042 = vmatprep.subr.bf16.mxu0 0
      %8043 = vmatpush2.bf16.msra.mxu0 0
      %8044 = vmatprep.subr.bf16.mxu0 0
      %8045 = vmatpush2.bf16.msra.mxu0 0
      %8046 = vmatprep.subr.bf16.mxu0 0
      %8047 = vmatpush2.bf16.msra.mxu0 0
      %8048 = vmatprep.subr.bf16.mxu0 0
      %8049 = vmatpush2.bf16.msra.mxu0 0
      %8050 = vmatprep.subr.bf16.mxu0 0
      %8051 = vmatpush2.bf16.msra.mxu0 0
      %8052 = vmatprep.subr.bf16.mxu0 0
      %8053 = vmatpush2.bf16.msra.mxu0 0
      %8054 = vmatprep.subr.bf16.mxu0 0
      %8055 = vmatpush2.bf16.msra.mxu0 0
      %8056 = vmatprep.subr.bf16.mxu0 0
      %8057 = vmatpush2.bf16.msra.mxu0 0
      %8058 = vmatprep.mubr.bf16.mxu0 0
      %8059 = vmatmul.mubr.bf16.gmra.mxu0 %v7564
      %v8060 = vpop.f32.mrf.mxu0
      %v8061 = vadd.f32 %v7861, %v8060
      %v8062 = vpop.f32.mrf.mxu0
      %v8063 = vpop.f32.mrf.mxu0
      %v8064 = vadd.f32 %v7864, %v8063
      %v8065 = vpop.f32.mrf.mxu0
      %8066 = vmatprep.mubr.bf16.mxu0 0
      %8067 = vmatmul.mubr.bf16.gmra.mxu0 %v7567
      %v8068 = vpop.f32.mrf.mxu0
      %v8069 = vadd.f32 %v7869, %v8068
      %v8070 = vpop.f32.mrf.mxu0
      %v8071 = vpop.f32.mrf.mxu0
      %v8072 = vadd.f32 %v7872, %v8071
      %v8073 = vpop.f32.mrf.mxu0
      %8074 = vmatprep.mubr.bf16.mxu0 0
      %8075 = vmatmul.mubr.bf16.gmra.mxu0 %v7570
      %v8076 = vpop.f32.mrf.mxu0
      %v8077 = vadd.f32 %v7877, %v8076
      %v8078 = vpop.f32.mrf.mxu0
      %v8079 = vpop.f32.mrf.mxu0
      %v8080 = vadd.f32 %v7880, %v8079
      %v8081 = vpop.f32.mrf.mxu0
      %8082 = vmatprep.mubr.bf16.mxu0 0
      %8083 = vmatmul.mubr.bf16.gmra.mxu0 %v7573
      %v8084 = vpop.f32.mrf.mxu0
      %v8085 = vadd.f32 %v7885, %v8084
      %v8086 = vpop.f32.mrf.mxu0
      %v8087 = vpop.f32.mrf.mxu0
      %v8088 = vadd.f32 %v7888, %v8087
      %v8089 = vpop.f32.mrf.mxu0
      %8090 = vmatprep.mubr.bf16.mxu0 0
      %8091 = vmatmul.mubr.bf16.gmra.mxu0 %v7576
      %v8092 = vpop.f32.mrf.mxu0
      %v8093 = vadd.f32 %v7893, %v8092
      %v8094 = vpop.f32.mrf.mxu0
      %v8095 = vpop.f32.mrf.mxu0
      %v8096 = vadd.f32 %v7896, %v8095
      %v8097 = vpop.f32.mrf.mxu0
      %8098 = vmatprep.mubr.bf16.mxu0 0
      %8099 = vmatmul.mubr.bf16.gmra.mxu0 %v7579
      %v8100 = vpop.f32.mrf.mxu0
      %v8101 = vadd.f32 %v7901, %v8100
      %v8102 = vpop.f32.mrf.mxu0
      %v8103 = vpop.f32.mrf.mxu0
      %v8104 = vadd.f32 %v7904, %v8103
      %v8105 = vpop.f32.mrf.mxu0
      %8106 = vmatprep.mubr.bf16.mxu0 0
      %8107 = vmatmul.mubr.bf16.gmra.mxu0 %v7582
      %v8108 = vpop.f32.mrf.mxu0
      %v8109 = vadd.f32 %v7909, %v8108
      %v8110 = vpop.f32.mrf.mxu0
      %v8111 = vpop.f32.mrf.mxu0
      %v8112 = vadd.f32 %v7912, %v8111
      %v8113 = vpop.f32.mrf.mxu0
      %8114 = vmatprep.mubr.bf16.mxu0 0
      %8115 = vmatmul.mubr.bf16.gmra.mxu0 %v7585
      %v8116 = vpop.f32.mrf.mxu0
      %v8117 = vadd.f32 %v7917, %v8116
      %v8118 = vpop.f32.mrf.mxu0
      %v8119 = vpop.f32.mrf.mxu0
      %v8120 = vadd.f32 %v7920, %v8119
      %v8121 = vpop.f32.mrf.mxu0
      %8122 = vmatprep.mubr.bf16.mxu0 0
      %8123 = vmatmul.mubr.bf16.gmra.mxu0 %v7588
      %v8124 = vpop.f32.mrf.mxu0
      %v8125 = vadd.f32 %v7925, %v8124
      %v8126 = vpop.f32.mrf.mxu0
      %v8127 = vpop.f32.mrf.mxu0
      %v8128 = vadd.f32 %v7928, %v8127
      %v8129 = vpop.f32.mrf.mxu0
      %8130 = vmatprep.mubr.bf16.mxu0 0
      %8131 = vmatmul.mubr.bf16.gmra.mxu0 %v7591
      %v8132 = vpop.f32.mrf.mxu0
      %v8133 = vadd.f32 %v7933, %v8132
      %v8134 = vpop.f32.mrf.mxu0
      %v8135 = vpop.f32.mrf.mxu0
      %v8136 = vadd.f32 %v7936, %v8135
      %v8137 = vpop.f32.mrf.mxu0
      %8138 = vmatprep.mubr.bf16.mxu0 0
      %8139 = vmatmul.mubr.bf16.gmra.mxu0 %v7594
      %v8140 = vpop.f32.mrf.mxu0
      %v8141 = vadd.f32 %v7941, %v8140
      %v8142 = vpop.f32.mrf.mxu0
      %v8143 = vpop.f32.mrf.mxu0
      %v8144 = vadd.f32 %v7944, %v8143
      %v8145 = vpop.f32.mrf.mxu0
      %8146 = vmatprep.mubr.bf16.mxu0 0
      %8147 = vmatmul.mubr.bf16.gmra.mxu0 %v7597
      %v8148 = vpop.f32.mrf.mxu0
      %v8149 = vadd.f32 %v7949, %v8148
      %v8150 = vpop.f32.mrf.mxu0
      %v8151 = vpop.f32.mrf.mxu0
      %v8152 = vadd.f32 %v7952, %v8151
      %v8153 = vpop.f32.mrf.mxu0
      %8154 = vmatprep.mubr.bf16.mxu0 0
      %8155 = vmatmul.mubr.bf16.gmra.mxu0 %v7600
      %v8156 = vpop.f32.mrf.mxu0
      %v8157 = vadd.f32 %v7957, %v8156
      %v8158 = vpop.f32.mrf.mxu0
      %v8159 = vpop.f32.mrf.mxu0
      %v8160 = vadd.f32 %v7960, %v8159
      %v8161 = vpop.f32.mrf.mxu0
      %8162 = vmatprep.mubr.bf16.mxu0 0
      %8163 = vmatmul.mubr.bf16.gmra.mxu0 %v7603
      %v8164 = vpop.f32.mrf.mxu0
      %v8165 = vadd.f32 %v7965, %v8164
      %v8166 = vpop.f32.mrf.mxu0
      %v8167 = vpop.f32.mrf.mxu0
      %v8168 = vadd.f32 %v7968, %v8167
      %v8169 = vpop.f32.mrf.mxu0
      %8170 = vmatprep.mubr.bf16.mxu0 0
      %8171 = vmatmul.mubr.bf16.gmra.mxu0 %v7606
      %v8172 = vpop.f32.mrf.mxu0
      %v8173 = vadd.f32 %v7973, %v8172
      %v8174 = vpop.f32.mrf.mxu0
      %v8175 = vpop.f32.mrf.mxu0
      %v8176 = vadd.f32 %v7976, %v8175
      %v8177 = vpop.f32.mrf.mxu0
      %8178 = vmatprep.mubr.bf16.mxu0 0
      %8179 = vmatmul.mubr.bf16.gmra.mxu0 %v7609
      %v8180 = vpop.f32.mrf.mxu0
      %v8181 = vadd.f32 %v7981, %v8180
      %v8182 = vpop.f32.mrf.mxu0
      %v8183 = vpop.f32.mrf.mxu0
      %v8184 = vadd.f32 %v7984, %v8183
      %v8185 = vpop.f32.mrf.mxu0
      %8186 = vmatprep.mubr.bf16.mxu0 0
      %8187 = vmatmul.mubr.bf16.gmra.mxu0 %v7612
      %v8188 = vpop.f32.mrf.mxu0
      %v8189 = vadd.f32 %v7989, %v8188
      %v8190 = vpop.f32.mrf.mxu0
      %v8191 = vpop.f32.mrf.mxu0
      %v8192 = vadd.f32 %v7992, %v8191
      %v8193 = vpop.f32.mrf.mxu0
      %8194 = vmatprep.mubr.bf16.mxu0 0
      %8195 = vmatmul.mubr.bf16.gmra.mxu0 %v7615
      %v8196 = vpop.f32.mrf.mxu0
      %v8197 = vadd.f32 %v7997, %v8196
      %v8198 = vpop.f32.mrf.mxu0
      %v8199 = vpop.f32.mrf.mxu0
      %v8200 = vadd.f32 %v8000, %v8199
      %v8201 = vpop.f32.mrf.mxu0
      %8202 = vmatprep.mubr.bf16.mxu0 0
      %8203 = vmatmul.mubr.bf16.gmra.mxu0 %v7618
      %v8204 = vpop.f32.mrf.mxu0
      %v8205 = vadd.f32 %v8005, %v8204
      %v8206 = vpop.f32.mrf.mxu0
      %v8207 = vpop.f32.mrf.mxu0
      %v8208 = vadd.f32 %v8008, %v8207
      %v8209 = vpop.f32.mrf.mxu0
      %8210 = vmatprep.mubr.bf16.mxu0 0
      %8211 = vmatmul.mubr.bf16.gmra.mxu0 %v7621
      %v8212 = vpop.f32.mrf.mxu0
      %v8213 = vadd.f32 %v8013, %v8212
      %v8214 = vpop.f32.mrf.mxu0
      %v8215 = vpop.f32.mrf.mxu0
      %v8216 = vadd.f32 %v8016, %v8215
      %v8217 = vpop.f32.mrf.mxu0
      %8218 = vmatprep.mubr.bf16.mxu0 0
      %8219 = vmatmul.mubr.bf16.gmra.mxu0 %v7624
      %v8220 = vpop.f32.mrf.mxu0
      %v8221 = vadd.f32 %v8021, %v8220
      %v8222 = vpop.f32.mrf.mxu0
      %v8223 = vpop.f32.mrf.mxu0
      %v8224 = vpop.f32.mrf.mxu0
      %8225 = vdwg.mxu0
      %v8226 = vmax.f32 %v8061, 0.0
      %v8227 = vmax.f32 %v8064, 0.0
      %v8228 = vmax.f32 %v8069, 0.0
      %v8229 = vmax.f32 %v8072, 0.0
      %v8230 = vmax.f32 %v8077, 0.0
      %v8231 = vmax.f32 %v8080, 0.0
      %v8232 = vmax.f32 %v8085, 0.0
      %v8233 = vmax.f32 %v8088, 0.0
      %v8234 = vmax.f32 %v8093, 0.0
      %v8235 = vmax.f32 %v8096, 0.0
      %v8236 = vmax.f32 %v8101, 0.0
      %v8237 = vmax.f32 %v8104, 0.0
      %v8238 = vmax.f32 %v8109, 0.0
      %v8239 = vmax.f32 %v8112, 0.0
      %v8240 = vmax.f32 %v8117, 0.0
      %v8241 = vmax.f32 %v8120, 0.0
      %v8242 = vmax.f32 %v8125, 0.0
      %v8243 = vmax.f32 %v8128, 0.0
      %v8244 = vmax.f32 %v8133, 0.0
      %v8245 = vmax.f32 %v8136, 0.0
      %v8246 = vmax.f32 %v8141, 0.0
      %v8247 = vmax.f32 %v8144, 0.0
      %v8248 = vmax.f32 %v8149, 0.0
      %v8249 = vmax.f32 %v8152, 0.0
      %v8250 = vmax.f32 %v8157, 0.0
      %v8251 = vmax.f32 %v8160, 0.0
      %v8252 = vmax.f32 %v8165, 0.0
      %v8253 = vmax.f32 %v8168, 0.0
      %v8254 = vmax.f32 %v8173, 0.0
      %v8255 = vmax.f32 %v8176, 0.0
      %v8256 = vmax.f32 %v8181, 0.0
      %v8257 = vmax.f32 %v8184, 0.0
      %v8258 = vmax.f32 %v8189, 0.0
      %v8259 = vmax.f32 %v8192, 0.0
      %v8260 = vmax.f32 %v8197, 0.0
      %v8261 = vmax.f32 %v8200, 0.0
      %v8262 = vmax.f32 %v8205, 0.0
      %v8263 = vmax.f32 %v8208, 0.0
      %v8264 = vmax.f32 %v8213, 0.0
      %v8265 = vmax.f32 %v8216, 0.0
      %v8266 = vmax.f32 %v8221, 0.0
      %v8267 = vsel %vm4844, %v8226, 0.0
      %v8268 = vsel %vm4845, %v8227, 0.0
      %v8269 = vsel %vm4846, %v8228, 0.0
      %v8270 = vsel %vm4847, %v8229, 0.0
      %v8271 = vsel %vm4848, %v8230, 0.0
      %v8272 = vsel %vm4849, %v8231, 0.0
      %v8273 = vsel %vm4850, %v8232, 0.0
      %v8274 = vsel %vm4851, %v8233, 0.0
      %v8275 = vsel %vm4852, %v8234, 0.0
      %v8276 = vsel %vm4853, %v8235, 0.0
      %v8277 = vsel %vm4854, %v8236, 0.0
      %v8278 = vsel %vm4855, %v8237, 0.0
      %v8279 = vsel %vm4856, %v8238, 0.0
      %v8280 = vsel %vm4857, %v8239, 0.0
      %v8281 = vsel %vm4858, %v8240, 0.0
      %v8282 = vsel %vm4859, %v8241, 0.0
      %v8283 = vsel %vm4860, %v8242, 0.0
      %v8284 = vsel %vm4861, %v8243, 0.0
      %v8285 = vsel %vm4862, %v8244, 0.0
      %v8286 = vsel %vm4863, %v8245, 0.0
      %v8287 = vsel %vm4864, %v8246, 0.0
      %v8288 = vsel %vm4865, %v8247, 0.0
      %v8289 = vsel %vm4866, %v8248, 0.0
      %v8290 = vsel %vm4867, %v8249, 0.0
      %v8291 = vsel %vm4868, %v8250, 0.0
      %v8292 = vsel %vm4869, %v8251, 0.0
      %v8293 = vsel %vm4870, %v8252, 0.0
      %v8294 = vsel %vm4871, %v8253, 0.0
      %v8295 = vsel %vm4872, %v8254, 0.0
      %v8296 = vsel %vm4873, %v8255, 0.0
      %v8297 = vsel %vm4874, %v8256, 0.0
      %v8298 = vsel %vm4875, %v8257, 0.0
      %v8299 = vsel %vm4876, %v8258, 0.0
      %v8300 = vsel %vm4877, %v8259, 0.0
      %v8301 = vsel %vm4878, %v8260, 0.0
      %v8302 = vsel %vm4879, %v8261, 0.0
      %v8303 = vsel %vm4880, %v8262, 0.0
      %v8304 = vsel %vm4881, %v8263, 0.0
      %v8305 = vsel %vm4882, %v8264, 0.0
      %v8306 = vsel %vm4883, %v8265, 0.0
      %v8307 = vsel %vm4884, %v8266, 0.0
      %v8308 = vpack.c.bf16 %v8268, %v8267
      %v8309 = vpack.c.bf16 %v8270, %v8269
      %v8310 = vpack.c.bf16 %v8272, %v8271
      %v8311 = vpack.c.bf16 %v8274, %v8273
      %v8312 = vpack.c.bf16 %v8276, %v8275
      %v8313 = vpack.c.bf16 %v8278, %v8277
      %v8314 = vpack.c.bf16 %v8280, %v8279
      %v8315 = vpack.c.bf16 %v8282, %v8281
      %v8316 = vpack.c.bf16 %v8284, %v8283
      %v8317 = vpack.c.bf16 %v8286, %v8285
      %v8318 = vpack.c.bf16 %v8288, %v8287
      %v8319 = vpack.c.bf16 %v8290, %v8289
      %v8320 = vpack.c.bf16 %v8292, %v8291
      %v8321 = vpack.c.bf16 %v8294, %v8293
      %v8322 = vpack.c.bf16 %v8296, %v8295
      %v8323 = vpack.c.bf16 %v8298, %v8297
      %v8324 = vpack.c.bf16 %v8300, %v8299
      %v8325 = vpack.c.bf16 %v8302, %v8301
      %v8326 = vpack.c.bf16 %v8304, %v8303
      %v8327 = vpack.c.bf16 %v8306, %v8305
      %v8328 = vpack.c.bf16 %v8307, %v8307
      %v8350 = vunpack.c.l.b16 %v8308
      %v8351 = vunpack.c.h.b16 %v8308
      %v8352 = vunpack.c.l.b16 %v8309
      %v8353 = vunpack.c.h.b16 %v8309
      %v8354 = vunpack.c.l.b16 %v8310
      %v8355 = vunpack.c.h.b16 %v8310
      %v8356 = vunpack.c.l.b16 %v8311
      %v8357 = vunpack.c.h.b16 %v8311
      %v8358 = vunpack.c.l.b16 %v8312
      %v8359 = vunpack.c.h.b16 %v8312
      %v8360 = vunpack.c.l.b16 %v8313
      %v8361 = vunpack.c.h.b16 %v8313
      %v8362 = vunpack.c.l.b16 %v8314
      %v8363 = vunpack.c.h.b16 %v8314
      %v8364 = vunpack.c.l.b16 %v8315
      %v8365 = vunpack.c.h.b16 %v8315
      %v8366 = vunpack.c.l.b16 %v8316
      %v8367 = vunpack.c.h.b16 %v8316
      %v8368 = vunpack.c.l.b16 %v8317
      %v8369 = vunpack.c.h.b16 %v8317
      %v8370 = vunpack.c.l.b16 %v8318
      %v8371 = vunpack.c.h.b16 %v8318
      %v8372 = vunpack.c.l.b16 %v8319
      %v8373 = vunpack.c.h.b16 %v8319
      %v8374 = vunpack.c.l.b16 %v8320
      %v8375 = vunpack.c.h.b16 %v8320
      %v8376 = vunpack.c.l.b16 %v8321
      %v8377 = vunpack.c.h.b16 %v8321
      %v8378 = vunpack.c.l.b16 %v8322
      %v8379 = vunpack.c.h.b16 %v8322
      %v8380 = vunpack.c.l.b16 %v8323
      %v8381 = vunpack.c.h.b16 %v8323
      %v8382 = vunpack.c.l.b16 %v8324
      %v8383 = vunpack.c.h.b16 %v8324
      %v8384 = vunpack.c.l.b16 %v8325
      %v8385 = vunpack.c.h.b16 %v8325
      %v8386 = vunpack.c.l.b16 %v8326
      %v8387 = vunpack.c.h.b16 %v8326
      %v8388 = vunpack.c.l.b16 %v8327
      %v8389 = vunpack.c.h.b16 %v8327
      %v8390 = vunpack.c.l.b16 %v8328
      %v8391 = vpack.c.b16 %v8350, %v8350
      %v8392 = vpack.c.b16 %v8351, %v8351
      %v8393 = vpack.c.b16 %v8352, %v8352
      %v8394 = vpack.c.b16 %v8353, %v8353
      %v8395 = vpack.c.b16 %v8354, %v8354
      %v8396 = vpack.c.b16 %v8355, %v8355
      %v8397 = vpack.c.b16 %v8356, %v8356
      %v8398 = vpack.c.b16 %v8357, %v8357
      %v8399 = vpack.c.b16 %v8358, %v8358
      %v8400 = vpack.c.b16 %v8359, %v8359
      %v8401 = vpack.c.b16 %v8360, %v8360
      %v8402 = vpack.c.b16 %v8361, %v8361
      %v8403 = vpack.c.b16 %v8362, %v8362
      %v8404 = vpack.c.b16 %v8363, %v8363
      %v8405 = vpack.c.b16 %v8364, %v8364
      %v8406 = vpack.c.b16 %v8365, %v8365
      %v8407 = vpack.c.b16 %v8366, %v8366
      %v8408 = vpack.c.b16 %v8367, %v8367
      %v8409 = vpack.c.b16 %v8368, %v8368
      %v8410 = vpack.c.b16 %v8369, %v8369
      %v8411 = vpack.c.b16 %v8370, %v8370
      %v8412 = vpack.c.b16 %v8371, %v8371
      %v8413 = vpack.c.b16 %v8372, %v8372
      %v8414 = vpack.c.b16 %v8373, %v8373
      %v8415 = vpack.c.b16 %v8374, %v8374
      %v8416 = vpack.c.b16 %v8375, %v8375
      %v8417 = vpack.c.b16 %v8376, %v8376
      %v8418 = vpack.c.b16 %v8377, %v8377
      %v8419 = vpack.c.b16 %v8378, %v8378
      %v8420 = vpack.c.b16 %v8379, %v8379
      %v8421 = vpack.c.b16 %v8380, %v8380
      %v8422 = vpack.c.b16 %v8381, %v8381
      %v8423 = vpack.c.b16 %v8382, %v8382
      %v8424 = vpack.c.b16 %v8383, %v8383
      %v8425 = vpack.c.b16 %v8384, %v8384
      %v8426 = vpack.c.b16 %v8385, %v8385
      %v8427 = vpack.c.b16 %v8386, %v8386
      %v8428 = vpack.c.b16 %v8387, %v8387
      %v8429 = vpack.c.b16 %v8388, %v8388
      %v8430 = vpack.c.b16 %v8389, %v8389
      %v8431 = vpack.c.b16 %v8390, %v8390
      %8473 = vst.msk [vmem:[#allocation2 + $0xc] sm:$0xf] %vm5091, %v8391
      %8474 = vst.msk [vmem:[#allocation2 + $0x10] sm:$0xf] %vm5091, %v8392
      %8475 = vst.msk [vmem:[#allocation2 + $0x14] sm:$0xf] %vm5091, %v8393
      %8476 = vst.msk [vmem:[#allocation2 + $0x18] sm:$0xf] %vm5091, %v8394
      %8477 = vst.msk [vmem:[#allocation2 + $0x1c] sm:$0xf] %vm5091, %v8395
      %8478 = vst.msk [vmem:[#allocation2 + $0x20] sm:$0xf] %vm5091, %v8396
      %8479 = vst.msk [vmem:[#allocation2 + $0x24] sm:$0xf] %vm5091, %v8397
      %8480 = vst.msk [vmem:[#allocation2 + $0x28] sm:$0xf] %vm5091, %v8398
      %8481 = vst.msk [vmem:[#allocation2 + $0x2c] sm:$0xf] %vm5091, %v8399
      %8482 = vst.msk [vmem:[#allocation2 + $0x30] sm:$0xf] %vm5091, %v8400
      %8483 = vst.msk [vmem:[#allocation2 + $0x34] sm:$0xf] %vm5091, %v8401
      %8484 = vst.msk [vmem:[#allocation2 + $0x38] sm:$0xf] %vm5091, %v8402
      %8485 = vst.msk [vmem:[#allocation2 + $0x3c] sm:$0xf] %vm5091, %v8403
      %8486 = vst.msk [vmem:[#allocation2 + $0x40] sm:$0xf] %vm5091, %v8404
      %8487 = vst.msk [vmem:[#allocation2 + $0x44] sm:$0xf] %vm5091, %v8405
      %8488 = vst.msk [vmem:[#allocation2 + $0x48] sm:$0xf] %vm5091, %v8406
      %8489 = vst.msk [vmem:[#allocation2 + $0x4c] sm:$0xf] %vm5091, %v8407
      %8490 = vst.msk [vmem:[#allocation2 + $0x50] sm:$0xf] %vm5091, %v8408
      %8491 = vst.msk [vmem:[#allocation2 + $0x54] sm:$0xf] %vm5091, %v8409
      %8492 = vst.msk [vmem:[#allocation2 + $0x58] sm:$0xf] %vm5091, %v8410
      %8493 = vst.msk [vmem:[#allocation2 + $0x5c] sm:$0xf] %vm5091, %v8411
      %8494 = vst.msk [vmem:[#allocation2 + $0x60] sm:$0xf] %vm5091, %v8412
      %8495 = vst.msk [vmem:[#allocation2 + $0x64] sm:$0xf] %vm5091, %v8413
      %8496 = vst.msk [vmem:[#allocation2 + $0x68] sm:$0xf] %vm5091, %v8414
      %8497 = vst.msk [vmem:[#allocation2 + $0x6c] sm:$0xf] %vm5091, %v8415
      %8498 = vst.msk [vmem:[#allocation2 + $0x70] sm:$0xf] %vm5091, %v8416
      %8499 = vst.msk [vmem:[#allocation2 + $0x74] sm:$0xf] %vm5091, %v8417
      %8500 = vst.msk [vmem:[#allocation2 + $0x78] sm:$0xf] %vm5091, %v8418
      %8501 = vst.msk [vmem:[#allocation2 + $0x7c] sm:$0xf] %vm5091, %v8419
      %8502 = vst.msk [vmem:[#allocation2 + $0x80] sm:$0xf] %vm5091, %v8420
      %8503 = vst.msk [vmem:[#allocation2 + $0x84] sm:$0xf] %vm5091, %v8421
      %8504 = vst.msk [vmem:[#allocation2 + $0x88] sm:$0xf] %vm5091, %v8422
      %8505 = vst.msk [vmem:[#allocation2 + $0x8c] sm:$0xf] %vm5091, %v8423
      %8506 = vst.msk [vmem:[#allocation2 + $0x90] sm:$0xf] %vm5091, %v8424
      %8507 = vst.msk [vmem:[#allocation2 + $0x94] sm:$0xf] %vm5091, %v8425
      %8508 = vst.msk [vmem:[#allocation2 + $0x98] sm:$0xf] %vm5091, %v8426
      %8509 = vst.msk [vmem:[#allocation2 + $0x9c] sm:$0xf] %vm5091, %v8427
      %8510 = vst.msk [vmem:[#allocation2 + $0xa0] sm:$0xf] %vm5091, %v8428
      %8511 = vst.msk [vmem:[#allocation2 + $0xa4] sm:$0xf] %vm5091, %v8429
      %8512 = vst.msk [vmem:[#allocation2 + $0xa8] sm:$0xf] %vm5091, %v8430
      %8513 = vst.msk [vmem:[#allocation2 + $0xac] sm:$0xf] %vm5091, %v8431
      %v8514 = vld [vmem:[#allocation2] sm:$0xc]
      %v8515 = vld [vmem:[#allocation2 + $0x4] sm:$0xf]
      %v8516 = vld [vmem:[#allocation2 + $0x8] sm:$0xf]
      %v8517 = vld [vmem:[#allocation2 + $0xc] sm:$0xf]
      %v8518 = vld [vmem:[#allocation2 + $0x10] sm:$0xf]
      %v8519 = vld [vmem:[#allocation2 + $0x14] sm:$0xf]
      %v8520 = vld [vmem:[#allocation2 + $0x18] sm:$0xf]
      %v8521 = vld [vmem:[#allocation2 + $0x1c] sm:$0xf]
      %v8522 = vld [vmem:[#allocation2 + $0x20] sm:$0xf]
      %v8523 = vld [vmem:[#allocation2 + $0x24] sm:$0xf]
      %v8524 = vld [vmem:[#allocation2 + $0x28] sm:$0xf]
      %v8525 = vld [vmem:[#allocation2 + $0x2c] sm:$0xf]
      %v8526 = vld [vmem:[#allocation2 + $0x30] sm:$0xf]
      %v8527 = vld [vmem:[#allocation2 + $0x34] sm:$0xf]
      %v8528 = vld [vmem:[#allocation2 + $0x38] sm:$0xf]
      %v8529 = vld [vmem:[#allocation2 + $0x3c] sm:$0xf]
      %v8530 = vld [vmem:[#allocation2 + $0x40] sm:$0xf]
      %v8531 = vld [vmem:[#allocation2 + $0x44] sm:$0xf]
      %v8532 = vld [vmem:[#allocation2 + $0x48] sm:$0xf]
      %v8533 = vld [vmem:[#allocation2 + $0x4c] sm:$0xf]
      %v8534 = vld [vmem:[#allocation2 + $0x50] sm:$0xf]
      %v8535 = vld [vmem:[#allocation2 + $0x54] sm:$0xf]
      %v8536 = vld [vmem:[#allocation2 + $0x58] sm:$0xf]
      %v8537 = vld [vmem:[#allocation2 + $0x5c] sm:$0xf]
      %v8538 = vld [vmem:[#allocation2 + $0x60] sm:$0xf]
      %v8539 = vld [vmem:[#allocation2 + $0x64] sm:$0xf]
      %v8540 = vld [vmem:[#allocation2 + $0x68] sm:$0xf]
      %v8541 = vld [vmem:[#allocation2 + $0x6c] sm:$0xf]
      %v8542 = vld [vmem:[#allocation2 + $0x70] sm:$0xf]
      %v8543 = vld [vmem:[#allocation2 + $0x74] sm:$0xf]
      %v8544 = vld [vmem:[#allocation2 + $0x78] sm:$0xf]
      %v8545 = vld [vmem:[#allocation2 + $0x7c] sm:$0xf]
      %v8546 = vld [vmem:[#allocation2 + $0x80] sm:$0xf]
      %v8547 = vld [vmem:[#allocation2 + $0x84] sm:$0xf]
      %v8548 = vld [vmem:[#allocation2 + $0x88] sm:$0xf]
      %v8549 = vld [vmem:[#allocation2 + $0x8c] sm:$0xf]
      %v8550 = vld [vmem:[#allocation2 + $0x90] sm:$0xf]
      %v8551 = vld [vmem:[#allocation2 + $0x94] sm:$0xf]
      %v8552 = vld [vmem:[#allocation2 + $0x98] sm:$0xf]
      %v8553 = vld [vmem:[#allocation2 + $0x9c] sm:$0xf]
      %v8554 = vld [vmem:[#allocation2 + $0xa0] sm:$0xf]
      %v8555 = vld [vmem:[#allocation2 + $0xa4] sm:$0x7]
      %v8556 = vld [vmem:[#allocation2] sm:$0x8]
      %v8557 = vld [vmem:[#allocation2 + $0xa4] sm:$0xf]
      %v8558 = vld [vmem:[#allocation2 + $0x8] sm:$0x8]
      %v8559 = vld [vmem:[#allocation2 + $0xa8] sm:$0xf]
      %v8560 = vld [vmem:[#allocation2 + $0xac] sm:$0xf]
      %v8561 = vld [vmem:[#allocation2 + $0xb0] sm:$0x1]
      %v8562 = vld [vmem:[#allocation2 + $0xb0] sm:$0xf]
      %v8563 = vld [vmem:[#allocation2 + $0xb4] sm:$0xf]
      %v8564 = vld [vmem:[#allocation2 + $0xb8] sm:$0x1]
      %v8565 = vld [vmem:[#allocation2 + $0x14] sm:$0xe]
      %v8566 = vld [vmem:[#allocation2 + $0xb8] sm:$0x3]
      %v8609 = vunpack.c.l.b16 %v8514
      %v8610 = vunpack.c.l.b16 %v8515
      %v8611 = vunpack.c.l.b16 %v8516
      %v8612 = vunpack.c.l.b16 %v8517
      %v8613 = vunpack.c.l.b16 %v8518
      %v8614 = vunpack.c.l.b16 %v8519
      %v8615 = vunpack.c.l.b16 %v8520
      %v8616 = vunpack.c.l.b16 %v8521
      %v8617 = vunpack.c.l.b16 %v8522
      %v8618 = vunpack.c.l.b16 %v8523
      %v8619 = vunpack.c.l.b16 %v8524
      %v8620 = vunpack.c.l.b16 %v8525
      %v8621 = vunpack.c.l.b16 %v8526
      %v8622 = vunpack.c.l.b16 %v8527
      %v8623 = vunpack.c.l.b16 %v8528
      %v8624 = vunpack.c.l.b16 %v8529
      %v8625 = vunpack.c.l.b16 %v8530
      %v8626 = vunpack.c.l.b16 %v8531
      %v8627 = vunpack.c.l.b16 %v8532
      %v8628 = vunpack.c.l.b16 %v8533
      %v8629 = vunpack.c.l.b16 %v8534
      %v8630 = vunpack.c.l.b16 %v8535
      %v8631 = vunpack.c.l.b16 %v8536
      %v8632 = vunpack.c.l.b16 %v8537
      %v8633 = vunpack.c.l.b16 %v8538
      %v8634 = vunpack.c.l.b16 %v8539
      %v8635 = vunpack.c.l.b16 %v8540
      %v8636 = vunpack.c.l.b16 %v8541
      %v8637 = vunpack.c.l.b16 %v8542
      %v8638 = vunpack.c.l.b16 %v8543
      %v8639 = vunpack.c.l.b16 %v8544
      %v8640 = vunpack.c.l.b16 %v8545
      %v8641 = vunpack.c.l.b16 %v8546
      %v8642 = vunpack.c.l.b16 %v8547
      %v8643 = vunpack.c.l.b16 %v8548
      %v8644 = vunpack.c.l.b16 %v8549
      %v8645 = vunpack.c.l.b16 %v8550
      %v8646 = vunpack.c.l.b16 %v8551
      %v8647 = vunpack.c.l.b16 %v8552
      %v8648 = vunpack.c.l.b16 %v8553
      %v8649 = vunpack.c.l.b16 %v8554
      %v8650 = vunpack.c.l.b16 %v8555
      %v8651 = vpack.c.b16 %v8610, %v8609
      %v8652 = vpack.c.b16 %v8612, %v8611
      %v8653 = vpack.c.b16 %v8614, %v8613
      %v8654 = vpack.c.b16 %v8616, %v8615
      %v8655 = vpack.c.b16 %v8618, %v8617
      %v8656 = vpack.c.b16 %v8620, %v8619
      %v8657 = vpack.c.b16 %v8622, %v8621
      %v8658 = vpack.c.b16 %v8624, %v8623
      %v8659 = vpack.c.b16 %v8626, %v8625
      %v8660 = vpack.c.b16 %v8628, %v8627
      %v8661 = vpack.c.b16 %v8630, %v8629
      %v8662 = vpack.c.b16 %v8632, %v8631
      %v8663 = vpack.c.b16 %v8634, %v8633
      %v8664 = vpack.c.b16 %v8636, %v8635
      %v8665 = vpack.c.b16 %v8638, %v8637
      %v8666 = vpack.c.b16 %v8640, %v8639
      %v8667 = vpack.c.b16 %v8642, %v8641
      %v8668 = vpack.c.b16 %v8644, %v8643
      %v8669 = vpack.c.b16 %v8646, %v8645
      %v8670 = vpack.c.b16 %v8648, %v8647
      %v8671 = vpack.c.b16 %v8650, %v8649
      %v8673 = vunpack.c.l.b16 %v8556
      %v8674 = vpack.c.b16 %v8610, %v8673
      %v8676 = vshrl.u32 %v8674, 16
      %v8678 = vshll.u32 %v8674, 16
      %v8680 = vrot.slane %v8678, 1
      %v8681 = vor.u32 %v8676, %v8680
      %v8683 = vshll.u32 %v8652, 16
      %v8685 = vrot.slane %v8683, 1
      %v8686 = vsel %vm589, %v8681, %v8685
      %v8687 = vshrl.u32 %v8652, 16
      %v8689 = vor.u32 %v8687, %v8685
      %v8691 = vshll.u32 %v8653, 16
      %v8693 = vrot.slane %v8691, 1
      %v8694 = vsel %vm589, %v8689, %v8693
      %v8695 = vshrl.u32 %v8653, 16
      %v8697 = vor.u32 %v8695, %v8693
      %v8699 = vshll.u32 %v8654, 16
      %v8701 = vrot.slane %v8699, 1
      %v8702 = vsel %vm589, %v8697, %v8701
      %v8703 = vshrl.u32 %v8654, 16
      %v8705 = vor.u32 %v8703, %v8701
      %v8707 = vshll.u32 %v8655, 16
      %v8709 = vrot.slane %v8707, 1
      %v8710 = vsel %vm589, %v8705, %v8709
      %v8711 = vshrl.u32 %v8655, 16
      %v8713 = vor.u32 %v8711, %v8709
      %v8715 = vshll.u32 %v8656, 16
      %v8717 = vrot.slane %v8715, 1
      %v8718 = vsel %vm589, %v8713, %v8717
      %v8719 = vshrl.u32 %v8656, 16
      %v8721 = vor.u32 %v8719, %v8717
      %v8723 = vshll.u32 %v8657, 16
      %v8725 = vrot.slane %v8723, 1
      %v8726 = vsel %vm589, %v8721, %v8725
      %v8727 = vshrl.u32 %v8657, 16
      %v8729 = vor.u32 %v8727, %v8725
      %v8731 = vshll.u32 %v8658, 16
      %v8733 = vrot.slane %v8731, 1
      %v8734 = vsel %vm589, %v8729, %v8733
      %v8735 = vshrl.u32 %v8658, 16
      %v8737 = vor.u32 %v8735, %v8733
      %v8739 = vshll.u32 %v8659, 16
      %v8741 = vrot.slane %v8739, 1
      %v8742 = vsel %vm589, %v8737, %v8741
      %v8743 = vshrl.u32 %v8659, 16
      %v8745 = vor.u32 %v8743, %v8741
      %v8747 = vshll.u32 %v8660, 16
      %v8749 = vrot.slane %v8747, 1
      %v8750 = vsel %vm589, %v8745, %v8749
      %v8751 = vshrl.u32 %v8660, 16
      %v8753 = vor.u32 %v8751, %v8749
      %v8755 = vshll.u32 %v8661, 16
      %v8757 = vrot.slane %v8755, 1
      %v8758 = vsel %vm589, %v8753, %v8757
      %v8759 = vshrl.u32 %v8661, 16
      %v8761 = vor.u32 %v8759, %v8757
      %v8763 = vshll.u32 %v8662, 16
      %v8765 = vrot.slane %v8763, 1
      %v8766 = vsel %vm589, %v8761, %v8765
      %v8767 = vshrl.u32 %v8662, 16
      %v8769 = vor.u32 %v8767, %v8765
      %v8771 = vshll.u32 %v8663, 16
      %v8773 = vrot.slane %v8771, 1
      %v8774 = vsel %vm589, %v8769, %v8773
      %v8775 = vshrl.u32 %v8663, 16
      %v8777 = vor.u32 %v8775, %v8773
      %v8779 = vshll.u32 %v8664, 16
      %v8781 = vrot.slane %v8779, 1
      %v8782 = vsel %vm589, %v8777, %v8781
      %v8783 = vshrl.u32 %v8664, 16
      %v8785 = vor.u32 %v8783, %v8781
      %v8787 = vshll.u32 %v8665, 16
      %v8789 = vrot.slane %v8787, 1
      %v8790 = vsel %vm589, %v8785, %v8789
      %v8791 = vshrl.u32 %v8665, 16
      %v8793 = vor.u32 %v8791, %v8789
      %v8795 = vshll.u32 %v8666, 16
      %v8797 = vrot.slane %v8795, 1
      %v8798 = vsel %vm589, %v8793, %v8797
      %v8799 = vshrl.u32 %v8666, 16
      %v8801 = vor.u32 %v8799, %v8797
      %v8803 = vshll.u32 %v8667, 16
      %v8805 = vrot.slane %v8803, 1
      %v8806 = vsel %vm589, %v8801, %v8805
      %v8807 = vshrl.u32 %v8667, 16
      %v8809 = vor.u32 %v8807, %v8805
      %v8811 = vshll.u32 %v8668, 16
      %v8813 = vrot.slane %v8811, 1
      %v8814 = vsel %vm589, %v8809, %v8813
      %v8815 = vshrl.u32 %v8668, 16
      %v8817 = vor.u32 %v8815, %v8813
      %v8819 = vshll.u32 %v8669, 16
      %v8821 = vrot.slane %v8819, 1
      %v8822 = vsel %vm589, %v8817, %v8821
      %v8823 = vshrl.u32 %v8669, 16
      %v8825 = vor.u32 %v8823, %v8821
      %v8827 = vshll.u32 %v8670, 16
      %v8829 = vrot.slane %v8827, 1
      %v8830 = vsel %vm589, %v8825, %v8829
      %v8831 = vshrl.u32 %v8670, 16
      %v8833 = vor.u32 %v8831, %v8829
      %v8835 = vshll.u32 %v8671, 16
      %v8837 = vrot.slane %v8835, 1
      %v8838 = vsel %vm589, %v8833, %v8837
      %v8839 = vshrl.u32 %v8671, 16
      %v8841 = vor.u32 %v8839, %v8837
      %8842 = vrot.lane.b32.xlu0 %v8686, 64
      %v8843 = vpop.permute.xlu0 %8842
      %8844 = vrot.lane.b32.xlu0 %v8694, 64
      %v8845 = vpop.permute.xlu0 %8844
      %8846 = vrot.lane.b32.xlu0 %v8702, 64
      %v8847 = vpop.permute.xlu0 %8846
      %8848 = vrot.lane.b32.xlu0 %v8710, 64
      %v8849 = vpop.permute.xlu0 %8848
      %8850 = vrot.lane.b32.xlu0 %v8718, 64
      %v8851 = vpop.permute.xlu0 %8850
      %8852 = vrot.lane.b32.xlu0 %v8726, 64
      %v8853 = vpop.permute.xlu0 %8852
      %8854 = vrot.lane.b32.xlu0 %v8734, 64
      %v8855 = vpop.permute.xlu0 %8854
      %8856 = vrot.lane.b32.xlu0 %v8742, 64
      %v8857 = vpop.permute.xlu0 %8856
      %8858 = vrot.lane.b32.xlu0 %v8750, 64
      %v8859 = vpop.permute.xlu0 %8858
      %8860 = vrot.lane.b32.xlu0 %v8758, 64
      %v8861 = vpop.permute.xlu0 %8860
      %8862 = vrot.lane.b32.xlu0 %v8766, 64
      %v8863 = vpop.permute.xlu0 %8862
      %8864 = vrot.lane.b32.xlu0 %v8774, 64
      %v8865 = vpop.permute.xlu0 %8864
      %8866 = vrot.lane.b32.xlu0 %v8782, 64
      %v8867 = vpop.permute.xlu0 %8866
      %8868 = vrot.lane.b32.xlu0 %v8790, 64
      %v8869 = vpop.permute.xlu0 %8868
      %8870 = vrot.lane.b32.xlu0 %v8798, 64
      %v8871 = vpop.permute.xlu0 %8870
      %8872 = vrot.lane.b32.xlu0 %v8806, 64
      %v8873 = vpop.permute.xlu0 %8872
      %8874 = vrot.lane.b32.xlu0 %v8814, 64
      %v8875 = vpop.permute.xlu0 %8874
      %8876 = vrot.lane.b32.xlu0 %v8822, 64
      %v8877 = vpop.permute.xlu0 %8876
      %8878 = vrot.lane.b32.xlu0 %v8830, 64
      %v8879 = vpop.permute.xlu0 %8878
      %8880 = vrot.lane.b32.xlu0 %v8838, 64
      %v8881 = vpop.permute.xlu0 %8880
      %8882 = vrot.lane.b32.xlu0 %v8841, 64
      %v8883 = vpop.permute.xlu0 %8882
      %v8885 = vunpack.c.l.b16 %v8557
      %v8886 = vpack.c.b16 %v8885, %v8649
      %v8887 = vrot.slane %v8674, 1
      %v8888 = vrot.slane %v8652, 1
      %v8889 = vsel %vm760, %v8887, %v8888
      %v8890 = vrot.slane %v8653, 1
      %v8891 = vsel %vm760, %v8888, %v8890
      %v8892 = vrot.slane %v8654, 1
      %v8893 = vsel %vm760, %v8890, %v8892
      %v8894 = vrot.slane %v8655, 1
      %v8895 = vsel %vm760, %v8892, %v8894
      %v8896 = vrot.slane %v8656, 1
      %v8897 = vsel %vm760, %v8894, %v8896
      %v8898 = vrot.slane %v8657, 1
      %v8899 = vsel %vm760, %v8896, %v8898
      %v8900 = vrot.slane %v8658, 1
      %v8901 = vsel %vm760, %v8898, %v8900
      %v8902 = vrot.slane %v8659, 1
      %v8903 = vsel %vm760, %v8900, %v8902
      %v8904 = vrot.slane %v8660, 1
      %v8905 = vsel %vm760, %v8902, %v8904
      %v8906 = vrot.slane %v8661, 1
      %v8907 = vsel %vm760, %v8904, %v8906
      %v8908 = vrot.slane %v8662, 1
      %v8909 = vsel %vm760, %v8906, %v8908
      %v8910 = vrot.slane %v8663, 1
      %v8911 = vsel %vm760, %v8908, %v8910
      %v8912 = vrot.slane %v8664, 1
      %v8913 = vsel %vm760, %v8910, %v8912
      %v8914 = vrot.slane %v8665, 1
      %v8915 = vsel %vm760, %v8912, %v8914
      %v8916 = vrot.slane %v8666, 1
      %v8917 = vsel %vm760, %v8914, %v8916
      %v8918 = vrot.slane %v8667, 1
      %v8919 = vsel %vm760, %v8916, %v8918
      %v8920 = vrot.slane %v8668, 1
      %v8921 = vsel %vm760, %v8918, %v8920
      %v8922 = vrot.slane %v8669, 1
      %v8923 = vsel %vm760, %v8920, %v8922
      %v8924 = vrot.slane %v8670, 1
      %v8925 = vsel %vm760, %v8922, %v8924
      %v8926 = vrot.slane %v8886, 1
      %v8927 = vsel %vm760, %v8924, %v8926
      %v8931 = vunpack.c.l.b16 %v8558
      %v8932 = vunpack.c.l.b16 %v8559
      %v8933 = vunpack.c.l.b16 %v8560
      %v8934 = vpack.c.b16 %v8612, %v8931
      %v8935 = vpack.c.b16 %v8933, %v8932
      %v8936 = vrot.slane %v8934, 1
      %v8937 = vsel %vm760, %v8936, %v8890
      %v8938 = vrot.slane %v8935, 1
      %v8939 = vsel %vm760, %v8926, %v8938
      %8940 = vrot.lane.b32.xlu0 %v8937, 64
      %v8941 = vpop.permute.xlu0 %8940
      %8942 = vrot.lane.b32.xlu0 %v8893, 64
      %v8943 = vpop.permute.xlu0 %8942
      %8944 = vrot.lane.b32.xlu0 %v8895, 64
      %v8945 = vpop.permute.xlu0 %8944
      %8946 = vrot.lane.b32.xlu0 %v8897, 64
      %v8947 = vpop.permute.xlu0 %8946
      %8948 = vrot.lane.b32.xlu0 %v8899, 64
      %v8949 = vpop.permute.xlu0 %8948
      %8950 = vrot.lane.b32.xlu0 %v8901, 64
      %v8951 = vpop.permute.xlu0 %8950
      %8952 = vrot.lane.b32.xlu0 %v8903, 64
      %v8953 = vpop.permute.xlu0 %8952
      %8954 = vrot.lane.b32.xlu0 %v8905, 64
      %v8955 = vpop.permute.xlu0 %8954
      %8956 = vrot.lane.b32.xlu0 %v8907, 64
      %v8957 = vpop.permute.xlu0 %8956
      %8958 = vrot.lane.b32.xlu0 %v8909, 64
      %v8959 = vpop.permute.xlu0 %8958
      %8960 = vrot.lane.b32.xlu0 %v8911, 64
      %v8961 = vpop.permute.xlu0 %8960
      %8962 = vrot.lane.b32.xlu0 %v8913, 64
      %v8963 = vpop.permute.xlu0 %8962
      %8964 = vrot.lane.b32.xlu0 %v8915, 64
      %v8965 = vpop.permute.xlu0 %8964
      %8966 = vrot.lane.b32.xlu0 %v8917, 64
      %v8967 = vpop.permute.xlu0 %8966
      %8968 = vrot.lane.b32.xlu0 %v8919, 64
      %v8969 = vpop.permute.xlu0 %8968
      %8970 = vrot.lane.b32.xlu0 %v8921, 64
      %v8971 = vpop.permute.xlu0 %8970
      %8972 = vrot.lane.b32.xlu0 %v8923, 64
      %v8973 = vpop.permute.xlu0 %8972
      %8974 = vrot.lane.b32.xlu0 %v8925, 64
      %v8975 = vpop.permute.xlu0 %8974
      %8976 = vrot.lane.b32.xlu0 %v8927, 64
      %v8977 = vpop.permute.xlu0 %8976
      %8978 = vrot.lane.b32.xlu0 %v8939, 64
      %v8979 = vpop.permute.xlu0 %8978
      %8980 = vrot.lane.b32.xlu0 %v8938, 64
      %v8981 = vpop.permute.xlu0 %8980
      %v8982 = vpack.c.b16 %v8613, %v8612
      %v8983 = vpack.c.b16 %v8615, %v8614
      %v8984 = vpack.c.b16 %v8617, %v8616
      %v8985 = vpack.c.b16 %v8619, %v8618
      %v8986 = vpack.c.b16 %v8621, %v8620
      %v8987 = vpack.c.b16 %v8623, %v8622
      %v8988 = vpack.c.b16 %v8625, %v8624
      %v8989 = vpack.c.b16 %v8627, %v8626
      %v8990 = vpack.c.b16 %v8629, %v8628
      %v8991 = vpack.c.b16 %v8631, %v8630
      %v8992 = vpack.c.b16 %v8633, %v8632
      %v8993 = vpack.c.b16 %v8635, %v8634
      %v8994 = vpack.c.b16 %v8637, %v8636
      %v8995 = vpack.c.b16 %v8639, %v8638
      %v8996 = vpack.c.b16 %v8641, %v8640
      %v8997 = vpack.c.b16 %v8643, %v8642
      %v8998 = vpack.c.b16 %v8645, %v8644
      %v8999 = vpack.c.b16 %v8647, %v8646
      %v9000 = vpack.c.b16 %v8649, %v8648
      %v9001 = vpack.c.b16 %v8932, %v8885
      %v9002 = vpack.c.b16 %v8933, %v8933
      %v9004 = vshrl.u32 %v8982, 16
      %v9006 = vrot.slane %v9004, 5
      %v9007 = vshll.u32 %v8982, 16
      %v9009 = vrot.slane %v9007, 6
      %v9010 = vor.u32 %v9006, %v9009
      %v9012 = vshrl.u32 %v8983, 16
      %v9014 = vrot.slane %v9012, 5
      %v9015 = vshll.u32 %v8983, 16
      %v9017 = vrot.slane %v9015, 6
      %v9018 = vor.u32 %v9014, %v9017
      %v9019 = vsel %vm835, %v9010, %v9018
      %v9021 = vshrl.u32 %v8984, 16
      %v9023 = vrot.slane %v9021, 5
      %v9024 = vshll.u32 %v8984, 16
      %v9026 = vrot.slane %v9024, 6
      %v9027 = vor.u32 %v9023, %v9026
      %v9028 = vsel %vm835, %v9018, %v9027
      %v9030 = vshrl.u32 %v8985, 16
      %v9032 = vrot.slane %v9030, 5
      %v9033 = vshll.u32 %v8985, 16
      %v9035 = vrot.slane %v9033, 6
      %v9036 = vor.u32 %v9032, %v9035
      %v9037 = vsel %vm835, %v9027, %v9036
      %v9039 = vshrl.u32 %v8986, 16
      %v9041 = vrot.slane %v9039, 5
      %v9042 = vshll.u32 %v8986, 16
      %v9044 = vrot.slane %v9042, 6
      %v9045 = vor.u32 %v9041, %v9044
      %v9046 = vsel %vm835, %v9036, %v9045
      %v9048 = vshrl.u32 %v8987, 16
      %v9050 = vrot.slane %v9048, 5
      %v9051 = vshll.u32 %v8987, 16
      %v9053 = vrot.slane %v9051, 6
      %v9054 = vor.u32 %v9050, %v9053
      %v9055 = vsel %vm835, %v9045, %v9054
      %v9057 = vshrl.u32 %v8988, 16
      %v9059 = vrot.slane %v9057, 5
      %v9060 = vshll.u32 %v8988, 16
      %v9062 = vrot.slane %v9060, 6
      %v9063 = vor.u32 %v9059, %v9062
      %v9064 = vsel %vm835, %v9054, %v9063
      %v9066 = vshrl.u32 %v8989, 16
      %v9068 = vrot.slane %v9066, 5
      %v9069 = vshll.u32 %v8989, 16
      %v9071 = vrot.slane %v9069, 6
      %v9072 = vor.u32 %v9068, %v9071
      %v9073 = vsel %vm835, %v9063, %v9072
      %v9075 = vshrl.u32 %v8990, 16
      %v9077 = vrot.slane %v9075, 5
      %v9078 = vshll.u32 %v8990, 16
      %v9080 = vrot.slane %v9078, 6
      %v9081 = vor.u32 %v9077, %v9080
      %v9082 = vsel %vm835, %v9072, %v9081
      %v9084 = vshrl.u32 %v8991, 16
      %v9086 = vrot.slane %v9084, 5
      %v9087 = vshll.u32 %v8991, 16
      %v9089 = vrot.slane %v9087, 6
      %v9090 = vor.u32 %v9086, %v9089
      %v9091 = vsel %vm835, %v9081, %v9090
      %v9093 = vshrl.u32 %v8992, 16
      %v9095 = vrot.slane %v9093, 5
      %v9096 = vshll.u32 %v8992, 16
      %v9098 = vrot.slane %v9096, 6
      %v9099 = vor.u32 %v9095, %v9098
      %v9100 = vsel %vm835, %v9090, %v9099
      %v9102 = vshrl.u32 %v8993, 16
      %v9104 = vrot.slane %v9102, 5
      %v9105 = vshll.u32 %v8993, 16
      %v9107 = vrot.slane %v9105, 6
      %v9108 = vor.u32 %v9104, %v9107
      %v9109 = vsel %vm835, %v9099, %v9108
      %v9111 = vshrl.u32 %v8994, 16
      %v9113 = vrot.slane %v9111, 5
      %v9114 = vshll.u32 %v8994, 16
      %v9116 = vrot.slane %v9114, 6
      %v9117 = vor.u32 %v9113, %v9116
      %v9118 = vsel %vm835, %v9108, %v9117
      %v9120 = vshrl.u32 %v8995, 16
      %v9122 = vrot.slane %v9120, 5
      %v9123 = vshll.u32 %v8995, 16
      %v9125 = vrot.slane %v9123, 6
      %v9126 = vor.u32 %v9122, %v9125
      %v9127 = vsel %vm835, %v9117, %v9126
      %v9129 = vshrl.u32 %v8996, 16
      %v9131 = vrot.slane %v9129, 5
      %v9132 = vshll.u32 %v8996, 16
      %v9134 = vrot.slane %v9132, 6
      %v9135 = vor.u32 %v9131, %v9134
      %v9136 = vsel %vm835, %v9126, %v9135
      %v9138 = vshrl.u32 %v8997, 16
      %v9140 = vrot.slane %v9138, 5
      %v9141 = vshll.u32 %v8997, 16
      %v9143 = vrot.slane %v9141, 6
      %v9144 = vor.u32 %v9140, %v9143
      %v9145 = vsel %vm835, %v9135, %v9144
      %v9147 = vshrl.u32 %v8998, 16
      %v9149 = vrot.slane %v9147, 5
      %v9150 = vshll.u32 %v8998, 16
      %v9152 = vrot.slane %v9150, 6
      %v9153 = vor.u32 %v9149, %v9152
      %v9154 = vsel %vm835, %v9144, %v9153
      %v9156 = vshrl.u32 %v8999, 16
      %v9158 = vrot.slane %v9156, 5
      %v9159 = vshll.u32 %v8999, 16
      %v9161 = vrot.slane %v9159, 6
      %v9162 = vor.u32 %v9158, %v9161
      %v9163 = vsel %vm835, %v9153, %v9162
      %v9165 = vshrl.u32 %v9000, 16
      %v9167 = vrot.slane %v9165, 5
      %v9168 = vshll.u32 %v9000, 16
      %v9170 = vrot.slane %v9168, 6
      %v9171 = vor.u32 %v9167, %v9170
      %v9172 = vsel %vm835, %v9162, %v9171
      %v9174 = vshrl.u32 %v9001, 16
      %v9176 = vrot.slane %v9174, 5
      %v9177 = vshll.u32 %v9001, 16
      %v9179 = vrot.slane %v9177, 6
      %v9180 = vor.u32 %v9176, %v9179
      %v9181 = vsel %vm835, %v9171, %v9180
      %v9183 = vshrl.u32 %v9002, 16
      %v9185 = vrot.slane %v9183, 5
      %v9186 = vshll.u32 %v9002, 16
      %v9188 = vrot.slane %v9186, 6
      %v9189 = vor.u32 %v9185, %v9188
      %v9190 = vsel %vm835, %v9180, %v9189
      %v9192 = vunpack.c.l.b16 %v8561
      %v9193 = vpack.c.b16 %v9192, %v8933
      %v9194 = vrot.slane %v8982, 6
      %v9195 = vrot.slane %v8983, 6
      %v9196 = vsel %vm1027, %v9194, %v9195
      %v9197 = vrot.slane %v8984, 6
      %v9198 = vsel %vm1027, %v9195, %v9197
      %v9199 = vrot.slane %v8985, 6
      %v9200 = vsel %vm1027, %v9197, %v9199
      %v9201 = vrot.slane %v8986, 6
      %v9202 = vsel %vm1027, %v9199, %v9201
      %v9203 = vrot.slane %v8987, 6
      %v9204 = vsel %vm1027, %v9201, %v9203
      %v9205 = vrot.slane %v8988, 6
      %v9206 = vsel %vm1027, %v9203, %v9205
      %v9207 = vrot.slane %v8989, 6
      %v9208 = vsel %vm1027, %v9205, %v9207
      %v9209 = vrot.slane %v8990, 6
      %v9210 = vsel %vm1027, %v9207, %v9209
      %v9211 = vrot.slane %v8991, 6
      %v9212 = vsel %vm1027, %v9209, %v9211
      %v9213 = vrot.slane %v8992, 6
      %v9214 = vsel %vm1027, %v9211, %v9213
      %v9215 = vrot.slane %v8993, 6
      %v9216 = vsel %vm1027, %v9213, %v9215
      %v9217 = vrot.slane %v8994, 6
      %v9218 = vsel %vm1027, %v9215, %v9217
      %v9219 = vrot.slane %v8995, 6
      %v9220 = vsel %vm1027, %v9217, %v9219
      %v9221 = vrot.slane %v8996, 6
      %v9222 = vsel %vm1027, %v9219, %v9221
      %v9223 = vrot.slane %v8997, 6
      %v9224 = vsel %vm1027, %v9221, %v9223
      %v9225 = vrot.slane %v8998, 6
      %v9226 = vsel %vm1027, %v9223, %v9225
      %v9227 = vrot.slane %v8999, 6
      %v9228 = vsel %vm1027, %v9225, %v9227
      %v9229 = vrot.slane %v9000, 6
      %v9230 = vsel %vm1027, %v9227, %v9229
      %v9231 = vrot.slane %v9001, 6
      %v9232 = vsel %vm1027, %v9229, %v9231
      %v9233 = vrot.slane %v9193, 6
      %v9234 = vsel %vm1027, %v9231, %v9233
      %9235 = vrot.lane.b32.xlu0 %v9194, 64
      %v9236 = vpop.permute.xlu0 %9235
      %9237 = vrot.lane.b32.xlu0 %v9196, 64
      %v9238 = vpop.permute.xlu0 %9237
      %9239 = vrot.lane.b32.xlu0 %v9198, 64
      %v9240 = vpop.permute.xlu0 %9239
      %9241 = vrot.lane.b32.xlu0 %v9200, 64
      %v9242 = vpop.permute.xlu0 %9241
      %9243 = vrot.lane.b32.xlu0 %v9202, 64
      %v9244 = vpop.permute.xlu0 %9243
      %9245 = vrot.lane.b32.xlu0 %v9204, 64
      %v9246 = vpop.permute.xlu0 %9245
      %9247 = vrot.lane.b32.xlu0 %v9206, 64
      %v9248 = vpop.permute.xlu0 %9247
      %9249 = vrot.lane.b32.xlu0 %v9208, 64
      %v9250 = vpop.permute.xlu0 %9249
      %9251 = vrot.lane.b32.xlu0 %v9210, 64
      %v9252 = vpop.permute.xlu0 %9251
      %9253 = vrot.lane.b32.xlu0 %v9212, 64
      %v9254 = vpop.permute.xlu0 %9253
      %9255 = vrot.lane.b32.xlu0 %v9214, 64
      %v9256 = vpop.permute.xlu0 %9255
      %9257 = vrot.lane.b32.xlu0 %v9216, 64
      %v9258 = vpop.permute.xlu0 %9257
      %9259 = vrot.lane.b32.xlu0 %v9218, 64
      %v9260 = vpop.permute.xlu0 %9259
      %9261 = vrot.lane.b32.xlu0 %v9220, 64
      %v9262 = vpop.permute.xlu0 %9261
      %9263 = vrot.lane.b32.xlu0 %v9222, 64
      %v9264 = vpop.permute.xlu0 %9263
      %9265 = vrot.lane.b32.xlu0 %v9224, 64
      %v9266 = vpop.permute.xlu0 %9265
      %9267 = vrot.lane.b32.xlu0 %v9226, 64
      %v9268 = vpop.permute.xlu0 %9267
      %9269 = vrot.lane.b32.xlu0 %v9228, 64
      %v9270 = vpop.permute.xlu0 %9269
      %9271 = vrot.lane.b32.xlu0 %v9230, 64
      %v9272 = vpop.permute.xlu0 %9271
      %9273 = vrot.lane.b32.xlu0 %v9232, 64
      %v9274 = vpop.permute.xlu0 %9273
      %9275 = vrot.lane.b32.xlu0 %v9234, 64
      %v9276 = vpop.permute.xlu0 %9275
      %v9280 = vunpack.c.l.b16 %v8562
      %v9281 = vunpack.c.l.b16 %v8563
      %v9282 = vunpack.c.l.b16 %v8564
      %v9283 = vpack.c.b16 %v9280, %v8933
      %v9284 = vpack.c.b16 %v9282, %v9281
      %v9285 = vrot.slane %v9283, 6
      %v9286 = vsel %vm1027, %v9231, %v9285
      %v9287 = vrot.slane %v9284, 6
      %v9288 = vsel %vm1027, %v9285, %v9287
      %v9290 = vunpack.c.l.b16 %v8565
      %v9291 = vpack.c.b16 %v8615, %v9290
      %v9293 = vshrl.u32 %v9291, 16
      %v9295 = vrot.slane %v9293, 6
      %v9296 = vshll.u32 %v9291, 16
      %v9298 = vrot.slane %v9296, 7
      %v9299 = vor.u32 %v9295, %v9298
      %v9300 = vrot.slane %v9021, 6
      %v9301 = vrot.slane %v9024, 7
      %v9302 = vor.u32 %v9300, %v9301
      %v9303 = vsel %vm1218, %v9299, %v9302
      %v9304 = vrot.slane %v9030, 6
      %v9305 = vrot.slane %v9033, 7
      %v9306 = vor.u32 %v9304, %v9305
      %v9307 = vsel %vm1218, %v9302, %v9306
      %v9308 = vrot.slane %v9039, 6
      %v9309 = vrot.slane %v9042, 7
      %v9310 = vor.u32 %v9308, %v9309
      %v9311 = vsel %vm1218, %v9306, %v9310
      %v9312 = vrot.slane %v9048, 6
      %v9313 = vrot.slane %v9051, 7
      %v9314 = vor.u32 %v9312, %v9313
      %v9315 = vsel %vm1218, %v9310, %v9314
      %v9316 = vrot.slane %v9057, 6
      %v9317 = vrot.slane %v9060, 7
      %v9318 = vor.u32 %v9316, %v9317
      %v9319 = vsel %vm1218, %v9314, %v9318
      %v9320 = vrot.slane %v9066, 6
      %v9321 = vrot.slane %v9069, 7
      %v9322 = vor.u32 %v9320, %v9321
      %v9323 = vsel %vm1218, %v9318, %v9322
      %v9324 = vrot.slane %v9075, 6
      %v9325 = vrot.slane %v9078, 7
      %v9326 = vor.u32 %v9324, %v9325
      %v9327 = vsel %vm1218, %v9322, %v9326
      %v9328 = vrot.slane %v9084, 6
      %v9329 = vrot.slane %v9087, 7
      %v9330 = vor.u32 %v9328, %v9329
      %v9331 = vsel %vm1218, %v9326, %v9330
      %v9332 = vrot.slane %v9093, 6
      %v9333 = vrot.slane %v9096, 7
      %v9334 = vor.u32 %v9332, %v9333
      %v9335 = vsel %vm1218, %v9330, %v9334
      %v9336 = vrot.slane %v9102, 6
      %v9337 = vrot.slane %v9105, 7
      %v9338 = vor.u32 %v9336, %v9337
      %v9339 = vsel %vm1218, %v9334, %v9338
      %v9340 = vrot.slane %v9111, 6
      %v9341 = vrot.slane %v9114, 7
      %v9342 = vor.u32 %v9340, %v9341
      %v9343 = vsel %vm1218, %v9338, %v9342
      %v9344 = vrot.slane %v9120, 6
      %v9345 = vrot.slane %v9123, 7
      %v9346 = vor.u32 %v9344, %v9345
      %v9347 = vsel %vm1218, %v9342, %v9346
      %v9348 = vrot.slane %v9129, 6
      %v9349 = vrot.slane %v9132, 7
      %v9350 = vor.u32 %v9348, %v9349
      %v9351 = vsel %vm1218, %v9346, %v9350
      %v9352 = vrot.slane %v9138, 6
      %v9353 = vrot.slane %v9141, 7
      %v9354 = vor.u32 %v9352, %v9353
      %v9355 = vsel %vm1218, %v9350, %v9354
      %v9356 = vrot.slane %v9147, 6
      %v9357 = vrot.slane %v9150, 7
      %v9358 = vor.u32 %v9356, %v9357
      %v9359 = vsel %vm1218, %v9354, %v9358
      %v9360 = vrot.slane %v9156, 6
      %v9361 = vrot.slane %v9159, 7
      %v9362 = vor.u32 %v9360, %v9361
      %v9363 = vsel %vm1218, %v9358, %v9362
      %v9364 = vrot.slane %v9165, 6
      %v9365 = vrot.slane %v9168, 7
      %v9366 = vor.u32 %v9364, %v9365
      %v9367 = vsel %vm1218, %v9362, %v9366
      %v9368 = vrot.slane %v9174, 6
      %v9369 = vrot.slane %v9177, 7
      %v9370 = vor.u32 %v9368, %v9369
      %v9371 = vsel %vm1218, %v9366, %v9370
      %v9373 = vshrl.u32 %v9283, 16
      %v9375 = vrot.slane %v9373, 6
      %v9376 = vshll.u32 %v9283, 16
      %v9378 = vrot.slane %v9376, 7
      %v9379 = vor.u32 %v9375, %v9378
      %v9380 = vsel %vm1218, %v9370, %v9379
      %v9382 = vshrl.u32 %v9284, 16
      %v9384 = vrot.slane %v9382, 6
      %v9385 = vshll.u32 %v9284, 16
      %v9387 = vrot.slane %v9385, 7
      %v9388 = vor.u32 %v9384, %v9387
      %v9389 = vsel %vm1218, %v9379, %v9388
      %9390 = vrot.lane.b32.xlu0 %v9299, 64
      %v9391 = vpop.permute.xlu0 %9390
      %9392 = vrot.lane.b32.xlu0 %v9303, 64
      %v9393 = vpop.permute.xlu0 %9392
      %9394 = vrot.lane.b32.xlu0 %v9307, 64
      %v9395 = vpop.permute.xlu0 %9394
      %9396 = vrot.lane.b32.xlu0 %v9311, 64
      %v9397 = vpop.permute.xlu0 %9396
      %9398 = vrot.lane.b32.xlu0 %v9315, 64
      %v9399 = vpop.permute.xlu0 %9398
      %9400 = vrot.lane.b32.xlu0 %v9319, 64
      %v9401 = vpop.permute.xlu0 %9400
      %9402 = vrot.lane.b32.xlu0 %v9323, 64
      %v9403 = vpop.permute.xlu0 %9402
      %9404 = vrot.lane.b32.xlu0 %v9327, 64
      %v9405 = vpop.permute.xlu0 %9404
      %9406 = vrot.lane.b32.xlu0 %v9331, 64
      %v9407 = vpop.permute.xlu0 %9406
      %9408 = vrot.lane.b32.xlu0 %v9335, 64
      %v9409 = vpop.permute.xlu0 %9408
      %9410 = vrot.lane.b32.xlu0 %v9339, 64
      %v9411 = vpop.permute.xlu0 %9410
      %9412 = vrot.lane.b32.xlu0 %v9343, 64
      %v9413 = vpop.permute.xlu0 %9412
      %9414 = vrot.lane.b32.xlu0 %v9347, 64
      %v9415 = vpop.permute.xlu0 %9414
      %9416 = vrot.lane.b32.xlu0 %v9351, 64
      %v9417 = vpop.permute.xlu0 %9416
      %9418 = vrot.lane.b32.xlu0 %v9355, 64
      %v9419 = vpop.permute.xlu0 %9418
      %9420 = vrot.lane.b32.xlu0 %v9359, 64
      %v9421 = vpop.permute.xlu0 %9420
      %9422 = vrot.lane.b32.xlu0 %v9363, 64
      %v9423 = vpop.permute.xlu0 %9422
      %9424 = vrot.lane.b32.xlu0 %v9367, 64
      %v9425 = vpop.permute.xlu0 %9424
      %9426 = vrot.lane.b32.xlu0 %v9371, 64
      %v9427 = vpop.permute.xlu0 %9426
      %9428 = vrot.lane.b32.xlu0 %v9380, 64
      %v9429 = vpop.permute.xlu0 %9428
      %9430 = vrot.lane.b32.xlu0 %v9389, 64
      %v9431 = vpop.permute.xlu0 %9430
      %v9433 = vunpack.c.l.b16 %v8566
      %v9434 = vpack.c.b16 %v9433, %v9281
      %v9435 = vrot.slane %v9291, 7
      %v9436 = vrot.slane %v8984, 7
      %v9437 = vsel %vm1410, %v9435, %v9436
      %v9438 = vrot.slane %v8985, 7
      %v9439 = vsel %vm1410, %v9436, %v9438
      %v9440 = vrot.slane %v8986, 7
      %v9441 = vsel %vm1410, %v9438, %v9440
      %v9442 = vrot.slane %v8987, 7
      %v9443 = vsel %vm1410, %v9440, %v9442
      %v9444 = vrot.slane %v8988, 7
      %v9445 = vsel %vm1410, %v9442, %v9444
      %v9446 = vrot.slane %v8989, 7
      %v9447 = vsel %vm1410, %v9444, %v9446
      %v9448 = vrot.slane %v8990, 7
      %v9449 = vsel %vm1410, %v9446, %v9448
      %v9450 = vrot.slane %v8991, 7
      %v9451 = vsel %vm1410, %v9448, %v9450
      %v9452 = vrot.slane %v8992, 7
      %v9453 = vsel %vm1410, %v9450, %v9452
      %v9454 = vrot.slane %v8993, 7
      %v9455 = vsel %vm1410, %v9452, %v9454
      %v9456 = vrot.slane %v8994, 7
      %v9457 = vsel %vm1410, %v9454, %v9456
      %v9458 = vrot.slane %v8995, 7
      %v9459 = vsel %vm1410, %v9456, %v9458
      %v9460 = vrot.slane %v8996, 7
      %v9461 = vsel %vm1410, %v9458, %v9460
      %v9462 = vrot.slane %v8997, 7
      %v9463 = vsel %vm1410, %v9460, %v9462
      %v9464 = vrot.slane %v8998, 7
      %v9465 = vsel %vm1410, %v9462, %v9464
      %v9466 = vrot.slane %v8999, 7
      %v9467 = vsel %vm1410, %v9464, %v9466
      %v9468 = vrot.slane %v9000, 7
      %v9469 = vsel %vm1410, %v9466, %v9468
      %v9470 = vrot.slane %v9001, 7
      %v9471 = vsel %vm1410, %v9468, %v9470
      %v9472 = vrot.slane %v9283, 7
      %v9473 = vsel %vm1410, %v9470, %v9472
      %v9474 = vrot.slane %v9434, 7
      %v9475 = vsel %vm1410, %v9472, %v9474
      %v9478 = vsel %vm6095, %v8651, %v8843
      %v9480 = vsel %vm6095, %v8652, %v8845
      %v9482 = vsel %vm6095, %v8653, %v8847
      %v9484 = vsel %vm6095, %v8654, %v8849
      %v9486 = vsel %vm6095, %v8655, %v8851
      %v9488 = vsel %vm6095, %v8656, %v8853
      %v9490 = vsel %vm6095, %v8657, %v8855
      %v9492 = vsel %vm6095, %v8658, %v8857
      %v9494 = vsel %vm6095, %v8659, %v8859
      %v9496 = vsel %vm6095, %v8660, %v8861
      %v9498 = vsel %vm6095, %v8661, %v8863
      %v9500 = vsel %vm6095, %v8662, %v8865
      %v9502 = vsel %vm6095, %v8663, %v8867
      %v9504 = vsel %vm6095, %v8664, %v8869
      %v9506 = vsel %vm6095, %v8665, %v8871
      %v9508 = vsel %vm6095, %v8666, %v8873
      %v9510 = vsel %vm6095, %v8667, %v8875
      %v9512 = vsel %vm6095, %v8668, %v8877
      %v9514 = vsel %vm6095, %v8669, %v8879
      %v9516 = vsel %vm6095, %v8670, %v8881
      %v9518 = vsel %vm6095, %v8671, %v8883
      %v9521 = vsel %vm6095, %v8889, %v8941
      %v9524 = vsel %vm6095, %v8891, %v8943
      %v9527 = vsel %vm6095, %v8893, %v8945
      %v9530 = vsel %vm6095, %v8895, %v8947
      %v9533 = vsel %vm6095, %v8897, %v8949
      %v9536 = vsel %vm6095, %v8899, %v8951
      %v9539 = vsel %vm6095, %v8901, %v8953
      %v9542 = vsel %vm6095, %v8903, %v8955
      %v9545 = vsel %vm6095, %v8905, %v8957
      %v9548 = vsel %vm6095, %v8907, %v8959
      %v9551 = vsel %vm6095, %v8909, %v8961
      %v9554 = vsel %vm6095, %v8911, %v8963
      %v9557 = vsel %vm6095, %v8913, %v8965
      %v9560 = vsel %vm6095, %v8915, %v8967
      %v9563 = vsel %vm6095, %v8917, %v8969
      %v9566 = vsel %vm6095, %v8919, %v8971
      %v9569 = vsel %vm6095, %v8921, %v8973
      %v9572 = vsel %vm6095, %v8923, %v8975
      %v9575 = vsel %vm6095, %v8925, %v8977
      %v9578 = vsel %vm6095, %v8927, %v8979
      %v9581 = vsel %vm6095, %v8926, %v8981
      %v9584 = vsel %vm6095, %v9010, %v9236
      %v9587 = vsel %vm6095, %v9019, %v9238
      %v9590 = vsel %vm6095, %v9028, %v9240
      %v9593 = vsel %vm6095, %v9037, %v9242
      %v9596 = vsel %vm6095, %v9046, %v9244
      %v9599 = vsel %vm6095, %v9055, %v9246
      %v9602 = vsel %vm6095, %v9064, %v9248
      %v9605 = vsel %vm6095, %v9073, %v9250
      %v9608 = vsel %vm6095, %v9082, %v9252
      %v9611 = vsel %vm6095, %v9091, %v9254
      %v9614 = vsel %vm6095, %v9100, %v9256
      %v9617 = vsel %vm6095, %v9109, %v9258
      %v9620 = vsel %vm6095, %v9118, %v9260
      %v9623 = vsel %vm6095, %v9127, %v9262
      %v9626 = vsel %vm6095, %v9136, %v9264
      %v9629 = vsel %vm6095, %v9145, %v9266
      %v9632 = vsel %vm6095, %v9154, %v9268
      %v9635 = vsel %vm6095, %v9163, %v9270
      %v9638 = vsel %vm6095, %v9172, %v9272
      %v9641 = vsel %vm6095, %v9181, %v9274
      %v9644 = vsel %vm6095, %v9190, %v9276
      %v9647 = vsel %vm6095, %v9195, %v9391
      %v9650 = vsel %vm6095, %v9198, %v9393
      %v9653 = vsel %vm6095, %v9200, %v9395
      %v9656 = vsel %vm6095, %v9202, %v9397
      %v9659 = vsel %vm6095, %v9204, %v9399
      %v9662 = vsel %vm6095, %v9206, %v9401
      %v9665 = vsel %vm6095, %v9208, %v9403
      %v9668 = vsel %vm6095, %v9210, %v9405
      %v9671 = vsel %vm6095, %v9212, %v9407
      %v9674 = vsel %vm6095, %v9214, %v9409
      %v9677 = vsel %vm6095, %v9216, %v9411
      %v9680 = vsel %vm6095, %v9218, %v9413
      %v9683 = vsel %vm6095, %v9220, %v9415
      %v9686 = vsel %vm6095, %v9222, %v9417
      %v9689 = vsel %vm6095, %v9224, %v9419
      %v9692 = vsel %vm6095, %v9226, %v9421
      %v9695 = vsel %vm6095, %v9228, %v9423
      %v9698 = vsel %vm6095, %v9230, %v9425
      %v9701 = vsel %vm6095, %v9232, %v9427
      %v9704 = vsel %vm6095, %v9286, %v9429
      %v9707 = vsel %vm6095, %v9288, %v9431
      %v9708 = vld [vmem:[%s5] sm:$0xf]
      %v9709 = vld [vmem:[%s5 + $0x4] sm:$0xf]
      %v9710 = vld [vmem:[%s5 + $0x8] sm:$0xf]
      %v9711 = vld [vmem:[%s5 + $0xc] sm:$0xf]
      %v9712 = vld [vmem:[%s5 + $0x10] sm:$0xf]
      %v9713 = vld [vmem:[%s5 + $0x14] sm:$0xf]
      %v9714 = vld [vmem:[%s5 + $0x18] sm:$0xf]
      %v9715 = vld [vmem:[%s5 + $0x1c] sm:$0xf]
      %v9716 = vld [vmem:[%s5 + $0x20] sm:$0xf]
      %v9717 = vld [vmem:[%s5 + $0x24] sm:$0xf]
      %v9718 = vld [vmem:[%s5 + $0x28] sm:$0xf]
      %v9719 = vld [vmem:[%s5 + $0x2c] sm:$0xf]
      %v9720 = vld [vmem:[%s5 + $0x30] sm:$0xf]
      %v9721 = vld [vmem:[%s5 + $0x34] sm:$0xf]
      %v9722 = vld [vmem:[%s5 + $0x38] sm:$0xf]
      %v9723 = vld [vmem:[%s5 + $0x3c] sm:$0xf]
      %v9724 = vld [vmem:[%s5 + $0x40] sm:$0xf]
      %v9725 = vld [vmem:[%s5 + $0x44] sm:$0xf]
      %v9726 = vld [vmem:[%s5 + $0x48] sm:$0xf]
      %v9727 = vld [vmem:[%s5 + $0x4c] sm:$0xf]
      %v9728 = vld [vmem:[%s5 + $0x50] sm:$0xf]
      %v9729 = vld [vmem:[%s5 + $0x54] sm:$0xf]
      %v9730 = vld [vmem:[%s5 + $0x58] sm:$0xf]
      %v9731 = vld [vmem:[%s5 + $0x5c] sm:$0xf]
      %v9732 = vld [vmem:[%s5 + $0x60] sm:$0xf]
      %v9733 = vld [vmem:[%s5 + $0x64] sm:$0xf]
      %v9734 = vld [vmem:[%s5 + $0x68] sm:$0xf]
      %v9735 = vld [vmem:[%s5 + $0x6c] sm:$0xf]
      %v9736 = vld [vmem:[%s5 + $0x70] sm:$0xf]
      %v9737 = vld [vmem:[%s5 + $0x74] sm:$0xf]
      %v9738 = vld [vmem:[%s5 + $0x78] sm:$0xf]
      %v9739 = vld [vmem:[%s5 + $0x7c] sm:$0xf]
      %v9740 = vld [vmem:[%s5 + $0x80] sm:$0xf]
      %v9741 = vld [vmem:[%s5 + $0x84] sm:$0xf]
      %v9742 = vld [vmem:[%s5 + $0x88] sm:$0xf]
      %v9743 = vld [vmem:[%s5 + $0x8c] sm:$0xf]
      %v9744 = vld [vmem:[%s5 + $0x90] sm:$0xf]
      %v9745 = vld [vmem:[%s5 + $0x94] sm:$0xf]
      %v9746 = vld [vmem:[%s5 + $0x98] sm:$0xf]
      %v9747 = vld [vmem:[%s5 + $0x9c] sm:$0xf]
      %v9748 = vld [vmem:[%s5 + $0xa0] sm:$0xf]
      %v9749 = vld [vmem:[%s5 + $0xa4] sm:$0xf]
      %v9750 = vld [vmem:[%s5 + $0xa8] sm:$0xf]
      %v9751 = vld [vmem:[%s5 + $0xac] sm:$0xf]
      %v9752 = vld [vmem:[%s5 + $0xb0] sm:$0xf]
      %v9753 = vld [vmem:[%s5 + $0xb4] sm:$0xf]
      %v9754 = vld [vmem:[%s5 + $0xb8] sm:$0xf]
      %v9755 = vld [vmem:[%s5 + $0xbc] sm:$0xf]
      %v9756 = vld [vmem:[%s5 + $0xc0] sm:$0xf]
      %v9757 = vld [vmem:[%s5 + $0xc4] sm:$0xf]
      %v9758 = vld [vmem:[%s5 + $0xc8] sm:$0xf]
      %v9759 = vld [vmem:[%s5 + $0xcc] sm:$0xf]
      %v9760 = vld [vmem:[%s5 + $0xd0] sm:$0xf]
      %v9761 = vld [vmem:[%s5 + $0xd4] sm:$0xf]
      %v9762 = vld [vmem:[%s5 + $0xd8] sm:$0xf]
      %v9763 = vld [vmem:[%s5 + $0xdc] sm:$0xf]
      %v9764 = vld [vmem:[%s5 + $0xe0] sm:$0xf]
      %v9765 = vld [vmem:[%s5 + $0xe4] sm:$0xf]
      %v9766 = vld [vmem:[%s5 + $0xe8] sm:$0xf]
      %v9767 = vld [vmem:[%s5 + $0xec] sm:$0xf]
      %v9768 = vld [vmem:[%s5 + $0xf0] sm:$0xf]
      %v9769 = vld [vmem:[%s5 + $0xf4] sm:$0xf]
      %v9770 = vld [vmem:[%s5 + $0xf8] sm:$0xf]
      %v9771 = vld [vmem:[%s5 + $0xfc] sm:$0xf]
      %v9772 = vld [vmem:[%s5 + $0x100] sm:$0xf]
      %v9773 = vld [vmem:[%s5 + $0x104] sm:$0xf]
      %v9774 = vld [vmem:[%s5 + $0x108] sm:$0xf]
      %v9775 = vld [vmem:[%s5 + $0x10c] sm:$0xf]
      %v9776 = vld [vmem:[%s5 + $0x110] sm:$0xf]
      %v9777 = vld [vmem:[%s5 + $0x114] sm:$0xf]
      %v9778 = vld [vmem:[%s5 + $0x118] sm:$0xf]
      %v9779 = vld [vmem:[%s5 + $0x11c] sm:$0xf]
      %v9780 = vld [vmem:[%s6] sm:$0x1]
      %v9782 = vlaneseq
      %v9783 = vshrl.u32 %v9782, 7
      %v9784 = vsub.s32 0, %v9783
      %v9785 = vrot.slane %v9780, %v9784
      %v9787 = vshrl.u32 %v9478, 16
      %v9789 = vrot.slane %v9787, 2
      %v9790 = vshll.u32 %v9478, 16
      %v9792 = vrot.slane %v9790, 3
      %v9793 = vor.u32 %v9789, %v9792
      %v9794 = vshrl.u32 %v9480, 16
      %v9796 = vrot.slane %v9794, 2
      %v9797 = vshll.u32 %v9480, 16
      %v9799 = vrot.slane %v9797, 3
      %v9800 = vor.u32 %v9796, %v9799
      %v9801 = vsel %vm1603, %v9793, %v9800
      %v9802 = vshrl.u32 %v9521, 16
      %v9804 = vrot.slane %v9802, 2
      %v9805 = vshll.u32 %v9521, 16
      %v9807 = vrot.slane %v9805, 3
      %v9808 = vor.u32 %v9804, %v9807
      %v9809 = vshrl.u32 %v9524, 16
      %v9811 = vrot.slane %v9809, 2
      %v9812 = vshll.u32 %v9524, 16
      %v9814 = vrot.slane %v9812, 3
      %v9815 = vor.u32 %v9811, %v9814
      %v9816 = vsel %vm1603, %v9808, %v9815
      %v9817 = vshrl.u32 %v9584, 16
      %v9819 = vrot.slane %v9817, 2
      %v9820 = vshll.u32 %v9584, 16
      %v9822 = vrot.slane %v9820, 3
      %v9823 = vor.u32 %v9819, %v9822
      %v9824 = vshrl.u32 %v9587, 16
      %v9826 = vrot.slane %v9824, 2
      %v9827 = vshll.u32 %v9587, 16
      %v9829 = vrot.slane %v9827, 3
      %v9830 = vor.u32 %v9826, %v9829
      %v9831 = vsel %vm1603, %v9823, %v9830
      %v9832 = vshrl.u32 %v9647, 16
      %v9834 = vrot.slane %v9832, 2
      %v9835 = vshll.u32 %v9647, 16
      %v9837 = vrot.slane %v9835, 3
      %v9838 = vor.u32 %v9834, %v9837
      %v9839 = vshrl.u32 %v9650, 16
      %v9841 = vrot.slane %v9839, 2
      %v9842 = vshll.u32 %v9650, 16
      %v9844 = vrot.slane %v9842, 3
      %v9845 = vor.u32 %v9841, %v9844
      %v9846 = vsel %vm1603, %v9838, %v9845
      %v9848 = vshrl.u32 %v9435, 16
      %v9850 = vrot.slane %v9848, 2
      %v9851 = vshll.u32 %v9435, 16
      %v9853 = vrot.slane %v9851, 3
      %v9854 = vor.u32 %v9850, %v9853
      %v9856 = vshrl.u32 %v9437, 16
      %v9858 = vrot.slane %v9856, 2
      %v9859 = vshll.u32 %v9437, 16
      %v9861 = vrot.slane %v9859, 3
      %v9862 = vor.u32 %v9858, %v9861
      %v9863 = vsel %vm1603, %v9854, %v9862
      %v9864 = vshrl.u32 %v9482, 16
      %v9866 = vrot.slane %v9864, 2
      %v9867 = vshll.u32 %v9482, 16
      %v9869 = vrot.slane %v9867, 3
      %v9870 = vor.u32 %v9866, %v9869
      %v9871 = vsel %vm1603, %v9800, %v9870
      %v9872 = vshrl.u32 %v9527, 16
      %v9874 = vrot.slane %v9872, 2
      %v9875 = vshll.u32 %v9527, 16
      %v9877 = vrot.slane %v9875, 3
      %v9878 = vor.u32 %v9874, %v9877
      %v9879 = vsel %vm1603, %v9815, %v9878
      %v9880 = vshrl.u32 %v9590, 16
      %v9882 = vrot.slane %v9880, 2
      %v9883 = vshll.u32 %v9590, 16
      %v9885 = vrot.slane %v9883, 3
      %v9886 = vor.u32 %v9882, %v9885
      %v9887 = vsel %vm1603, %v9830, %v9886
      %v9888 = vshrl.u32 %v9653, 16
      %v9890 = vrot.slane %v9888, 2
      %v9891 = vshll.u32 %v9653, 16
      %v9893 = vrot.slane %v9891, 3
      %v9894 = vor.u32 %v9890, %v9893
      %v9895 = vsel %vm1603, %v9845, %v9894
      %v9897 = vshrl.u32 %v9439, 16
      %v9899 = vrot.slane %v9897, 2
      %v9900 = vshll.u32 %v9439, 16
      %v9902 = vrot.slane %v9900, 3
      %v9903 = vor.u32 %v9899, %v9902
      %v9904 = vsel %vm1603, %v9862, %v9903
      %v9905 = vshrl.u32 %v9484, 16
      %v9907 = vrot.slane %v9905, 2
      %v9908 = vshll.u32 %v9484, 16
      %v9910 = vrot.slane %v9908, 3
      %v9911 = vor.u32 %v9907, %v9910
      %v9912 = vsel %vm1603, %v9870, %v9911
      %v9913 = vshrl.u32 %v9530, 16
      %v9915 = vrot.slane %v9913, 2
      %v9916 = vshll.u32 %v9530, 16
      %v9918 = vrot.slane %v9916, 3
      %v9919 = vor.u32 %v9915, %v9918
      %v9920 = vsel %vm1603, %v9878, %v9919
      %v9921 = vshrl.u32 %v9593, 16
      %v9923 = vrot.slane %v9921, 2
      %v9924 = vshll.u32 %v9593, 16
      %v9926 = vrot.slane %v9924, 3
      %v9927 = vor.u32 %v9923, %v9926
      %v9928 = vsel %vm1603, %v9886, %v9927
      %v9929 = vshrl.u32 %v9656, 16
      %v9931 = vrot.slane %v9929, 2
      %v9932 = vshll.u32 %v9656, 16
      %v9934 = vrot.slane %v9932, 3
      %v9935 = vor.u32 %v9931, %v9934
      %v9936 = vsel %vm1603, %v9894, %v9935
      %v9938 = vshrl.u32 %v9441, 16
      %v9940 = vrot.slane %v9938, 2
      %v9941 = vshll.u32 %v9441, 16
      %v9943 = vrot.slane %v9941, 3
      %v9944 = vor.u32 %v9940, %v9943
      %v9945 = vsel %vm1603, %v9903, %v9944
      %v9946 = vshrl.u32 %v9486, 16
      %v9948 = vrot.slane %v9946, 2
      %v9949 = vshll.u32 %v9486, 16
      %v9951 = vrot.slane %v9949, 3
      %v9952 = vor.u32 %v9948, %v9951
      %v9953 = vsel %vm1603, %v9911, %v9952
      %v9954 = vshrl.u32 %v9533, 16
      %v9956 = vrot.slane %v9954, 2
      %v9957 = vshll.u32 %v9533, 16
      %v9959 = vrot.slane %v9957, 3
      %v9960 = vor.u32 %v9956, %v9959
      %v9961 = vsel %vm1603, %v9919, %v9960
      %v9962 = vshrl.u32 %v9596, 16
      %v9964 = vrot.slane %v9962, 2
      %v9965 = vshll.u32 %v9596, 16
      %v9967 = vrot.slane %v9965, 3
      %v9968 = vor.u32 %v9964, %v9967
      %v9969 = vsel %vm1603, %v9927, %v9968
      %v9970 = vshrl.u32 %v9659, 16
      %v9972 = vrot.slane %v9970, 2
      %v9973 = vshll.u32 %v9659, 16
      %v9975 = vrot.slane %v9973, 3
      %v9976 = vor.u32 %v9972, %v9975
      %v9977 = vsel %vm1603, %v9935, %v9976
      %v9979 = vshrl.u32 %v9443, 16
      %v9981 = vrot.slane %v9979, 2
      %v9982 = vshll.u32 %v9443, 16
      %v9984 = vrot.slane %v9982, 3
      %v9985 = vor.u32 %v9981, %v9984
      %v9986 = vsel %vm1603, %v9944, %v9985
      %v9987 = vshrl.u32 %v9488, 16
      %v9989 = vrot.slane %v9987, 2
      %v9990 = vshll.u32 %v9488, 16
      %v9992 = vrot.slane %v9990, 3
      %v9993 = vor.u32 %v9989, %v9992
      %v9994 = vsel %vm1603, %v9952, %v9993
      %v9995 = vshrl.u32 %v9536, 16
      %v9997 = vrot.slane %v9995, 2
      %v9998 = vshll.u32 %v9536, 16
      %v10000 = vrot.slane %v9998, 3
      %v10001 = vor.u32 %v9997, %v10000
      %v10002 = vsel %vm1603, %v9960, %v10001
      %v10003 = vshrl.u32 %v9599, 16
      %v10005 = vrot.slane %v10003, 2
      %v10006 = vshll.u32 %v9599, 16
      %v10008 = vrot.slane %v10006, 3
      %v10009 = vor.u32 %v10005, %v10008
      %v10010 = vsel %vm1603, %v9968, %v10009
      %v10011 = vshrl.u32 %v9662, 16
      %v10013 = vrot.slane %v10011, 2
      %v10014 = vshll.u32 %v9662, 16
      %v10016 = vrot.slane %v10014, 3
      %v10017 = vor.u32 %v10013, %v10016
      %v10018 = vsel %vm1603, %v9976, %v10017
      %v10020 = vshrl.u32 %v9445, 16
      %v10022 = vrot.slane %v10020, 2
      %v10023 = vshll.u32 %v9445, 16
      %v10025 = vrot.slane %v10023, 3
      %v10026 = vor.u32 %v10022, %v10025
      %v10027 = vsel %vm1603, %v9985, %v10026
      %v10028 = vshrl.u32 %v9490, 16
      %v10030 = vrot.slane %v10028, 2
      %v10031 = vshll.u32 %v9490, 16
      %v10033 = vrot.slane %v10031, 3
      %v10034 = vor.u32 %v10030, %v10033
      %v10035 = vsel %vm1603, %v9993, %v10034
      %v10036 = vshrl.u32 %v9539, 16
      %v10038 = vrot.slane %v10036, 2
      %v10039 = vshll.u32 %v9539, 16
      %v10041 = vrot.slane %v10039, 3
      %v10042 = vor.u32 %v10038, %v10041
      %v10043 = vsel %vm1603, %v10001, %v10042
      %v10044 = vshrl.u32 %v9602, 16
      %v10046 = vrot.slane %v10044, 2
      %v10047 = vshll.u32 %v9602, 16
      %v10049 = vrot.slane %v10047, 3
      %v10050 = vor.u32 %v10046, %v10049
      %v10051 = vsel %vm1603, %v10009, %v10050
      %v10052 = vshrl.u32 %v9665, 16
      %v10054 = vrot.slane %v10052, 2
      %v10055 = vshll.u32 %v9665, 16
      %v10057 = vrot.slane %v10055, 3
      %v10058 = vor.u32 %v10054, %v10057
      %v10059 = vsel %vm1603, %v10017, %v10058
      %v10061 = vshrl.u32 %v9447, 16
      %v10063 = vrot.slane %v10061, 2
      %v10064 = vshll.u32 %v9447, 16
      %v10066 = vrot.slane %v10064, 3
      %v10067 = vor.u32 %v10063, %v10066
      %v10068 = vsel %vm1603, %v10026, %v10067
      %v10069 = vshrl.u32 %v9492, 16
      %v10071 = vrot.slane %v10069, 2
      %v10072 = vshll.u32 %v9492, 16
      %v10074 = vrot.slane %v10072, 3
      %v10075 = vor.u32 %v10071, %v10074
      %v10076 = vsel %vm1603, %v10034, %v10075
      %v10077 = vshrl.u32 %v9542, 16
      %v10079 = vrot.slane %v10077, 2
      %v10080 = vshll.u32 %v9542, 16
      %v10082 = vrot.slane %v10080, 3
      %v10083 = vor.u32 %v10079, %v10082
      %v10084 = vsel %vm1603, %v10042, %v10083
      %v10085 = vshrl.u32 %v9605, 16
      %v10087 = vrot.slane %v10085, 2
      %v10088 = vshll.u32 %v9605, 16
      %v10090 = vrot.slane %v10088, 3
      %v10091 = vor.u32 %v10087, %v10090
      %v10092 = vsel %vm1603, %v10050, %v10091
      %v10093 = vshrl.u32 %v9668, 16
      %v10095 = vrot.slane %v10093, 2
      %v10096 = vshll.u32 %v9668, 16
      %v10098 = vrot.slane %v10096, 3
      %v10099 = vor.u32 %v10095, %v10098
      %v10100 = vsel %vm1603, %v10058, %v10099
      %v10102 = vshrl.u32 %v9449, 16
      %v10104 = vrot.slane %v10102, 2
      %v10105 = vshll.u32 %v9449, 16
      %v10107 = vrot.slane %v10105, 3
      %v10108 = vor.u32 %v10104, %v10107
      %v10109 = vsel %vm1603, %v10067, %v10108
      %v10110 = vshrl.u32 %v9494, 16
      %v10112 = vrot.slane %v10110, 2
      %v10113 = vshll.u32 %v9494, 16
      %v10115 = vrot.slane %v10113, 3
      %v10116 = vor.u32 %v10112, %v10115
      %v10117 = vsel %vm1603, %v10075, %v10116
      %v10118 = vshrl.u32 %v9545, 16
      %v10120 = vrot.slane %v10118, 2
      %v10121 = vshll.u32 %v9545, 16
      %v10123 = vrot.slane %v10121, 3
      %v10124 = vor.u32 %v10120, %v10123
      %v10125 = vsel %vm1603, %v10083, %v10124
      %v10126 = vshrl.u32 %v9608, 16
      %v10128 = vrot.slane %v10126, 2
      %v10129 = vshll.u32 %v9608, 16
      %v10131 = vrot.slane %v10129, 3
      %v10132 = vor.u32 %v10128, %v10131
      %v10133 = vsel %vm1603, %v10091, %v10132
      %v10134 = vshrl.u32 %v9671, 16
      %v10136 = vrot.slane %v10134, 2
      %v10137 = vshll.u32 %v9671, 16
      %v10139 = vrot.slane %v10137, 3
      %v10140 = vor.u32 %v10136, %v10139
      %v10141 = vsel %vm1603, %v10099, %v10140
      %v10143 = vshrl.u32 %v9451, 16
      %v10145 = vrot.slane %v10143, 2
      %v10146 = vshll.u32 %v9451, 16
      %v10148 = vrot.slane %v10146, 3
      %v10149 = vor.u32 %v10145, %v10148
      %v10150 = vsel %vm1603, %v10108, %v10149
      %v10151 = vshrl.u32 %v9496, 16
      %v10153 = vrot.slane %v10151, 2
      %v10154 = vshll.u32 %v9496, 16
      %v10156 = vrot.slane %v10154, 3
      %v10157 = vor.u32 %v10153, %v10156
      %v10158 = vsel %vm1603, %v10116, %v10157
      %v10159 = vshrl.u32 %v9548, 16
      %v10161 = vrot.slane %v10159, 2
      %v10162 = vshll.u32 %v9548, 16
      %v10164 = vrot.slane %v10162, 3
      %v10165 = vor.u32 %v10161, %v10164
      %v10166 = vsel %vm1603, %v10124, %v10165
      %v10167 = vshrl.u32 %v9611, 16
      %v10169 = vrot.slane %v10167, 2
      %v10170 = vshll.u32 %v9611, 16
      %v10172 = vrot.slane %v10170, 3
      %v10173 = vor.u32 %v10169, %v10172
      %v10174 = vsel %vm1603, %v10132, %v10173
      %v10175 = vshrl.u32 %v9674, 16
      %v10177 = vrot.slane %v10175, 2
      %v10178 = vshll.u32 %v9674, 16
      %v10180 = vrot.slane %v10178, 3
      %v10181 = vor.u32 %v10177, %v10180
      %v10182 = vsel %vm1603, %v10140, %v10181
      %v10184 = vshrl.u32 %v9453, 16
      %v10186 = vrot.slane %v10184, 2
      %v10187 = vshll.u32 %v9453, 16
      %v10189 = vrot.slane %v10187, 3
      %v10190 = vor.u32 %v10186, %v10189
      %v10191 = vsel %vm1603, %v10149, %v10190
      %v10192 = vshrl.u32 %v9498, 16
      %v10194 = vrot.slane %v10192, 2
      %v10195 = vshll.u32 %v9498, 16
      %v10197 = vrot.slane %v10195, 3
      %v10198 = vor.u32 %v10194, %v10197
      %v10199 = vsel %vm1603, %v10157, %v10198
      %v10200 = vshrl.u32 %v9551, 16
      %v10202 = vrot.slane %v10200, 2
      %v10203 = vshll.u32 %v9551, 16
      %v10205 = vrot.slane %v10203, 3
      %v10206 = vor.u32 %v10202, %v10205
      %v10207 = vsel %vm1603, %v10165, %v10206
      %v10208 = vshrl.u32 %v9614, 16
      %v10210 = vrot.slane %v10208, 2
      %v10211 = vshll.u32 %v9614, 16
      %v10213 = vrot.slane %v10211, 3
      %v10214 = vor.u32 %v10210, %v10213
      %v10215 = vsel %vm1603, %v10173, %v10214
      %v10216 = vshrl.u32 %v9677, 16
      %v10218 = vrot.slane %v10216, 2
      %v10219 = vshll.u32 %v9677, 16
      %v10221 = vrot.slane %v10219, 3
      %v10222 = vor.u32 %v10218, %v10221
      %v10223 = vsel %vm1603, %v10181, %v10222
      %v10225 = vshrl.u32 %v9455, 16
      %v10227 = vrot.slane %v10225, 2
      %v10228 = vshll.u32 %v9455, 16
      %v10230 = vrot.slane %v10228, 3
      %v10231 = vor.u32 %v10227, %v10230
      %v10232 = vsel %vm1603, %v10190, %v10231
      %v10233 = vshrl.u32 %v9500, 16
      %v10235 = vrot.slane %v10233, 2
      %v10236 = vshll.u32 %v9500, 16
      %v10238 = vrot.slane %v10236, 3
      %v10239 = vor.u32 %v10235, %v10238
      %v10240 = vsel %vm1603, %v10198, %v10239
      %v10241 = vshrl.u32 %v9554, 16
      %v10243 = vrot.slane %v10241, 2
      %v10244 = vshll.u32 %v9554, 16
      %v10246 = vrot.slane %v10244, 3
      %v10247 = vor.u32 %v10243, %v10246
      %v10248 = vsel %vm1603, %v10206, %v10247
      %v10249 = vshrl.u32 %v9617, 16
      %v10251 = vrot.slane %v10249, 2
      %v10252 = vshll.u32 %v9617, 16
      %v10254 = vrot.slane %v10252, 3
      %v10255 = vor.u32 %v10251, %v10254
      %v10256 = vsel %vm1603, %v10214, %v10255
      %v10257 = vshrl.u32 %v9680, 16
      %v10259 = vrot.slane %v10257, 2
      %v10260 = vshll.u32 %v9680, 16
      %v10262 = vrot.slane %v10260, 3
      %v10263 = vor.u32 %v10259, %v10262
      %v10264 = vsel %vm1603, %v10222, %v10263
      %v10266 = vshrl.u32 %v9457, 16
      %v10268 = vrot.slane %v10266, 2
      %v10269 = vshll.u32 %v9457, 16
      %v10271 = vrot.slane %v10269, 3
      %v10272 = vor.u32 %v10268, %v10271
      %v10273 = vsel %vm1603, %v10231, %v10272
      %v10274 = vshrl.u32 %v9502, 16
      %v10276 = vrot.slane %v10274, 2
      %v10277 = vshll.u32 %v9502, 16
      %v10279 = vrot.slane %v10277, 3
      %v10280 = vor.u32 %v10276, %v10279
      %v10281 = vsel %vm1603, %v10239, %v10280
      %v10282 = vshrl.u32 %v9557, 16
      %v10284 = vrot.slane %v10282, 2
      %v10285 = vshll.u32 %v9557, 16
      %v10287 = vrot.slane %v10285, 3
      %v10288 = vor.u32 %v10284, %v10287
      %v10289 = vsel %vm1603, %v10247, %v10288
      %v10290 = vshrl.u32 %v9620, 16
      %v10292 = vrot.slane %v10290, 2
      %v10293 = vshll.u32 %v9620, 16
      %v10295 = vrot.slane %v10293, 3
      %v10296 = vor.u32 %v10292, %v10295
      %v10297 = vsel %vm1603, %v10255, %v10296
      %v10298 = vshrl.u32 %v9683, 16
      %v10300 = vrot.slane %v10298, 2
      %v10301 = vshll.u32 %v9683, 16
      %v10303 = vrot.slane %v10301, 3
      %v10304 = vor.u32 %v10300, %v10303
      %v10305 = vsel %vm1603, %v10263, %v10304
      %v10307 = vshrl.u32 %v9459, 16
      %v10309 = vrot.slane %v10307, 2
      %v10310 = vshll.u32 %v9459, 16
      %v10312 = vrot.slane %v10310, 3
      %v10313 = vor.u32 %v10309, %v10312
      %v10314 = vsel %vm1603, %v10272, %v10313
      %v10315 = vshrl.u32 %v9504, 16
      %v10317 = vrot.slane %v10315, 2
      %v10318 = vshll.u32 %v9504, 16
      %v10320 = vrot.slane %v10318, 3
      %v10321 = vor.u32 %v10317, %v10320
      %v10322 = vsel %vm1603, %v10280, %v10321
      %v10323 = vshrl.u32 %v9560, 16
      %v10325 = vrot.slane %v10323, 2
      %v10326 = vshll.u32 %v9560, 16
      %v10328 = vrot.slane %v10326, 3
      %v10329 = vor.u32 %v10325, %v10328
      %v10330 = vsel %vm1603, %v10288, %v10329
      %v10331 = vshrl.u32 %v9623, 16
      %v10333 = vrot.slane %v10331, 2
      %v10334 = vshll.u32 %v9623, 16
      %v10336 = vrot.slane %v10334, 3
      %v10337 = vor.u32 %v10333, %v10336
      %v10338 = vsel %vm1603, %v10296, %v10337
      %v10339 = vshrl.u32 %v9686, 16
      %v10341 = vrot.slane %v10339, 2
      %v10342 = vshll.u32 %v9686, 16
      %v10344 = vrot.slane %v10342, 3
      %v10345 = vor.u32 %v10341, %v10344
      %v10346 = vsel %vm1603, %v10304, %v10345
      %v10348 = vshrl.u32 %v9461, 16
      %v10350 = vrot.slane %v10348, 2
      %v10351 = vshll.u32 %v9461, 16
      %v10353 = vrot.slane %v10351, 3
      %v10354 = vor.u32 %v10350, %v10353
      %v10355 = vsel %vm1603, %v10313, %v10354
      %v10356 = vshrl.u32 %v9506, 16
      %v10358 = vrot.slane %v10356, 2
      %v10359 = vshll.u32 %v9506, 16
      %v10361 = vrot.slane %v10359, 3
      %v10362 = vor.u32 %v10358, %v10361
      %v10363 = vsel %vm1603, %v10321, %v10362
      %v10364 = vshrl.u32 %v9563, 16
      %v10366 = vrot.slane %v10364, 2
      %v10367 = vshll.u32 %v9563, 16
      %v10369 = vrot.slane %v10367, 3
      %v10370 = vor.u32 %v10366, %v10369
      %v10371 = vsel %vm1603, %v10329, %v10370
      %v10372 = vshrl.u32 %v9626, 16
      %v10374 = vrot.slane %v10372, 2
      %v10375 = vshll.u32 %v9626, 16
      %v10377 = vrot.slane %v10375, 3
      %v10378 = vor.u32 %v10374, %v10377
      %v10379 = vsel %vm1603, %v10337, %v10378
      %v10380 = vshrl.u32 %v9689, 16
      %v10382 = vrot.slane %v10380, 2
      %v10383 = vshll.u32 %v9689, 16
      %v10385 = vrot.slane %v10383, 3
      %v10386 = vor.u32 %v10382, %v10385
      %v10387 = vsel %vm1603, %v10345, %v10386
      %v10389 = vshrl.u32 %v9463, 16
      %v10391 = vrot.slane %v10389, 2
      %v10392 = vshll.u32 %v9463, 16
      %v10394 = vrot.slane %v10392, 3
      %v10395 = vor.u32 %v10391, %v10394
      %v10396 = vsel %vm1603, %v10354, %v10395
      %v10397 = vshrl.u32 %v9508, 16
      %v10399 = vrot.slane %v10397, 2
      %v10400 = vshll.u32 %v9508, 16
      %v10402 = vrot.slane %v10400, 3
      %v10403 = vor.u32 %v10399, %v10402
      %v10404 = vsel %vm1603, %v10362, %v10403
      %v10405 = vshrl.u32 %v9566, 16
      %v10407 = vrot.slane %v10405, 2
      %v10408 = vshll.u32 %v9566, 16
      %v10410 = vrot.slane %v10408, 3
      %v10411 = vor.u32 %v10407, %v10410
      %v10412 = vsel %vm1603, %v10370, %v10411
      %v10413 = vshrl.u32 %v9629, 16
      %v10415 = vrot.slane %v10413, 2
      %v10416 = vshll.u32 %v9629, 16
      %v10418 = vrot.slane %v10416, 3
      %v10419 = vor.u32 %v10415, %v10418
      %v10420 = vsel %vm1603, %v10378, %v10419
      %v10421 = vshrl.u32 %v9692, 16
      %v10423 = vrot.slane %v10421, 2
      %v10424 = vshll.u32 %v9692, 16
      %v10426 = vrot.slane %v10424, 3
      %v10427 = vor.u32 %v10423, %v10426
      %v10428 = vsel %vm1603, %v10386, %v10427
      %v10430 = vshrl.u32 %v9465, 16
      %v10432 = vrot.slane %v10430, 2
      %v10433 = vshll.u32 %v9465, 16
      %v10435 = vrot.slane %v10433, 3
      %v10436 = vor.u32 %v10432, %v10435
      %v10437 = vsel %vm1603, %v10395, %v10436
      %v10438 = vshrl.u32 %v9510, 16
      %v10440 = vrot.slane %v10438, 2
      %v10441 = vshll.u32 %v9510, 16
      %v10443 = vrot.slane %v10441, 3
      %v10444 = vor.u32 %v10440, %v10443
      %v10445 = vsel %vm1603, %v10403, %v10444
      %v10446 = vshrl.u32 %v9569, 16
      %v10448 = vrot.slane %v10446, 2
      %v10449 = vshll.u32 %v9569, 16
      %v10451 = vrot.slane %v10449, 3
      %v10452 = vor.u32 %v10448, %v10451
      %v10453 = vsel %vm1603, %v10411, %v10452
      %v10454 = vshrl.u32 %v9632, 16
      %v10456 = vrot.slane %v10454, 2
      %v10457 = vshll.u32 %v9632, 16
      %v10459 = vrot.slane %v10457, 3
      %v10460 = vor.u32 %v10456, %v10459
      %v10461 = vsel %vm1603, %v10419, %v10460
      %v10462 = vshrl.u32 %v9695, 16
      %v10464 = vrot.slane %v10462, 2
      %v10465 = vshll.u32 %v9695, 16
      %v10467 = vrot.slane %v10465, 3
      %v10468 = vor.u32 %v10464, %v10467
      %v10469 = vsel %vm1603, %v10427, %v10468
      %v10471 = vshrl.u32 %v9467, 16
      %v10473 = vrot.slane %v10471, 2
      %v10474 = vshll.u32 %v9467, 16
      %v10476 = vrot.slane %v10474, 3
      %v10477 = vor.u32 %v10473, %v10476
      %v10478 = vsel %vm1603, %v10436, %v10477
      %v10479 = vshrl.u32 %v9512, 16
      %v10481 = vrot.slane %v10479, 2
      %v10482 = vshll.u32 %v9512, 16
      %v10484 = vrot.slane %v10482, 3
      %v10485 = vor.u32 %v10481, %v10484
      %v10486 = vsel %vm1603, %v10444, %v10485
      %v10487 = vshrl.u32 %v9572, 16
      %v10489 = vrot.slane %v10487, 2
      %v10490 = vshll.u32 %v9572, 16
      %v10492 = vrot.slane %v10490, 3
      %v10493 = vor.u32 %v10489, %v10492
      %v10494 = vsel %vm1603, %v10452, %v10493
      %v10495 = vshrl.u32 %v9635, 16
      %v10497 = vrot.slane %v10495, 2
      %v10498 = vshll.u32 %v9635, 16
      %v10500 = vrot.slane %v10498, 3
      %v10501 = vor.u32 %v10497, %v10500
      %v10502 = vsel %vm1603, %v10460, %v10501
      %v10503 = vshrl.u32 %v9698, 16
      %v10505 = vrot.slane %v10503, 2
      %v10506 = vshll.u32 %v9698, 16
      %v10508 = vrot.slane %v10506, 3
      %v10509 = vor.u32 %v10505, %v10508
      %v10510 = vsel %vm1603, %v10468, %v10509
      %v10512 = vshrl.u32 %v9469, 16
      %v10514 = vrot.slane %v10512, 2
      %v10515 = vshll.u32 %v9469, 16
      %v10517 = vrot.slane %v10515, 3
      %v10518 = vor.u32 %v10514, %v10517
      %v10519 = vsel %vm1603, %v10477, %v10518
      %v10520 = vshrl.u32 %v9514, 16
      %v10522 = vrot.slane %v10520, 2
      %v10523 = vshll.u32 %v9514, 16
      %v10525 = vrot.slane %v10523, 3
      %v10526 = vor.u32 %v10522, %v10525
      %v10527 = vsel %vm1603, %v10485, %v10526
      %v10528 = vshrl.u32 %v9575, 16
      %v10530 = vrot.slane %v10528, 2
      %v10531 = vshll.u32 %v9575, 16
      %v10533 = vrot.slane %v10531, 3
      %v10534 = vor.u32 %v10530, %v10533
      %v10535 = vsel %vm1603, %v10493, %v10534
      %v10536 = vshrl.u32 %v9638, 16
      %v10538 = vrot.slane %v10536, 2
      %v10539 = vshll.u32 %v9638, 16
      %v10541 = vrot.slane %v10539, 3
      %v10542 = vor.u32 %v10538, %v10541
      %v10543 = vsel %vm1603, %v10501, %v10542
      %v10544 = vshrl.u32 %v9701, 16
      %v10546 = vrot.slane %v10544, 2
      %v10547 = vshll.u32 %v9701, 16
      %v10549 = vrot.slane %v10547, 3
      %v10550 = vor.u32 %v10546, %v10549
      %v10551 = vsel %vm1603, %v10509, %v10550
      %v10553 = vshrl.u32 %v9471, 16
      %v10555 = vrot.slane %v10553, 2
      %v10556 = vshll.u32 %v9471, 16
      %v10558 = vrot.slane %v10556, 3
      %v10559 = vor.u32 %v10555, %v10558
      %v10560 = vsel %vm1603, %v10518, %v10559
      %v10561 = vshrl.u32 %v9516, 16
      %v10563 = vrot.slane %v10561, 2
      %v10564 = vshll.u32 %v9516, 16
      %v10566 = vrot.slane %v10564, 3
      %v10567 = vor.u32 %v10563, %v10566
      %v10568 = vsel %vm1603, %v10526, %v10567
      %v10569 = vshrl.u32 %v9578, 16
      %v10571 = vrot.slane %v10569, 2
      %v10572 = vshll.u32 %v9578, 16
      %v10574 = vrot.slane %v10572, 3
      %v10575 = vor.u32 %v10571, %v10574
      %v10576 = vsel %vm1603, %v10534, %v10575
      %v10577 = vshrl.u32 %v9641, 16
      %v10579 = vrot.slane %v10577, 2
      %v10580 = vshll.u32 %v9641, 16
      %v10582 = vrot.slane %v10580, 3
      %v10583 = vor.u32 %v10579, %v10582
      %v10584 = vsel %vm1603, %v10542, %v10583
      %v10585 = vshrl.u32 %v9704, 16
      %v10587 = vrot.slane %v10585, 2
      %v10588 = vshll.u32 %v9704, 16
      %v10590 = vrot.slane %v10588, 3
      %v10591 = vor.u32 %v10587, %v10590
      %v10592 = vsel %vm1603, %v10550, %v10591
      %v10594 = vshrl.u32 %v9473, 16
      %v10596 = vrot.slane %v10594, 2
      %v10597 = vshll.u32 %v9473, 16
      %v10599 = vrot.slane %v10597, 3
      %v10600 = vor.u32 %v10596, %v10599
      %v10601 = vsel %vm1603, %v10559, %v10600
      %v10602 = vshrl.u32 %v9518, 16
      %v10604 = vrot.slane %v10602, 2
      %v10605 = vshll.u32 %v9518, 16
      %v10607 = vrot.slane %v10605, 3
      %v10608 = vor.u32 %v10604, %v10607
      %v10609 = vsel %vm1603, %v10567, %v10608
      %v10610 = vshrl.u32 %v9581, 16
      %v10612 = vrot.slane %v10610, 2
      %v10613 = vshll.u32 %v9581, 16
      %v10615 = vrot.slane %v10613, 3
      %v10616 = vor.u32 %v10612, %v10615
      %v10617 = vsel %vm1603, %v10575, %v10616
      %v10618 = vshrl.u32 %v9644, 16
      %v10620 = vrot.slane %v10618, 2
      %v10621 = vshll.u32 %v9644, 16
      %v10623 = vrot.slane %v10621, 3
      %v10624 = vor.u32 %v10620, %v10623
      %v10625 = vsel %vm1603, %v10583, %v10624
      %v10626 = vshrl.u32 %v9707, 16
      %v10628 = vrot.slane %v10626, 2
      %v10629 = vshll.u32 %v9707, 16
      %v10631 = vrot.slane %v10629, 3
      %v10632 = vor.u32 %v10628, %v10631
      %v10633 = vsel %vm1603, %v10591, %v10632
      %v10635 = vshrl.u32 %v9475, 16
      %v10637 = vrot.slane %v10635, 2
      %v10638 = vshll.u32 %v9475, 16
      %v10640 = vrot.slane %v10638, 3
      %v10641 = vor.u32 %v10637, %v10640
      %v10642 = vsel %vm1603, %v10600, %v10641
      %v10799 = vunpack.c.l.b16 %v9708
      %v10800 = vunpack.c.l.b16 %v9709
      %v10801 = vunpack.c.l.b16 %v9710
      %v10802 = vunpack.c.l.b16 %v9711
      %v10803 = vunpack.c.l.b16 %v9712
      %v10804 = vunpack.c.l.b16 %v9713
      %v10805 = vunpack.c.l.b16 %v9714
      %v10806 = vunpack.c.l.b16 %v9715
      %v10807 = vunpack.c.l.b16 %v9716
      %v10808 = vunpack.c.l.b16 %v9717
      %v10809 = vunpack.c.l.b16 %v9718
      %v10810 = vunpack.c.l.b16 %v9719
      %v10811 = vunpack.c.l.b16 %v9720
      %v10812 = vunpack.c.l.b16 %v9721
      %v10813 = vunpack.c.l.b16 %v9722
      %v10814 = vunpack.c.l.b16 %v9723
      %v10815 = vunpack.c.l.b16 %v9724
      %v10816 = vunpack.c.l.b16 %v9725
      %v10817 = vunpack.c.l.b16 %v9726
      %v10818 = vunpack.c.l.b16 %v9727
      %v10819 = vunpack.c.l.b16 %v9728
      %v10820 = vunpack.c.l.b16 %v9729
      %v10821 = vunpack.c.l.b16 %v9730
      %v10822 = vunpack.c.l.b16 %v9731
      %v10823 = vunpack.c.l.b16 %v9732
      %v10824 = vunpack.c.l.b16 %v9733
      %v10825 = vunpack.c.l.b16 %v9734
      %v10826 = vunpack.c.l.b16 %v9735
      %v10827 = vunpack.c.l.b16 %v9736
      %v10828 = vunpack.c.l.b16 %v9737
      %v10829 = vunpack.c.l.b16 %v9738
      %v10830 = vunpack.c.l.b16 %v9739
      %v10831 = vunpack.c.l.b16 %v9740
      %v10832 = vunpack.c.l.b16 %v9741
      %v10833 = vunpack.c.l.b16 %v9742
      %v10834 = vunpack.c.l.b16 %v9743
      %v10835 = vunpack.c.l.b16 %v9744
      %v10836 = vunpack.c.l.b16 %v9745
      %v10837 = vunpack.c.l.b16 %v9746
      %v10838 = vunpack.c.l.b16 %v9747
      %v10839 = vunpack.c.l.b16 %v9748
      %v10840 = vunpack.c.l.b16 %v9749
      %v10841 = vunpack.c.l.b16 %v9750
      %v10842 = vunpack.c.l.b16 %v9751
      %v10843 = vunpack.c.l.b16 %v9752
      %v10844 = vunpack.c.l.b16 %v9753
      %v10845 = vunpack.c.l.b16 %v9754
      %v10846 = vunpack.c.l.b16 %v9755
      %v10847 = vunpack.c.l.b16 %v9756
      %v10848 = vunpack.c.l.b16 %v9757
      %v10849 = vunpack.c.l.b16 %v9758
      %v10850 = vunpack.c.l.b16 %v9759
      %v10851 = vunpack.c.l.b16 %v9760
      %v10852 = vunpack.c.l.b16 %v9761
      %v10853 = vunpack.c.l.b16 %v9762
      %v10854 = vunpack.c.l.b16 %v9763
      %v10855 = vunpack.c.l.b16 %v9764
      %v10856 = vunpack.c.l.b16 %v9765
      %v10857 = vunpack.c.l.b16 %v9766
      %v10858 = vunpack.c.l.b16 %v9767
      %v10859 = vunpack.c.l.b16 %v9768
      %v10860 = vunpack.c.l.b16 %v9769
      %v10861 = vunpack.c.l.b16 %v9770
      %v10862 = vunpack.c.l.b16 %v9771
      %v10863 = vunpack.c.l.b16 %v9772
      %v10864 = vunpack.c.l.b16 %v9773
      %v10865 = vunpack.c.l.b16 %v9774
      %v10866 = vunpack.c.l.b16 %v9775
      %v10867 = vunpack.c.l.b16 %v9776
      %v10868 = vunpack.c.l.b16 %v9777
      %v10869 = vunpack.c.l.b16 %v9778
      %v10870 = vunpack.c.l.b16 %v9779
      %v10871 = vpack.c.b16 %v10800, %v10799
      %v10872 = vpack.c.b16 %v10802, %v10801
      %v10873 = vpack.c.b16 %v10804, %v10803
      %v10874 = vpack.c.b16 %v10806, %v10805
      %v10875 = vpack.c.b16 %v10808, %v10807
      %v10876 = vpack.c.b16 %v10810, %v10809
      %v10877 = vpack.c.b16 %v10812, %v10811
      %v10878 = vpack.c.b16 %v10814, %v10813
      %v10879 = vpack.c.b16 %v10816, %v10815
      %v10880 = vpack.c.b16 %v10818, %v10817
      %v10881 = vpack.c.b16 %v10820, %v10819
      %v10882 = vpack.c.b16 %v10822, %v10821
      %v10883 = vpack.c.b16 %v10824, %v10823
      %v10884 = vpack.c.b16 %v10826, %v10825
      %v10885 = vpack.c.b16 %v10828, %v10827
      %v10886 = vpack.c.b16 %v10830, %v10829
      %v10887 = vpack.c.b16 %v10832, %v10831
      %v10888 = vpack.c.b16 %v10834, %v10833
      %v10889 = vpack.c.b16 %v10836, %v10835
      %v10890 = vpack.c.b16 %v10838, %v10837
      %v10891 = vpack.c.b16 %v10840, %v10839
      %v10892 = vpack.c.b16 %v10842, %v10841
      %v10893 = vpack.c.b16 %v10844, %v10843
      %v10894 = vpack.c.b16 %v10846, %v10845
      %v10895 = vpack.c.b16 %v10848, %v10847
      %v10896 = vpack.c.b16 %v10850, %v10849
      %v10897 = vpack.c.b16 %v10852, %v10851
      %v10898 = vpack.c.b16 %v10854, %v10853
      %v10899 = vpack.c.b16 %v10856, %v10855
      %v10900 = vpack.c.b16 %v10858, %v10857
      %v10901 = vpack.c.b16 %v10860, %v10859
      %v10902 = vpack.c.b16 %v10862, %v10861
      %v10903 = vpack.c.b16 %v10864, %v10863
      %v10904 = vpack.c.b16 %v10866, %v10865
      %v10905 = vpack.c.b16 %v10868, %v10867
      %v10906 = vpack.c.b16 %v10870, %v10869
      %v10944 = vsel %vm6095, %v9863, 0
      %v10947 = vsel %vm6095, %v9904, 0
      %v10950 = vsel %vm6095, %v9945, 0
      %v10953 = vsel %vm6095, %v9986, 0
      %v10956 = vsel %vm6095, %v10027, 0
      %v10959 = vsel %vm6095, %v10068, 0
      %v10962 = vsel %vm6095, %v10109, 0
      %v10965 = vsel %vm6095, %v10150, 0
      %v10968 = vsel %vm6095, %v10191, 0
      %v10971 = vsel %vm6095, %v10232, 0
      %v10974 = vsel %vm6095, %v10273, 0
      %v10977 = vsel %vm6095, %v10314, 0
      %v10980 = vsel %vm6095, %v10355, 0
      %v10983 = vsel %vm6095, %v10396, 0
      %v10986 = vsel %vm6095, %v10437, 0
      %v10989 = vsel %vm6095, %v10478, 0
      %v10992 = vsel %vm6095, %v10519, 0
      %v10995 = vsel %vm6095, %v10560, 0
      %v10998 = vsel %vm6095, %v10601, 0
      %v11001 = vsel %vm6095, %v10642, 0
      %v11004 = vsel %vm6095, %v10641, 0
      %11006 = vmatprep.subr.bf16.mxu0 0
      %11007 = vmatpush1.bf16.msra.mxu0 %v10878
      %11008 = vmatprep.subr.bf16.mxu0 0
      %11009 = vmatpush1.bf16.msra.mxu0 %v10877
      %11010 = vmatprep.subr.bf16.mxu0 0
      %11011 = vmatpush1.bf16.msra.mxu0 %v10876
      %11012 = vmatprep.subr.bf16.mxu0 0
      %11013 = vmatpush1.bf16.msra.mxu0 %v10875
      %11014 = vmatprep.subr.bf16.mxu0 0
      %11015 = vmatpush1.bf16.msra.mxu0 %v10874
      %11016 = vmatprep.subr.bf16.mxu0 0
      %11017 = vmatpush1.bf16.msra.mxu0 %v10873
      %11018 = vmatprep.subr.bf16.mxu0 0
      %11019 = vmatpush1.bf16.msra.mxu0 %v10872
      %11020 = vmatprep.subr.bf16.mxu0 0
      %11021 = vmatpush1.bf16.msra.mxu0 %v10871
      %11022 = vmatprep.subr.bf16.mxu0 0
      %11023 = vmatpush2.bf16.msra.mxu0 %v10886
      %11024 = vmatprep.subr.bf16.mxu0 0
      %11025 = vmatpush2.bf16.msra.mxu0 %v10885
      %11026 = vmatprep.subr.bf16.mxu0 0
      %11027 = vmatpush2.bf16.msra.mxu0 %v10884
      %11028 = vmatprep.subr.bf16.mxu0 0
      %11029 = vmatpush2.bf16.msra.mxu0 %v10883
      %11030 = vmatprep.subr.bf16.mxu0 0
      %11031 = vmatpush2.bf16.msra.mxu0 %v10882
      %11032 = vmatprep.subr.bf16.mxu0 0
      %11033 = vmatpush2.bf16.msra.mxu0 %v10881
      %11034 = vmatprep.subr.bf16.mxu0 0
      %11035 = vmatpush2.bf16.msra.mxu0 %v10880
      %11036 = vmatprep.subr.bf16.mxu0 0
      %11037 = vmatpush2.bf16.msra.mxu0 %v10879
      %11038 = vmatprep.mubr.bf16.mxu0 %v9816
      %11039 = vmatmul.mubr.bf16.gmra.mxu0 %v9801
      %v11040 = vpop.f32.mrf.mxu0
      %v11041 = vadd.f32 %v9785, %v11040
      %v11042 = vpop.f32.mrf.mxu0
      %v11043 = vpop.f32.mrf.mxu0
      %v11044 = vadd.f32 %v9785, %v11043
      %v11045 = vpop.f32.mrf.mxu0
      %11046 = vmatprep.mubr.bf16.mxu0 %v9879
      %11047 = vmatmul.mubr.bf16.gmra.mxu0 %v9871
      %v11048 = vpop.f32.mrf.mxu0
      %v11049 = vadd.f32 %v9785, %v11048
      %v11050 = vpop.f32.mrf.mxu0
      %v11051 = vpop.f32.mrf.mxu0
      %v11052 = vadd.f32 %v9785, %v11051
      %v11053 = vpop.f32.mrf.mxu0
      %11054 = vmatprep.mubr.bf16.mxu0 %v9920
      %11055 = vmatmul.mubr.bf16.gmra.mxu0 %v9912
      %v11056 = vpop.f32.mrf.mxu0
      %v11057 = vadd.f32 %v9785, %v11056
      %v11058 = vpop.f32.mrf.mxu0
      %v11059 = vpop.f32.mrf.mxu0
      %v11060 = vadd.f32 %v9785, %v11059
      %v11061 = vpop.f32.mrf.mxu0
      %11062 = vmatprep.mubr.bf16.mxu0 %v9961
      %11063 = vmatmul.mubr.bf16.gmra.mxu0 %v9953
      %v11064 = vpop.f32.mrf.mxu0
      %v11065 = vadd.f32 %v9785, %v11064
      %v11066 = vpop.f32.mrf.mxu0
      %v11067 = vpop.f32.mrf.mxu0
      %v11068 = vadd.f32 %v9785, %v11067
      %v11069 = vpop.f32.mrf.mxu0
      %11070 = vmatprep.mubr.bf16.mxu0 %v10002
      %11071 = vmatmul.mubr.bf16.gmra.mxu0 %v9994
      %v11072 = vpop.f32.mrf.mxu0
      %v11073 = vadd.f32 %v9785, %v11072
      %v11074 = vpop.f32.mrf.mxu0
      %v11075 = vpop.f32.mrf.mxu0
      %v11076 = vadd.f32 %v9785, %v11075
      %v11077 = vpop.f32.mrf.mxu0
      %11078 = vmatprep.mubr.bf16.mxu0 %v10043
      %11079 = vmatmul.mubr.bf16.gmra.mxu0 %v10035
      %v11080 = vpop.f32.mrf.mxu0
      %v11081 = vadd.f32 %v9785, %v11080
      %v11082 = vpop.f32.mrf.mxu0
      %v11083 = vpop.f32.mrf.mxu0
      %v11084 = vadd.f32 %v9785, %v11083
      %v11085 = vpop.f32.mrf.mxu0
      %11086 = vmatprep.mubr.bf16.mxu0 %v10084
      %11087 = vmatmul.mubr.bf16.gmra.mxu0 %v10076
      %v11088 = vpop.f32.mrf.mxu0
      %v11089 = vadd.f32 %v9785, %v11088
      %v11090 = vpop.f32.mrf.mxu0
      %v11091 = vpop.f32.mrf.mxu0
      %v11092 = vadd.f32 %v9785, %v11091
      %v11093 = vpop.f32.mrf.mxu0
      %11094 = vmatprep.mubr.bf16.mxu0 %v10125
      %11095 = vmatmul.mubr.bf16.gmra.mxu0 %v10117
      %v11096 = vpop.f32.mrf.mxu0
      %v11097 = vadd.f32 %v9785, %v11096
      %v11098 = vpop.f32.mrf.mxu0
      %v11099 = vpop.f32.mrf.mxu0
      %v11100 = vadd.f32 %v9785, %v11099
      %v11101 = vpop.f32.mrf.mxu0
      %11102 = vmatprep.mubr.bf16.mxu0 %v10166
      %11103 = vmatmul.mubr.bf16.gmra.mxu0 %v10158
      %v11104 = vpop.f32.mrf.mxu0
      %v11105 = vadd.f32 %v9785, %v11104
      %v11106 = vpop.f32.mrf.mxu0
      %v11107 = vpop.f32.mrf.mxu0
      %v11108 = vadd.f32 %v9785, %v11107
      %v11109 = vpop.f32.mrf.mxu0
      %11110 = vmatprep.mubr.bf16.mxu0 %v10207
      %11111 = vmatmul.mubr.bf16.gmra.mxu0 %v10199
      %v11112 = vpop.f32.mrf.mxu0
      %v11113 = vadd.f32 %v9785, %v11112
      %v11114 = vpop.f32.mrf.mxu0
      %v11115 = vpop.f32.mrf.mxu0
      %v11116 = vadd.f32 %v9785, %v11115
      %v11117 = vpop.f32.mrf.mxu0
      %11118 = vmatprep.mubr.bf16.mxu0 %v10248
      %11119 = vmatmul.mubr.bf16.gmra.mxu0 %v10240
      %v11120 = vpop.f32.mrf.mxu0
      %v11121 = vadd.f32 %v9785, %v11120
      %v11122 = vpop.f32.mrf.mxu0
      %v11123 = vpop.f32.mrf.mxu0
      %v11124 = vadd.f32 %v9785, %v11123
      %v11125 = vpop.f32.mrf.mxu0
      %11126 = vmatprep.mubr.bf16.mxu0 %v10289
      %11127 = vmatmul.mubr.bf16.gmra.mxu0 %v10281
      %v11128 = vpop.f32.mrf.mxu0
      %v11129 = vadd.f32 %v9785, %v11128
      %v11130 = vpop.f32.mrf.mxu0
      %v11131 = vpop.f32.mrf.mxu0
      %v11132 = vadd.f32 %v9785, %v11131
      %v11133 = vpop.f32.mrf.mxu0
      %11134 = vmatprep.mubr.bf16.mxu0 %v10330
      %11135 = vmatmul.mubr.bf16.gmra.mxu0 %v10322
      %v11136 = vpop.f32.mrf.mxu0
      %v11137 = vadd.f32 %v9785, %v11136
      %v11138 = vpop.f32.mrf.mxu0
      %v11139 = vpop.f32.mrf.mxu0
      %v11140 = vadd.f32 %v9785, %v11139
      %v11141 = vpop.f32.mrf.mxu0
      %11142 = vmatprep.mubr.bf16.mxu0 %v10371
      %11143 = vmatmul.mubr.bf16.gmra.mxu0 %v10363
      %v11144 = vpop.f32.mrf.mxu0
      %v11145 = vadd.f32 %v9785, %v11144
      %v11146 = vpop.f32.mrf.mxu0
      %v11147 = vpop.f32.mrf.mxu0
      %v11148 = vadd.f32 %v9785, %v11147
      %v11149 = vpop.f32.mrf.mxu0
      %11150 = vmatprep.mubr.bf16.mxu0 %v10412
      %11151 = vmatmul.mubr.bf16.gmra.mxu0 %v10404
      %v11152 = vpop.f32.mrf.mxu0
      %v11153 = vadd.f32 %v9785, %v11152
      %v11154 = vpop.f32.mrf.mxu0
      %v11155 = vpop.f32.mrf.mxu0
      %v11156 = vadd.f32 %v9785, %v11155
      %v11157 = vpop.f32.mrf.mxu0
      %11158 = vmatprep.mubr.bf16.mxu0 %v10453
      %11159 = vmatmul.mubr.bf16.gmra.mxu0 %v10445
      %v11160 = vpop.f32.mrf.mxu0
      %v11161 = vadd.f32 %v9785, %v11160
      %v11162 = vpop.f32.mrf.mxu0
      %v11163 = vpop.f32.mrf.mxu0
      %v11164 = vadd.f32 %v9785, %v11163
      %v11165 = vpop.f32.mrf.mxu0
      %11166 = vmatprep.mubr.bf16.mxu0 %v10494
      %11167 = vmatmul.mubr.bf16.gmra.mxu0 %v10486
      %v11168 = vpop.f32.mrf.mxu0
      %v11169 = vadd.f32 %v9785, %v11168
      %v11170 = vpop.f32.mrf.mxu0
      %v11171 = vpop.f32.mrf.mxu0
      %v11172 = vadd.f32 %v9785, %v11171
      %v11173 = vpop.f32.mrf.mxu0
      %11174 = vmatprep.mubr.bf16.mxu0 %v10535
      %11175 = vmatmul.mubr.bf16.gmra.mxu0 %v10527
      %v11176 = vpop.f32.mrf.mxu0
      %v11177 = vadd.f32 %v9785, %v11176
      %v11178 = vpop.f32.mrf.mxu0
      %v11179 = vpop.f32.mrf.mxu0
      %v11180 = vadd.f32 %v9785, %v11179
      %v11181 = vpop.f32.mrf.mxu0
      %11182 = vmatprep.mubr.bf16.mxu0 %v10576
      %11183 = vmatmul.mubr.bf16.gmra.mxu0 %v10568
      %v11184 = vpop.f32.mrf.mxu0
      %v11185 = vadd.f32 %v9785, %v11184
      %v11186 = vpop.f32.mrf.mxu0
      %v11187 = vpop.f32.mrf.mxu0
      %v11188 = vadd.f32 %v9785, %v11187
      %v11189 = vpop.f32.mrf.mxu0
      %11190 = vmatprep.mubr.bf16.mxu0 %v10617
      %11191 = vmatmul.mubr.bf16.gmra.mxu0 %v10609
      %v11192 = vpop.f32.mrf.mxu0
      %v11193 = vadd.f32 %v9785, %v11192
      %v11194 = vpop.f32.mrf.mxu0
      %v11195 = vpop.f32.mrf.mxu0
      %v11196 = vadd.f32 %v9785, %v11195
      %v11197 = vpop.f32.mrf.mxu0
      %11198 = vmatprep.mubr.bf16.mxu0 %v10616
      %11199 = vmatmul.mubr.bf16.gmra.mxu0 %v10608
      %v11200 = vpop.f32.mrf.mxu0
      %v11201 = vadd.f32 %v9785, %v11200
      %v11202 = vpop.f32.mrf.mxu0
      %v11203 = vpop.f32.mrf.mxu0
      %v11204 = vpop.f32.mrf.mxu0
      %11205 = vdwg.mxu0
      %11206 = vmatprep.subr.bf16.mxu0 0
      %11207 = vmatpush1.bf16.msra.mxu0 %v10894
      %11208 = vmatprep.subr.bf16.mxu0 0
      %11209 = vmatpush1.bf16.msra.mxu0 %v10893
      %11210 = vmatprep.subr.bf16.mxu0 0
      %11211 = vmatpush1.bf16.msra.mxu0 %v10892
      %11212 = vmatprep.subr.bf16.mxu0 0
      %11213 = vmatpush1.bf16.msra.mxu0 %v10891
      %11214 = vmatprep.subr.bf16.mxu0 0
      %11215 = vmatpush1.bf16.msra.mxu0 %v10890
      %11216 = vmatprep.subr.bf16.mxu0 0
      %11217 = vmatpush1.bf16.msra.mxu0 %v10889
      %11218 = vmatprep.subr.bf16.mxu0 0
      %11219 = vmatpush1.bf16.msra.mxu0 %v10888
      %11220 = vmatprep.subr.bf16.mxu0 0
      %11221 = vmatpush1.bf16.msra.mxu0 %v10887
      %11222 = vmatprep.subr.bf16.mxu0 0
      %11223 = vmatpush2.bf16.msra.mxu0 %v10902
      %11224 = vmatprep.subr.bf16.mxu0 0
      %11225 = vmatpush2.bf16.msra.mxu0 %v10901
      %11226 = vmatprep.subr.bf16.mxu0 0
      %11227 = vmatpush2.bf16.msra.mxu0 %v10900
      %11228 = vmatprep.subr.bf16.mxu0 0
      %11229 = vmatpush2.bf16.msra.mxu0 %v10899
      %11230 = vmatprep.subr.bf16.mxu0 0
      %11231 = vmatpush2.bf16.msra.mxu0 %v10898
      %11232 = vmatprep.subr.bf16.mxu0 0
      %11233 = vmatpush2.bf16.msra.mxu0 %v10897
      %11234 = vmatprep.subr.bf16.mxu0 0
      %11235 = vmatpush2.bf16.msra.mxu0 %v10896
      %11236 = vmatprep.subr.bf16.mxu0 0
      %11237 = vmatpush2.bf16.msra.mxu0 %v10895
      %11238 = vmatprep.mubr.bf16.mxu0 %v9846
      %11239 = vmatmul.mubr.bf16.gmra.mxu0 %v9831
      %v11240 = vpop.f32.mrf.mxu0
      %v11241 = vadd.f32 %v11041, %v11240
      %v11242 = vpop.f32.mrf.mxu0
      %v11243 = vpop.f32.mrf.mxu0
      %v11244 = vadd.f32 %v11044, %v11243
      %v11245 = vpop.f32.mrf.mxu0
      %11246 = vmatprep.mubr.bf16.mxu0 %v9895
      %11247 = vmatmul.mubr.bf16.gmra.mxu0 %v9887
      %v11248 = vpop.f32.mrf.mxu0
      %v11249 = vadd.f32 %v11049, %v11248
      %v11250 = vpop.f32.mrf.mxu0
      %v11251 = vpop.f32.mrf.mxu0
      %v11252 = vadd.f32 %v11052, %v11251
      %v11253 = vpop.f32.mrf.mxu0
      %11254 = vmatprep.mubr.bf16.mxu0 %v9936
      %11255 = vmatmul.mubr.bf16.gmra.mxu0 %v9928
      %v11256 = vpop.f32.mrf.mxu0
      %v11257 = vadd.f32 %v11057, %v11256
      %v11258 = vpop.f32.mrf.mxu0
      %v11259 = vpop.f32.mrf.mxu0
      %v11260 = vadd.f32 %v11060, %v11259
      %v11261 = vpop.f32.mrf.mxu0
      %11262 = vmatprep.mubr.bf16.mxu0 %v9977
      %11263 = vmatmul.mubr.bf16.gmra.mxu0 %v9969
      %v11264 = vpop.f32.mrf.mxu0
      %v11265 = vadd.f32 %v11065, %v11264
      %v11266 = vpop.f32.mrf.mxu0
      %v11267 = vpop.f32.mrf.mxu0
      %v11268 = vadd.f32 %v11068, %v11267
      %v11269 = vpop.f32.mrf.mxu0
      %11270 = vmatprep.mubr.bf16.mxu0 %v10018
      %11271 = vmatmul.mubr.bf16.gmra.mxu0 %v10010
      %v11272 = vpop.f32.mrf.mxu0
      %v11273 = vadd.f32 %v11073, %v11272
      %v11274 = vpop.f32.mrf.mxu0
      %v11275 = vpop.f32.mrf.mxu0
      %v11276 = vadd.f32 %v11076, %v11275
      %v11277 = vpop.f32.mrf.mxu0
      %11278 = vmatprep.mubr.bf16.mxu0 %v10059
      %11279 = vmatmul.mubr.bf16.gmra.mxu0 %v10051
      %v11280 = vpop.f32.mrf.mxu0
      %v11281 = vadd.f32 %v11081, %v11280
      %v11282 = vpop.f32.mrf.mxu0
      %v11283 = vpop.f32.mrf.mxu0
      %v11284 = vadd.f32 %v11084, %v11283
      %v11285 = vpop.f32.mrf.mxu0
      %11286 = vmatprep.mubr.bf16.mxu0 %v10100
      %11287 = vmatmul.mubr.bf16.gmra.mxu0 %v10092
      %v11288 = vpop.f32.mrf.mxu0
      %v11289 = vadd.f32 %v11089, %v11288
      %v11290 = vpop.f32.mrf.mxu0
      %v11291 = vpop.f32.mrf.mxu0
      %v11292 = vadd.f32 %v11092, %v11291
      %v11293 = vpop.f32.mrf.mxu0
      %11294 = vmatprep.mubr.bf16.mxu0 %v10141
      %11295 = vmatmul.mubr.bf16.gmra.mxu0 %v10133
      %v11296 = vpop.f32.mrf.mxu0
      %v11297 = vadd.f32 %v11097, %v11296
      %v11298 = vpop.f32.mrf.mxu0
      %v11299 = vpop.f32.mrf.mxu0
      %v11300 = vadd.f32 %v11100, %v11299
      %v11301 = vpop.f32.mrf.mxu0
      %11302 = vmatprep.mubr.bf16.mxu0 %v10182
      %11303 = vmatmul.mubr.bf16.gmra.mxu0 %v10174
      %v11304 = vpop.f32.mrf.mxu0
      %v11305 = vadd.f32 %v11105, %v11304
      %v11306 = vpop.f32.mrf.mxu0
      %v11307 = vpop.f32.mrf.mxu0
      %v11308 = vadd.f32 %v11108, %v11307
      %v11309 = vpop.f32.mrf.mxu0
      %11310 = vmatprep.mubr.bf16.mxu0 %v10223
      %11311 = vmatmul.mubr.bf16.gmra.mxu0 %v10215
      %v11312 = vpop.f32.mrf.mxu0
      %v11313 = vadd.f32 %v11113, %v11312
      %v11314 = vpop.f32.mrf.mxu0
      %v11315 = vpop.f32.mrf.mxu0
      %v11316 = vadd.f32 %v11116, %v11315
      %v11317 = vpop.f32.mrf.mxu0
      %11318 = vmatprep.mubr.bf16.mxu0 %v10264
      %11319 = vmatmul.mubr.bf16.gmra.mxu0 %v10256
      %v11320 = vpop.f32.mrf.mxu0
      %v11321 = vadd.f32 %v11121, %v11320
      %v11322 = vpop.f32.mrf.mxu0
      %v11323 = vpop.f32.mrf.mxu0
      %v11324 = vadd.f32 %v11124, %v11323
      %v11325 = vpop.f32.mrf.mxu0
      %11326 = vmatprep.mubr.bf16.mxu0 %v10305
      %11327 = vmatmul.mubr.bf16.gmra.mxu0 %v10297
      %v11328 = vpop.f32.mrf.mxu0
      %v11329 = vadd.f32 %v11129, %v11328
      %v11330 = vpop.f32.mrf.mxu0
      %v11331 = vpop.f32.mrf.mxu0
      %v11332 = vadd.f32 %v11132, %v11331
      %v11333 = vpop.f32.mrf.mxu0
      %11334 = vmatprep.mubr.bf16.mxu0 %v10346
      %11335 = vmatmul.mubr.bf16.gmra.mxu0 %v10338
      %v11336 = vpop.f32.mrf.mxu0
      %v11337 = vadd.f32 %v11137, %v11336
      %v11338 = vpop.f32.mrf.mxu0
      %v11339 = vpop.f32.mrf.mxu0
      %v11340 = vadd.f32 %v11140, %v11339
      %v11341 = vpop.f32.mrf.mxu0
      %11342 = vmatprep.mubr.bf16.mxu0 %v10387
      %11343 = vmatmul.mubr.bf16.gmra.mxu0 %v10379
      %v11344 = vpop.f32.mrf.mxu0
      %v11345 = vadd.f32 %v11145, %v11344
      %v11346 = vpop.f32.mrf.mxu0
      %v11347 = vpop.f32.mrf.mxu0
      %v11348 = vadd.f32 %v11148, %v11347
      %v11349 = vpop.f32.mrf.mxu0
      %11350 = vmatprep.mubr.bf16.mxu0 %v10428
      %11351 = vmatmul.mubr.bf16.gmra.mxu0 %v10420
      %v11352 = vpop.f32.mrf.mxu0
      %v11353 = vadd.f32 %v11153, %v11352
      %v11354 = vpop.f32.mrf.mxu0
      %v11355 = vpop.f32.mrf.mxu0
      %v11356 = vadd.f32 %v11156, %v11355
      %v11357 = vpop.f32.mrf.mxu0
      %11358 = vmatprep.mubr.bf16.mxu0 %v10469
      %11359 = vmatmul.mubr.bf16.gmra.mxu0 %v10461
      %v11360 = vpop.f32.mrf.mxu0
      %v11361 = vadd.f32 %v11161, %v11360
      %v11362 = vpop.f32.mrf.mxu0
      %v11363 = vpop.f32.mrf.mxu0
      %v11364 = vadd.f32 %v11164, %v11363
      %v11365 = vpop.f32.mrf.mxu0
      %11366 = vmatprep.mubr.bf16.mxu0 %v10510
      %11367 = vmatmul.mubr.bf16.gmra.mxu0 %v10502
      %v11368 = vpop.f32.mrf.mxu0
      %v11369 = vadd.f32 %v11169, %v11368
      %v11370 = vpop.f32.mrf.mxu0
      %v11371 = vpop.f32.mrf.mxu0
      %v11372 = vadd.f32 %v11172, %v11371
      %v11373 = vpop.f32.mrf.mxu0
      %11374 = vmatprep.mubr.bf16.mxu0 %v10551
      %11375 = vmatmul.mubr.bf16.gmra.mxu0 %v10543
      %v11376 = vpop.f32.mrf.mxu0
      %v11377 = vadd.f32 %v11177, %v11376
      %v11378 = vpop.f32.mrf.mxu0
      %v11379 = vpop.f32.mrf.mxu0
      %v11380 = vadd.f32 %v11180, %v11379
      %v11381 = vpop.f32.mrf.mxu0
      %11382 = vmatprep.mubr.bf16.mxu0 %v10592
      %11383 = vmatmul.mubr.bf16.gmra.mxu0 %v10584
      %v11384 = vpop.f32.mrf.mxu0
      %v11385 = vadd.f32 %v11185, %v11384
      %v11386 = vpop.f32.mrf.mxu0
      %v11387 = vpop.f32.mrf.mxu0
      %v11388 = vadd.f32 %v11188, %v11387
      %v11389 = vpop.f32.mrf.mxu0
      %11390 = vmatprep.mubr.bf16.mxu0 %v10633
      %11391 = vmatmul.mubr.bf16.gmra.mxu0 %v10625
      %v11392 = vpop.f32.mrf.mxu0
      %v11393 = vadd.f32 %v11193, %v11392
      %v11394 = vpop.f32.mrf.mxu0
      %v11395 = vpop.f32.mrf.mxu0
      %v11396 = vadd.f32 %v11196, %v11395
      %v11397 = vpop.f32.mrf.mxu0
      %11398 = vmatprep.mubr.bf16.mxu0 %v10632
      %11399 = vmatmul.mubr.bf16.gmra.mxu0 %v10624
      %v11400 = vpop.f32.mrf.mxu0
      %v11401 = vadd.f32 %v11201, %v11400
      %v11402 = vpop.f32.mrf.mxu0
      %v11403 = vpop.f32.mrf.mxu0
      %v11404 = vpop.f32.mrf.mxu0
      %11405 = vdwg.mxu0
      %11406 = vmatprep.subr.bf16.mxu0 0
      %11407 = vmatpush1.bf16.msra.mxu0 0
      %11408 = vmatprep.subr.bf16.mxu0 0
      %11409 = vmatpush1.bf16.msra.mxu0 0
      %11410 = vmatprep.subr.bf16.mxu0 0
      %11411 = vmatpush1.bf16.msra.mxu0 0
      %11412 = vmatprep.subr.bf16.mxu0 0
      %11413 = vmatpush1.bf16.msra.mxu0 0
      %11414 = vmatprep.subr.bf16.mxu0 0
      %11415 = vmatpush1.bf16.msra.mxu0 %v10906
      %11416 = vmatprep.subr.bf16.mxu0 0
      %11417 = vmatpush1.bf16.msra.mxu0 %v10905
      %11418 = vmatprep.subr.bf16.mxu0 0
      %11419 = vmatpush1.bf16.msra.mxu0 %v10904
      %11420 = vmatprep.subr.bf16.mxu0 0
      %11421 = vmatpush1.bf16.msra.mxu0 %v10903
      %11422 = vmatprep.subr.bf16.mxu0 0
      %11423 = vmatpush2.bf16.msra.mxu0 0
      %11424 = vmatprep.subr.bf16.mxu0 0
      %11425 = vmatpush2.bf16.msra.mxu0 0
      %11426 = vmatprep.subr.bf16.mxu0 0
      %11427 = vmatpush2.bf16.msra.mxu0 0
      %11428 = vmatprep.subr.bf16.mxu0 0
      %11429 = vmatpush2.bf16.msra.mxu0 0
      %11430 = vmatprep.subr.bf16.mxu0 0
      %11431 = vmatpush2.bf16.msra.mxu0 0
      %11432 = vmatprep.subr.bf16.mxu0 0
      %11433 = vmatpush2.bf16.msra.mxu0 0
      %11434 = vmatprep.subr.bf16.mxu0 0
      %11435 = vmatpush2.bf16.msra.mxu0 0
      %11436 = vmatprep.subr.bf16.mxu0 0
      %11437 = vmatpush2.bf16.msra.mxu0 0
      %11438 = vmatprep.mubr.bf16.mxu0 0
      %11439 = vmatmul.mubr.bf16.gmra.mxu0 %v10944
      %v11440 = vpop.f32.mrf.mxu0
      %v11441 = vadd.f32 %v11241, %v11440
      %v11442 = vpop.f32.mrf.mxu0
      %v11443 = vpop.f32.mrf.mxu0
      %v11444 = vadd.f32 %v11244, %v11443
      %v11445 = vpop.f32.mrf.mxu0
      %11446 = vmatprep.mubr.bf16.mxu0 0
      %11447 = vmatmul.mubr.bf16.gmra.mxu0 %v10947
      %v11448 = vpop.f32.mrf.mxu0
      %v11449 = vadd.f32 %v11249, %v11448
      %v11450 = vpop.f32.mrf.mxu0
      %v11451 = vpop.f32.mrf.mxu0
      %v11452 = vadd.f32 %v11252, %v11451
      %v11453 = vpop.f32.mrf.mxu0
      %11454 = vmatprep.mubr.bf16.mxu0 0
      %11455 = vmatmul.mubr.bf16.gmra.mxu0 %v10950
      %v11456 = vpop.f32.mrf.mxu0
      %v11457 = vadd.f32 %v11257, %v11456
      %v11458 = vpop.f32.mrf.mxu0
      %v11459 = vpop.f32.mrf.mxu0
      %v11460 = vadd.f32 %v11260, %v11459
      %v11461 = vpop.f32.mrf.mxu0
      %11462 = vmatprep.mubr.bf16.mxu0 0
      %11463 = vmatmul.mubr.bf16.gmra.mxu0 %v10953
      %v11464 = vpop.f32.mrf.mxu0
      %v11465 = vadd.f32 %v11265, %v11464
      %v11466 = vpop.f32.mrf.mxu0
      %v11467 = vpop.f32.mrf.mxu0
      %v11468 = vadd.f32 %v11268, %v11467
      %v11469 = vpop.f32.mrf.mxu0
      %11470 = vmatprep.mubr.bf16.mxu0 0
      %11471 = vmatmul.mubr.bf16.gmra.mxu0 %v10956
      %v11472 = vpop.f32.mrf.mxu0
      %v11473 = vadd.f32 %v11273, %v11472
      %v11474 = vpop.f32.mrf.mxu0
      %v11475 = vpop.f32.mrf.mxu0
      %v11476 = vadd.f32 %v11276, %v11475
      %v11477 = vpop.f32.mrf.mxu0
      %11478 = vmatprep.mubr.bf16.mxu0 0
      %11479 = vmatmul.mubr.bf16.gmra.mxu0 %v10959
      %v11480 = vpop.f32.mrf.mxu0
      %v11481 = vadd.f32 %v11281, %v11480
      %v11482 = vpop.f32.mrf.mxu0
      %v11483 = vpop.f32.mrf.mxu0
      %v11484 = vadd.f32 %v11284, %v11483
      %v11485 = vpop.f32.mrf.mxu0
      %11486 = vmatprep.mubr.bf16.mxu0 0
      %11487 = vmatmul.mubr.bf16.gmra.mxu0 %v10962
      %v11488 = vpop.f32.mrf.mxu0
      %v11489 = vadd.f32 %v11289, %v11488
      %v11490 = vpop.f32.mrf.mxu0
      %v11491 = vpop.f32.mrf.mxu0
      %v11492 = vadd.f32 %v11292, %v11491
      %v11493 = vpop.f32.mrf.mxu0
      %11494 = vmatprep.mubr.bf16.mxu0 0
      %11495 = vmatmul.mubr.bf16.gmra.mxu0 %v10965
      %v11496 = vpop.f32.mrf.mxu0
      %v11497 = vadd.f32 %v11297, %v11496
      %v11498 = vpop.f32.mrf.mxu0
      %v11499 = vpop.f32.mrf.mxu0
      %v11500 = vadd.f32 %v11300, %v11499
      %v11501 = vpop.f32.mrf.mxu0
      %11502 = vmatprep.mubr.bf16.mxu0 0
      %11503 = vmatmul.mubr.bf16.gmra.mxu0 %v10968
      %v11504 = vpop.f32.mrf.mxu0
      %v11505 = vadd.f32 %v11305, %v11504
      %v11506 = vpop.f32.mrf.mxu0
      %v11507 = vpop.f32.mrf.mxu0
      %v11508 = vadd.f32 %v11308, %v11507
      %v11509 = vpop.f32.mrf.mxu0
      %11510 = vmatprep.mubr.bf16.mxu0 0
      %11511 = vmatmul.mubr.bf16.gmra.mxu0 %v10971
      %v11512 = vpop.f32.mrf.mxu0
      %v11513 = vadd.f32 %v11313, %v11512
      %v11514 = vpop.f32.mrf.mxu0
      %v11515 = vpop.f32.mrf.mxu0
      %v11516 = vadd.f32 %v11316, %v11515
      %v11517 = vpop.f32.mrf.mxu0
      %11518 = vmatprep.mubr.bf16.mxu0 0
      %11519 = vmatmul.mubr.bf16.gmra.mxu0 %v10974
      %v11520 = vpop.f32.mrf.mxu0
      %v11521 = vadd.f32 %v11321, %v11520
      %v11522 = vpop.f32.mrf.mxu0
      %v11523 = vpop.f32.mrf.mxu0
      %v11524 = vadd.f32 %v11324, %v11523
      %v11525 = vpop.f32.mrf.mxu0
      %11526 = vmatprep.mubr.bf16.mxu0 0
      %11527 = vmatmul.mubr.bf16.gmra.mxu0 %v10977
      %v11528 = vpop.f32.mrf.mxu0
      %v11529 = vadd.f32 %v11329, %v11528
      %v11530 = vpop.f32.mrf.mxu0
      %v11531 = vpop.f32.mrf.mxu0
      %v11532 = vadd.f32 %v11332, %v11531
      %v11533 = vpop.f32.mrf.mxu0
      %11534 = vmatprep.mubr.bf16.mxu0 0
      %11535 = vmatmul.mubr.bf16.gmra.mxu0 %v10980
      %v11536 = vpop.f32.mrf.mxu0
      %v11537 = vadd.f32 %v11337, %v11536
      %v11538 = vpop.f32.mrf.mxu0
      %v11539 = vpop.f32.mrf.mxu0
      %v11540 = vadd.f32 %v11340, %v11539
      %v11541 = vpop.f32.mrf.mxu0
      %11542 = vmatprep.mubr.bf16.mxu0 0
      %11543 = vmatmul.mubr.bf16.gmra.mxu0 %v10983
      %v11544 = vpop.f32.mrf.mxu0
      %v11545 = vadd.f32 %v11345, %v11544
      %v11546 = vpop.f32.mrf.mxu0
      %v11547 = vpop.f32.mrf.mxu0
      %v11548 = vadd.f32 %v11348, %v11547
      %v11549 = vpop.f32.mrf.mxu0
      %11550 = vmatprep.mubr.bf16.mxu0 0
      %11551 = vmatmul.mubr.bf16.gmra.mxu0 %v10986
      %v11552 = vpop.f32.mrf.mxu0
      %v11553 = vadd.f32 %v11353, %v11552
      %v11554 = vpop.f32.mrf.mxu0
      %v11555 = vpop.f32.mrf.mxu0
      %v11556 = vadd.f32 %v11356, %v11555
      %v11557 = vpop.f32.mrf.mxu0
      %11558 = vmatprep.mubr.bf16.mxu0 0
      %11559 = vmatmul.mubr.bf16.gmra.mxu0 %v10989
      %v11560 = vpop.f32.mrf.mxu0
      %v11561 = vadd.f32 %v11361, %v11560
      %v11562 = vpop.f32.mrf.mxu0
      %v11563 = vpop.f32.mrf.mxu0
      %v11564 = vadd.f32 %v11364, %v11563
      %v11565 = vpop.f32.mrf.mxu0
      %11566 = vmatprep.mubr.bf16.mxu0 0
      %11567 = vmatmul.mubr.bf16.gmra.mxu0 %v10992
      %v11568 = vpop.f32.mrf.mxu0
      %v11569 = vadd.f32 %v11369, %v11568
      %v11570 = vpop.f32.mrf.mxu0
      %v11571 = vpop.f32.mrf.mxu0
      %v11572 = vadd.f32 %v11372, %v11571
      %v11573 = vpop.f32.mrf.mxu0
      %11574 = vmatprep.mubr.bf16.mxu0 0
      %11575 = vmatmul.mubr.bf16.gmra.mxu0 %v10995
      %v11576 = vpop.f32.mrf.mxu0
      %v11577 = vadd.f32 %v11377, %v11576
      %v11578 = vpop.f32.mrf.mxu0
      %v11579 = vpop.f32.mrf.mxu0
      %v11580 = vadd.f32 %v11380, %v11579
      %v11581 = vpop.f32.mrf.mxu0
      %11582 = vmatprep.mubr.bf16.mxu0 0
      %11583 = vmatmul.mubr.bf16.gmra.mxu0 %v10998
      %v11584 = vpop.f32.mrf.mxu0
      %v11585 = vadd.f32 %v11385, %v11584
      %v11586 = vpop.f32.mrf.mxu0
      %v11587 = vpop.f32.mrf.mxu0
      %v11588 = vadd.f32 %v11388, %v11587
      %v11589 = vpop.f32.mrf.mxu0
      %11590 = vmatprep.mubr.bf16.mxu0 0
      %11591 = vmatmul.mubr.bf16.gmra.mxu0 %v11001
      %v11592 = vpop.f32.mrf.mxu0
      %v11593 = vadd.f32 %v11393, %v11592
      %v11594 = vpop.f32.mrf.mxu0
      %v11595 = vpop.f32.mrf.mxu0
      %v11596 = vadd.f32 %v11396, %v11595
      %v11597 = vpop.f32.mrf.mxu0
      %11598 = vmatprep.mubr.bf16.mxu0 0
      %11599 = vmatmul.mubr.bf16.gmra.mxu0 %v11004
      %v11600 = vpop.f32.mrf.mxu0
      %v11601 = vadd.f32 %v11401, %v11600
      %v11602 = vpop.f32.mrf.mxu0
      %v11603 = vpop.f32.mrf.mxu0
      %v11604 = vpop.f32.mrf.mxu0
      %11605 = vdwg.mxu0
      %11606 = vst.msk [vmem:[%s305] sm:$0xff] %vm6095, %v11441
      %11607 = vst.msk [vmem:[%s305 + $0x8] sm:$0xff] %vm6095, %v11444
      %11608 = vst.msk [vmem:[%s305 + $0x10] sm:$0xff] %vm6095, %v11449
      %11609 = vst.msk [vmem:[%s305 + $0x18] sm:$0xff] %vm6095, %v11452
      %11610 = vst.msk [vmem:[%s305 + $0x20] sm:$0xff] %vm6095, %v11457
      %11611 = vst.msk [vmem:[%s305 + $0x28] sm:$0xff] %vm6095, %v11460
      %11612 = vst.msk [vmem:[%s305 + $0x30] sm:$0xff] %vm6095, %v11465
      %11613 = vst.msk [vmem:[%s305 + $0x38] sm:$0xff] %vm6095, %v11468
      %11614 = vst.msk [vmem:[%s305 + $0x40] sm:$0xff] %vm6095, %v11473
      %11615 = vst.msk [vmem:[%s305 + $0x48] sm:$0xff] %vm6095, %v11476
      %11616 = vst.msk [vmem:[%s305 + $0x50] sm:$0xff] %vm6095, %v11481
      %11617 = vst.msk [vmem:[%s305 + $0x58] sm:$0xff] %vm6095, %v11484
      %11618 = vst.msk [vmem:[%s305 + $0x60] sm:$0xff] %vm6095, %v11489
      %11619 = vst.msk [vmem:[%s305 + $0x68] sm:$0xff] %vm6095, %v11492
      %11620 = vst.msk [vmem:[%s305 + $0x70] sm:$0xff] %vm6095, %v11497
      %11621 = vst.msk [vmem:[%s305 + $0x78] sm:$0xff] %vm6095, %v11500
      %11622 = vst.msk [vmem:[%s305 + $0x80] sm:$0xff] %vm6095, %v11505
      %11623 = vst.msk [vmem:[%s305 + $0x88] sm:$0xff] %vm6095, %v11508
      %11624 = vst.msk [vmem:[%s305 + $0x90] sm:$0xff] %vm6095, %v11513
      %11625 = vst.msk [vmem:[%s305 + $0x98] sm:$0xff] %vm6095, %v11516
      %11626 = vst.msk [vmem:[%s305 + $0xa0] sm:$0xff] %vm6095, %v11521
      %11627 = vst.msk [vmem:[%s305 + $0xa8] sm:$0xff] %vm6095, %v11524
      %11628 = vst.msk [vmem:[%s305 + $0xb0] sm:$0xff] %vm6095, %v11529
      %11629 = vst.msk [vmem:[%s305 + $0xb8] sm:$0xff] %vm6095, %v11532
      %11630 = vst.msk [vmem:[%s305 + $0xc0] sm:$0xff] %vm6095, %v11537
      %11631 = vst.msk [vmem:[%s305 + $0xc8] sm:$0xff] %vm6095, %v11540
      %11632 = vst.msk [vmem:[%s305 + $0xd0] sm:$0xff] %vm6095, %v11545
      %11633 = vst.msk [vmem:[%s305 + $0xd8] sm:$0xff] %vm6095, %v11548
      %11634 = vst.msk [vmem:[%s305 + $0xe0] sm:$0xff] %vm6095, %v11553
      %11635 = vst.msk [vmem:[%s305 + $0xe8] sm:$0xff] %vm6095, %v11556
      %11636 = vst.msk [vmem:[%s305 + $0xf0] sm:$0xff] %vm6095, %v11561
      %11637 = vst.msk [vmem:[%s305 + $0xf8] sm:$0xff] %vm6095, %v11564
      %11638 = vst.msk [vmem:[%s305 + $0x100] sm:$0xff] %vm6095, %v11569
      %11639 = vst.msk [vmem:[%s305 + $0x108] sm:$0xff] %vm6095, %v11572
      %11640 = vst.msk [vmem:[%s305 + $0x110] sm:$0xff] %vm6095, %v11577
      %11641 = vst.msk [vmem:[%s305 + $0x118] sm:$0xff] %vm6095, %v11580
      %11642 = vst.msk [vmem:[%s305 + $0x120] sm:$0xff] %vm6095, %v11585
      %11643 = vst.msk [vmem:[%s305 + $0x128] sm:$0xff] %vm6095, %v11588
      %11644 = vst.msk [vmem:[%s305 + $0x130] sm:$0xff] %vm6095, %v11593
      %11645 = vst.msk [vmem:[%s305 + $0x138] sm:$0xff] %vm6095, %v11596
      %11646 = vst.msk [vmem:[%s305 + $0x140] sm:$0xff] %vm6095, %v11601
      %p11647 = scmp.lt.s32.totalorder %s19, 1
      %s11648 = scalar_select %p11647, %s19, 1
      %s11649 = smul.addr %s11648, 41
      %s11650 = smul.addr %s11649, 8
      %s11651 = scalar_lea.vmem %s8, %s11650
      // Predicated region
      $region53: #{denoise_forward.1} parent=51 // pred_check
        %p11652 = pneg %p210
      $region54: #{denoise_forward.1} parent=51 // pred_check_branch
        %11654 = sbr.rel (%p11652) target = $region56
      $region55: #{denoise_forward.1} parent=51 // pred_region
        _
      $region56: #{denoise_forward.1} parent=51 // pred_fallthru
        _
    $region52: #{denoise_forward.1} parent=5 // pred_fallthru
      _
    %p11655 = scmp.le.s32.totalorder 2, %s14
    // Predicated region
    $region57: #{denoise_forward.1} parent=5 // pred_check
      %p11656 = pneg %p11655
    $region58: #{denoise_forward.1} parent=5 // pred_check_branch
      %11658 = sbr.rel (%p11656) target = $region60
    $region59: #{denoise_forward.1} parent=5 // pred_region
      %s11659 = ssub.s32 %s14, 2
      // Predicated region
      $region61: #{denoise_forward.1} parent=59 // pred_check
        %p11660 = pneg %p216
      $region62: #{denoise_forward.1} parent=59 // pred_check_branch
        %11662 = sbr.rel (%p11660) target = $region64
      $region63: #{denoise_forward.1} parent=59 // pred_region
        %p11663 = scmp.lt.s32.totalorder %s20, 1
        %s11664 = scalar_select %p11663, %s20, 1
        %s11665 = smul.addr %s11664, 41
        %s11666 = smul.addr %s11665, 8
        %s11667 = scalar_lea.vmem %s8, %s11666
      $region64: #{denoise_forward.1} parent=59 // pred_fallthru
        _
    $region60: #{denoise_forward.1} parent=5 // pred_fallthru
      _
  $region6: #{denoise_forward.1} parent=0 // loop_footer
    %s18 = sadd.s32 1, %s14
  $region7: #{denoise_forward.1} parent=0 // loop_footer_branch
    %13 = sbr.rel target = $region3
  $region8: #{denoise_forward.1} parent=0 // loop_exit
    _

</llo_original>
